<compile_context>
chip_gen: v7x
topology: tpu7x:2x2x1
jax: 0.10.0
libtpu: 0.0.40
codegen_flags: <defaults>
</compile_context>

<pallas_src>
import functools
import math

import jax
import jax.numpy as jnp
from jax import lax
from jax.experimental import pallas as pl
from jax.experimental.pallas import tpu as pltpu


def encoder_layer_kernel(
    x_ref, bias_ref,
    wq_ref, bq_ref, wk_ref, bk_ref, wv_ref, bv_ref,
    wo_ref, bo_ref,
    g1_ref, be1_ref,
    w1_ref, b1_ref, w2_ref, b2_ref,
    g2_ref, be2_ref,
    *refs,
    n_head, eps, tq, write_attn):
  """Fused encoder layer for one (batch, query-tile) grid point."""
  if write_attn:
    out_ref, attn_ref, k_sc, v_sc, ctx_sc = refs
  else:
    out_ref, k_sc, v_sc, ctx_sc = refs
    attn_ref = None

  qi = pl.program_id(1)
  D = x_ref.shape[2]
  dh = D // n_head
  cdt = wq_ref.dtype                     # MXU operand dtype (bf16 by default)

  # ---- K / V projection: once per batch element (qi == 0) -------------------
  # Per-head (S, D) @ (D, dh) matmuls (full-D contraction) written straight
  # into head-major scratch -- no (S, 2D) intermediate, no lane slicing.
  @pl.when(qi == 0)
  def _project_kv():
    x_full = x_ref[0].astype(cdt)                                   # (S, D)
    for h in range(n_head):
      k_h = jnp.dot(x_full, wk_ref[h],
                    preferred_element_type=jnp.float32) + bk_ref[h]
      v_h = jnp.dot(x_full, wv_ref[h],
                    preferred_element_type=jnp.float32) + bv_ref[h]
      k_sc[h] = k_h.astype(k_sc.dtype)
      v_sc[h] = v_h.astype(v_sc.dtype)

  # ---- multi-head attention for this query tile ------------------------------
  row0 = pl.multiple_of(qi * tq, tq)
  x_tile = x_ref[0, pl.ds(row0, tq), :].astype(jnp.float32)         # (tq, D)
  x_tile_c = x_tile.astype(cdt)
  bias = bias_ref[0].astype(jnp.float32)                            # (tq, S)

  for h in range(n_head):
    # Q projection for this head; Wq/bq were pre-scaled by 1/sqrt(dh).
    q_h = jnp.dot(x_tile_c, wq_ref[h],
                  preferred_element_type=jnp.float32) + bq_ref[h]   # (tq, dh)
    # scores: (tq, dh) . (S, dh)^T (NT matmul, f32 accumulate)
    s_h = lax.dot_general(q_h.astype(cdt), k_sc[h],
                          (((1,), (1,)), ((), ())),
                          preferred_element_type=jnp.float32)       # (tq, S)
    s_h = s_h + bias                                                # mask bias
    m_h = jnp.max(s_h, axis=-1, keepdims=True)
    p_h = jnp.exp(s_h - m_h)
    denom = jnp.sum(p_h, axis=-1, keepdims=True)
    attn_h = p_h * pl.reciprocal(denom, approx=True)                # EUP slot
    if write_attn:
      attn_ref[0, h] = attn_h.astype(attn_ref.dtype)
    # Per-head context, packed lane-dense so the output projection is one
    # full-D-contraction matmul instead of H dh-contraction matmuls + adds.
    ctx_sc[:, h * dh:(h + 1) * dh] = jnp.dot(
        attn_h.astype(cdt), v_sc[h], preferred_element_type=jnp.float32)

  attn_out = jnp.dot(ctx_sc[...].astype(cdt), wo_ref[...],
                     preferred_element_type=jnp.float32) + bo_ref[...]

  # dropout1: identity ---- add & norm 1 ---------------------------------------
  y = attn_out + x_tile
  mean = jnp.mean(y, axis=-1, keepdims=True)
  var = jnp.mean((y - mean) ** 2, axis=-1, keepdims=True)
  y = (y - mean) * lax.rsqrt(var + eps) * g1_ref[...] + be1_ref[...]

  # ---- position-wise FFN (inner dropout identity) -----------------------------
  h1 = jnp.dot(y.astype(cdt), w1_ref[...],
               preferred_element_type=jnp.float32) + b1_ref[...]
  h1 = jnp.maximum(h1, 0.0)
  ff = jnp.dot(h1.astype(cdt), w2_ref[...],
               preferred_element_type=jnp.float32) + b2_ref[...]

  # dropout2: identity ---- add & norm 2 ---------------------------------------
  z = ff + y
  mean2 = jnp.mean(z, axis=-1, keepdims=True)
  var2 = jnp.mean((z - mean2) ** 2, axis=-1, keepdims=True)
  z = (z - mean2) * lax.rsqrt(var2 + eps) * g2_ref[...] + be2_ref[...]

  out_ref[0] = z.astype(out_ref.dtype)


def _pick_query_tile(S, n_head, attn_itemsize, budget_bytes=8 << 20):
  """Largest tile dividing S whose attn/score blocks fit a VMEM budget."""
  for cand in (256, 128, 64, 32, 16, 8):
    if S % cand != 0:
      continue
    block = (2 * n_head * cand * S * attn_itemsize   # attn out block (x2 bufs)
             + 2 * cand * S * 4)                     # f32 score temporaries
    if block <= budget_bytes or cand == 8:
      return cand
  return S


def encoder_layer(x, mask, params, *, n_head, eps=1e-12,
                  compute_dtype=jnp.bfloat16,
                  return_attn=True, attn_dtype=jnp.float32):
  B, S, D = x.shape
  dh = D // n_head
  scale = 1.0 / math.sqrt(dh)

  # ---- host-side packing ------------------------------------------------------
  # Per-head weights (H, D, dh): each head is a full-D-contraction matmul
  # straight into head-major scratch; softmax scale folded into Wq/bq.
  def per_head(w):
    return w.reshape(D, n_head, dh).transpose(1, 0, 2)

  wq_h = per_head(params["wq"] * scale).astype(compute_dtype)
  wk_h = per_head(params["wk"]).astype(compute_dtype)
  wv_h = per_head(params["wv"]).astype(compute_dtype)
  bq_h = (params["bq"] * scale).reshape(n_head, 1, dh).astype(jnp.float32)
  bk_h = params["bk"].reshape(n_head, 1, dh).astype(jnp.float32)
  bv_h = params["bv"].reshape(n_head, 1, dh).astype(jnp.float32)
  wo = params["wo"].astype(compute_dtype)
  w1 = params["w1"].astype(compute_dtype)
  w2 = params["w2"].astype(compute_dtype)

  # Mask as precomputed additive bias (0 = keep, -1e9 = masked) in compute dtype.
  bias = ((mask.astype(jnp.float32) - 1.0) * 1e9).astype(compute_dtype)

  attn_itemsize = jnp.dtype(attn_dtype).itemsize if return_attn else 0
  tq = _pick_query_tile(S, n_head, attn_itemsize)
  n_q = S // tq

  kernel = functools.partial(encoder_layer_kernel, n_head=n_head, eps=eps,
                             tq=tq, write_attn=return_attn)

  weight_args = (wq_h, bq_h, wk_h, bk_h, wv_h, bv_h, wo, params["bo"],
                 params["g1"], params["be1"], w1, params["b1"],
                 w2, params["b2"], params["g2"], params["be2"])

  cdt_size = jnp.dtype(compute_dtype).itemsize
  x_size = jnp.dtype(x.dtype).itemsize

  def _call(single_buffer_weights):
    def rep(a):
      shape = a.shape
      idx = lambda b, qi, _n=len(shape): (0,) * _n
      if single_buffer_weights:
        # Block index never changes -> one VMEM copy is enough.
        return pl.BlockSpec(shape, idx, pipeline_mode=pl.Buffered(1))
      return pl.BlockSpec(shape, idx)

    in_specs = [
        pl.BlockSpec((1, S, D), lambda b, qi: (b, 0, 0)),    # x (full sequence)
        pl.BlockSpec((1, tq, S), lambda b, qi: (b, qi, 0)),  # mask bias (q rows)
    ] + [rep(a) for a in weight_args]

    out_shapes = [jax.ShapeDtypeStruct((B, S, D), x.dtype)]
    out_specs = [pl.BlockSpec((1, tq, D), lambda b, qi: (b, qi, 0))]
    if return_attn:
      out_shapes.append(jax.ShapeDtypeStruct((B, n_head, S, S), attn_dtype))
      out_specs.append(pl.BlockSpec((1, n_head, tq, S),
                                    lambda b, qi: (b, 0, qi, 0)))

    scratch_shapes = [
        pltpu.VMEM((n_head, S, dh), compute_dtype),   # K (head-major)
        pltpu.VMEM((n_head, S, dh), compute_dtype),   # V (head-major)
        pltpu.VMEM((tq, D), jnp.float32),             # lane-dense ctx
    ]

    # Explicit VMEM budget (includes lane padding of dh up to 128).
    wbuf = 1 if single_buffer_weights else 2
    weight_bytes = sum(int(a.size) * a.dtype.itemsize for a in weight_args)
    dh_pad = max(dh, 128)
    est = (wbuf * weight_bytes
           + 2 * S * D * x_size                        # x block
           + 2 * tq * S * cdt_size                     # bias block
           + 2 * tq * D * x_size                       # out block
           + 2 * n_head * tq * S * attn_itemsize       # attn block
           + 2 * n_head * S * dh_pad * cdt_size        # K/V scratch
           + tq * D * 4                                # ctx scratch
           + 2 * tq * S * 4                            # score temporaries
           + (8 << 20))                                # headroom
    vmem_limit = int(min(max(est, 32 << 20), 100 << 20))

    outs = pl.pallas_call(
        kernel,
        out_shape=tuple(out_shapes),
        grid_spec=pltpu.PrefetchScalarGridSpec(
            num_scalar_prefetch=0,
            grid=(B, n_q),
            in_specs=in_specs,
            out_specs=tuple(out_specs),
            scratch_shapes=scratch_shapes),
        compiler_params=pltpu.CompilerParams(
            dimension_semantics=("parallel", "arbitrary"),
            vmem_limit_bytes=vmem_limit),
    )(x, bias, *weight_args)
    return jax.block_until_ready(outs)

  try:
    outs = _call(True)
  except Exception:
    # pipeline_mode=pl.Buffered(1) not supported by this Pallas build.
    outs = _call(False)

  if return_attn:
    out, attn = outs
  else:
    out, attn = outs[0], None

  # prior_attn is None -> p_attn == attn; return the same array twice instead
  # of writing a duplicate (B, H, S, S) tensor from the kernel.
  return out, attn, attn


def init_params(key, d_model, ffn_hidden):
  keys = jax.random.split(key, 6)
  s = 0.02
  return {
      "wq": jax.random.normal(keys[0], (d_model, d_model), jnp.float32) * s,
      "bq": jnp.zeros((1, d_model), jnp.float32),
      "wk": jax.random.normal(keys[1], (d_model, d_model), jnp.float32) * s,
      "bk": jnp.zeros((1, d_model), jnp.float32),
      "wv": jax.random.normal(keys[2], (d_model, d_model), jnp.float32) * s,
      "bv": jnp.zeros((1, d_model), jnp.float32),
      "wo": jax.random.normal(keys[3], (d_model, d_model), jnp.float32) * s,
      "bo": jnp.zeros((1, d_model), jnp.float32),
      "g1": jnp.ones((1, d_model), jnp.float32),
      "be1": jnp.zeros((1, d_model), jnp.float32),
      "w1": jax.random.normal(keys[4], (d_model, ffn_hidden), jnp.float32) * s,
      "b1": jnp.zeros((1, ffn_hidden), jnp.float32),
      "w2": jax.random.normal(keys[5], (ffn_hidden, d_model), jnp.float32) * s,
      "b2": jnp.zeros((1, d_model), jnp.float32),
      "g2": jnp.ones((1, d_model), jnp.float32),
      "be2": jnp.zeros((1, d_model), jnp.float32),
  }


def ref_encoder_layer(x, mask, params, n_head, eps=1e-12):
  """Pure-JAX f32 reference (matches the PyTorch module, dropout=identity)."""
  B, S, D = x.shape
  dh = D // n_head

  def split_heads(t):
    return t.reshape(B, S, n_head, dh).transpose(0, 2, 1, 3)

  q = split_heads(x @ params["wq"] + params["bq"])
  k = split_heads(x @ params["wk"] + params["bk"])
  v = split_heads(x @ params["wv"] + params["bv"])
  s = jnp.einsum("bhqd,bhkd->bhqk", q, k) / math.sqrt(dh)
  s = jnp.where(mask[:, None, :, :] == 0, -1e9, s)
  attn = jax.nn.softmax(s, axis=-1)
  ctx = jnp.einsum("bhqk,bhkd->bhqd", attn, v)
  ctx = ctx.transpose(0, 2, 1, 3).reshape(B, S, D)
  a_out = ctx @ params["wo"] + params["bo"]

  def ln(t, g, b):
    mu = jnp.mean(t, axis=-1, keepdims=True)
    var = jnp.mean((t - mu) ** 2, axis=-1, keepdims=True)
    return (t - mu) / jnp.sqrt(var + eps) * g + b

  y = ln(a_out + x, params["g1"], params["be1"])
  ff = (jnp.maximum(y @ params["w1"] + params["b1"], 0.0)
        @ params["w2"] + params["b2"])
  z = ln(ff + y, params["g2"], params["be2"])
  return z, attn


if __name__ == "__main__":
  B, S, D, N_HEAD, FFN = 2, 8, 32, 4, 64

  key = jax.random.PRNGKey(0)
  kx, kp = jax.random.split(key)
  x = jax.random.normal(kx, (B, S, D), jnp.float32)
  # keep/mask pattern: last two key positions masked for every query row.
  src_mask = jnp.ones((B, S, S), jnp.float32).at[:, :, -2:].set(0.0)
  params = init_params(kp, D, FFN)

  out, attn, p_attn = encoder_layer(x, src_mask, params, n_head=N_HEAD)
  jax.block_until_ready((out, attn, p_attn))

  assert out.shape == (B, S, D)
  assert attn.shape == (B, N_HEAD, S, S)
  assert p_attn.shape == (B, N_HEAD, S, S)

  ref_out, ref_attn = ref_encoder_layer(x, src_mask, params, N_HEAD)
  out_err = float(jnp.max(jnp.abs(out - ref_out)))
  attn_err = float(jnp.max(jnp.abs(attn.astype(jnp.float32) - ref_attn)))
  assert out_err < 0.1, f"out mismatch: {out_err}"
  assert attn_err < 0.05, f"attn mismatch: {attn_err}"

  print("KERNEL_OK")
</pallas_src>

<mosaic_0001>
module attributes {stable_mosaic.version = 11 : i64} {
  func.func @encoder_layer_kernel(%arg0: i32, %arg1: i32, %arg2: memref<1x8x32xf32, #tpu.memory_space<vmem>>, %arg3: memref<1x8x8xbf16, #tpu.memory_space<vmem>>, %arg4: memref<4x32x8xbf16, #tpu.memory_space<vmem>>, %arg5: memref<4x1x8xf32, #tpu.memory_space<vmem>>, %arg6: memref<4x32x8xbf16, #tpu.memory_space<vmem>>, %arg7: memref<4x1x8xf32, #tpu.memory_space<vmem>>, %arg8: memref<4x32x8xbf16, #tpu.memory_space<vmem>>, %arg9: memref<4x1x8xf32, #tpu.memory_space<vmem>>, %arg10: memref<32x32xbf16, #tpu.memory_space<vmem>>, %arg11: memref<1x32xf32, #tpu.memory_space<vmem>>, %arg12: memref<1x32xf32, #tpu.memory_space<vmem>>, %arg13: memref<1x32xf32, #tpu.memory_space<vmem>>, %arg14: memref<32x64xbf16, #tpu.memory_space<vmem>>, %arg15: memref<1x64xf32, #tpu.memory_space<vmem>>, %arg16: memref<64x32xbf16, #tpu.memory_space<vmem>>, %arg17: memref<1x32xf32, #tpu.memory_space<vmem>>, %arg18: memref<1x32xf32, #tpu.memory_space<vmem>>, %arg19: memref<1x32xf32, #tpu.memory_space<vmem>>, %arg20: memref<1x8x32xf32, #tpu.memory_space<vmem>>, %arg21: memref<1x4x8x8xf32, #tpu.memory_space<vmem>>, %arg22: memref<4x8x8xbf16, #tpu.memory_space<vmem>>, %arg23: memref<4x8x8xbf16, #tpu.memory_space<vmem>>, %arg24: memref<8x32xf32, #tpu.memory_space<vmem>>) attributes {dimension_semantics = [#tpu.dimension_semantics<parallel>, #tpu.dimension_semantics<arbitrary>], iteration_bounds = array<i64: 2, 1>, scalar_prefetch = 0 : i64, scratch_operands = 3 : i64, tpu.core_type = #tpu.core_type<tc>, window_params = [{transform_indices = @transform_0, window_bounds = array<i64: 1, 8, 32>}, {transform_indices = @transform_1, window_bounds = array<i64: 1, 8, 8>}, {pipeline_mode = #tpu.pipeline_mode<synchronous>, transform_indices = @transform_2, window_bounds = array<i64: 4, 32, 8>}, {pipeline_mode = #tpu.pipeline_mode<synchronous>, transform_indices = @transform_3, window_bounds = array<i64: 4, 1, 8>}, {pipeline_mode = #tpu.pipeline_mode<synchronous>, transform_indices = @transform_4, window_bounds = array<i64: 4, 32, 8>}, {pipeline_mode = #tpu.pipeline_mode<synchronous>, transform_indices = @transform_5, window_bounds = array<i64: 4, 1, 8>}, {pipeline_mode = #tpu.pipeline_mode<synchronous>, transform_indices = @transform_6, window_bounds = array<i64: 4, 32, 8>}, {pipeline_mode = #tpu.pipeline_mode<synchronous>, transform_indices = @transform_7, window_bounds = array<i64: 4, 1, 8>}, {pipeline_mode = #tpu.pipeline_mode<synchronous>, transform_indices = @transform_8, window_bounds = array<i64: 32, 32>}, {pipeline_mode = #tpu.pipeline_mode<synchronous>, transform_indices = @transform_9, window_bounds = array<i64: 1, 32>}, {pipeline_mode = #tpu.pipeline_mode<synchronous>, transform_indices = @transform_10, window_bounds = array<i64: 1, 32>}, {pipeline_mode = #tpu.pipeline_mode<synchronous>, transform_indices = @transform_11, window_bounds = array<i64: 1, 32>}, {pipeline_mode = #tpu.pipeline_mode<synchronous>, transform_indices = @transform_12, window_bounds = array<i64: 32, 64>}, {pipeline_mode = #tpu.pipeline_mode<synchronous>, transform_indices = @transform_13, window_bounds = array<i64: 1, 64>}, {pipeline_mode = #tpu.pipeline_mode<synchronous>, transform_indices = @transform_14, window_bounds = array<i64: 64, 32>}, {pipeline_mode = #tpu.pipeline_mode<synchronous>, transform_indices = @transform_15, window_bounds = array<i64: 1, 32>}, {pipeline_mode = #tpu.pipeline_mode<synchronous>, transform_indices = @transform_16, window_bounds = array<i64: 1, 32>}, {pipeline_mode = #tpu.pipeline_mode<synchronous>, transform_indices = @transform_17, window_bounds = array<i64: 1, 32>}, {transform_indices = @transform_18, window_bounds = array<i64: 1, 8, 32>}, {transform_indices = @transform_19, window_bounds = array<i64: 1, 4, 8, 8>}]} {
    %c0_i32 = arith.constant 0 : i32
    %0 = arith.cmpi eq, %arg1, %c0_i32 : i32
    %1 = arith.extui %0 : i1 to i32
    %c0_i32_0 = arith.constant 0 : i32
    %2 = arith.cmpi ne, %1, %c0_i32_0 : i32
    scf.if %2 {
      %c0_129 = arith.constant 0 : index
      %c0_130 = arith.constant 0 : index
      %c0_131 = arith.constant 0 : index
      %206 = vector.load %arg2[%c0_129, %c0_130, %c0_131] : memref<1x8x32xf32, #tpu.memory_space<vmem>>, vector<1x8x32xf32>
      %207 = vector.shape_cast %206 : vector<1x8x32xf32> to vector<8x32xf32>
      %208 = arith.truncf %207 : vector<8x32xf32> to vector<8x32xbf16>
      %c0_132 = arith.constant 0 : index
      %c0_133 = arith.constant 0 : index
      %c0_134 = arith.constant 0 : index
      %209 = vector.load %arg6[%c0_132, %c0_133, %c0_134] : memref<4x32x8xbf16, #tpu.memory_space<vmem>>, vector<1x32x8xbf16>
      %210 = vector.shape_cast %209 : vector<1x32x8xbf16> to vector<32x8xbf16>
      %cst_135 = arith.constant dense<0.000000e+00> : vector<8x8xf32>
      %211 = tpu.matmul %208, %210, %cst_135 {dimension_numbers = #tpu.dot_dimension_numbers<[1], [0], [0], [1], [0, 0, 1, 1], [], []>} : vector<8x32xbf16>, vector<32x8xbf16>, vector<8x8xf32> -> vector<8x8xf32>
      %c0_136 = arith.constant 0 : index
      %c0_137 = arith.constant 0 : index
      %c0_138 = arith.constant 0 : index
      %212 = vector.load %arg7[%c0_136, %c0_137, %c0_138] : memref<4x1x8xf32, #tpu.memory_space<vmem>>, vector<1x1x8xf32>
      %213 = vector.shape_cast %212 : vector<1x1x8xf32> to vector<1x8xf32>
      %214 = vector.broadcast %213 : vector<1x8xf32> to vector<8x8xf32>
      %215 = arith.addf %211, %214 : vector<8x8xf32>
      %c0_139 = arith.constant 0 : index
      %c0_140 = arith.constant 0 : index
      %c0_141 = arith.constant 0 : index
      %216 = vector.load %arg8[%c0_139, %c0_140, %c0_141] : memref<4x32x8xbf16, #tpu.memory_space<vmem>>, vector<1x32x8xbf16>
      %217 = vector.shape_cast %216 : vector<1x32x8xbf16> to vector<32x8xbf16>
      %cst_142 = arith.constant dense<0.000000e+00> : vector<8x8xf32>
      %218 = tpu.matmul %208, %217, %cst_142 {dimension_numbers = #tpu.dot_dimension_numbers<[1], [0], [0], [1], [0, 0, 1, 1], [], []>} : vector<8x32xbf16>, vector<32x8xbf16>, vector<8x8xf32> -> vector<8x8xf32>
      %c0_143 = arith.constant 0 : index
      %c0_144 = arith.constant 0 : index
      %c0_145 = arith.constant 0 : index
      %219 = vector.load %arg9[%c0_143, %c0_144, %c0_145] : memref<4x1x8xf32, #tpu.memory_space<vmem>>, vector<1x1x8xf32>
      %220 = vector.shape_cast %219 : vector<1x1x8xf32> to vector<1x8xf32>
      %221 = vector.broadcast %220 : vector<1x8xf32> to vector<8x8xf32>
      %222 = arith.addf %218, %221 : vector<8x8xf32>
      %223 = arith.truncf %215 : vector<8x8xf32> to vector<8x8xbf16>
      %c0_146 = arith.constant 0 : index
      %c0_147 = arith.constant 0 : index
      %c0_148 = arith.constant 0 : index
      %224 = vector.load %arg22[%c0_146, %c0_147, %c0_148] : memref<4x8x8xbf16, #tpu.memory_space<vmem>>, vector<1x8x8xbf16>
      %225 = vector.shape_cast %224 : vector<1x8x8xbf16> to vector<8x8xbf16>
      %226 = vector.shape_cast %223 : vector<8x8xbf16> to vector<1x8x8xbf16>
      tpu.vector_store %arg22[%c0_146, %c0_147, %c0_148], %226 {strides = array<i32>} : memref<4x8x8xbf16, #tpu.memory_space<vmem>>, vector<1x8x8xbf16>,
      %227 = arith.truncf %222 : vector<8x8xf32> to vector<8x8xbf16>
      %c0_149 = arith.constant 0 : index
      %c0_150 = arith.constant 0 : index
      %c0_151 = arith.constant 0 : index
      %228 = vector.load %arg23[%c0_149, %c0_150, %c0_151] : memref<4x8x8xbf16, #tpu.memory_space<vmem>>, vector<1x8x8xbf16>
      %229 = vector.shape_cast %228 : vector<1x8x8xbf16> to vector<8x8xbf16>
      %230 = vector.shape_cast %227 : vector<8x8xbf16> to vector<1x8x8xbf16>
      tpu.vector_store %arg23[%c0_149, %c0_150, %c0_151], %230 {strides = array<i32>} : memref<4x8x8xbf16, #tpu.memory_space<vmem>>, vector<1x8x8xbf16>,
      %c1_152 = arith.constant 1 : index
      %c0_153 = arith.constant 0 : index
      %c0_154 = arith.constant 0 : index
      %231 = vector.load %arg6[%c1_152, %c0_153, %c0_154] : memref<4x32x8xbf16, #tpu.memory_space<vmem>>, vector<1x32x8xbf16>
      %232 = vector.shape_cast %231 : vector<1x32x8xbf16> to vector<32x8xbf16>
      %cst_155 = arith.constant dense<0.000000e+00> : vector<8x8xf32>
      %233 = tpu.matmul %208, %232, %cst_155 {dimension_numbers = #tpu.dot_dimension_numbers<[1], [0], [0], [1], [0, 0, 1, 1], [], []>} : vector<8x32xbf16>, vector<32x8xbf16>, vector<8x8xf32> -> vector<8x8xf32>
      %c1_156 = arith.constant 1 : index
      %c0_157 = arith.constant 0 : index
      %c0_158 = arith.constant 0 : index
      %234 = vector.load %arg7[%c1_156, %c0_157, %c0_158] : memref<4x1x8xf32, #tpu.memory_space<vmem>>, vector<1x1x8xf32>
      %235 = vector.shape_cast %234 : vector<1x1x8xf32> to vector<1x8xf32>
      %236 = vector.broadcast %235 : vector<1x8xf32> to vector<8x8xf32>
      %237 = arith.addf %233, %236 : vector<8x8xf32>
      %c1_159 = arith.constant 1 : index
      %c0_160 = arith.constant 0 : index
      %c0_161 = arith.constant 0 : index
      %238 = vector.load %arg8[%c1_159, %c0_160, %c0_161] : memref<4x32x8xbf16, #tpu.memory_space<vmem>>, vector<1x32x8xbf16>
      %239 = vector.shape_cast %238 : vector<1x32x8xbf16> to vector<32x8xbf16>
      %cst_162 = arith.constant dense<0.000000e+00> : vector<8x8xf32>
      %240 = tpu.matmul %208, %239, %cst_162 {dimension_numbers = #tpu.dot_dimension_numbers<[1], [0], [0], [1], [0, 0, 1, 1], [], []>} : vector<8x32xbf16>, vector<32x8xbf16>, vector<8x8xf32> -> vector<8x8xf32>
      %c1_163 = arith.constant 1 : index
      %c0_164 = arith.constant 0 : index
      %c0_165 = arith.constant 0 : index
      %241 = vector.load %arg9[%c1_163, %c0_164, %c0_165] : memref<4x1x8xf32, #tpu.memory_space<vmem>>, vector<1x1x8xf32>
      %242 = vector.shape_cast %241 : vector<1x1x8xf32> to vector<1x8xf32>
      %243 = vector.broadcast %242 : vector<1x8xf32> to vector<8x8xf32>
      %244 = arith.addf %240, %243 : vector<8x8xf32>
      %245 = arith.truncf %237 : vector<8x8xf32> to vector<8x8xbf16>
      %c1_166 = arith.constant 1 : index
      %c0_167 = arith.constant 0 : index
      %c0_168 = arith.constant 0 : index
      %246 = vector.load %arg22[%c1_166, %c0_167, %c0_168] : memref<4x8x8xbf16, #tpu.memory_space<vmem>>, vector<1x8x8xbf16>
      %247 = vector.shape_cast %246 : vector<1x8x8xbf16> to vector<8x8xbf16>
      %248 = vector.shape_cast %245 : vector<8x8xbf16> to vector<1x8x8xbf16>
      tpu.vector_store %arg22[%c1_166, %c0_167, %c0_168], %248 {strides = array<i32>} : memref<4x8x8xbf16, #tpu.memory_space<vmem>>, vector<1x8x8xbf16>,
      %249 = arith.truncf %244 : vector<8x8xf32> to vector<8x8xbf16>
      %c1_169 = arith.constant 1 : index
      %c0_170 = arith.constant 0 : index
      %c0_171 = arith.constant 0 : index
      %250 = vector.load %arg23[%c1_169, %c0_170, %c0_171] : memref<4x8x8xbf16, #tpu.memory_space<vmem>>, vector<1x8x8xbf16>
      %251 = vector.shape_cast %250 : vector<1x8x8xbf16> to vector<8x8xbf16>
      %252 = vector.shape_cast %249 : vector<8x8xbf16> to vector<1x8x8xbf16>
      tpu.vector_store %arg23[%c1_169, %c0_170, %c0_171], %252 {strides = array<i32>} : memref<4x8x8xbf16, #tpu.memory_space<vmem>>, vector<1x8x8xbf16>,
      %c2_172 = arith.constant 2 : index
      %c0_173 = arith.constant 0 : index
      %c0_174 = arith.constant 0 : index
      %253 = vector.load %arg6[%c2_172, %c0_173, %c0_174] : memref<4x32x8xbf16, #tpu.memory_space<vmem>>, vector<1x32x8xbf16>
      %254 = vector.shape_cast %253 : vector<1x32x8xbf16> to vector<32x8xbf16>
      %cst_175 = arith.constant dense<0.000000e+00> : vector<8x8xf32>
      %255 = tpu.matmul %208, %254, %cst_175 {dimension_numbers = #tpu.dot_dimension_numbers<[1], [0], [0], [1], [0, 0, 1, 1], [], []>} : vector<8x32xbf16>, vector<32x8xbf16>, vector<8x8xf32> -> vector<8x8xf32>
      %c2_176 = arith.constant 2 : index
      %c0_177 = arith.constant 0 : index
      %c0_178 = arith.constant 0 : index
      %256 = vector.load %arg7[%c2_176, %c0_177, %c0_178] : memref<4x1x8xf32, #tpu.memory_space<vmem>>, vector<1x1x8xf32>
      %257 = vector.shape_cast %256 : vector<1x1x8xf32> to vector<1x8xf32>
      %258 = vector.broadcast %257 : vector<1x8xf32> to vector<8x8xf32>
      %259 = arith.addf %255, %258 : vector<8x8xf32>
      %c2_179 = arith.constant 2 : index
      %c0_180 = arith.constant 0 : index
      %c0_181 = arith.constant 0 : index
      %260 = vector.load %arg8[%c2_179, %c0_180, %c0_181] : memref<4x32x8xbf16, #tpu.memory_space<vmem>>, vector<1x32x8xbf16>
      %261 = vector.shape_cast %260 : vector<1x32x8xbf16> to vector<32x8xbf16>
      %cst_182 = arith.constant dense<0.000000e+00> : vector<8x8xf32>
      %262 = tpu.matmul %208, %261, %cst_182 {dimension_numbers = #tpu.dot_dimension_numbers<[1], [0], [0], [1], [0, 0, 1, 1], [], []>} : vector<8x32xbf16>, vector<32x8xbf16>, vector<8x8xf32> -> vector<8x8xf32>
      %c2_183 = arith.constant 2 : index
      %c0_184 = arith.constant 0 : index
      %c0_185 = arith.constant 0 : index
      %263 = vector.load %arg9[%c2_183, %c0_184, %c0_185] : memref<4x1x8xf32, #tpu.memory_space<vmem>>, vector<1x1x8xf32>
      %264 = vector.shape_cast %263 : vector<1x1x8xf32> to vector<1x8xf32>
      %265 = vector.broadcast %264 : vector<1x8xf32> to vector<8x8xf32>
      %266 = arith.addf %262, %265 : vector<8x8xf32>
      %267 = arith.truncf %259 : vector<8x8xf32> to vector<8x8xbf16>
      %c2_186 = arith.constant 2 : index
      %c0_187 = arith.constant 0 : index
      %c0_188 = arith.constant 0 : index
      %268 = vector.load %arg22[%c2_186, %c0_187, %c0_188] : memref<4x8x8xbf16, #tpu.memory_space<vmem>>, vector<1x8x8xbf16>
      %269 = vector.shape_cast %268 : vector<1x8x8xbf16> to vector<8x8xbf16>
      %270 = vector.shape_cast %267 : vector<8x8xbf16> to vector<1x8x8xbf16>
      tpu.vector_store %arg22[%c2_186, %c0_187, %c0_188], %270 {strides = array<i32>} : memref<4x8x8xbf16, #tpu.memory_space<vmem>>, vector<1x8x8xbf16>,
      %271 = arith.truncf %266 : vector<8x8xf32> to vector<8x8xbf16>
      %c2_189 = arith.constant 2 : index
      %c0_190 = arith.constant 0 : index
      %c0_191 = arith.constant 0 : index
      %272 = vector.load %arg23[%c2_189, %c0_190, %c0_191] : memref<4x8x8xbf16, #tpu.memory_space<vmem>>, vector<1x8x8xbf16>
      %273 = vector.shape_cast %272 : vector<1x8x8xbf16> to vector<8x8xbf16>
      %274 = vector.shape_cast %271 : vector<8x8xbf16> to vector<1x8x8xbf16>
      tpu.vector_store %arg23[%c2_189, %c0_190, %c0_191], %274 {strides = array<i32>} : memref<4x8x8xbf16, #tpu.memory_space<vmem>>, vector<1x8x8xbf16>,
      %c3_192 = arith.constant 3 : index
      %c0_193 = arith.constant 0 : index
      %c0_194 = arith.constant 0 : index
      %275 = vector.load %arg6[%c3_192, %c0_193, %c0_194] : memref<4x32x8xbf16, #tpu.memory_space<vmem>>, vector<1x32x8xbf16>
      %276 = vector.shape_cast %275 : vector<1x32x8xbf16> to vector<32x8xbf16>
      %cst_195 = arith.constant dense<0.000000e+00> : vector<8x8xf32>
      %277 = tpu.matmul %208, %276, %cst_195 {dimension_numbers = #tpu.dot_dimension_numbers<[1], [0], [0], [1], [0, 0, 1, 1], [], []>} : vector<8x32xbf16>, vector<32x8xbf16>, vector<8x8xf32> -> vector<8x8xf32>
      %c3_196 = arith.constant 3 : index
      %c0_197 = arith.constant 0 : index
      %c0_198 = arith.constant 0 : index
      %278 = vector.load %arg7[%c3_196, %c0_197, %c0_198] : memref<4x1x8xf32, #tpu.memory_space<vmem>>, vector<1x1x8xf32>
      %279 = vector.shape_cast %278 : vector<1x1x8xf32> to vector<1x8xf32>
      %280 = vector.broadcast %279 : vector<1x8xf32> to vector<8x8xf32>
      %281 = arith.addf %277, %280 : vector<8x8xf32>
      %c3_199 = arith.constant 3 : index
      %c0_200 = arith.constant 0 : index
      %c0_201 = arith.constant 0 : index
      %282 = vector.load %arg8[%c3_199, %c0_200, %c0_201] : memref<4x32x8xbf16, #tpu.memory_space<vmem>>, vector<1x32x8xbf16>
      %283 = vector.shape_cast %282 : vector<1x32x8xbf16> to vector<32x8xbf16>
      %cst_202 = arith.constant dense<0.000000e+00> : vector<8x8xf32>
      %284 = tpu.matmul %208, %283, %cst_202 {dimension_numbers = #tpu.dot_dimension_numbers<[1], [0], [0], [1], [0, 0, 1, 1], [], []>} : vector<8x32xbf16>, vector<32x8xbf16>, vector<8x8xf32> -> vector<8x8xf32>
      %c3_203 = arith.constant 3 : index
      %c0_204 = arith.constant 0 : index
      %c0_205 = arith.constant 0 : index
      %285 = vector.load %arg9[%c3_203, %c0_204, %c0_205] : memref<4x1x8xf32, #tpu.memory_space<vmem>>, vector<1x1x8xf32>
      %286 = vector.shape_cast %285 : vector<1x1x8xf32> to vector<1x8xf32>
      %287 = vector.broadcast %286 : vector<1x8xf32> to vector<8x8xf32>
      %288 = arith.addf %284, %287 : vector<8x8xf32>
      %289 = arith.truncf %281 : vector<8x8xf32> to vector<8x8xbf16>
      %c3_206 = arith.constant 3 : index
      %c0_207 = arith.constant 0 : index
      %c0_208 = arith.constant 0 : index
      %290 = vector.load %arg22[%c3_206, %c0_207, %c0_208] : memref<4x8x8xbf16, #tpu.memory_space<vmem>>, vector<1x8x8xbf16>
      %291 = vector.shape_cast %290 : vector<1x8x8xbf16> to vector<8x8xbf16>
      %292 = vector.shape_cast %289 : vector<8x8xbf16> to vector<1x8x8xbf16>
      tpu.vector_store %arg22[%c3_206, %c0_207, %c0_208], %292 {strides = array<i32>} : memref<4x8x8xbf16, #tpu.memory_space<vmem>>, vector<1x8x8xbf16>,
      %293 = arith.truncf %288 : vector<8x8xf32> to vector<8x8xbf16>
      %c3_209 = arith.constant 3 : index
      %c0_210 = arith.constant 0 : index
      %c0_211 = arith.constant 0 : index
      %294 = vector.load %arg23[%c3_209, %c0_210, %c0_211] : memref<4x8x8xbf16, #tpu.memory_space<vmem>>, vector<1x8x8xbf16>
      %295 = vector.shape_cast %294 : vector<1x8x8xbf16> to vector<8x8xbf16>
      %296 = vector.shape_cast %293 : vector<8x8xbf16> to vector<1x8x8xbf16>
      tpu.vector_store %arg23[%c3_209, %c0_210, %c0_211], %296 {strides = array<i32>} : memref<4x8x8xbf16, #tpu.memory_space<vmem>>, vector<1x8x8xbf16>,
    } else {
    }
    %c8_i32 = arith.constant 8 : i32
    %3 = arith.muli %arg1, %c8_i32 : i32
    %4 = tpu.assume_multiple %3, 8 : i32
    %c0 = arith.constant 0 : index
    %5 = arith.index_cast %4 : i32 to index
    %c0_1 = arith.constant 0 : index
    %6 = vector.load %arg2[%c0, %5, %c0_1] : memref<1x8x32xf32, #tpu.memory_space<vmem>>, vector<1x8x32xf32>
    %7 = vector.shape_cast %6 : vector<1x8x32xf32> to vector<8x32xf32>
    %8 = arith.truncf %7 : vector<8x32xf32> to vector<8x32xbf16>
    %c0_2 = arith.constant 0 : index
    %c0_3 = arith.constant 0 : index
    %c0_4 = arith.constant 0 : index
    %9 = vector.load %arg3[%c0_2, %c0_3, %c0_4] : memref<1x8x8xbf16, #tpu.memory_space<vmem>>, vector<1x8x8xbf16>
    %10 = vector.shape_cast %9 : vector<1x8x8xbf16> to vector<8x8xbf16>
    %11 = arith.extf %10 : vector<8x8xbf16> to vector<8x8xf32>
    %c0_5 = arith.constant 0 : index
    %c0_6 = arith.constant 0 : index
    %c0_7 = arith.constant 0 : index
    %12 = vector.load %arg4[%c0_5, %c0_6, %c0_7] : memref<4x32x8xbf16, #tpu.memory_space<vmem>>, vector<1x32x8xbf16>
    %13 = vector.shape_cast %12 : vector<1x32x8xbf16> to vector<32x8xbf16>
    %cst = arith.constant dense<0.000000e+00> : vector<8x8xf32>
    %14 = tpu.matmul %8, %13, %cst {dimension_numbers = #tpu.dot_dimension_numbers<[1], [0], [0], [1], [0, 0, 1, 1], [], []>} : vector<8x32xbf16>, vector<32x8xbf16>, vector<8x8xf32> -> vector<8x8xf32>
    %c0_8 = arith.constant 0 : index
    %c0_9 = arith.constant 0 : index
    %c0_10 = arith.constant 0 : index
    %15 = vector.load %arg5[%c0_8, %c0_9, %c0_10] : memref<4x1x8xf32, #tpu.memory_space<vmem>>, vector<1x1x8xf32>
    %16 = vector.shape_cast %15 : vector<1x1x8xf32> to vector<1x8xf32>
    %17 = vector.broadcast %16 : vector<1x8xf32> to vector<8x8xf32>
    %18 = arith.addf %14, %17 : vector<8x8xf32>
    %19 = arith.truncf %18 : vector<8x8xf32> to vector<8x8xbf16>
    %c0_11 = arith.constant 0 : index
    %c0_12 = arith.constant 0 : index
    %c0_13 = arith.constant 0 : index
    %20 = vector.load %arg22[%c0_11, %c0_12, %c0_13] : memref<4x8x8xbf16, #tpu.memory_space<vmem>>, vector<1x8x8xbf16>
    %21 = vector.shape_cast %20 : vector<1x8x8xbf16> to vector<8x8xbf16>
    %cst_14 = arith.constant dense<0.000000e+00> : vector<8x8xf32>
    %22 = tpu.matmul %19, %21, %cst_14 {dimension_numbers = #tpu.dot_dimension_numbers<[1], [1], [0], [0], [0, 0, 1, 0], [], []>} : vector<8x8xbf16>, vector<8x8xbf16>, vector<8x8xf32> -> vector<8x8xf32>
    %23 = arith.addf %22, %11 : vector<8x8xf32>
    %cst_15 = arith.constant dense<0xFF800000> : vector<8xf32>
    %24 = vector.multi_reduction <maximumf>, %23, %cst_15 [1] : vector<8x8xf32> to vector<8xf32>
    %25 = vector.shape_cast %24 : vector<8xf32> to vector<8x1xf32>
    %26 = vector.broadcast %25 : vector<8x1xf32> to vector<8x8xf32>
    %27 = arith.subf %23, %26 : vector<8x8xf32>
    %28 = math.exp %27 : vector<8x8xf32>
    %cst_16 = arith.constant dense<0.000000e+00> : vector<8xf32>
    %29 = vector.multi_reduction <add>, %28, %cst_16 [1] : vector<8x8xf32> to vector<8xf32>
    %30 = vector.shape_cast %29 : vector<8xf32> to vector<8x1xf32>
    %31 = tpu.reciprocal %30 {approx = true} : vector<8x1xf32> -> vector<8x1xf32>
    %32 = vector.broadcast %31 : vector<8x1xf32> to vector<8x8xf32>
    %33 = arith.mulf %28, %32 : vector<8x8xf32>
    %c0_17 = arith.constant 0 : index
    %c0_18 = arith.constant 0 : index
    %c0_19 = arith.constant 0 : index
    %c0_20 = arith.constant 0 : index
    %34 = vector.load %arg21[%c0_17, %c0_18, %c0_19, %c0_20] : memref<1x4x8x8xf32, #tpu.memory_space<vmem>>, vector<1x1x8x8xf32>
    %35 = vector.shape_cast %34 : vector<1x1x8x8xf32> to vector<8x8xf32>
    %36 = vector.shape_cast %33 : vector<8x8xf32> to vector<1x1x8x8xf32>
    tpu.vector_store %arg21[%c0_17, %c0_18, %c0_19, %c0_20], %36 {strides = array<i32>} : memref<1x4x8x8xf32, #tpu.memory_space<vmem>>, vector<1x1x8x8xf32>,
    %37 = arith.truncf %33 : vector<8x8xf32> to vector<8x8xbf16>
    %c0_21 = arith.constant 0 : index
    %c0_22 = arith.constant 0 : index
    %c0_23 = arith.constant 0 : index
    %38 = vector.load %arg23[%c0_21, %c0_22, %c0_23] : memref<4x8x8xbf16, #tpu.memory_space<vmem>>, vector<1x8x8xbf16>
    %39 = vector.shape_cast %38 : vector<1x8x8xbf16> to vector<8x8xbf16>
    %cst_24 = arith.constant dense<0.000000e+00> : vector<8x8xf32>
    %40 = tpu.matmul %37, %39, %cst_24 {dimension_numbers = #tpu.dot_dimension_numbers<[1], [0], [0], [1], [0, 0, 1, 1], [], []>} : vector<8x8xbf16>, vector<8x8xbf16>, vector<8x8xf32> -> vector<8x8xf32>
    %c0_25 = arith.constant 0 : index
    %c0_26 = arith.constant 0 : index
    %41 = vector.load %arg24[%c0_25, %c0_26] : memref<8x32xf32, #tpu.memory_space<vmem>>, vector<8x8xf32>
    tpu.vector_store %arg24[%c0_25, %c0_26], %40 {strides = array<i32>} : memref<8x32xf32, #tpu.memory_space<vmem>>, vector<8x8xf32>,
    %c1 = arith.constant 1 : index
    %c0_27 = arith.constant 0 : index
    %c0_28 = arith.constant 0 : index
    %42 = vector.load %arg4[%c1, %c0_27, %c0_28] : memref<4x32x8xbf16, #tpu.memory_space<vmem>>, vector<1x32x8xbf16>
    %43 = vector.shape_cast %42 : vector<1x32x8xbf16> to vector<32x8xbf16>
    %cst_29 = arith.constant dense<0.000000e+00> : vector<8x8xf32>
    %44 = tpu.matmul %8, %43, %cst_29 {dimension_numbers = #tpu.dot_dimension_numbers<[1], [0], [0], [1], [0, 0, 1, 1], [], []>} : vector<8x32xbf16>, vector<32x8xbf16>, vector<8x8xf32> -> vector<8x8xf32>
    %c1_30 = arith.constant 1 : index
    %c0_31 = arith.constant 0 : index
    %c0_32 = arith.constant 0 : index
    %45 = vector.load %arg5[%c1_30, %c0_31, %c0_32] : memref<4x1x8xf32, #tpu.memory_space<vmem>>, vector<1x1x8xf32>
    %46 = vector.shape_cast %45 : vector<1x1x8xf32> to vector<1x8xf32>
    %47 = vector.broadcast %46 : vector<1x8xf32> to vector<8x8xf32>
    %48 = arith.addf %44, %47 : vector<8x8xf32>
    %49 = arith.truncf %48 : vector<8x8xf32> to vector<8x8xbf16>
    %c1_33 = arith.constant 1 : index
    %c0_34 = arith.constant 0 : index
    %c0_35 = arith.constant 0 : index
    %50 = vector.load %arg22[%c1_33, %c0_34, %c0_35] : memref<4x8x8xbf16, #tpu.memory_space<vmem>>, vector<1x8x8xbf16>
    %51 = vector.shape_cast %50 : vector<1x8x8xbf16> to vector<8x8xbf16>
    %cst_36 = arith.constant dense<0.000000e+00> : vector<8x8xf32>
    %52 = tpu.matmul %49, %51, %cst_36 {dimension_numbers = #tpu.dot_dimension_numbers<[1], [1], [0], [0], [0, 0, 1, 0], [], []>} : vector<8x8xbf16>, vector<8x8xbf16>, vector<8x8xf32> -> vector<8x8xf32>
    %53 = arith.addf %52, %11 : vector<8x8xf32>
    %cst_37 = arith.constant dense<0xFF800000> : vector<8xf32>
    %54 = vector.multi_reduction <maximumf>, %53, %cst_37 [1] : vector<8x8xf32> to vector<8xf32>
    %55 = vector.shape_cast %54 : vector<8xf32> to vector<8x1xf32>
    %56 = vector.broadcast %55 : vector<8x1xf32> to vector<8x8xf32>
    %57 = arith.subf %53, %56 : vector<8x8xf32>
    %58 = math.exp %57 : vector<8x8xf32>
    %cst_38 = arith.constant dense<0.000000e+00> : vector<8xf32>
    %59 = vector.multi_reduction <add>, %58, %cst_38 [1] : vector<8x8xf32> to vector<8xf32>
    %60 = vector.shape_cast %59 : vector<8xf32> to vector<8x1xf32>
    %61 = tpu.reciprocal %60 {approx = true} : vector<8x1xf32> -> vector<8x1xf32>
    %62 = vector.broadcast %61 : vector<8x1xf32> to vector<8x8xf32>
    %63 = arith.mulf %58, %62 : vector<8x8xf32>
    %c0_39 = arith.constant 0 : index
    %c1_40 = arith.constant 1 : index
    %c0_41 = arith.constant 0 : index
    %c0_42 = arith.constant 0 : index
    %64 = vector.load %arg21[%c0_39, %c1_40, %c0_41, %c0_42] : memref<1x4x8x8xf32, #tpu.memory_space<vmem>>, vector<1x1x8x8xf32>
    %65 = vector.shape_cast %64 : vector<1x1x8x8xf32> to vector<8x8xf32>
    %66 = vector.shape_cast %63 : vector<8x8xf32> to vector<1x1x8x8xf32>
    tpu.vector_store %arg21[%c0_39, %c1_40, %c0_41, %c0_42], %66 {strides = array<i32>} : memref<1x4x8x8xf32, #tpu.memory_space<vmem>>, vector<1x1x8x8xf32>,
    %67 = arith.truncf %63 : vector<8x8xf32> to vector<8x8xbf16>
    %c1_43 = arith.constant 1 : index
    %c0_44 = arith.constant 0 : index
    %c0_45 = arith.constant 0 : index
    %68 = vector.load %arg23[%c1_43, %c0_44, %c0_45] : memref<4x8x8xbf16, #tpu.memory_space<vmem>>, vector<1x8x8xbf16>
    %69 = vector.shape_cast %68 : vector<1x8x8xbf16> to vector<8x8xbf16>
    %cst_46 = arith.constant dense<0.000000e+00> : vector<8x8xf32>
    %70 = tpu.matmul %67, %69, %cst_46 {dimension_numbers = #tpu.dot_dimension_numbers<[1], [0], [0], [1], [0, 0, 1, 1], [], []>} : vector<8x8xbf16>, vector<8x8xbf16>, vector<8x8xf32> -> vector<8x8xf32>
    %c0_47 = arith.constant 0 : index
    %c8 = arith.constant 8 : index
    %71 = vector.load %arg24[%c0_47, %c8] : memref<8x32xf32, #tpu.memory_space<vmem>>, vector<8x8xf32>
    tpu.vector_store %arg24[%c0_47, %c8], %70 {strides = array<i32>} : memref<8x32xf32, #tpu.memory_space<vmem>>, vector<8x8xf32>,
    %c2 = arith.constant 2 : index
    %c0_48 = arith.constant 0 : index
    %c0_49 = arith.constant 0 : index
    %72 = vector.load %arg4[%c2, %c0_48, %c0_49] : memref<4x32x8xbf16, #tpu.memory_space<vmem>>, vector<1x32x8xbf16>
    %73 = vector.shape_cast %72 : vector<1x32x8xbf16> to vector<32x8xbf16>
    %cst_50 = arith.constant dense<0.000000e+00> : vector<8x8xf32>
    %74 = tpu.matmul %8, %73, %cst_50 {dimension_numbers = #tpu.dot_dimension_numbers<[1], [0], [0], [1], [0, 0, 1, 1], [], []>} : vector<8x32xbf16>, vector<32x8xbf16>, vector<8x8xf32> -> vector<8x8xf32>
    %c2_51 = arith.constant 2 : index
    %c0_52 = arith.constant 0 : index
    %c0_53 = arith.constant 0 : index
    %75 = vector.load %arg5[%c2_51, %c0_52, %c0_53] : memref<4x1x8xf32, #tpu.memory_space<vmem>>, vector<1x1x8xf32>
    %76 = vector.shape_cast %75 : vector<1x1x8xf32> to vector<1x8xf32>
    %77 = vector.broadcast %76 : vector<1x8xf32> to vector<8x8xf32>
    %78 = arith.addf %74, %77 : vector<8x8xf32>
    %79 = arith.truncf %78 : vector<8x8xf32> to vector<8x8xbf16>
    %c2_54 = arith.constant 2 : index
    %c0_55 = arith.constant 0 : index
    %c0_56 = arith.constant 0 : index
    %80 = vector.load %arg22[%c2_54, %c0_55, %c0_56] : memref<4x8x8xbf16, #tpu.memory_space<vmem>>, vector<1x8x8xbf16>
    %81 = vector.shape_cast %80 : vector<1x8x8xbf16> to vector<8x8xbf16>
    %cst_57 = arith.constant dense<0.000000e+00> : vector<8x8xf32>
    %82 = tpu.matmul %79, %81, %cst_57 {dimension_numbers = #tpu.dot_dimension_numbers<[1], [1], [0], [0], [0, 0, 1, 0], [], []>} : vector<8x8xbf16>, vector<8x8xbf16>, vector<8x8xf32> -> vector<8x8xf32>
    %83 = arith.addf %82, %11 : vector<8x8xf32>
    %cst_58 = arith.constant dense<0xFF800000> : vector<8xf32>
    %84 = vector.multi_reduction <maximumf>, %83, %cst_58 [1] : vector<8x8xf32> to vector<8xf32>
    %85 = vector.shape_cast %84 : vector<8xf32> to vector<8x1xf32>
    %86 = vector.broadcast %85 : vector<8x1xf32> to vector<8x8xf32>
    %87 = arith.subf %83, %86 : vector<8x8xf32>
    %88 = math.exp %87 : vector<8x8xf32>
    %cst_59 = arith.constant dense<0.000000e+00> : vector<8xf32>
    %89 = vector.multi_reduction <add>, %88, %cst_59 [1] : vector<8x8xf32> to vector<8xf32>
    %90 = vector.shape_cast %89 : vector<8xf32> to vector<8x1xf32>
    %91 = tpu.reciprocal %90 {approx = true} : vector<8x1xf32> -> vector<8x1xf32>
    %92 = vector.broadcast %91 : vector<8x1xf32> to vector<8x8xf32>
    %93 = arith.mulf %88, %92 : vector<8x8xf32>
    %c0_60 = arith.constant 0 : index
    %c2_61 = arith.constant 2 : index
    %c0_62 = arith.constant 0 : index
    %c0_63 = arith.constant 0 : index
    %94 = vector.load %arg21[%c0_60, %c2_61, %c0_62, %c0_63] : memref<1x4x8x8xf32, #tpu.memory_space<vmem>>, vector<1x1x8x8xf32>
    %95 = vector.shape_cast %94 : vector<1x1x8x8xf32> to vector<8x8xf32>
    %96 = vector.shape_cast %93 : vector<8x8xf32> to vector<1x1x8x8xf32>
    tpu.vector_store %arg21[%c0_60, %c2_61, %c0_62, %c0_63], %96 {strides = array<i32>} : memref<1x4x8x8xf32, #tpu.memory_space<vmem>>, vector<1x1x8x8xf32>,
    %97 = arith.truncf %93 : vector<8x8xf32> to vector<8x8xbf16>
    %c2_64 = arith.constant 2 : index
    %c0_65 = arith.constant 0 : index
    %c0_66 = arith.constant 0 : index
    %98 = vector.load %arg23[%c2_64, %c0_65, %c0_66] : memref<4x8x8xbf16, #tpu.memory_space<vmem>>, vector<1x8x8xbf16>
    %99 = vector.shape_cast %98 : vector<1x8x8xbf16> to vector<8x8xbf16>
    %cst_67 = arith.constant dense<0.000000e+00> : vector<8x8xf32>
    %100 = tpu.matmul %97, %99, %cst_67 {dimension_numbers = #tpu.dot_dimension_numbers<[1], [0], [0], [1], [0, 0, 1, 1], [], []>} : vector<8x8xbf16>, vector<8x8xbf16>, vector<8x8xf32> -> vector<8x8xf32>
    %c0_68 = arith.constant 0 : index
    %c16 = arith.constant 16 : index
    %101 = vector.load %arg24[%c0_68, %c16] : memref<8x32xf32, #tpu.memory_space<vmem>>, vector<8x8xf32>
    tpu.vector_store %arg24[%c0_68, %c16], %100 {strides = array<i32>} : memref<8x32xf32, #tpu.memory_space<vmem>>, vector<8x8xf32>,
    %c3 = arith.constant 3 : index
    %c0_69 = arith.constant 0 : index
    %c0_70 = arith.constant 0 : index
    %102 = vector.load %arg4[%c3, %c0_69, %c0_70] : memref<4x32x8xbf16, #tpu.memory_space<vmem>>, vector<1x32x8xbf16>
    %103 = vector.shape_cast %102 : vector<1x32x8xbf16> to vector<32x8xbf16>
    %cst_71 = arith.constant dense<0.000000e+00> : vector<8x8xf32>
    %104 = tpu.matmul %8, %103, %cst_71 {dimension_numbers = #tpu.dot_dimension_numbers<[1], [0], [0], [1], [0, 0, 1, 1], [], []>} : vector<8x32xbf16>, vector<32x8xbf16>, vector<8x8xf32> -> vector<8x8xf32>
    %c3_72 = arith.constant 3 : index
    %c0_73 = arith.constant 0 : index
    %c0_74 = arith.constant 0 : index
    %105 = vector.load %arg5[%c3_72, %c0_73, %c0_74] : memref<4x1x8xf32, #tpu.memory_space<vmem>>, vector<1x1x8xf32>
    %106 = vector.shape_cast %105 : vector<1x1x8xf32> to vector<1x8xf32>
    %107 = vector.broadcast %106 : vector<1x8xf32> to vector<8x8xf32>
    %108 = arith.addf %104, %107 : vector<8x8xf32>
    %109 = arith.truncf %108 : vector<8x8xf32> to vector<8x8xbf16>
    %c3_75 = arith.constant 3 : index
    %c0_76 = arith.constant 0 : index
    %c0_77 = arith.constant 0 : index
    %110 = vector.load %arg22[%c3_75, %c0_76, %c0_77] : memref<4x8x8xbf16, #tpu.memory_space<vmem>>, vector<1x8x8xbf16>
    %111 = vector.shape_cast %110 : vector<1x8x8xbf16> to vector<8x8xbf16>
    %cst_78 = arith.constant dense<0.000000e+00> : vector<8x8xf32>
    %112 = tpu.matmul %109, %111, %cst_78 {dimension_numbers = #tpu.dot_dimension_numbers<[1], [1], [0], [0], [0, 0, 1, 0], [], []>} : vector<8x8xbf16>, vector<8x8xbf16>, vector<8x8xf32> -> vector<8x8xf32>
    %113 = arith.addf %112, %11 : vector<8x8xf32>
    %cst_79 = arith.constant dense<0xFF800000> : vector<8xf32>
    %114 = vector.multi_reduction <maximumf>, %113, %cst_79 [1] : vector<8x8xf32> to vector<8xf32>
    %115 = vector.shape_cast %114 : vector<8xf32> to vector<8x1xf32>
    %116 = vector.broadcast %115 : vector<8x1xf32> to vector<8x8xf32>
    %117 = arith.subf %113, %116 : vector<8x8xf32>
    %118 = math.exp %117 : vector<8x8xf32>
    %cst_80 = arith.constant dense<0.000000e+00> : vector<8xf32>
    %119 = vector.multi_reduction <add>, %118, %cst_80 [1] : vector<8x8xf32> to vector<8xf32>
    %120 = vector.shape_cast %119 : vector<8xf32> to vector<8x1xf32>
    %121 = tpu.reciprocal %120 {approx = true} : vector<8x1xf32> -> vector<8x1xf32>
    %122 = vector.broadcast %121 : vector<8x1xf32> to vector<8x8xf32>
    %123 = arith.mulf %118, %122 : vector<8x8xf32>
    %c0_81 = arith.constant 0 : index
    %c3_82 = arith.constant 3 : index
    %c0_83 = arith.constant 0 : index
    %c0_84 = arith.constant 0 : index
    %124 = vector.load %arg21[%c0_81, %c3_82, %c0_83, %c0_84] : memref<1x4x8x8xf32, #tpu.memory_space<vmem>>, vector<1x1x8x8xf32>
    %125 = vector.shape_cast %124 : vector<1x1x8x8xf32> to vector<8x8xf32>
    %126 = vector.shape_cast %123 : vector<8x8xf32> to vector<1x1x8x8xf32>
    tpu.vector_store %arg21[%c0_81, %c3_82, %c0_83, %c0_84], %126 {strides = array<i32>} : memref<1x4x8x8xf32, #tpu.memory_space<vmem>>, vector<1x1x8x8xf32>,
    %127 = arith.truncf %123 : vector<8x8xf32> to vector<8x8xbf16>
    %c3_85 = arith.constant 3 : index
    %c0_86 = arith.constant 0 : index
    %c0_87 = arith.constant 0 : index
    %128 = vector.load %arg23[%c3_85, %c0_86, %c0_87] : memref<4x8x8xbf16, #tpu.memory_space<vmem>>, vector<1x8x8xbf16>
    %129 = vector.shape_cast %128 : vector<1x8x8xbf16> to vector<8x8xbf16>
    %cst_88 = arith.constant dense<0.000000e+00> : vector<8x8xf32>
    %130 = tpu.matmul %127, %129, %cst_88 {dimension_numbers = #tpu.dot_dimension_numbers<[1], [0], [0], [1], [0, 0, 1, 1], [], []>} : vector<8x8xbf16>, vector<8x8xbf16>, vector<8x8xf32> -> vector<8x8xf32>
    %c0_89 = arith.constant 0 : index
    %c24 = arith.constant 24 : index
    %131 = vector.load %arg24[%c0_89, %c24] : memref<8x32xf32, #tpu.memory_space<vmem>>, vector<8x8xf32>
    tpu.vector_store %arg24[%c0_89, %c24], %130 {strides = array<i32>} : memref<8x32xf32, #tpu.memory_space<vmem>>, vector<8x8xf32>,
    %c0_90 = arith.constant 0 : index
    %c0_91 = arith.constant 0 : index
    %132 = vector.load %arg24[%c0_90, %c0_91] : memref<8x32xf32, #tpu.memory_space<vmem>>, vector<8x32xf32>
    %133 = arith.truncf %132 : vector<8x32xf32> to vector<8x32xbf16>
    %c0_92 = arith.constant 0 : index
    %c0_93 = arith.constant 0 : index
    %134 = vector.load %arg10[%c0_92, %c0_93] : memref<32x32xbf16, #tpu.memory_space<vmem>>, vector<32x32xbf16>
    %cst_94 = arith.constant dense<0.000000e+00> : vector<8x32xf32>
    %135 = tpu.matmul %133, %134, %cst_94 {dimension_numbers = #tpu.dot_dimension_numbers<[1], [0], [0], [1], [0, 0, 1, 1], [], []>} : vector<8x32xbf16>, vector<32x32xbf16>, vector<8x32xf32> -> vector<8x32xf32>
    %c0_95 = arith.constant 0 : index
    %c0_96 = arith.constant 0 : index
    %136 = vector.load %arg11[%c0_95, %c0_96] : memref<1x32xf32, #tpu.memory_space<vmem>>, vector<1x32xf32>
    %137 = vector.broadcast %136 : vector<1x32xf32> to vector<8x32xf32>
    %138 = arith.addf %135, %137 : vector<8x32xf32>
    %139 = arith.addf %138, %7 : vector<8x32xf32>
    %cst_97 = arith.constant dense<0.000000e+00> : vector<8xf32>
    %140 = vector.multi_reduction <add>, %139, %cst_97 [1] : vector<8x32xf32> to vector<8xf32>
    %141 = vector.shape_cast %140 : vector<8xf32> to vector<8x1xf32>
    %cst_98 = arith.constant 3.200000e+01 : f32
    %142 = vector.broadcast %cst_98 : f32 to vector<8x1xf32>
    %143 = arith.divf %141, %142 : vector<8x1xf32>
    %144 = vector.broadcast %143 : vector<8x1xf32> to vector<8x32xf32>
    %145 = arith.subf %139, %144 : vector<8x32xf32>
    %146 = arith.mulf %145, %145 : vector<8x32xf32>
    %cst_99 = arith.constant dense<0.000000e+00> : vector<8xf32>
    %147 = vector.multi_reduction <add>, %146, %cst_99 [1] : vector<8x32xf32> to vector<8xf32>
    %148 = vector.shape_cast %147 : vector<8xf32> to vector<8x1xf32>
    %cst_100 = arith.constant 3.200000e+01 : f32
    %149 = vector.broadcast %cst_100 : f32 to vector<8x1xf32>
    %150 = arith.divf %148, %149 : vector<8x1xf32>
    %151 = vector.broadcast %143 : vector<8x1xf32> to vector<8x32xf32>
    %152 = arith.subf %139, %151 : vector<8x32xf32>
    %cst_101 = arith.constant 9.99999996E-13 : f32
    %153 = vector.broadcast %cst_101 : f32 to vector<8x1xf32>
    %154 = arith.addf %150, %153 : vector<8x1xf32>
    %155 = math.rsqrt %154 : vector<8x1xf32>
    %156 = vector.broadcast %155 : vector<8x1xf32> to vector<8x32xf32>
    %157 = arith.mulf %152, %156 : vector<8x32xf32>
    %c0_102 = arith.constant 0 : index
    %c0_103 = arith.constant 0 : index
    %158 = vector.load %arg12[%c0_102, %c0_103] : memref<1x32xf32, #tpu.memory_space<vmem>>, vector<1x32xf32>
    %159 = vector.broadcast %158 : vector<1x32xf32> to vector<8x32xf32>
    %160 = arith.mulf %157, %159 : vector<8x32xf32>
    %c0_104 = arith.constant 0 : index
    %c0_105 = arith.constant 0 : index
    %161 = vector.load %arg13[%c0_104, %c0_105] : memref<1x32xf32, #tpu.memory_space<vmem>>, vector<1x32xf32>
    %162 = vector.broadcast %161 : vector<1x32xf32> to vector<8x32xf32>
    %163 = arith.addf %160, %162 : vector<8x32xf32>
    %164 = arith.truncf %163 : vector<8x32xf32> to vector<8x32xbf16>
    %c0_106 = arith.constant 0 : index
    %c0_107 = arith.constant 0 : index
    %165 = vector.load %arg14[%c0_106, %c0_107] : memref<32x64xbf16, #tpu.memory_space<vmem>>, vector<32x64xbf16>
    %cst_108 = arith.constant dense<0.000000e+00> : vector<8x64xf32>
    %166 = tpu.matmul %164, %165, %cst_108 {dimension_numbers = #tpu.dot_dimension_numbers<[1], [0], [0], [1], [0, 0, 1, 1], [], []>} : vector<8x32xbf16>, vector<32x64xbf16>, vector<8x64xf32> -> vector<8x64xf32>
    %c0_109 = arith.constant 0 : index
    %c0_110 = arith.constant 0 : index
    %167 = vector.load %arg15[%c0_109, %c0_110] : memref<1x64xf32, #tpu.memory_space<vmem>>, vector<1x64xf32>
    %168 = vector.broadcast %167 : vector<1x64xf32> to vector<8x64xf32>
    %169 = arith.addf %166, %168 : vector<8x64xf32>
    %cst_111 = arith.constant 0.000000e+00 : f32
    %170 = vector.broadcast %cst_111 : f32 to vector<8x64xf32>
    %171 = arith.maximumf %169, %170 : vector<8x64xf32>
    %172 = arith.truncf %171 : vector<8x64xf32> to vector<8x64xbf16>
    %c0_112 = arith.constant 0 : index
    %c0_113 = arith.constant 0 : index
    %173 = vector.load %arg16[%c0_112, %c0_113] : memref<64x32xbf16, #tpu.memory_space<vmem>>, vector<64x32xbf16>
    %cst_114 = arith.constant dense<0.000000e+00> : vector<8x32xf32>
    %174 = tpu.matmul %172, %173, %cst_114 {dimension_numbers = #tpu.dot_dimension_numbers<[1], [0], [0], [1], [0, 0, 1, 1], [], []>} : vector<8x64xbf16>, vector<64x32xbf16>, vector<8x32xf32> -> vector<8x32xf32>
    %c0_115 = arith.constant 0 : index
    %c0_116 = arith.constant 0 : index
    %175 = vector.load %arg17[%c0_115, %c0_116] : memref<1x32xf32, #tpu.memory_space<vmem>>, vector<1x32xf32>
    %176 = vector.broadcast %175 : vector<1x32xf32> to vector<8x32xf32>
    %177 = arith.addf %174, %176 : vector<8x32xf32>
    %178 = arith.addf %177, %163 : vector<8x32xf32>
    %cst_117 = arith.constant dense<0.000000e+00> : vector<8xf32>
    %179 = vector.multi_reduction <add>, %178, %cst_117 [1] : vector<8x32xf32> to vector<8xf32>
    %180 = vector.shape_cast %179 : vector<8xf32> to vector<8x1xf32>
    %cst_118 = arith.constant 3.200000e+01 : f32
    %181 = vector.broadcast %cst_118 : f32 to vector<8x1xf32>
    %182 = arith.divf %180, %181 : vector<8x1xf32>
    %183 = vector.broadcast %182 : vector<8x1xf32> to vector<8x32xf32>
    %184 = arith.subf %178, %183 : vector<8x32xf32>
    %185 = arith.mulf %184, %184 : vector<8x32xf32>
    %cst_119 = arith.constant dense<0.000000e+00> : vector<8xf32>
    %186 = vector.multi_reduction <add>, %185, %cst_119 [1] : vector<8x32xf32> to vector<8xf32>
    %187 = vector.shape_cast %186 : vector<8xf32> to vector<8x1xf32>
    %cst_120 = arith.constant 3.200000e+01 : f32
    %188 = vector.broadcast %cst_120 : f32 to vector<8x1xf32>
    %189 = arith.divf %187, %188 : vector<8x1xf32>
    %190 = vector.broadcast %182 : vector<8x1xf32> to vector<8x32xf32>
    %191 = arith.subf %178, %190 : vector<8x32xf32>
    %cst_121 = arith.constant 9.99999996E-13 : f32
    %192 = vector.broadcast %cst_121 : f32 to vector<8x1xf32>
    %193 = arith.addf %189, %192 : vector<8x1xf32>
    %194 = math.rsqrt %193 : vector<8x1xf32>
    %195 = vector.broadcast %194 : vector<8x1xf32> to vector<8x32xf32>
    %196 = arith.mulf %191, %195 : vector<8x32xf32>
    %c0_122 = arith.constant 0 : index
    %c0_123 = arith.constant 0 : index
    %197 = vector.load %arg18[%c0_122, %c0_123] : memref<1x32xf32, #tpu.memory_space<vmem>>, vector<1x32xf32>
    %198 = vector.broadcast %197 : vector<1x32xf32> to vector<8x32xf32>
    %199 = arith.mulf %196, %198 : vector<8x32xf32>
    %c0_124 = arith.constant 0 : index
    %c0_125 = arith.constant 0 : index
    %200 = vector.load %arg19[%c0_124, %c0_125] : memref<1x32xf32, #tpu.memory_space<vmem>>, vector<1x32xf32>
    %201 = vector.broadcast %200 : vector<1x32xf32> to vector<8x32xf32>
    %202 = arith.addf %199, %201 : vector<8x32xf32>
    %c0_126 = arith.constant 0 : index
    %c0_127 = arith.constant 0 : index
    %c0_128 = arith.constant 0 : index
    %203 = vector.load %arg20[%c0_126, %c0_127, %c0_128] : memref<1x8x32xf32, #tpu.memory_space<vmem>>, vector<1x8x32xf32>
    %204 = vector.shape_cast %203 : vector<1x8x32xf32> to vector<8x32xf32>
    %205 = vector.shape_cast %202 : vector<8x32xf32> to vector<1x8x32xf32>
    tpu.vector_store %arg20[%c0_126, %c0_127, %c0_128], %205 {strides = array<i32>} : memref<1x8x32xf32, #tpu.memory_space<vmem>>, vector<1x8x32xf32>,
    return
  }
  func.func @transform_0(%arg0: i32, %arg1: i32) -> (i32, i32, i32) {
    %c0_i32 = arith.constant 0 : i32
    %c0_i32_0 = arith.constant 0 : i32
    %c0_i32_1 = arith.constant 0 : i32
    return %arg0, %c0_i32, %c0_i32_0 : i32, i32, i32
  }
  func.func @transform_1(%arg0: i32, %arg1: i32) -> (i32, i32, i32) {
    %c0_i32 = arith.constant 0 : i32
    %c0_i32_0 = arith.constant 0 : i32
    return %arg0, %arg1, %c0_i32 : i32, i32, i32
  }
  func.func @transform_2(%arg0: i32, %arg1: i32) -> (i32, i32, i32) {
    %c0_i32 = arith.constant 0 : i32
    %c0_i32_0 = arith.constant 0 : i32
    %c0_i32_1 = arith.constant 0 : i32
    %c0_i32_2 = arith.constant 0 : i32
    return %c0_i32, %c0_i32_0, %c0_i32_1 : i32, i32, i32
  }
  func.func @transform_3(%arg0: i32, %arg1: i32) -> (i32, i32, i32) {
    %c0_i32 = arith.constant 0 : i32
    %c0_i32_0 = arith.constant 0 : i32
    %c0_i32_1 = arith.constant 0 : i32
    %c0_i32_2 = arith.constant 0 : i32
    return %c0_i32, %c0_i32_0, %c0_i32_1 : i32, i32, i32
  }
  func.func @transform_4(%arg0: i32, %arg1: i32) -> (i32, i32, i32) {
    %c0_i32 = arith.constant 0 : i32
    %c0_i32_0 = arith.constant 0 : i32
    %c0_i32_1 = arith.constant 0 : i32
    %c0_i32_2 = arith.constant 0 : i32
    return %c0_i32, %c0_i32_0, %c0_i32_1 : i32, i32, i32
  }
  func.func @transform_5(%arg0: i32, %arg1: i32) -> (i32, i32, i32) {
    %c0_i32 = arith.constant 0 : i32
    %c0_i32_0 = arith.constant 0 : i32
    %c0_i32_1 = arith.constant 0 : i32
    %c0_i32_2 = arith.constant 0 : i32
    return %c0_i32, %c0_i32_0, %c0_i32_1 : i32, i32, i32
  }
  func.func @transform_6(%arg0: i32, %arg1: i32) -> (i32, i32, i32) {
    %c0_i32 = arith.constant 0 : i32
    %c0_i32_0 = arith.constant 0 : i32
    %c0_i32_1 = arith.constant 0 : i32
    %c0_i32_2 = arith.constant 0 : i32
    return %c0_i32, %c0_i32_0, %c0_i32_1 : i32, i32, i32
  }
  func.func @transform_7(%arg0: i32, %arg1: i32) -> (i32, i32, i32) {
    %c0_i32 = arith.constant 0 : i32
    %c0_i32_0 = arith.constant 0 : i32
    %c0_i32_1 = arith.constant 0 : i32
    %c0_i32_2 = arith.constant 0 : i32
    return %c0_i32, %c0_i32_0, %c0_i32_1 : i32, i32, i32
  }
  func.func @transform_8(%arg0: i32, %arg1: i32) -> (i32, i32) {
    %c0_i32 = arith.constant 0 : i32
    %c0_i32_0 = arith.constant 0 : i32
    %c0_i32_1 = arith.constant 0 : i32
    return %c0_i32, %c0_i32_0 : i32, i32
  }
  func.func @transform_9(%arg0: i32, %arg1: i32) -> (i32, i32) {
    %c0_i32 = arith.constant 0 : i32
    %c0_i32_0 = arith.constant 0 : i32
    %c0_i32_1 = arith.constant 0 : i32
    return %c0_i32, %c0_i32_0 : i32, i32
  }
  func.func @transform_10(%arg0: i32, %arg1: i32) -> (i32, i32) {
    %c0_i32 = arith.constant 0 : i32
    %c0_i32_0 = arith.constant 0 : i32
    %c0_i32_1 = arith.constant 0 : i32
    return %c0_i32, %c0_i32_0 : i32, i32
  }
  func.func @transform_11(%arg0: i32, %arg1: i32) -> (i32, i32) {
    %c0_i32 = arith.constant 0 : i32
    %c0_i32_0 = arith.constant 0 : i32
    %c0_i32_1 = arith.constant 0 : i32
    return %c0_i32, %c0_i32_0 : i32, i32
  }
  func.func @transform_12(%arg0: i32, %arg1: i32) -> (i32, i32) {
    %c0_i32 = arith.constant 0 : i32
    %c0_i32_0 = arith.constant 0 : i32
    %c0_i32_1 = arith.constant 0 : i32
    return %c0_i32, %c0_i32_0 : i32, i32
  }
  func.func @transform_13(%arg0: i32, %arg1: i32) -> (i32, i32) {
    %c0_i32 = arith.constant 0 : i32
    %c0_i32_0 = arith.constant 0 : i32
    %c0_i32_1 = arith.constant 0 : i32
    return %c0_i32, %c0_i32_0 : i32, i32
  }
  func.func @transform_14(%arg0: i32, %arg1: i32) -> (i32, i32) {
    %c0_i32 = arith.constant 0 : i32
    %c0_i32_0 = arith.constant 0 : i32
    %c0_i32_1 = arith.constant 0 : i32
    return %c0_i32, %c0_i32_0 : i32, i32
  }
  func.func @transform_15(%arg0: i32, %arg1: i32) -> (i32, i32) {
    %c0_i32 = arith.constant 0 : i32
    %c0_i32_0 = arith.constant 0 : i32
    %c0_i32_1 = arith.constant 0 : i32
    return %c0_i32, %c0_i32_0 : i32, i32
  }
  func.func @transform_16(%arg0: i32, %arg1: i32) -> (i32, i32) {
    %c0_i32 = arith.constant 0 : i32
    %c0_i32_0 = arith.constant 0 : i32
    %c0_i32_1 = arith.constant 0 : i32
    return %c0_i32, %c0_i32_0 : i32, i32
  }
  func.func @transform_17(%arg0: i32, %arg1: i32) -> (i32, i32) {
    %c0_i32 = arith.constant 0 : i32
    %c0_i32_0 = arith.constant 0 : i32
    %c0_i32_1 = arith.constant 0 : i32
    return %c0_i32, %c0_i32_0 : i32, i32
  }
  func.func @transform_18(%arg0: i32, %arg1: i32) -> (i32, i32, i32) {
    %c0_i32 = arith.constant 0 : i32
    %c0_i32_0 = arith.constant 0 : i32
    return %arg0, %arg1, %c0_i32 : i32, i32, i32
  }
  func.func @transform_19(%arg0: i32, %arg1: i32) -> (i32, i32, i32, i32) {
    %c0_i32 = arith.constant 0 : i32
    %c0_i32_0 = arith.constant 0 : i32
    %c0_i32_1 = arith.constant 0 : i32
    return %arg0, %c0_i32, %arg1, %c0_i32_0 : i32, i32, i32, i32
  }
}

module attributes {stable_mosaic.version = 11 : i64} {
  func.func @encoder_layer_kernel(%arg0: i32, %arg1: i32, %arg2: memref<1x8x32xf32, #tpu.memory_space<vmem>>, %arg3: memref<1x8x8xbf16, #tpu.memory_space<vmem>>, %arg4: memref<4x32x8xbf16, #tpu.memory_space<vmem>>, %arg5: memref<4x1x8xf32, #tpu.memory_space<vmem>>, %arg6: memref<4x32x8xbf16, #tpu.memory_space<vmem>>, %arg7: memref<4x1x8xf32, #tpu.memory_space<vmem>>, %arg8: memref<4x32x8xbf16, #tpu.memory_space<vmem>>, %arg9: memref<4x1x8xf32, #tpu.memory_space<vmem>>, %arg10: memref<32x32xbf16, #tpu.memory_space<vmem>>, %arg11: memref<1x32xf32, #tpu.memory_space<vmem>>, %arg12: memref<1x32xf32, #tpu.memory_space<vmem>>, %arg13: memref<1x32xf32, #tpu.memory_space<vmem>>, %arg14: memref<32x64xbf16, #tpu.memory_space<vmem>>, %arg15: memref<1x64xf32, #tpu.memory_space<vmem>>, %arg16: memref<64x32xbf16, #tpu.memory_space<vmem>>, %arg17: memref<1x32xf32, #tpu.memory_space<vmem>>, %arg18: memref<1x32xf32, #tpu.memory_space<vmem>>, %arg19: memref<1x32xf32, #tpu.memory_space<vmem>>, %arg20: memref<1x8x32xf32, #tpu.memory_space<vmem>>, %arg21: memref<1x4x8x8xf32, #tpu.memory_space<vmem>>, %arg22: memref<4x8x8xbf16, #tpu.memory_space<vmem>>, %arg23: memref<4x8x8xbf16, #tpu.memory_space<vmem>>, %arg24: memref<8x32xf32, #tpu.memory_space<vmem>>) attributes {dimension_semantics = [#tpu.dimension_semantics<parallel>, #tpu.dimension_semantics<arbitrary>], iteration_bounds = array<i64: 2, 1>, scalar_prefetch = 0 : i64, scratch_operands = 3 : i64, tpu.core_type = #tpu.core_type<tc>, window_params = [{transform_indices = @transform_0, window_bounds = array<i64: 1, 8, 32>}, {transform_indices = @transform_1, window_bounds = array<i64: 1, 8, 8>}, {pipeline_mode = #tpu.pipeline_mode<synchronous>, transform_indices = @transform_2, window_bounds = array<i64: 4, 32, 8>}, {pipeline_mode = #tpu.pipeline_mode<synchronous>, transform_indices = @transform_3, window_bounds = array<i64: 4, 1, 8>}, {pipeline_mode = #tpu.pipeline_mode<synchronous>, transform_indices = @transform_4, window_bounds = array<i64: 4, 32, 8>}, {pipeline_mode = #tpu.pipeline_mode<synchronous>, transform_indices = @transform_5, window_bounds = array<i64: 4, 1, 8>}, {pipeline_mode = #tpu.pipeline_mode<synchronous>, transform_indices = @transform_6, window_bounds = array<i64: 4, 32, 8>}, {pipeline_mode = #tpu.pipeline_mode<synchronous>, transform_indices = @transform_7, window_bounds = array<i64: 4, 1, 8>}, {pipeline_mode = #tpu.pipeline_mode<synchronous>, transform_indices = @transform_8, window_bounds = array<i64: 32, 32>}, {pipeline_mode = #tpu.pipeline_mode<synchronous>, transform_indices = @transform_9, window_bounds = array<i64: 1, 32>}, {pipeline_mode = #tpu.pipeline_mode<synchronous>, transform_indices = @transform_10, window_bounds = array<i64: 1, 32>}, {pipeline_mode = #tpu.pipeline_mode<synchronous>, transform_indices = @transform_11, window_bounds = array<i64: 1, 32>}, {pipeline_mode = #tpu.pipeline_mode<synchronous>, transform_indices = @transform_12, window_bounds = array<i64: 32, 64>}, {pipeline_mode = #tpu.pipeline_mode<synchronous>, transform_indices = @transform_13, window_bounds = array<i64: 1, 64>}, {pipeline_mode = #tpu.pipeline_mode<synchronous>, transform_indices = @transform_14, window_bounds = array<i64: 64, 32>}, {pipeline_mode = #tpu.pipeline_mode<synchronous>, transform_indices = @transform_15, window_bounds = array<i64: 1, 32>}, {pipeline_mode = #tpu.pipeline_mode<synchronous>, transform_indices = @transform_16, window_bounds = array<i64: 1, 32>}, {pipeline_mode = #tpu.pipeline_mode<synchronous>, transform_indices = @transform_17, window_bounds = array<i64: 1, 32>}, {transform_indices = @transform_18, window_bounds = array<i64: 1, 8, 32>}, {transform_indices = @transform_19, window_bounds = array<i64: 1, 4, 8, 8>}]} {
    %c0_i32 = arith.constant 0 : i32
    %0 = arith.cmpi eq, %arg1, %c0_i32 : i32
    %1 = arith.extui %0 : i1 to i32
    %c0_i32_0 = arith.constant 0 : i32
    %2 = arith.cmpi ne, %1, %c0_i32_0 : i32
    scf.if %2 {
      %c0_129 = arith.constant 0 : index
      %c0_130 = arith.constant 0 : index
      %c0_131 = arith.constant 0 : index
      %206 = vector.load %arg2[%c0_129, %c0_130, %c0_131] : memref<1x8x32xf32, #tpu.memory_space<vmem>>, vector<1x8x32xf32>
      %207 = vector.shape_cast %206 : vector<1x8x32xf32> to vector<8x32xf32>
      %208 = arith.truncf %207 : vector<8x32xf32> to vector<8x32xbf16>
      %c0_132 = arith.constant 0 : index
      %c0_133 = arith.constant 0 : index
      %c0_134 = arith.constant 0 : index
      %209 = vector.load %arg6[%c0_132, %c0_133, %c0_134] : memref<4x32x8xbf16, #tpu.memory_space<vmem>>, vector<1x32x8xbf16>
      %210 = vector.shape_cast %209 : vector<1x32x8xbf16> to vector<32x8xbf16>
      %cst_135 = arith.constant dense<0.000000e+00> : vector<8x8xf32>
      %211 = tpu.matmul %208, %210, %cst_135 {dimension_numbers = #tpu.dot_dimension_numbers<[1], [0], [0], [1], [0, 0, 1, 1], [], []>} : vector<8x32xbf16>, vector<32x8xbf16>, vector<8x8xf32> -> vector<8x8xf32>
      %c0_136 = arith.constant 0 : index
      %c0_137 = arith.constant 0 : index
      %c0_138 = arith.constant 0 : index
      %212 = vector.load %arg7[%c0_136, %c0_137, %c0_138] : memref<4x1x8xf32, #tpu.memory_space<vmem>>, vector<1x1x8xf32>
      %213 = vector.shape_cast %212 : vector<1x1x8xf32> to vector<1x8xf32>
      %214 = vector.broadcast %213 : vector<1x8xf32> to vector<8x8xf32>
      %215 = arith.addf %211, %214 : vector<8x8xf32>
      %c0_139 = arith.constant 0 : index
      %c0_140 = arith.constant 0 : index
      %c0_141 = arith.constant 0 : index
      %216 = vector.load %arg8[%c0_139, %c0_140, %c0_141] : memref<4x32x8xbf16, #tpu.memory_space<vmem>>, vector<1x32x8xbf16>
      %217 = vector.shape_cast %216 : vector<1x32x8xbf16> to vector<32x8xbf16>
      %cst_142 = arith.constant dense<0.000000e+00> : vector<8x8xf32>
      %218 = tpu.matmul %208, %217, %cst_142 {dimension_numbers = #tpu.dot_dimension_numbers<[1], [0], [0], [1], [0, 0, 1, 1], [], []>} : vector<8x32xbf16>, vector<32x8xbf16>, vector<8x8xf32> -> vector<8x8xf32>
      %c0_143 = arith.constant 0 : index
      %c0_144 = arith.constant 0 : index
      %c0_145 = arith.constant 0 : index
      %219 = vector.load %arg9[%c0_143, %c0_144, %c0_145] : memref<4x1x8xf32, #tpu.memory_space<vmem>>, vector<1x1x8xf32>
      %220 = vector.shape_cast %219 : vector<1x1x8xf32> to vector<1x8xf32>
      %221 = vector.broadcast %220 : vector<1x8xf32> to vector<8x8xf32>
      %222 = arith.addf %218, %221 : vector<8x8xf32>
      %223 = arith.truncf %215 : vector<8x8xf32> to vector<8x8xbf16>
      %c0_146 = arith.constant 0 : index
      %c0_147 = arith.constant 0 : index
      %c0_148 = arith.constant 0 : index
      %224 = vector.load %arg22[%c0_146, %c0_147, %c0_148] : memref<4x8x8xbf16, #tpu.memory_space<vmem>>, vector<1x8x8xbf16>
      %225 = vector.shape_cast %224 : vector<1x8x8xbf16> to vector<8x8xbf16>
      %226 = vector.shape_cast %223 : vector<8x8xbf16> to vector<1x8x8xbf16>
      tpu.vector_store %arg22[%c0_146, %c0_147, %c0_148], %226 {strides = array<i32>} : memref<4x8x8xbf16, #tpu.memory_space<vmem>>, vector<1x8x8xbf16>,
      %227 = arith.truncf %222 : vector<8x8xf32> to vector<8x8xbf16>
      %c0_149 = arith.constant 0 : index
      %c0_150 = arith.constant 0 : index
      %c0_151 = arith.constant 0 : index
      %228 = vector.load %arg23[%c0_149, %c0_150, %c0_151] : memref<4x8x8xbf16, #tpu.memory_space<vmem>>, vector<1x8x8xbf16>
      %229 = vector.shape_cast %228 : vector<1x8x8xbf16> to vector<8x8xbf16>
      %230 = vector.shape_cast %227 : vector<8x8xbf16> to vector<1x8x8xbf16>
      tpu.vector_store %arg23[%c0_149, %c0_150, %c0_151], %230 {strides = array<i32>} : memref<4x8x8xbf16, #tpu.memory_space<vmem>>, vector<1x8x8xbf16>,
      %c1_152 = arith.constant 1 : index
      %c0_153 = arith.constant 0 : index
      %c0_154 = arith.constant 0 : index
      %231 = vector.load %arg6[%c1_152, %c0_153, %c0_154] : memref<4x32x8xbf16, #tpu.memory_space<vmem>>, vector<1x32x8xbf16>
      %232 = vector.shape_cast %231 : vector<1x32x8xbf16> to vector<32x8xbf16>
      %cst_155 = arith.constant dense<0.000000e+00> : vector<8x8xf32>
      %233 = tpu.matmul %208, %232, %cst_155 {dimension_numbers = #tpu.dot_dimension_numbers<[1], [0], [0], [1], [0, 0, 1, 1], [], []>} : vector<8x32xbf16>, vector<32x8xbf16>, vector<8x8xf32> -> vector<8x8xf32>
      %c1_156 = arith.constant 1 : index
      %c0_157 = arith.constant 0 : index
      %c0_158 = arith.constant 0 : index
      %234 = vector.load %arg7[%c1_156, %c0_157, %c0_158] : memref<4x1x8xf32, #tpu.memory_space<vmem>>, vector<1x1x8xf32>
      %235 = vector.shape_cast %234 : vector<1x1x8xf32> to vector<1x8xf32>
      %236 = vector.broadcast %235 : vector<1x8xf32> to vector<8x8xf32>
      %237 = arith.addf %233, %236 : vector<8x8xf32>
      %c1_159 = arith.constant 1 : index
      %c0_160 = arith.constant 0 : index
      %c0_161 = arith.constant 0 : index
      %238 = vector.load %arg8[%c1_159, %c0_160, %c0_161] : memref<4x32x8xbf16, #tpu.memory_space<vmem>>, vector<1x32x8xbf16>
      %239 = vector.shape_cast %238 : vector<1x32x8xbf16> to vector<32x8xbf16>
      %cst_162 = arith.constant dense<0.000000e+00> : vector<8x8xf32>
      %240 = tpu.matmul %208, %239, %cst_162 {dimension_numbers = #tpu.dot_dimension_numbers<[1], [0], [0], [1], [0, 0, 1, 1], [], []>} : vector<8x32xbf16>, vector<32x8xbf16>, vector<8x8xf32> -> vector<8x8xf32>
      %c1_163 = arith.constant 1 : index
      %c0_164 = arith.constant 0 : index
      %c0_165 = arith.constant 0 : index
      %241 = vector.load %arg9[%c1_163, %c0_164, %c0_165] : memref<4x1x8xf32, #tpu.memory_space<vmem>>, vector<1x1x8xf32>
      %242 = vector.shape_cast %241 : vector<1x1x8xf32> to vector<1x8xf32>
      %243 = vector.broadcast %242 : vector<1x8xf32> to vector<8x8xf32>
      %244 = arith.addf %240, %243 : vector<8x8xf32>
      %245 = arith.truncf %237 : vector<8x8xf32> to vector<8x8xbf16>
      %c1_166 = arith.constant 1 : index
      %c0_167 = arith.constant 0 : index
      %c0_168 = arith.constant 0 : index
      %246 = vector.load %arg22[%c1_166, %c0_167, %c0_168] : memref<4x8x8xbf16, #tpu.memory_space<vmem>>, vector<1x8x8xbf16>
      %247 = vector.shape_cast %246 : vector<1x8x8xbf16> to vector<8x8xbf16>
      %248 = vector.shape_cast %245 : vector<8x8xbf16> to vector<1x8x8xbf16>
      tpu.vector_store %arg22[%c1_166, %c0_167, %c0_168], %248 {strides = array<i32>} : memref<4x8x8xbf16, #tpu.memory_space<vmem>>, vector<1x8x8xbf16>,
      %249 = arith.truncf %244 : vector<8x8xf32> to vector<8x8xbf16>
      %c1_169 = arith.constant 1 : index
      %c0_170 = arith.constant 0 : index
      %c0_171 = arith.constant 0 : index
      %250 = vector.load %arg23[%c1_169, %c0_170, %c0_171] : memref<4x8x8xbf16, #tpu.memory_space<vmem>>, vector<1x8x8xbf16>
      %251 = vector.shape_cast %250 : vector<1x8x8xbf16> to vector<8x8xbf16>
      %252 = vector.shape_cast %249 : vector<8x8xbf16> to vector<1x8x8xbf16>
      tpu.vector_store %arg23[%c1_169, %c0_170, %c0_171], %252 {strides = array<i32>} : memref<4x8x8xbf16, #tpu.memory_space<vmem>>, vector<1x8x8xbf16>,
      %c2_172 = arith.constant 2 : index
      %c0_173 = arith.constant 0 : index
      %c0_174 = arith.constant 0 : index
      %253 = vector.load %arg6[%c2_172, %c0_173, %c0_174] : memref<4x32x8xbf16, #tpu.memory_space<vmem>>, vector<1x32x8xbf16>
      %254 = vector.shape_cast %253 : vector<1x32x8xbf16> to vector<32x8xbf16>
      %cst_175 = arith.constant dense<0.000000e+00> : vector<8x8xf32>
      %255 = tpu.matmul %208, %254, %cst_175 {dimension_numbers = #tpu.dot_dimension_numbers<[1], [0], [0], [1], [0, 0, 1, 1], [], []>} : vector<8x32xbf16>, vector<32x8xbf16>, vector<8x8xf32> -> vector<8x8xf32>
      %c2_176 = arith.constant 2 : index
      %c0_177 = arith.constant 0 : index
      %c0_178 = arith.constant 0 : index
      %256 = vector.load %arg7[%c2_176, %c0_177, %c0_178] : memref<4x1x8xf32, #tpu.memory_space<vmem>>, vector<1x1x8xf32>
      %257 = vector.shape_cast %256 : vector<1x1x8xf32> to vector<1x8xf32>
      %258 = vector.broadcast %257 : vector<1x8xf32> to vector<8x8xf32>
      %259 = arith.addf %255, %258 : vector<8x8xf32>
      %c2_179 = arith.constant 2 : index
      %c0_180 = arith.constant 0 : index
      %c0_181 = arith.constant 0 : index
      %260 = vector.load %arg8[%c2_179, %c0_180, %c0_181] : memref<4x32x8xbf16, #tpu.memory_space<vmem>>, vector<1x32x8xbf16>
      %261 = vector.shape_cast %260 : vector<1x32x8xbf16> to vector<32x8xbf16>
      %cst_182 = arith.constant dense<0.000000e+00> : vector<8x8xf32>
      %262 = tpu.matmul %208, %261, %cst_182 {dimension_numbers = #tpu.dot_dimension_numbers<[1], [0], [0], [1], [0, 0, 1, 1], [], []>} : vector<8x32xbf16>, vector<32x8xbf16>, vector<8x8xf32> -> vector<8x8xf32>
      %c2_183 = arith.constant 2 : index
      %c0_184 = arith.constant 0 : index
      %c0_185 = arith.constant 0 : index
      %263 = vector.load %arg9[%c2_183, %c0_184, %c0_185] : memref<4x1x8xf32, #tpu.memory_space<vmem>>, vector<1x1x8xf32>
      %264 = vector.shape_cast %263 : vector<1x1x8xf32> to vector<1x8xf32>
      %265 = vector.broadcast %264 : vector<1x8xf32> to vector<8x8xf32>
      %266 = arith.addf %262, %265 : vector<8x8xf32>
      %267 = arith.truncf %259 : vector<8x8xf32> to vector<8x8xbf16>
      %c2_186 = arith.constant 2 : index
      %c0_187 = arith.constant 0 : index
      %c0_188 = arith.constant 0 : index
      %268 = vector.load %arg22[%c2_186, %c0_187, %c0_188] : memref<4x8x8xbf16, #tpu.memory_space<vmem>>, vector<1x8x8xbf16>
      %269 = vector.shape_cast %268 : vector<1x8x8xbf16> to vector<8x8xbf16>
      %270 = vector.shape_cast %267 : vector<8x8xbf16> to vector<1x8x8xbf16>
      tpu.vector_store %arg22[%c2_186, %c0_187, %c0_188], %270 {strides = array<i32>} : memref<4x8x8xbf16, #tpu.memory_space<vmem>>, vector<1x8x8xbf16>,
      %271 = arith.truncf %266 : vector<8x8xf32> to vector<8x8xbf16>
      %c2_189 = arith.constant 2 : index
      %c0_190 = arith.constant 0 : index
      %c0_191 = arith.constant 0 : index
      %272 = vector.load %arg23[%c2_189, %c0_190, %c0_191] : memref<4x8x8xbf16, #tpu.memory_space<vmem>>, vector<1x8x8xbf16>
      %273 = vector.shape_cast %272 : vector<1x8x8xbf16> to vector<8x8xbf16>
      %274 = vector.shape_cast %271 : vector<8x8xbf16> to vector<1x8x8xbf16>
      tpu.vector_store %arg23[%c2_189, %c0_190, %c0_191], %274 {strides = array<i32>} : memref<4x8x8xbf16, #tpu.memory_space<vmem>>, vector<1x8x8xbf16>,
      %c3_192 = arith.constant 3 : index
      %c0_193 = arith.constant 0 : index
      %c0_194 = arith.constant 0 : index
      %275 = vector.load %arg6[%c3_192, %c0_193, %c0_194] : memref<4x32x8xbf16, #tpu.memory_space<vmem>>, vector<1x32x8xbf16>
      %276 = vector.shape_cast %275 : vector<1x32x8xbf16> to vector<32x8xbf16>
      %cst_195 = arith.constant dense<0.000000e+00> : vector<8x8xf32>
      %277 = tpu.matmul %208, %276, %cst_195 {dimension_numbers = #tpu.dot_dimension_numbers<[1], [0], [0], [1], [0, 0, 1, 1], [], []>} : vector<8x32xbf16>, vector<32x8xbf16>, vector<8x8xf32> -> vector<8x8xf32>
      %c3_196 = arith.constant 3 : index
      %c0_197 = arith.constant 0 : index
      %c0_198 = arith.constant 0 : index
      %278 = vector.load %arg7[%c3_196, %c0_197, %c0_198] : memref<4x1x8xf32, #tpu.memory_space<vmem>>, vector<1x1x8xf32>
      %279 = vector.shape_cast %278 : vector<1x1x8xf32> to vector<1x8xf32>
      %280 = vector.broadcast %279 : vector<1x8xf32> to vector<8x8xf32>
      %281 = arith.addf %277, %280 : vector<8x8xf32>
      %c3_199 = arith.constant 3 : index
      %c0_200 = arith.constant 0 : index
      %c0_201 = arith.constant 0 : index
      %282 = vector.load %arg8[%c3_199, %c0_200, %c0_201] : memref<4x32x8xbf16, #tpu.memory_space<vmem>>, vector<1x32x8xbf16>
      %283 = vector.shape_cast %282 : vector<1x32x8xbf16> to vector<32x8xbf16>
      %cst_202 = arith.constant dense<0.000000e+00> : vector<8x8xf32>
      %284 = tpu.matmul %208, %283, %cst_202 {dimension_numbers = #tpu.dot_dimension_numbers<[1], [0], [0], [1], [0, 0, 1, 1], [], []>} : vector<8x32xbf16>, vector<32x8xbf16>, vector<8x8xf32> -> vector<8x8xf32>
      %c3_203 = arith.constant 3 : index
      %c0_204 = arith.constant 0 : index
      %c0_205 = arith.constant 0 : index
      %285 = vector.load %arg9[%c3_203, %c0_204, %c0_205] : memref<4x1x8xf32, #tpu.memory_space<vmem>>, vector<1x1x8xf32>
      %286 = vector.shape_cast %285 : vector<1x1x8xf32> to vector<1x8xf32>
      %287 = vector.broadcast %286 : vector<1x8xf32> to vector<8x8xf32>
      %288 = arith.addf %284, %287 : vector<8x8xf32>
      %289 = arith.truncf %281 : vector<8x8xf32> to vector<8x8xbf16>
      %c3_206 = arith.constant 3 : index
      %c0_207 = arith.constant 0 : index
      %c0_208 = arith.constant 0 : index
      %290 = vector.load %arg22[%c3_206, %c0_207, %c0_208] : memref<4x8x8xbf16, #tpu.memory_space<vmem>>, vector<1x8x8xbf16>
      %291 = vector.shape_cast %290 : vector<1x8x8xbf16> to vector<8x8xbf16>
      %292 = vector.shape_cast %289 : vector<8x8xbf16> to vector<1x8x8xbf16>
      tpu.vector_store %arg22[%c3_206, %c0_207, %c0_208], %292 {strides = array<i32>} : memref<4x8x8xbf16, #tpu.memory_space<vmem>>, vector<1x8x8xbf16>,
      %293 = arith.truncf %288 : vector<8x8xf32> to vector<8x8xbf16>
      %c3_209 = arith.constant 3 : index
      %c0_210 = arith.constant 0 : index
      %c0_211 = arith.constant 0 : index
      %294 = vector.load %arg23[%c3_209, %c0_210, %c0_211] : memref<4x8x8xbf16, #tpu.memory_space<vmem>>, vector<1x8x8xbf16>
      %295 = vector.shape_cast %294 : vector<1x8x8xbf16> to vector<8x8xbf16>
      %296 = vector.shape_cast %293 : vector<8x8xbf16> to vector<1x8x8xbf16>
      tpu.vector_store %arg23[%c3_209, %c0_210, %c0_211], %296 {strides = array<i32>} : memref<4x8x8xbf16, #tpu.memory_space<vmem>>, vector<1x8x8xbf16>,
    } else {
    }
    %c8_i32 = arith.constant 8 : i32
    %3 = arith.muli %arg1, %c8_i32 : i32
    %4 = tpu.assume_multiple %3, 8 : i32
    %c0 = arith.constant 0 : index
    %5 = arith.index_cast %4 : i32 to index
    %c0_1 = arith.constant 0 : index
    %6 = vector.load %arg2[%c0, %5, %c0_1] : memref<1x8x32xf32, #tpu.memory_space<vmem>>, vector<1x8x32xf32>
    %7 = vector.shape_cast %6 : vector<1x8x32xf32> to vector<8x32xf32>
    %8 = arith.truncf %7 : vector<8x32xf32> to vector<8x32xbf16>
    %c0_2 = arith.constant 0 : index
    %c0_3 = arith.constant 0 : index
    %c0_4 = arith.constant 0 : index
    %9 = vector.load %arg3[%c0_2, %c0_3, %c0_4] : memref<1x8x8xbf16, #tpu.memory_space<vmem>>, vector<1x8x8xbf16>
    %10 = vector.shape_cast %9 : vector<1x8x8xbf16> to vector<8x8xbf16>
    %11 = arith.extf %10 : vector<8x8xbf16> to vector<8x8xf32>
    %c0_5 = arith.constant 0 : index
    %c0_6 = arith.constant 0 : index
    %c0_7 = arith.constant 0 : index
    %12 = vector.load %arg4[%c0_5, %c0_6, %c0_7] : memref<4x32x8xbf16, #tpu.memory_space<vmem>>, vector<1x32x8xbf16>
    %13 = vector.shape_cast %12 : vector<1x32x8xbf16> to vector<32x8xbf16>
    %cst = arith.constant dense<0.000000e+00> : vector<8x8xf32>
    %14 = tpu.matmul %8, %13, %cst {dimension_numbers = #tpu.dot_dimension_numbers<[1], [0], [0], [1], [0, 0, 1, 1], [], []>} : vector<8x32xbf16>, vector<32x8xbf16>, vector<8x8xf32> -> vector<8x8xf32>
    %c0_8 = arith.constant 0 : index
    %c0_9 = arith.constant 0 : index
    %c0_10 = arith.constant 0 : index
    %15 = vector.load %arg5[%c0_8, %c0_9, %c0_10] : memref<4x1x8xf32, #tpu.memory_space<vmem>>, vector<1x1x8xf32>
    %16 = vector.shape_cast %15 : vector<1x1x8xf32> to vector<1x8xf32>
    %17 = vector.broadcast %16 : vector<1x8xf32> to vector<8x8xf32>
    %18 = arith.addf %14, %17 : vector<8x8xf32>
    %19 = arith.truncf %18 : vector<8x8xf32> to vector<8x8xbf16>
    %c0_11 = arith.constant 0 : index
    %c0_12 = arith.constant 0 : index
    %c0_13 = arith.constant 0 : index
    %20 = vector.load %arg22[%c0_11, %c0_12, %c0_13] : memref<4x8x8xbf16, #tpu.memory_space<vmem>>, vector<1x8x8xbf16>
    %21 = vector.shape_cast %20 : vector<1x8x8xbf16> to vector<8x8xbf16>
    %cst_14 = arith.constant dense<0.000000e+00> : vector<8x8xf32>
    %22 = tpu.matmul %19, %21, %cst_14 {dimension_numbers = #tpu.dot_dimension_numbers<[1], [1], [0], [0], [0, 0, 1, 0], [], []>} : vector<8x8xbf16>, vector<8x8xbf16>, vector<8x8xf32> -> vector<8x8xf32>
    %23 = arith.addf %22, %11 : vector<8x8xf32>
    %cst_15 = arith.constant dense<0xFF800000> : vector<8xf32>
    %24 = vector.multi_reduction <maximumf>, %23, %cst_15 [1] : vector<8x8xf32> to vector<8xf32>
    %25 = vector.shape_cast %24 : vector<8xf32> to vector<8x1xf32>
    %26 = vector.broadcast %25 : vector<8x1xf32> to vector<8x8xf32>
    %27 = arith.subf %23, %26 : vector<8x8xf32>
    %28 = math.exp %27 : vector<8x8xf32>
    %cst_16 = arith.constant dense<0.000000e+00> : vector<8xf32>
    %29 = vector.multi_reduction <add>, %28, %cst_16 [1] : vector<8x8xf32> to vector<8xf32>
    %30 = vector.shape_cast %29 : vector<8xf32> to vector<8x1xf32>
    %31 = tpu.reciprocal %30 {approx = true} : vector<8x1xf32> -> vector<8x1xf32>
    %32 = vector.broadcast %31 : vector<8x1xf32> to vector<8x8xf32>
    %33 = arith.mulf %28, %32 : vector<8x8xf32>
    %c0_17 = arith.constant 0 : index
    %c0_18 = arith.constant 0 : index
    %c0_19 = arith.constant 0 : index
    %c0_20 = arith.constant 0 : index
    %34 = vector.load %arg21[%c0_17, %c0_18, %c0_19, %c0_20] : memref<1x4x8x8xf32, #tpu.memory_space<vmem>>, vector<1x1x8x8xf32>
    %35 = vector.shape_cast %34 : vector<1x1x8x8xf32> to vector<8x8xf32>
    %36 = vector.shape_cast %33 : vector<8x8xf32> to vector<1x1x8x8xf32>
    tpu.vector_store %arg21[%c0_17, %c0_18, %c0_19, %c0_20], %36 {strides = array<i32>} : memref<1x4x8x8xf32, #tpu.memory_space<vmem>>, vector<1x1x8x8xf32>,
    %37 = arith.truncf %33 : vector<8x8xf32> to vector<8x8xbf16>
    %c0_21 = arith.constant 0 : index
    %c0_22 = arith.constant 0 : index
    %c0_23 = arith.constant 0 : index
    %38 = vector.load %arg23[%c0_21, %c0_22, %c0_23] : memref<4x8x8xbf16, #tpu.memory_space<vmem>>, vector<1x8x8xbf16>
    %39 = vector.shape_cast %38 : vector<1x8x8xbf16> to vector<8x8xbf16>
    %cst_24 = arith.constant dense<0.000000e+00> : vector<8x8xf32>
    %40 = tpu.matmul %37, %39, %cst_24 {dimension_numbers = #tpu.dot_dimension_numbers<[1], [0], [0], [1], [0, 0, 1, 1], [], []>} : vector<8x8xbf16>, vector<8x8xbf16>, vector<8x8xf32> -> vector<8x8xf32>
    %c0_25 = arith.constant 0 : index
    %c0_26 = arith.constant 0 : index
    %41 = vector.load %arg24[%c0_25, %c0_26] : memref<8x32xf32, #tpu.memory_space<vmem>>, vector<8x8xf32>
    tpu.vector_store %arg24[%c0_25, %c0_26], %40 {strides = array<i32>} : memref<8x32xf32, #tpu.memory_space<vmem>>, vector<8x8xf32>,
    %c1 = arith.constant 1 : index
    %c0_27 = arith.constant 0 : index
    %c0_28 = arith.constant 0 : index
    %42 = vector.load %arg4[%c1, %c0_27, %c0_28] : memref<4x32x8xbf16, #tpu.memory_space<vmem>>, vector<1x32x8xbf16>
    %43 = vector.shape_cast %42 : vector<1x32x8xbf16> to vector<32x8xbf16>
    %cst_29 = arith.constant dense<0.000000e+00> : vector<8x8xf32>
    %44 = tpu.matmul %8, %43, %cst_29 {dimension_numbers = #tpu.dot_dimension_numbers<[1], [0], [0], [1], [0, 0, 1, 1], [], []>} : vector<8x32xbf16>, vector<32x8xbf16>, vector<8x8xf32> -> vector<8x8xf32>
    %c1_30 = arith.constant 1 : index
    %c0_31 = arith.constant 0 : index
    %c0_32 = arith.constant 0 : index
    %45 = vector.load %arg5[%c1_30, %c0_31, %c0_32] : memref<4x1x8xf32, #tpu.memory_space<vmem>>, vector<1x1x8xf32>
    %46 = vector.shape_cast %45 : vector<1x1x8xf32> to vector<1x8xf32>
    %47 = vector.broadcast %46 : vector<1x8xf32> to vector<8x8xf32>
    %48 = arith.addf %44, %47 : vector<8x8xf32>
    %49 = arith.truncf %48 : vector<8x8xf32> to vector<8x8xbf16>
    %c1_33 = arith.constant 1 : index
    %c0_34 = arith.constant 0 : index
    %c0_35 = arith.constant 0 : index
    %50 = vector.load %arg22[%c1_33, %c0_34, %c0_35] : memref<4x8x8xbf16, #tpu.memory_space<vmem>>, vector<1x8x8xbf16>
    %51 = vector.shape_cast %50 : vector<1x8x8xbf16> to vector<8x8xbf16>
    %cst_36 = arith.constant dense<0.000000e+00> : vector<8x8xf32>
    %52 = tpu.matmul %49, %51, %cst_36 {dimension_numbers = #tpu.dot_dimension_numbers<[1], [1], [0], [0], [0, 0, 1, 0], [], []>} : vector<8x8xbf16>, vector<8x8xbf16>, vector<8x8xf32> -> vector<8x8xf32>
    %53 = arith.addf %52, %11 : vector<8x8xf32>
    %cst_37 = arith.constant dense<0xFF800000> : vector<8xf32>
    %54 = vector.multi_reduction <maximumf>, %53, %cst_37 [1] : vector<8x8xf32> to vector<8xf32>
    %55 = vector.shape_cast %54 : vector<8xf32> to vector<8x1xf32>
    %56 = vector.broadcast %55 : vector<8x1xf32> to vector<8x8xf32>
    %57 = arith.subf %53, %56 : vector<8x8xf32>
    %58 = math.exp %57 : vector<8x8xf32>
    %cst_38 = arith.constant dense<0.000000e+00> : vector<8xf32>
    %59 = vector.multi_reduction <add>, %58, %cst_38 [1] : vector<8x8xf32> to vector<8xf32>
    %60 = vector.shape_cast %59 : vector<8xf32> to vector<8x1xf32>
    %61 = tpu.reciprocal %60 {approx = true} : vector<8x1xf32> -> vector<8x1xf32>
    %62 = vector.broadcast %61 : vector<8x1xf32> to vector<8x8xf32>
    %63 = arith.mulf %58, %62 : vector<8x8xf32>
    %c0_39 = arith.constant 0 : index
    %c1_40 = arith.constant 1 : index
    %c0_41 = arith.constant 0 : index
    %c0_42 = arith.constant 0 : index
    %64 = vector.load %arg21[%c0_39, %c1_40, %c0_41, %c0_42] : memref<1x4x8x8xf32, #tpu.memory_space<vmem>>, vector<1x1x8x8xf32>
    %65 = vector.shape_cast %64 : vector<1x1x8x8xf32> to vector<8x8xf32>
    %66 = vector.shape_cast %63 : vector<8x8xf32> to vector<1x1x8x8xf32>
    tpu.vector_store %arg21[%c0_39, %c1_40, %c0_41, %c0_42], %66 {strides = array<i32>} : memref<1x4x8x8xf32, #tpu.memory_space<vmem>>, vector<1x1x8x8xf32>,
    %67 = arith.truncf %63 : vector<8x8xf32> to vector<8x8xbf16>
    %c1_43 = arith.constant 1 : index
    %c0_44 = arith.constant 0 : index
    %c0_45 = arith.constant 0 : index
    %68 = vector.load %arg23[%c1_43, %c0_44, %c0_45] : memref<4x8x8xbf16, #tpu.memory_space<vmem>>, vector<1x8x8xbf16>
    %69 = vector.shape_cast %68 : vector<1x8x8xbf16> to vector<8x8xbf16>
    %cst_46 = arith.constant dense<0.000000e+00> : vector<8x8xf32>
    %70 = tpu.matmul %67, %69, %cst_46 {dimension_numbers = #tpu.dot_dimension_numbers<[1], [0], [0], [1], [0, 0, 1, 1], [], []>} : vector<8x8xbf16>, vector<8x8xbf16>, vector<8x8xf32> -> vector<8x8xf32>
    %c0_47 = arith.constant 0 : index
    %c8 = arith.constant 8 : index
    %71 = vector.load %arg24[%c0_47, %c8] : memref<8x32xf32, #tpu.memory_space<vmem>>, vector<8x8xf32>
    tpu.vector_store %arg24[%c0_47, %c8], %70 {strides = array<i32>} : memref<8x32xf32, #tpu.memory_space<vmem>>, vector<8x8xf32>,
    %c2 = arith.constant 2 : index
    %c0_48 = arith.constant 0 : index
    %c0_49 = arith.constant 0 : index
    %72 = vector.load %arg4[%c2, %c0_48, %c0_49] : memref<4x32x8xbf16, #tpu.memory_space<vmem>>, vector<1x32x8xbf16>
    %73 = vector.shape_cast %72 : vector<1x32x8xbf16> to vector<32x8xbf16>
    %cst_50 = arith.constant dense<0.000000e+00> : vector<8x8xf32>
    %74 = tpu.matmul %8, %73, %cst_50 {dimension_numbers = #tpu.dot_dimension_numbers<[1], [0], [0], [1], [0, 0, 1, 1], [], []>} : vector<8x32xbf16>, vector<32x8xbf16>, vector<8x8xf32> -> vector<8x8xf32>
    %c2_51 = arith.constant 2 : index
    %c0_52 = arith.constant 0 : index
    %c0_53 = arith.constant 0 : index
    %75 = vector.load %arg5[%c2_51, %c0_52, %c0_53] : memref<4x1x8xf32, #tpu.memory_space<vmem>>, vector<1x1x8xf32>
    %76 = vector.shape_cast %75 : vector<1x1x8xf32> to vector<1x8xf32>
    %77 = vector.broadcast %76 : vector<1x8xf32> to vector<8x8xf32>
    %78 = arith.addf %74, %77 : vector<8x8xf32>
    %79 = arith.truncf %78 : vector<8x8xf32> to vector<8x8xbf16>
    %c2_54 = arith.constant 2 : index
    %c0_55 = arith.constant 0 : index
    %c0_56 = arith.constant 0 : index
    %80 = vector.load %arg22[%c2_54, %c0_55, %c0_56] : memref<4x8x8xbf16, #tpu.memory_space<vmem>>, vector<1x8x8xbf16>
    %81 = vector.shape_cast %80 : vector<1x8x8xbf16> to vector<8x8xbf16>
    %cst_57 = arith.constant dense<0.000000e+00> : vector<8x8xf32>
    %82 = tpu.matmul %79, %81, %cst_57 {dimension_numbers = #tpu.dot_dimension_numbers<[1], [1], [0], [0], [0, 0, 1, 0], [], []>} : vector<8x8xbf16>, vector<8x8xbf16>, vector<8x8xf32> -> vector<8x8xf32>
    %83 = arith.addf %82, %11 : vector<8x8xf32>
    %cst_58 = arith.constant dense<0xFF800000> : vector<8xf32>
    %84 = vector.multi_reduction <maximumf>, %83, %cst_58 [1] : vector<8x8xf32> to vector<8xf32>
    %85 = vector.shape_cast %84 : vector<8xf32> to vector<8x1xf32>
    %86 = vector.broadcast %85 : vector<8x1xf32> to vector<8x8xf32>
    %87 = arith.subf %83, %86 : vector<8x8xf32>
    %88 = math.exp %87 : vector<8x8xf32>
    %cst_59 = arith.constant dense<0.000000e+00> : vector<8xf32>
    %89 = vector.multi_reduction <add>, %88, %cst_59 [1] : vector<8x8xf32> to vector<8xf32>
    %90 = vector.shape_cast %89 : vector<8xf32> to vector<8x1xf32>
    %91 = tpu.reciprocal %90 {approx = true} : vector<8x1xf32> -> vector<8x1xf32>
    %92 = vector.broadcast %91 : vector<8x1xf32> to vector<8x8xf32>
    %93 = arith.mulf %88, %92 : vector<8x8xf32>
    %c0_60 = arith.constant 0 : index
    %c2_61 = arith.constant 2 : index
    %c0_62 = arith.constant 0 : index
    %c0_63 = arith.constant 0 : index
    %94 = vector.load %arg21[%c0_60, %c2_61, %c0_62, %c0_63] : memref<1x4x8x8xf32, #tpu.memory_space<vmem>>, vector<1x1x8x8xf32>
    %95 = vector.shape_cast %94 : vector<1x1x8x8xf32> to vector<8x8xf32>
    %96 = vector.shape_cast %93 : vector<8x8xf32> to vector<1x1x8x8xf32>
    tpu.vector_store %arg21[%c0_60, %c2_61, %c0_62, %c0_63], %96 {strides = array<i32>} : memref<1x4x8x8xf32, #tpu.memory_space<vmem>>, vector<1x1x8x8xf32>,
    %97 = arith.truncf %93 : vector<8x8xf32> to vector<8x8xbf16>
    %c2_64 = arith.constant 2 : index
    %c0_65 = arith.constant 0 : index
    %c0_66 = arith.constant 0 : index
    %98 = vector.load %arg23[%c2_64, %c0_65, %c0_66] : memref<4x8x8xbf16, #tpu.memory_space<vmem>>, vector<1x8x8xbf16>
    %99 = vector.shape_cast %98 : vector<1x8x8xbf16> to vector<8x8xbf16>
    %cst_67 = arith.constant dense<0.000000e+00> : vector<8x8xf32>
    %100 = tpu.matmul %97, %99, %cst_67 {dimension_numbers = #tpu.dot_dimension_numbers<[1], [0], [0], [1], [0, 0, 1, 1], [], []>} : vector<8x8xbf16>, vector<8x8xbf16>, vector<8x8xf32> -> vector<8x8xf32>
    %c0_68 = arith.constant 0 : index
    %c16 = arith.constant 16 : index
    %101 = vector.load %arg24[%c0_68, %c16] : memref<8x32xf32, #tpu.memory_space<vmem>>, vector<8x8xf32>
    tpu.vector_store %arg24[%c0_68, %c16], %100 {strides = array<i32>} : memref<8x32xf32, #tpu.memory_space<vmem>>, vector<8x8xf32>,
    %c3 = arith.constant 3 : index
    %c0_69 = arith.constant 0 : index
    %c0_70 = arith.constant 0 : index
    %102 = vector.load %arg4[%c3, %c0_69, %c0_70] : memref<4x32x8xbf16, #tpu.memory_space<vmem>>, vector<1x32x8xbf16>
    %103 = vector.shape_cast %102 : vector<1x32x8xbf16> to vector<32x8xbf16>
    %cst_71 = arith.constant dense<0.000000e+00> : vector<8x8xf32>
    %104 = tpu.matmul %8, %103, %cst_71 {dimension_numbers = #tpu.dot_dimension_numbers<[1], [0], [0], [1], [0, 0, 1, 1], [], []>} : vector<8x32xbf16>, vector<32x8xbf16>, vector<8x8xf32> -> vector<8x8xf32>
    %c3_72 = arith.constant 3 : index
    %c0_73 = arith.constant 0 : index
    %c0_74 = arith.constant 0 : index
    %105 = vector.load %arg5[%c3_72, %c0_73, %c0_74] : memref<4x1x8xf32, #tpu.memory_space<vmem>>, vector<1x1x8xf32>
    %106 = vector.shape_cast %105 : vector<1x1x8xf32> to vector<1x8xf32>
    %107 = vector.broadcast %106 : vector<1x8xf32> to vector<8x8xf32>
    %108 = arith.addf %104, %107 : vector<8x8xf32>
    %109 = arith.truncf %108 : vector<8x8xf32> to vector<8x8xbf16>
    %c3_75 = arith.constant 3 : index
    %c0_76 = arith.constant 0 : index
    %c0_77 = arith.constant 0 : index
    %110 = vector.load %arg22[%c3_75, %c0_76, %c0_77] : memref<4x8x8xbf16, #tpu.memory_space<vmem>>, vector<1x8x8xbf16>
    %111 = vector.shape_cast %110 : vector<1x8x8xbf16> to vector<8x8xbf16>
    %cst_78 = arith.constant dense<0.000000e+00> : vector<8x8xf32>
    %112 = tpu.matmul %109, %111, %cst_78 {dimension_numbers = #tpu.dot_dimension_numbers<[1], [1], [0], [0], [0, 0, 1, 0], [], []>} : vector<8x8xbf16>, vector<8x8xbf16>, vector<8x8xf32> -> vector<8x8xf32>
    %113 = arith.addf %112, %11 : vector<8x8xf32>
    %cst_79 = arith.constant dense<0xFF800000> : vector<8xf32>
    %114 = vector.multi_reduction <maximumf>, %113, %cst_79 [1] : vector<8x8xf32> to vector<8xf32>
    %115 = vector.shape_cast %114 : vector<8xf32> to vector<8x1xf32>
    %116 = vector.broadcast %115 : vector<8x1xf32> to vector<8x8xf32>
    %117 = arith.subf %113, %116 : vector<8x8xf32>
    %118 = math.exp %117 : vector<8x8xf32>
    %cst_80 = arith.constant dense<0.000000e+00> : vector<8xf32>
    %119 = vector.multi_reduction <add>, %118, %cst_80 [1] : vector<8x8xf32> to vector<8xf32>
    %120 = vector.shape_cast %119 : vector<8xf32> to vector<8x1xf32>
    %121 = tpu.reciprocal %120 {approx = true} : vector<8x1xf32> -> vector<8x1xf32>
    %122 = vector.broadcast %121 : vector<8x1xf32> to vector<8x8xf32>
    %123 = arith.mulf %118, %122 : vector<8x8xf32>
    %c0_81 = arith.constant 0 : index
    %c3_82 = arith.constant 3 : index
    %c0_83 = arith.constant 0 : index
    %c0_84 = arith.constant 0 : index
    %124 = vector.load %arg21[%c0_81, %c3_82, %c0_83, %c0_84] : memref<1x4x8x8xf32, #tpu.memory_space<vmem>>, vector<1x1x8x8xf32>
    %125 = vector.shape_cast %124 : vector<1x1x8x8xf32> to vector<8x8xf32>
    %126 = vector.shape_cast %123 : vector<8x8xf32> to vector<1x1x8x8xf32>
    tpu.vector_store %arg21[%c0_81, %c3_82, %c0_83, %c0_84], %126 {strides = array<i32>} : memref<1x4x8x8xf32, #tpu.memory_space<vmem>>, vector<1x1x8x8xf32>,
    %127 = arith.truncf %123 : vector<8x8xf32> to vector<8x8xbf16>
    %c3_85 = arith.constant 3 : index
    %c0_86 = arith.constant 0 : index
    %c0_87 = arith.constant 0 : index
    %128 = vector.load %arg23[%c3_85, %c0_86, %c0_87] : memref<4x8x8xbf16, #tpu.memory_space<vmem>>, vector<1x8x8xbf16>
    %129 = vector.shape_cast %128 : vector<1x8x8xbf16> to vector<8x8xbf16>
    %cst_88 = arith.constant dense<0.000000e+00> : vector<8x8xf32>
    %130 = tpu.matmul %127, %129, %cst_88 {dimension_numbers = #tpu.dot_dimension_numbers<[1], [0], [0], [1], [0, 0, 1, 1], [], []>} : vector<8x8xbf16>, vector<8x8xbf16>, vector<8x8xf32> -> vector<8x8xf32>
    %c0_89 = arith.constant 0 : index
    %c24 = arith.constant 24 : index
    %131 = vector.load %arg24[%c0_89, %c24] : memref<8x32xf32, #tpu.memory_space<vmem>>, vector<8x8xf32>
    tpu.vector_store %arg24[%c0_89, %c24], %130 {strides = array<i32>} : memref<8x32xf32, #tpu.memory_space<vmem>>, vector<8x8xf32>,
    %c0_90 = arith.constant 0 : index
    %c0_91 = arith.constant 0 : index
    %132 = vector.load %arg24[%c0_90, %c0_91] : memref<8x32xf32, #tpu.memory_space<vmem>>, vector<8x32xf32>
    %133 = arith.truncf %132 : vector<8x32xf32> to vector<8x32xbf16>
    %c0_92 = arith.constant 0 : index
    %c0_93 = arith.constant 0 : index
    %134 = vector.load %arg10[%c0_92, %c0_93] : memref<32x32xbf16, #tpu.memory_space<vmem>>, vector<32x32xbf16>
    %cst_94 = arith.constant dense<0.000000e+00> : vector<8x32xf32>
    %135 = tpu.matmul %133, %134, %cst_94 {dimension_numbers = #tpu.dot_dimension_numbers<[1], [0], [0], [1], [0, 0, 1, 1], [], []>} : vector<8x32xbf16>, vector<32x32xbf16>, vector<8x32xf32> -> vector<8x32xf32>
    %c0_95 = arith.constant 0 : index
    %c0_96 = arith.constant 0 : index
    %136 = vector.load %arg11[%c0_95, %c0_96] : memref<1x32xf32, #tpu.memory_space<vmem>>, vector<1x32xf32>
    %137 = vector.broadcast %136 : vector<1x32xf32> to vector<8x32xf32>
    %138 = arith.addf %135, %137 : vector<8x32xf32>
    %139 = arith.addf %138, %7 : vector<8x32xf32>
    %cst_97 = arith.constant dense<0.000000e+00> : vector<8xf32>
    %140 = vector.multi_reduction <add>, %139, %cst_97 [1] : vector<8x32xf32> to vector<8xf32>
    %141 = vector.shape_cast %140 : vector<8xf32> to vector<8x1xf32>
    %cst_98 = arith.constant 3.200000e+01 : f32
    %142 = vector.broadcast %cst_98 : f32 to vector<8x1xf32>
    %143 = arith.divf %141, %142 : vector<8x1xf32>
    %144 = vector.broadcast %143 : vector<8x1xf32> to vector<8x32xf32>
    %145 = arith.subf %139, %144 : vector<8x32xf32>
    %146 = arith.mulf %145, %145 : vector<8x32xf32>
    %cst_99 = arith.constant dense<0.000000e+00> : vector<8xf32>
    %147 = vector.multi_reduction <add>, %146, %cst_99 [1] : vector<8x32xf32> to vector<8xf32>
    %148 = vector.shape_cast %147 : vector<8xf32> to vector<8x1xf32>
    %cst_100 = arith.constant 3.200000e+01 : f32
    %149 = vector.broadcast %cst_100 : f32 to vector<8x1xf32>
    %150 = arith.divf %148, %149 : vector<8x1xf32>
    %151 = vector.broadcast %143 : vector<8x1xf32> to vector<8x32xf32>
    %152 = arith.subf %139, %151 : vector<8x32xf32>
    %cst_101 = arith.constant 9.99999996E-13 : f32
    %153 = vector.broadcast %cst_101 : f32 to vector<8x1xf32>
    %154 = arith.addf %150, %153 : vector<8x1xf32>
    %155 = math.rsqrt %154 : vector<8x1xf32>
    %156 = vector.broadcast %155 : vector<8x1xf32> to vector<8x32xf32>
    %157 = arith.mulf %152, %156 : vector<8x32xf32>
    %c0_102 = arith.constant 0 : index
    %c0_103 = arith.constant 0 : index
    %158 = vector.load %arg12[%c0_102, %c0_103] : memref<1x32xf32, #tpu.memory_space<vmem>>, vector<1x32xf32>
    %159 = vector.broadcast %158 : vector<1x32xf32> to vector<8x32xf32>
    %160 = arith.mulf %157, %159 : vector<8x32xf32>
    %c0_104 = arith.constant 0 : index
    %c0_105 = arith.constant 0 : index
    %161 = vector.load %arg13[%c0_104, %c0_105] : memref<1x32xf32, #tpu.memory_space<vmem>>, vector<1x32xf32>
    %162 = vector.broadcast %161 : vector<1x32xf32> to vector<8x32xf32>
    %163 = arith.addf %160, %162 : vector<8x32xf32>
    %164 = arith.truncf %163 : vector<8x32xf32> to vector<8x32xbf16>
    %c0_106 = arith.constant 0 : index
    %c0_107 = arith.constant 0 : index
    %165 = vector.load %arg14[%c0_106, %c0_107] : memref<32x64xbf16, #tpu.memory_space<vmem>>, vector<32x64xbf16>
    %cst_108 = arith.constant dense<0.000000e+00> : vector<8x64xf32>
    %166 = tpu.matmul %164, %165, %cst_108 {dimension_numbers = #tpu.dot_dimension_numbers<[1], [0], [0], [1], [0, 0, 1, 1], [], []>} : vector<8x32xbf16>, vector<32x64xbf16>, vector<8x64xf32> -> vector<8x64xf32>
    %c0_109 = arith.constant 0 : index
    %c0_110 = arith.constant 0 : index
    %167 = vector.load %arg15[%c0_109, %c0_110] : memref<1x64xf32, #tpu.memory_space<vmem>>, vector<1x64xf32>
    %168 = vector.broadcast %167 : vector<1x64xf32> to vector<8x64xf32>
    %169 = arith.addf %166, %168 : vector<8x64xf32>
    %cst_111 = arith.constant 0.000000e+00 : f32
    %170 = vector.broadcast %cst_111 : f32 to vector<8x64xf32>
    %171 = arith.maximumf %169, %170 : vector<8x64xf32>
    %172 = arith.truncf %171 : vector<8x64xf32> to vector<8x64xbf16>
    %c0_112 = arith.constant 0 : index
    %c0_113 = arith.constant 0 : index
    %173 = vector.load %arg16[%c0_112, %c0_113] : memref<64x32xbf16, #tpu.memory_space<vmem>>, vector<64x32xbf16>
    %cst_114 = arith.constant dense<0.000000e+00> : vector<8x32xf32>
    %174 = tpu.matmul %172, %173, %cst_114 {dimension_numbers = #tpu.dot_dimension_numbers<[1], [0], [0], [1], [0, 0, 1, 1], [], []>} : vector<8x64xbf16>, vector<64x32xbf16>, vector<8x32xf32> -> vector<8x32xf32>
    %c0_115 = arith.constant 0 : index
    %c0_116 = arith.constant 0 : index
    %175 = vector.load %arg17[%c0_115, %c0_116] : memref<1x32xf32, #tpu.memory_space<vmem>>, vector<1x32xf32>
    %176 = vector.broadcast %175 : vector<1x32xf32> to vector<8x32xf32>
    %177 = arith.addf %174, %176 : vector<8x32xf32>
    %178 = arith.addf %177, %163 : vector<8x32xf32>
    %cst_117 = arith.constant dense<0.000000e+00> : vector<8xf32>
    %179 = vector.multi_reduction <add>, %178, %cst_117 [1] : vector<8x32xf32> to vector<8xf32>
    %180 = vector.shape_cast %179 : vector<8xf32> to vector<8x1xf32>
    %cst_118 = arith.constant 3.200000e+01 : f32
    %181 = vector.broadcast %cst_118 : f32 to vector<8x1xf32>
    %182 = arith.divf %180, %181 : vector<8x1xf32>
    %183 = vector.broadcast %182 : vector<8x1xf32> to vector<8x32xf32>
    %184 = arith.subf %178, %183 : vector<8x32xf32>
    %185 = arith.mulf %184, %184 : vector<8x32xf32>
    %cst_119 = arith.constant dense<0.000000e+00> : vector<8xf32>
    %186 = vector.multi_reduction <add>, %185, %cst_119 [1] : vector<8x32xf32> to vector<8xf32>
    %187 = vector.shape_cast %186 : vector<8xf32> to vector<8x1xf32>
    %cst_120 = arith.constant 3.200000e+01 : f32
    %188 = vector.broadcast %cst_120 : f32 to vector<8x1xf32>
    %189 = arith.divf %187, %188 : vector<8x1xf32>
    %190 = vector.broadcast %182 : vector<8x1xf32> to vector<8x32xf32>
    %191 = arith.subf %178, %190 : vector<8x32xf32>
    %cst_121 = arith.constant 9.99999996E-13 : f32
    %192 = vector.broadcast %cst_121 : f32 to vector<8x1xf32>
    %193 = arith.addf %189, %192 : vector<8x1xf32>
    %194 = math.rsqrt %193 : vector<8x1xf32>
    %195 = vector.broadcast %194 : vector<8x1xf32> to vector<8x32xf32>
    %196 = arith.mulf %191, %195 : vector<8x32xf32>
    %c0_122 = arith.constant 0 : index
    %c0_123 = arith.constant 0 : index
    %197 = vector.load %arg18[%c0_122, %c0_123] : memref<1x32xf32, #tpu.memory_space<vmem>>, vector<1x32xf32>
    %198 = vector.broadcast %197 : vector<1x32xf32> to vector<8x32xf32>
    %199 = arith.mulf %196, %198 : vector<8x32xf32>
    %c0_124 = arith.constant 0 : index
    %c0_125 = arith.constant 0 : index
    %200 = vector.load %arg19[%c0_124, %c0_125] : memref<1x32xf32, #tpu.memory_space<vmem>>, vector<1x32xf32>
    %201 = vector.broadcast %200 : vector<1x32xf32> to vector<8x32xf32>
    %202 = arith.addf %199, %201 : vector<8x32xf32>
    %c0_126 = arith.constant 0 : index
    %c0_127 = arith.constant 0 : index
    %c0_128 = arith.constant 0 : index
    %203 = vector.load %arg20[%c0_126, %c0_127, %c0_128] : memref<1x8x32xf32, #tpu.memory_space<vmem>>, vector<1x8x32xf32>
    %204 = vector.shape_cast %203 : vector<1x8x32xf32> to vector<8x32xf32>
    %205 = vector.shape_cast %202 : vector<8x32xf32> to vector<1x8x32xf32>
    tpu.vector_store %arg20[%c0_126, %c0_127, %c0_128], %205 {strides = array<i32>} : memref<1x8x32xf32, #tpu.memory_space<vmem>>, vector<1x8x32xf32>,
    return
  }
  func.func @transform_0(%arg0: i32, %arg1: i32) -> (i32, i32, i32) {
    %c0_i32 = arith.constant 0 : i32
    %c0_i32_0 = arith.constant 0 : i32
    %c0_i32_1 = arith.constant 0 : i32
    return %arg0, %c0_i32, %c0_i32_0 : i32, i32, i32
  }
  func.func @transform_1(%arg0: i32, %arg1: i32) -> (i32, i32, i32) {
    %c0_i32 = arith.constant 0 : i32
    %c0_i32_0 = arith.constant 0 : i32
    return %arg0, %arg1, %c0_i32 : i32, i32, i32
  }
  func.func @transform_2(%arg0: i32, %arg1: i32) -> (i32, i32, i32) {
    %c0_i32 = arith.constant 0 : i32
    %c0_i32_0 = arith.constant 0 : i32
    %c0_i32_1 = arith.constant 0 : i32
    %c0_i32_2 = arith.constant 0 : i32
    return %c0_i32, %c0_i32_0, %c0_i32_1 : i32, i32, i32
  }
  func.func @transform_3(%arg0: i32, %arg1: i32) -> (i32, i32, i32) {
    %c0_i32 = arith.constant 0 : i32
    %c0_i32_0 = arith.constant 0 : i32
    %c0_i32_1 = arith.constant 0 : i32
    %c0_i32_2 = arith.constant 0 : i32
    return %c0_i32, %c0_i32_0, %c0_i32_1 : i32, i32, i32
  }
  func.func @transform_4(%arg0: i32, %arg1: i32) -> (i32, i32, i32) {
    %c0_i32 = arith.constant 0 : i32
    %c0_i32_0 = arith.constant 0 : i32
    %c0_i32_1 = arith.constant 0 : i32
    %c0_i32_2 = arith.constant 0 : i32
    return %c0_i32, %c0_i32_0, %c0_i32_1 : i32, i32, i32
  }
  func.func @transform_5(%arg0: i32, %arg1: i32) -> (i32, i32, i32) {
    %c0_i32 = arith.constant 0 : i32
    %c0_i32_0 = arith.constant 0 : i32
    %c0_i32_1 = arith.constant 0 : i32
    %c0_i32_2 = arith.constant 0 : i32
    return %c0_i32, %c0_i32_0, %c0_i32_1 : i32, i32, i32
  }
  func.func @transform_6(%arg0: i32, %arg1: i32) -> (i32, i32, i32) {
    %c0_i32 = arith.constant 0 : i32
    %c0_i32_0 = arith.constant 0 : i32
    %c0_i32_1 = arith.constant 0 : i32
    %c0_i32_2 = arith.constant 0 : i32
    return %c0_i32, %c0_i32_0, %c0_i32_1 : i32, i32, i32
  }
  func.func @transform_7(%arg0: i32, %arg1: i32) -> (i32, i32, i32) {
    %c0_i32 = arith.constant 0 : i32
    %c0_i32_0 = arith.constant 0 : i32
    %c0_i32_1 = arith.constant 0 : i32
    %c0_i32_2 = arith.constant 0 : i32
    return %c0_i32, %c0_i32_0, %c0_i32_1 : i32, i32, i32
  }
  func.func @transform_8(%arg0: i32, %arg1: i32) -> (i32, i32) {
    %c0_i32 = arith.constant 0 : i32
    %c0_i32_0 = arith.constant 0 : i32
    %c0_i32_1 = arith.constant 0 : i32
    return %c0_i32, %c0_i32_0 : i32, i32
  }
  func.func @transform_9(%arg0: i32, %arg1: i32) -> (i32, i32) {
    %c0_i32 = arith.constant 0 : i32
    %c0_i32_0 = arith.constant 0 : i32
    %c0_i32_1 = arith.constant 0 : i32
    return %c0_i32, %c0_i32_0 : i32, i32
  }
  func.func @transform_10(%arg0: i32, %arg1: i32) -> (i32, i32) {
    %c0_i32 = arith.constant 0 : i32
    %c0_i32_0 = arith.constant 0 : i32
    %c0_i32_1 = arith.constant 0 : i32
    return %c0_i32, %c0_i32_0 : i32, i32
  }
  func.func @transform_11(%arg0: i32, %arg1: i32) -> (i32, i32) {
    %c0_i32 = arith.constant 0 : i32
    %c0_i32_0 = arith.constant 0 : i32
    %c0_i32_1 = arith.constant 0 : i32
    return %c0_i32, %c0_i32_0 : i32, i32
  }
  func.func @transform_12(%arg0: i32, %arg1: i32) -> (i32, i32) {
    %c0_i32 = arith.constant 0 : i32
    %c0_i32_0 = arith.constant 0 : i32
    %c0_i32_1 = arith.constant 0 : i32
    return %c0_i32, %c0_i32_0 : i32, i32
  }
  func.func @transform_13(%arg0: i32, %arg1: i32) -> (i32, i32) {
    %c0_i32 = arith.constant 0 : i32
    %c0_i32_0 = arith.constant 0 : i32
    %c0_i32_1 = arith.constant 0 : i32
    return %c0_i32, %c0_i32_0 : i32, i32
  }
  func.func @transform_14(%arg0: i32, %arg1: i32) -> (i32, i32) {
    %c0_i32 = arith.constant 0 : i32
    %c0_i32_0 = arith.constant 0 : i32
    %c0_i32_1 = arith.constant 0 : i32
    return %c0_i32, %c0_i32_0 : i32, i32
  }
  func.func @transform_15(%arg0: i32, %arg1: i32) -> (i32, i32) {
    %c0_i32 = arith.constant 0 : i32
    %c0_i32_0 = arith.constant 0 : i32
    %c0_i32_1 = arith.constant 0 : i32
    return %c0_i32, %c0_i32_0 : i32, i32
  }
  func.func @transform_16(%arg0: i32, %arg1: i32) -> (i32, i32) {
    %c0_i32 = arith.constant 0 : i32
    %c0_i32_0 = arith.constant 0 : i32
    %c0_i32_1 = arith.constant 0 : i32
    return %c0_i32, %c0_i32_0 : i32, i32
  }
  func.func @transform_17(%arg0: i32, %arg1: i32) -> (i32, i32) {
    %c0_i32 = arith.constant 0 : i32
    %c0_i32_0 = arith.constant 0 : i32
    %c0_i32_1 = arith.constant 0 : i32
    return %c0_i32, %c0_i32_0 : i32, i32
  }
  func.func @transform_18(%arg0: i32, %arg1: i32) -> (i32, i32, i32) {
    %c0_i32 = arith.constant 0 : i32
    %c0_i32_0 = arith.constant 0 : i32
    return %arg0, %arg1, %c0_i32 : i32, i32, i32
  }
  func.func @transform_19(%arg0: i32, %arg1: i32) -> (i32, i32, i32, i32) {
    %c0_i32 = arith.constant 0 : i32
    %c0_i32_0 = arith.constant 0 : i32
    %c0_i32_1 = arith.constant 0 : i32
    return %arg0, %c0_i32, %arg1, %c0_i32_0 : i32, i32, i32, i32
  }
}

</mosaic_0001>

<llo_original>
// kernel: tpu_custom_call.1
$region0: #{tpu_custom_call.1}
  #allocation0 [shape = 'u32[]', space=smem, size = 0x4, offset = 0x4, fixed_abs, tag = 'smem constant byte address 0x4 - core index']
  #allocation1 [shape = 'u32[144,128]{1,0:T(1,128)}', space=vmem, size = 0x12000, scoped, tag = 'internal scratch']
  #allocation2 [shape = 'bf16[4,8,8]{2,1,0:T(8,128)(2,1)}', space=vmem, size = 0x2000, scoped, tag = 'scratch operand']
  #allocation3 [shape = 'bf16[4,8,8]{2,1,0:T(8,128)(2,1)}', space=vmem, size = 0x2000, scoped, tag = 'scratch operand']
  #allocation4 [shape = 'f32[8,32]{1,0:T(8,128)}', space=vmem, size = 0x1000, scoped, tag = 'scratch operand']
  %s0 = inlined_call_operand.vmem [shape: f32[2,8,32], index: 0, kind: input, shape index: {}]
  %s1 = inlined_call_operand.vmem [shape: bf16[2,8,8], index: 1, kind: input, shape index: {}]
  %s2 = inlined_call_operand.vmem [shape: bf16[4,32,8], index: 2, kind: input, shape index: {}]
  %s3 = inlined_call_operand.vmem [shape: f32[4,1,8], index: 3, kind: input, shape index: {}]
  %s4 = inlined_call_operand.vmem [shape: bf16[4,32,8], index: 4, kind: input, shape index: {}]
  %s5 = inlined_call_operand.vmem [shape: f32[4,1,8], index: 5, kind: input, shape index: {}]
  %s6 = inlined_call_operand.vmem [shape: bf16[4,32,8], index: 6, kind: input, shape index: {}]
  %s7 = inlined_call_operand.vmem [shape: f32[4,1,8], index: 7, kind: input, shape index: {}]
  %s8 = inlined_call_operand.vmem [shape: bf16[32,32], index: 8, kind: input, shape index: {}]
  %s9 = inlined_call_operand.vmem [shape: f32[1,32], index: 9, kind: input, shape index: {}]
  %s10 = inlined_call_operand.vmem [shape: f32[1,32], index: 10, kind: input, shape index: {}]
  %s11 = inlined_call_operand.vmem [shape: f32[1,32], index: 11, kind: input, shape index: {}]
  %s12 = inlined_call_operand.vmem [shape: bf16[32,64], index: 12, kind: input, shape index: {}]
  %s13 = inlined_call_operand.vmem [shape: f32[1,64], index: 13, kind: input, shape index: {}]
  %s14 = inlined_call_operand.vmem [shape: bf16[64,32], index: 14, kind: input, shape index: {}]
  %s15 = inlined_call_operand.vmem [shape: f32[1,32], index: 15, kind: input, shape index: {}]
  %s16 = inlined_call_operand.vmem [shape: f32[1,32], index: 16, kind: input, shape index: {}]
  %s17 = inlined_call_operand.vmem [shape: f32[1,32], index: 17, kind: input, shape index: {}]
  %s18 = inlined_call_operand.hbm [shape: f32[2,8,32], index: 18, kind: output, shape index: {0}]
  %s19 = inlined_call_operand.hbm [shape: f32[2,4,8,8], index: 19, kind: output, shape index: {1}]
  %20 = xla_tuple %s18, %s19
  %s21 = sld [smem:[#allocation0]]
  $region117: #{tpu_custom_call.1} parent=0
    _
  %s23 = ssub.s32 1, %s21
  %s24 = scalar_select 0, %s23, %s21
  $region1: #{tpu_custom_call.1} parent=0
    #allocation5 [shape = 'u8[8192]{0}', space=vmem, size = 0x2000, scoped, tag = 'output window, operand 0']
    #allocation6 [shape = 's32[2]{0}', space=sflag, size = 0x8, scoped, tag = 'scoped memory for tpu_custom_call.1']
    #allocation7 [shape = 'u8[32768]{0}', space=vmem, size = 0x8000, scoped, tag = 'output window, operand 1']
    #allocation8 [shape = 's32[2]{0}', space=sflag, size = 0x8, scoped, tag = 'scoped memory for tpu_custom_call.1']
    %25 = vsyncpa [#allocation6], 0
    %s26 = scalar_lea.sflag [#allocation6], 1
    %27 = vsyncpa %s26, 0
    %28 = vsyncpa [#allocation8], 0
    %s29 = scalar_lea.sflag [#allocation8], 1
    %30 = vsyncpa %s29, 0
    loop: start=0, step=1, limit=4
    $region2: #{tpu_custom_call.1} parent=1 // loop_pre_header
      _
    $region3: #{tpu_custom_call.1} parent=1 // loop_header
      %s32 = sphi 0, %s36
      %p33 = scmp.ge.s32.totalorder %s32, 4
      %s39 = sphi 0, %s51
      %s40 = sphi 0, %s47
      %s41 = sphi 0, %s39
      %s42 = sphi 0, %s40
      %s43 = sphi 0, %s41
      %s44 = sphi 0, %s42
      %s54 = sphi 0, %s56
      %s57 = sphi 0, %s54
      %s58 = sphi 0, %s57
      %s74 = sphi 0, %s58
      %s82 = sphi 0, %s84
      %s85 = sphi 0, %s82
      %s86 = sphi 0, %s85
      %s102 = sphi 0, %s86
      %s106 = sphi 0, %s106
      %s108 = sphi 0, %s106
      %s109 = sphi 0, %s108
      %s123 = sphi 0, %s109
      %s127 = sphi 0, %s127
      %s129 = sphi 0, %s127
      %s130 = sphi 0, %s129
      %s144 = sphi 0, %s130
      %s148 = sphi 0, %s148
      %s150 = sphi 0, %s148
      %s151 = sphi 0, %s150
      %s165 = sphi 0, %s151
      %s169 = sphi 0, %s169
      %s171 = sphi 0, %s169
      %s172 = sphi 0, %s171
      %s186 = sphi 0, %s172
      %s190 = sphi 0, %s190
      %s192 = sphi 0, %s190
      %s193 = sphi 0, %s192
      %s207 = sphi 0, %s193
      %s211 = sphi 0, %s211
      %s213 = sphi 0, %s211
      %s214 = sphi 0, %s213
      %s228 = sphi 0, %s214
      %s232 = sphi 0, %s232
      %s234 = sphi 0, %s232
      %s235 = sphi 0, %s234
      %s249 = sphi 0, %s235
      %s253 = sphi 0, %s253
      %s255 = sphi 0, %s253
      %s256 = sphi 0, %s255
      %s270 = sphi 0, %s256
      %s274 = sphi 0, %s274
      %s276 = sphi 0, %s274
      %s277 = sphi 0, %s276
      %s291 = sphi 0, %s277
      %s295 = sphi 0, %s295
      %s297 = sphi 0, %s295
      %s298 = sphi 0, %s297
      %s312 = sphi 0, %s298
      %s316 = sphi 0, %s316
      %s318 = sphi 0, %s316
      %s319 = sphi 0, %s318
      %s333 = sphi 0, %s319
      %s337 = sphi 0, %s337
      %s339 = sphi 0, %s337
      %s340 = sphi 0, %s339
      %s354 = sphi 0, %s340
      %s358 = sphi 0, %s358
      %s360 = sphi 0, %s358
      %s361 = sphi 0, %s360
      %s375 = sphi 0, %s361
      %s379 = sphi 0, %s379
      %s381 = sphi 0, %s379
      %s382 = sphi 0, %s381
      %s396 = sphi 0, %s382
      %s400 = sphi 0, %s400
      %s402 = sphi 0, %s400
      %s403 = sphi 0, %s402
      %s417 = sphi 0, %s403
      %s421 = sphi 0, %s421
      %s423 = sphi 0, %s421
      %s424 = sphi 0, %s423
      %s438 = sphi 0, %s424
      %s446 = sphi 0, %s448
      %s449 = sphi 0, %s446
      %s450 = sphi 0, %s449
      %s466 = sphi 0, %s450
      %s474 = sphi 0, %s476
      %s477 = sphi 0, %s474
      %s478 = sphi 0, %s477
      %s494 = sphi 0, %s478
    $region4: #{tpu_custom_call.1} parent=1 // loop_header_branch
      %35 = sbr.rel (%p33) target = $region8
    $region5: #{tpu_custom_call.1} parent=1 // loop_body
      %s37 = ssub.s32 %s32, 1
      %s38 = ssub.s32 %s32, 2
      %s45 = sadd.s32 1, %s40
      %p46 = scmp.ge.s32.totalorder %s45, 1
      %s47 = scalar_select %p46, 0, %s45
      %s48 = sadd.s32 1, %s39
      %s49 = scalar_select %p46, %s48, %s39
      %p50 = scmp.ge.s32.totalorder %s49, 2
      %s51 = scalar_select %p50, 0, %s49
      %s52 = ssub.s32 %s39, %s51
      %p53 = scmp.eq.s32.totalorder %s52, 0
      %s55 = sadd.s32 %s54, 1
      %s56 = scalar_select %p53, %s54, %s55
      %p59 = pneg %p53
      %p60 = scmp.eq.s32.totalorder %s32, 1
      %p61 = por %p59, %p60
      %p62 = scmp.ne.s32.totalorder %s54, %s57
      %p63 = scmp.eq.s32.totalorder %s32, 0
      %p64 = por %p62, %p63
      %p65 = scmp.ne.s32.totalorder %s54, %s57
      %p66 = scmp.eq.s32.totalorder %s37, 1
      %p67 = por %p65, %p66
      %p68 = scmp.ne.s32.totalorder %s57, %s58
      %p69 = scmp.eq.s32.totalorder %s37, 0
      %p70 = por %p68, %p69
      %p71 = scmp.ne.s32.totalorder %s57, %s58
      %p72 = scmp.eq.s32.totalorder %s38, 1
      %p73 = por %p71, %p72
      %p75 = scmp.ne.s32.totalorder %s58, %s74
      %p76 = scmp.eq.s32.totalorder %s38, 0
      %p77 = por %p75, %p76
      %s78 = ssub.s32 %s39, %s51
      %s79 = ssub.s32 %s40, %s47
      %s80 = sor.u32 %s78, %s79
      %p81 = scmp.eq.s32.totalorder %s80, 0
      %s83 = sadd.s32 %s82, 1
      %s84 = scalar_select %p81, %s82, %s83
      %p87 = pneg %p81
      %p88 = scmp.eq.s32.totalorder %s32, 1
      %p89 = por %p87, %p88
      %p90 = scmp.ne.s32.totalorder %s82, %s85
      %p91 = scmp.eq.s32.totalorder %s32, 0
      %p92 = por %p90, %p91
      %p93 = scmp.ne.s32.totalorder %s82, %s85
      %p94 = scmp.eq.s32.totalorder %s37, 1
      %p95 = por %p93, %p94
      %p96 = scmp.ne.s32.totalorder %s85, %s86
      %p97 = scmp.eq.s32.totalorder %s37, 0
      %p98 = por %p96, %p97
      %p99 = scmp.ne.s32.totalorder %s85, %s86
      %p100 = scmp.eq.s32.totalorder %s38, 1
      %p101 = por %p99, %p100
      %p103 = scmp.ne.s32.totalorder %s86, %s102
      %p104 = scmp.eq.s32.totalorder %s38, 0
      %p105 = por %p103, %p104
      %s107 = sadd.s32 %s106, 1
      %p110 = scmp.eq.s32.totalorder %s32, 1
      %p111 = scmp.ne.s32.totalorder %s106, %s108
      %p112 = scmp.eq.s32.totalorder %s32, 0
      %p113 = por %p111, %p112
      %p114 = scmp.ne.s32.totalorder %s106, %s108
      %p115 = scmp.eq.s32.totalorder %s37, 1
      %p116 = por %p114, %p115
      %p117 = scmp.ne.s32.totalorder %s108, %s109
      %p118 = scmp.eq.s32.totalorder %s37, 0
      %p119 = por %p117, %p118
      %p120 = scmp.ne.s32.totalorder %s108, %s109
      %p121 = scmp.eq.s32.totalorder %s38, 1
      %p122 = por %p120, %p121
      %p124 = scmp.ne.s32.totalorder %s109, %s123
      %p125 = scmp.eq.s32.totalorder %s38, 0
      %p126 = por %p124, %p125
      %s128 = sadd.s32 %s127, 1
      %p131 = scmp.eq.s32.totalorder %s32, 1
      %p132 = scmp.ne.s32.totalorder %s127, %s129
      %p133 = scmp.eq.s32.totalorder %s32, 0
      %p134 = por %p132, %p133
      %p135 = scmp.ne.s32.totalorder %s127, %s129
      %p136 = scmp.eq.s32.totalorder %s37, 1
      %p137 = por %p135, %p136
      %p138 = scmp.ne.s32.totalorder %s129, %s130
      %p139 = scmp.eq.s32.totalorder %s37, 0
      %p140 = por %p138, %p139
      %p141 = scmp.ne.s32.totalorder %s129, %s130
      %p142 = scmp.eq.s32.totalorder %s38, 1
      %p143 = por %p141, %p142
      %p145 = scmp.ne.s32.totalorder %s130, %s144
      %p146 = scmp.eq.s32.totalorder %s38, 0
      %p147 = por %p145, %p146
      %s149 = sadd.s32 %s148, 1
      %p152 = scmp.eq.s32.totalorder %s32, 1
      %p153 = scmp.ne.s32.totalorder %s148, %s150
      %p154 = scmp.eq.s32.totalorder %s32, 0
      %p155 = por %p153, %p154
      %p156 = scmp.ne.s32.totalorder %s148, %s150
      %p157 = scmp.eq.s32.totalorder %s37, 1
      %p158 = por %p156, %p157
      %p159 = scmp.ne.s32.totalorder %s150, %s151
      %p160 = scmp.eq.s32.totalorder %s37, 0
      %p161 = por %p159, %p160
      %p162 = scmp.ne.s32.totalorder %s150, %s151
      %p163 = scmp.eq.s32.totalorder %s38, 1
      %p164 = por %p162, %p163
      %p166 = scmp.ne.s32.totalorder %s151, %s165
      %p167 = scmp.eq.s32.totalorder %s38, 0
      %p168 = por %p166, %p167
      %s170 = sadd.s32 %s169, 1
      %p173 = scmp.eq.s32.totalorder %s32, 1
      %p174 = scmp.ne.s32.totalorder %s169, %s171
      %p175 = scmp.eq.s32.totalorder %s32, 0
      %p176 = por %p174, %p175
      %p177 = scmp.ne.s32.totalorder %s169, %s171
      %p178 = scmp.eq.s32.totalorder %s37, 1
      %p179 = por %p177, %p178
      %p180 = scmp.ne.s32.totalorder %s171, %s172
      %p181 = scmp.eq.s32.totalorder %s37, 0
      %p182 = por %p180, %p181
      %p183 = scmp.ne.s32.totalorder %s171, %s172
      %p184 = scmp.eq.s32.totalorder %s38, 1
      %p185 = por %p183, %p184
      %p187 = scmp.ne.s32.totalorder %s172, %s186
      %p188 = scmp.eq.s32.totalorder %s38, 0
      %p189 = por %p187, %p188
      %s191 = sadd.s32 %s190, 1
      %p194 = scmp.eq.s32.totalorder %s32, 1
      %p195 = scmp.ne.s32.totalorder %s190, %s192
      %p196 = scmp.eq.s32.totalorder %s32, 0
      %p197 = por %p195, %p196
      %p198 = scmp.ne.s32.totalorder %s190, %s192
      %p199 = scmp.eq.s32.totalorder %s37, 1
      %p200 = por %p198, %p199
      %p201 = scmp.ne.s32.totalorder %s192, %s193
      %p202 = scmp.eq.s32.totalorder %s37, 0
      %p203 = por %p201, %p202
      %p204 = scmp.ne.s32.totalorder %s192, %s193
      %p205 = scmp.eq.s32.totalorder %s38, 1
      %p206 = por %p204, %p205
      %p208 = scmp.ne.s32.totalorder %s193, %s207
      %p209 = scmp.eq.s32.totalorder %s38, 0
      %p210 = por %p208, %p209
      %s212 = sadd.s32 %s211, 1
      %p215 = scmp.eq.s32.totalorder %s32, 1
      %p216 = scmp.ne.s32.totalorder %s211, %s213
      %p217 = scmp.eq.s32.totalorder %s32, 0
      %p218 = por %p216, %p217
      %p219 = scmp.ne.s32.totalorder %s211, %s213
      %p220 = scmp.eq.s32.totalorder %s37, 1
      %p221 = por %p219, %p220
      %p222 = scmp.ne.s32.totalorder %s213, %s214
      %p223 = scmp.eq.s32.totalorder %s37, 0
      %p224 = por %p222, %p223
      %p225 = scmp.ne.s32.totalorder %s213, %s214
      %p226 = scmp.eq.s32.totalorder %s38, 1
      %p227 = por %p225, %p226
      %p229 = scmp.ne.s32.totalorder %s214, %s228
      %p230 = scmp.eq.s32.totalorder %s38, 0
      %p231 = por %p229, %p230
      %s233 = sadd.s32 %s232, 1
      %p236 = scmp.eq.s32.totalorder %s32, 1
      %p237 = scmp.ne.s32.totalorder %s232, %s234
      %p238 = scmp.eq.s32.totalorder %s32, 0
      %p239 = por %p237, %p238
      %p240 = scmp.ne.s32.totalorder %s232, %s234
      %p241 = scmp.eq.s32.totalorder %s37, 1
      %p242 = por %p240, %p241
      %p243 = scmp.ne.s32.totalorder %s234, %s235
      %p244 = scmp.eq.s32.totalorder %s37, 0
      %p245 = por %p243, %p244
      %p246 = scmp.ne.s32.totalorder %s234, %s235
      %p247 = scmp.eq.s32.totalorder %s38, 1
      %p248 = por %p246, %p247
      %p250 = scmp.ne.s32.totalorder %s235, %s249
      %p251 = scmp.eq.s32.totalorder %s38, 0
      %p252 = por %p250, %p251
      %s254 = sadd.s32 %s253, 1
      %p257 = scmp.eq.s32.totalorder %s32, 1
      %p258 = scmp.ne.s32.totalorder %s253, %s255
      %p259 = scmp.eq.s32.totalorder %s32, 0
      %p260 = por %p258, %p259
      %p261 = scmp.ne.s32.totalorder %s253, %s255
      %p262 = scmp.eq.s32.totalorder %s37, 1
      %p263 = por %p261, %p262
      %p264 = scmp.ne.s32.totalorder %s255, %s256
      %p265 = scmp.eq.s32.totalorder %s37, 0
      %p266 = por %p264, %p265
      %p267 = scmp.ne.s32.totalorder %s255, %s256
      %p268 = scmp.eq.s32.totalorder %s38, 1
      %p269 = por %p267, %p268
      %p271 = scmp.ne.s32.totalorder %s256, %s270
      %p272 = scmp.eq.s32.totalorder %s38, 0
      %p273 = por %p271, %p272
      %s275 = sadd.s32 %s274, 1
      %p278 = scmp.eq.s32.totalorder %s32, 1
      %p279 = scmp.ne.s32.totalorder %s274, %s276
      %p280 = scmp.eq.s32.totalorder %s32, 0
      %p281 = por %p279, %p280
      %p282 = scmp.ne.s32.totalorder %s274, %s276
      %p283 = scmp.eq.s32.totalorder %s37, 1
      %p284 = por %p282, %p283
      %p285 = scmp.ne.s32.totalorder %s276, %s277
      %p286 = scmp.eq.s32.totalorder %s37, 0
      %p287 = por %p285, %p286
      %p288 = scmp.ne.s32.totalorder %s276, %s277
      %p289 = scmp.eq.s32.totalorder %s38, 1
      %p290 = por %p288, %p289
      %p292 = scmp.ne.s32.totalorder %s277, %s291
      %p293 = scmp.eq.s32.totalorder %s38, 0
      %p294 = por %p292, %p293
      %s296 = sadd.s32 %s295, 1
      %p299 = scmp.eq.s32.totalorder %s32, 1
      %p300 = scmp.ne.s32.totalorder %s295, %s297
      %p301 = scmp.eq.s32.totalorder %s32, 0
      %p302 = por %p300, %p301
      %p303 = scmp.ne.s32.totalorder %s295, %s297
      %p304 = scmp.eq.s32.totalorder %s37, 1
      %p305 = por %p303, %p304
      %p306 = scmp.ne.s32.totalorder %s297, %s298
      %p307 = scmp.eq.s32.totalorder %s37, 0
      %p308 = por %p306, %p307
      %p309 = scmp.ne.s32.totalorder %s297, %s298
      %p310 = scmp.eq.s32.totalorder %s38, 1
      %p311 = por %p309, %p310
      %p313 = scmp.ne.s32.totalorder %s298, %s312
      %p314 = scmp.eq.s32.totalorder %s38, 0
      %p315 = por %p313, %p314
      %s317 = sadd.s32 %s316, 1
      %p320 = scmp.eq.s32.totalorder %s32, 1
      %p321 = scmp.ne.s32.totalorder %s316, %s318
      %p322 = scmp.eq.s32.totalorder %s32, 0
      %p323 = por %p321, %p322
      %p324 = scmp.ne.s32.totalorder %s316, %s318
      %p325 = scmp.eq.s32.totalorder %s37, 1
      %p326 = por %p324, %p325
      %p327 = scmp.ne.s32.totalorder %s318, %s319
      %p328 = scmp.eq.s32.totalorder %s37, 0
      %p329 = por %p327, %p328
      %p330 = scmp.ne.s32.totalorder %s318, %s319
      %p331 = scmp.eq.s32.totalorder %s38, 1
      %p332 = por %p330, %p331
      %p334 = scmp.ne.s32.totalorder %s319, %s333
      %p335 = scmp.eq.s32.totalorder %s38, 0
      %p336 = por %p334, %p335
      %s338 = sadd.s32 %s337, 1
      %p341 = scmp.eq.s32.totalorder %s32, 1
      %p342 = scmp.ne.s32.totalorder %s337, %s339
      %p343 = scmp.eq.s32.totalorder %s32, 0
      %p344 = por %p342, %p343
      %p345 = scmp.ne.s32.totalorder %s337, %s339
      %p346 = scmp.eq.s32.totalorder %s37, 1
      %p347 = por %p345, %p346
      %p348 = scmp.ne.s32.totalorder %s339, %s340
      %p349 = scmp.eq.s32.totalorder %s37, 0
      %p350 = por %p348, %p349
      %p351 = scmp.ne.s32.totalorder %s339, %s340
      %p352 = scmp.eq.s32.totalorder %s38, 1
      %p353 = por %p351, %p352
      %p355 = scmp.ne.s32.totalorder %s340, %s354
      %p356 = scmp.eq.s32.totalorder %s38, 0
      %p357 = por %p355, %p356
      %s359 = sadd.s32 %s358, 1
      %p362 = scmp.eq.s32.totalorder %s32, 1
      %p363 = scmp.ne.s32.totalorder %s358, %s360
      %p364 = scmp.eq.s32.totalorder %s32, 0
      %p365 = por %p363, %p364
      %p366 = scmp.ne.s32.totalorder %s358, %s360
      %p367 = scmp.eq.s32.totalorder %s37, 1
      %p368 = por %p366, %p367
      %p369 = scmp.ne.s32.totalorder %s360, %s361
      %p370 = scmp.eq.s32.totalorder %s37, 0
      %p371 = por %p369, %p370
      %p372 = scmp.ne.s32.totalorder %s360, %s361
      %p373 = scmp.eq.s32.totalorder %s38, 1
      %p374 = por %p372, %p373
      %p376 = scmp.ne.s32.totalorder %s361, %s375
      %p377 = scmp.eq.s32.totalorder %s38, 0
      %p378 = por %p376, %p377
      %s380 = sadd.s32 %s379, 1
      %p383 = scmp.eq.s32.totalorder %s32, 1
      %p384 = scmp.ne.s32.totalorder %s379, %s381
      %p385 = scmp.eq.s32.totalorder %s32, 0
      %p386 = por %p384, %p385
      %p387 = scmp.ne.s32.totalorder %s379, %s381
      %p388 = scmp.eq.s32.totalorder %s37, 1
      %p389 = por %p387, %p388
      %p390 = scmp.ne.s32.totalorder %s381, %s382
      %p391 = scmp.eq.s32.totalorder %s37, 0
      %p392 = por %p390, %p391
      %p393 = scmp.ne.s32.totalorder %s381, %s382
      %p394 = scmp.eq.s32.totalorder %s38, 1
      %p395 = por %p393, %p394
      %p397 = scmp.ne.s32.totalorder %s382, %s396
      %p398 = scmp.eq.s32.totalorder %s38, 0
      %p399 = por %p397, %p398
      %s401 = sadd.s32 %s400, 1
      %p404 = scmp.eq.s32.totalorder %s32, 1
      %p405 = scmp.ne.s32.totalorder %s400, %s402
      %p406 = scmp.eq.s32.totalorder %s32, 0
      %p407 = por %p405, %p406
      %p408 = scmp.ne.s32.totalorder %s400, %s402
      %p409 = scmp.eq.s32.totalorder %s37, 1
      %p410 = por %p408, %p409
      %p411 = scmp.ne.s32.totalorder %s402, %s403
      %p412 = scmp.eq.s32.totalorder %s37, 0
      %p413 = por %p411, %p412
      %p414 = scmp.ne.s32.totalorder %s402, %s403
      %p415 = scmp.eq.s32.totalorder %s38, 1
      %p416 = por %p414, %p415
      %p418 = scmp.ne.s32.totalorder %s403, %s417
      %p419 = scmp.eq.s32.totalorder %s38, 0
      %p420 = por %p418, %p419
      %s422 = sadd.s32 %s421, 1
      %p425 = scmp.eq.s32.totalorder %s32, 1
      %p426 = scmp.ne.s32.totalorder %s421, %s423
      %p427 = scmp.eq.s32.totalorder %s32, 0
      %p428 = por %p426, %p427
      %p429 = scmp.ne.s32.totalorder %s421, %s423
      %p430 = scmp.eq.s32.totalorder %s37, 1
      %p431 = por %p429, %p430
      %p432 = scmp.ne.s32.totalorder %s423, %s424
      %p433 = scmp.eq.s32.totalorder %s37, 0
      %p434 = por %p432, %p433
      %p435 = scmp.ne.s32.totalorder %s423, %s424
      %p436 = scmp.eq.s32.totalorder %s38, 1
      %p437 = por %p435, %p436
      %p439 = scmp.ne.s32.totalorder %s424, %s438
      %p440 = scmp.eq.s32.totalorder %s38, 0
      %p441 = por %p439, %p440
      %s442 = ssub.s32 %s39, %s51
      %s443 = ssub.s32 %s40, %s47
      %s444 = sor.u32 %s442, %s443
      %p445 = scmp.eq.s32.totalorder %s444, 0
      %s447 = sadd.s32 %s446, 1
      %s448 = scalar_select %p445, %s446, %s447
      %p451 = pneg %p445
      %p452 = scmp.eq.s32.totalorder %s32, 1
      %p453 = por %p451, %p452
      %p454 = scmp.ne.s32.totalorder %s446, %s449
      %p455 = scmp.eq.s32.totalorder %s32, 0
      %p456 = por %p454, %p455
      %p457 = scmp.ne.s32.totalorder %s446, %s449
      %p458 = scmp.eq.s32.totalorder %s37, 1
      %p459 = por %p457, %p458
      %p460 = scmp.ne.s32.totalorder %s449, %s450
      %p461 = scmp.eq.s32.totalorder %s37, 0
      %p462 = por %p460, %p461
      %p463 = scmp.ne.s32.totalorder %s449, %s450
      %p464 = scmp.eq.s32.totalorder %s38, 1
      %p465 = por %p463, %p464
      %p467 = scmp.ne.s32.totalorder %s450, %s466
      %p468 = scmp.eq.s32.totalorder %s38, 0
      %p469 = por %p467, %p468
      %s470 = ssub.s32 %s39, %s51
      %s471 = ssub.s32 %s40, %s47
      %s472 = sor.u32 %s470, %s471
      %p473 = scmp.eq.s32.totalorder %s472, 0
      %s475 = sadd.s32 %s474, 1
      %s476 = scalar_select %p473, %s474, %s475
      %p479 = pneg %p473
      %p480 = scmp.eq.s32.totalorder %s32, 1
      %p481 = por %p479, %p480
      %p482 = scmp.ne.s32.totalorder %s474, %s477
      %p483 = scmp.eq.s32.totalorder %s32, 0
      %p484 = por %p482, %p483
      %p485 = scmp.ne.s32.totalorder %s474, %s477
      %p486 = scmp.eq.s32.totalorder %s37, 1
      %p487 = por %p485, %p486
      %p488 = scmp.ne.s32.totalorder %s477, %s478
      %p489 = scmp.eq.s32.totalorder %s37, 0
      %p490 = por %p488, %p489
      %p491 = scmp.ne.s32.totalorder %s477, %s478
      %p492 = scmp.eq.s32.totalorder %s38, 1
      %p493 = por %p491, %p492
      %p495 = scmp.ne.s32.totalorder %s478, %s494
      %p496 = scmp.eq.s32.totalorder %s38, 0
      %p497 = por %p495, %p496
      %p498 = scmp.le.s32.totalorder 1, %s32
      %p499 = scmp.lt.s32.totalorder %s32, 3
      %p500 = pnand %p498, %p499
      %p501 = pneg %p500
      // Predicated region
      $region9: #{tpu_custom_call.1} parent=5 // pred_check
        _
      $region10: #{tpu_custom_call.1} parent=5 // pred_check_branch
        %503 = sbr.rel (%p500) target = $region12
      $region11: #{tpu_custom_call.1} parent=5 // pred_region
        %s504 = ssub.s32 %s32, 1
        // Predicated region
        $region13: #{tpu_custom_call.1} parent=11 // pred_check
          %p505 = pneg %p119
        $region14: #{tpu_custom_call.1} parent=11 // pred_check_branch
          %507 = sbr.rel (%p505) target = $region16
        $region15: #{tpu_custom_call.1} parent=11 // pred_region
          _
        $region16: #{tpu_custom_call.1} parent=11 // pred_fallthru
          _
        // Predicated region
        $region17: #{tpu_custom_call.1} parent=11 // pred_check
          %p508 = pneg %p140
        $region18: #{tpu_custom_call.1} parent=11 // pred_check_branch
          %510 = sbr.rel (%p508) target = $region20
        $region19: #{tpu_custom_call.1} parent=11 // pred_region
          _
        $region20: #{tpu_custom_call.1} parent=11 // pred_fallthru
          _
        // Predicated region
        $region21: #{tpu_custom_call.1} parent=11 // pred_check
          %p511 = pneg %p161
        $region22: #{tpu_custom_call.1} parent=11 // pred_check_branch
          %513 = sbr.rel (%p511) target = $region24
        $region23: #{tpu_custom_call.1} parent=11 // pred_region
          _
        $region24: #{tpu_custom_call.1} parent=11 // pred_fallthru
          _
        // Predicated region
        $region25: #{tpu_custom_call.1} parent=11 // pred_check
          %p514 = pneg %p182
        $region26: #{tpu_custom_call.1} parent=11 // pred_check_branch
          %516 = sbr.rel (%p514) target = $region28
        $region27: #{tpu_custom_call.1} parent=11 // pred_region
          _
        $region28: #{tpu_custom_call.1} parent=11 // pred_fallthru
          _
        // Predicated region
        $region29: #{tpu_custom_call.1} parent=11 // pred_check
          %p517 = pneg %p203
        $region30: #{tpu_custom_call.1} parent=11 // pred_check_branch
          %519 = sbr.rel (%p517) target = $region32
        $region31: #{tpu_custom_call.1} parent=11 // pred_region
          _
        $region32: #{tpu_custom_call.1} parent=11 // pred_fallthru
          _
        // Predicated region
        $region33: #{tpu_custom_call.1} parent=11 // pred_check
          %p520 = pneg %p224
        $region34: #{tpu_custom_call.1} parent=11 // pred_check_branch
          %522 = sbr.rel (%p520) target = $region36
        $region35: #{tpu_custom_call.1} parent=11 // pred_region
          _
        $region36: #{tpu_custom_call.1} parent=11 // pred_fallthru
          _
        // Predicated region
        $region37: #{tpu_custom_call.1} parent=11 // pred_check
          %p523 = pneg %p245
        $region38: #{tpu_custom_call.1} parent=11 // pred_check_branch
          %525 = sbr.rel (%p523) target = $region40
        $region39: #{tpu_custom_call.1} parent=11 // pred_region
          _
        $region40: #{tpu_custom_call.1} parent=11 // pred_fallthru
          _
        // Predicated region
        $region41: #{tpu_custom_call.1} parent=11 // pred_check
          %p526 = pneg %p266
        $region42: #{tpu_custom_call.1} parent=11 // pred_check_branch
          %528 = sbr.rel (%p526) target = $region44
        $region43: #{tpu_custom_call.1} parent=11 // pred_region
          _
        $region44: #{tpu_custom_call.1} parent=11 // pred_fallthru
          _
        // Predicated region
        $region45: #{tpu_custom_call.1} parent=11 // pred_check
          %p529 = pneg %p287
        $region46: #{tpu_custom_call.1} parent=11 // pred_check_branch
          %531 = sbr.rel (%p529) target = $region48
        $region47: #{tpu_custom_call.1} parent=11 // pred_region
          _
        $region48: #{tpu_custom_call.1} parent=11 // pred_fallthru
          _
        // Predicated region
        $region49: #{tpu_custom_call.1} parent=11 // pred_check
          %p532 = pneg %p308
        $region50: #{tpu_custom_call.1} parent=11 // pred_check_branch
          %534 = sbr.rel (%p532) target = $region52
        $region51: #{tpu_custom_call.1} parent=11 // pred_region
          _
        $region52: #{tpu_custom_call.1} parent=11 // pred_fallthru
          _
        // Predicated region
        $region53: #{tpu_custom_call.1} parent=11 // pred_check
          %p535 = pneg %p329
        $region54: #{tpu_custom_call.1} parent=11 // pred_check_branch
          %537 = sbr.rel (%p535) target = $region56
        $region55: #{tpu_custom_call.1} parent=11 // pred_region
          _
        $region56: #{tpu_custom_call.1} parent=11 // pred_fallthru
          _
        // Predicated region
        $region57: #{tpu_custom_call.1} parent=11 // pred_check
          %p538 = pneg %p350
        $region58: #{tpu_custom_call.1} parent=11 // pred_check_branch
          %540 = sbr.rel (%p538) target = $region60
        $region59: #{tpu_custom_call.1} parent=11 // pred_region
          _
        $region60: #{tpu_custom_call.1} parent=11 // pred_fallthru
          _
        // Predicated region
        $region61: #{tpu_custom_call.1} parent=11 // pred_check
          %p541 = pneg %p371
        $region62: #{tpu_custom_call.1} parent=11 // pred_check_branch
          %543 = sbr.rel (%p541) target = $region64
        $region63: #{tpu_custom_call.1} parent=11 // pred_region
          _
        $region64: #{tpu_custom_call.1} parent=11 // pred_fallthru
          _
        // Predicated region
        $region65: #{tpu_custom_call.1} parent=11 // pred_check
          %p544 = pneg %p392
        $region66: #{tpu_custom_call.1} parent=11 // pred_check_branch
          %546 = sbr.rel (%p544) target = $region68
        $region67: #{tpu_custom_call.1} parent=11 // pred_region
          _
        $region68: #{tpu_custom_call.1} parent=11 // pred_fallthru
          _
        // Predicated region
        $region69: #{tpu_custom_call.1} parent=11 // pred_check
          %p547 = pneg %p413
        $region70: #{tpu_custom_call.1} parent=11 // pred_check_branch
          %549 = sbr.rel (%p547) target = $region72
        $region71: #{tpu_custom_call.1} parent=11 // pred_region
          _
        $region72: #{tpu_custom_call.1} parent=11 // pred_fallthru
          _
        // Predicated region
        $region73: #{tpu_custom_call.1} parent=11 // pred_check
          %p550 = pneg %p434
        $region74: #{tpu_custom_call.1} parent=11 // pred_check_branch
          %552 = sbr.rel (%p550) target = $region76
        $region75: #{tpu_custom_call.1} parent=11 // pred_region
          _
        $region76: #{tpu_custom_call.1} parent=11 // pred_fallthru
          _
      $region12: #{tpu_custom_call.1} parent=5 // pred_fallthru
        _
      %p553 = scmp.lt.s32.totalorder %s32, 2
      // Predicated region
      $region77: #{tpu_custom_call.1} parent=5 // pred_check
        %p554 = pneg %p553
      $region78: #{tpu_custom_call.1} parent=5 // pred_check_branch
        %556 = sbr.rel (%p554) target = $region80
      $region79: #{tpu_custom_call.1} parent=5 // pred_region
        // Predicated region
        $region81: #{tpu_custom_call.1} parent=79 // pred_check
          %p557 = pneg %p64
        $region82: #{tpu_custom_call.1} parent=79 // pred_check_branch
          %559 = sbr.rel (%p557) target = $region84
        $region83: #{tpu_custom_call.1} parent=79 // pred_region
          %p560 = scmp.lt.s32.totalorder %s39, 1
          %s561 = scalar_select %p560, %s39, 1
          %s562 = smul.addr %s561, 8
          %s563 = scalar_lea.vmem %s0, %s562
        $region84: #{tpu_custom_call.1} parent=79 // pred_fallthru
          _
        // Predicated region
        $region85: #{tpu_custom_call.1} parent=79 // pred_check
          %p564 = pneg %p92
        $region86: #{tpu_custom_call.1} parent=79 // pred_check_branch
          %566 = sbr.rel (%p564) target = $region88
        $region87: #{tpu_custom_call.1} parent=79 // pred_region
          %p567 = scmp.lt.s32.totalorder %s39, 1
          %s568 = scalar_select %p567, %s39, 1
          %p569 = scmp.lt.s32.totalorder %s40, 0
          %s570 = scalar_select %p569, %s40, 0
          %s571 = sadd.s32 %s570, %s568
          %s572 = smul.addr %s571, 4
          %s573 = scalar_lea.vmem %s1, %s572
        $region88: #{tpu_custom_call.1} parent=79 // pred_fallthru
          _
      $region80: #{tpu_custom_call.1} parent=5 // pred_fallthru
        _
      %p574 = scmp.le.s32.totalorder 1, %s32
      %p575 = scmp.lt.s32.totalorder %s32, 3
      %p576 = pnand %p574, %p575
      %p577 = pneg %p576
      // Predicated region
      $region89: #{tpu_custom_call.1} parent=5 // pred_check
        _
      $region90: #{tpu_custom_call.1} parent=5 // pred_check_branch
        %579 = sbr.rel (%p576) target = $region92
      $region91: #{tpu_custom_call.1} parent=5 // pred_region
        %s580 = ssub.s32 %s32, 1
        %p581 = scmp.lt.s32.totalorder %s41, 1
        %s582 = scalar_select %p581, %s41, 1
        %s583 = smul.addr %s582, 8
        %s584 = scalar_lea.vmem %s0, %s583
        %p585 = pneg %p70
        %p586 = pneg %p67
        %p587 = scmp.lt.s32.totalorder %s41, 1
        %s588 = scalar_select %p587, %s41, 1
        %p589 = scmp.lt.s32.totalorder %s42, 0
        %s590 = scalar_select %p589, %s42, 0
        %s591 = sadd.s32 %s590, %s588
        %s592 = smul.addr %s591, 4
        %s593 = scalar_lea.vmem %s1, %s592
        %p594 = pneg %p98
        %p595 = pneg %p95
        %p596 = pneg %p119
        %p597 = pneg %p116
        %p598 = pneg %p140
        %p599 = pneg %p137
        %p600 = pneg %p161
        %p601 = pneg %p158
        %p602 = pneg %p182
        %p603 = pneg %p179
        %p604 = pneg %p203
        %p605 = pneg %p200
        %p606 = pneg %p224
        %p607 = pneg %p221
        %p608 = pneg %p245
        %p609 = pneg %p242
        %p610 = pneg %p266
        %p611 = pneg %p263
        %p612 = pneg %p287
        %p613 = pneg %p284
        %p614 = pneg %p308
        %p615 = pneg %p305
        %p616 = pneg %p329
        %p617 = pneg %p326
        %p618 = pneg %p350
        %p619 = pneg %p347
        %p620 = pneg %p371
        %p621 = pneg %p368
        %p622 = pneg %p392
        %p623 = pneg %p389
        %p624 = pneg %p413
        %p625 = pneg %p410
        %p626 = pneg %p434
        %p627 = pneg %p431
        %p628 = pneg %p462
        %p629 = pneg %p459
        %s630 = sand.u32 %s449, 1
        %s631 = scalar_lea.sflag [#allocation6], %s630
        %s632 = sand.u32 %s449, 1
        %s633 = smul.addr %s632, 8
        %s634 = scalar_lea.vmem [#allocation5], %s633
        %p635 = pneg %p490
        %p636 = pneg %p487
        %s637 = sand.u32 %s477, 1
        %s638 = scalar_lea.sflag [#allocation8], %s637
        %s639 = sand.u32 %s477, 1
        %s640 = smul.addr %s639, 32
        %s641 = scalar_lea.vmem [#allocation7], %s640
        %p642 = scmp.lt.s32.totalorder %s41, 1
        %s643 = scalar_select %p642, %s41, 1
        %s644 = smul.addr %s643, 8
        %s645 = scalar_lea.vmem %s0, %s644
        %p646 = scmp.lt.s32.totalorder %s41, 1
        %s647 = scalar_select %p646, %s41, 1
        %p648 = scmp.lt.s32.totalorder %s42, 0
        %s649 = scalar_select %p648, %s42, 0
        %s650 = sadd.s32 %s649, %s647
        %s651 = smul.addr %s650, 4
        %s652 = scalar_lea.vmem %s1, %s651
        %p654 = scmp.eq.s32.totalorder %s42, 0
        // Predicated region
        $region93: #{tpu_custom_call.1} parent=91 // pred_check
          %p655 = pneg %p654
        $region94: #{tpu_custom_call.1} parent=91 // pred_check_branch
          %657 = sbr.rel (%p655) target = $region96
        $region95: #{tpu_custom_call.1} parent=91 // pred_region
          %v658 = vld [vmem:[%s645] sm:$0xff]
          %v659 = vpack.c.bf16 %v658, %v658
          %v660 = vld [vmem:[%s4] sm:$0xf]
          %v661 = vld [vmem:[%s4 + $0x4] sm:$0xf]
          %v662 = vld [vmem:[%s4 + $0x8] sm:$0xf]
          %v663 = vld [vmem:[%s4 + $0xc] sm:$0xf]
          %v664 = vld [vmem:[%s5] sm:$0x1]
          %v666 = vlaneseq
          %v667 = vshrl.u32 %v666, 7
          %v668 = vsub.s32 0, %v667
          %v669 = vrot.slane %v664, %v668
          %v675 = vunpack.c.l.b16 %v660
          %v676 = vunpack.c.l.b16 %v661
          %v677 = vunpack.c.l.b16 %v662
          %v678 = vunpack.c.l.b16 %v663
          %v679 = vpack.c.b16 %v676, %v675
          %v680 = vpack.c.b16 %v678, %v677
          %vm683 = vcmask 261120
          %v685 = vsel %vm683, %v659, 0
          %687 = vmatprep.subr.bf16.mxu0 0
          %688 = vmatpush1.bf16.msra.mxu0 %v679
          %689 = vmatprep.subr.bf16.mxu0 0
          %690 = vmatpush1.bf16.msra.mxu0 %v680
          %691 = vmatprep.subr.bf16.mxu0 0
          %692 = vmatpush1.bf16.msra.mxu0 0
          %693 = vmatprep.subr.bf16.mxu0 0
          %694 = vmatpush1.bf16.msra.mxu0 0
          %695 = vmatprep.subr.bf16.mxu0 0
          %696 = vmatpush1.bf16.msra.mxu0 0
          %697 = vmatprep.subr.bf16.mxu0 0
          %698 = vmatpush1.bf16.msra.mxu0 0
          %699 = vmatprep.subr.bf16.mxu0 0
          %700 = vmatpush1.bf16.msra.mxu0 0
          %701 = vmatprep.subr.bf16.mxu0 0
          %702 = vmatpush1.bf16.msra.mxu0 0
          %703 = vmatprep.subr.bf16.mxu0 0
          %704 = vmatpush1.bf16.msra.mxu0 0
          %705 = vmatprep.subr.bf16.mxu0 0
          %706 = vmatpush1.bf16.msra.mxu0 0
          %707 = vmatprep.subr.bf16.mxu0 0
          %708 = vmatpush1.bf16.msra.mxu0 0
          %709 = vmatprep.subr.bf16.mxu0 0
          %710 = vmatpush1.bf16.msra.mxu0 0
          %711 = vmatprep.subr.bf16.mxu0 0
          %712 = vmatpush1.bf16.msra.mxu0 0
          %713 = vmatprep.subr.bf16.mxu0 0
          %714 = vmatpush1.bf16.msra.mxu0 0
          %715 = vmatprep.subr.bf16.mxu0 0
          %716 = vmatpush1.bf16.msra.mxu0 0
          %717 = vmatprep.subr.bf16.mxu0 0
          %718 = vmatpush1.bf16.msra.mxu0 0
          %719 = vmatprep.mubr.bf16.mxu0 0
          %720 = vmatmul.mubr.bf16.gmra.mrb[0].mxu0 %v685
          %v721 = vpop.f32.mrb[0].mxu0
          %v722 = vadd.f32 %v669, %v721
          %v723 = vpop.f32.mrb[0].mxu0
          %v724 = vpop.f32.mrb[0].mxu0
          %v725 = vpop.f32.mrb[0].mxu0
          %726 = vdwg.mxu0
          %v727 = vld [vmem:[%s6] sm:$0xf]
          %v728 = vld [vmem:[%s6 + $0x4] sm:$0xf]
          %v729 = vld [vmem:[%s6 + $0x8] sm:$0xf]
          %v730 = vld [vmem:[%s6 + $0xc] sm:$0xf]
          %v731 = vld [vmem:[%s7] sm:$0x1]
          %v733 = vlaneseq
          %v734 = vshrl.u32 %v733, 7
          %v735 = vsub.s32 0, %v734
          %v736 = vrot.slane %v731, %v735
          %v742 = vunpack.c.l.b16 %v727
          %v743 = vunpack.c.l.b16 %v728
          %v744 = vunpack.c.l.b16 %v729
          %v745 = vunpack.c.l.b16 %v730
          %v746 = vpack.c.b16 %v743, %v742
          %v747 = vpack.c.b16 %v745, %v744
          %750 = vmatprep.subr.bf16.mxu0 0
          %751 = vmatpush1.bf16.msra.mxu0 %v746
          %752 = vmatprep.subr.bf16.mxu0 0
          %753 = vmatpush1.bf16.msra.mxu0 %v747
          %754 = vmatprep.subr.bf16.mxu0 0
          %755 = vmatpush1.bf16.msra.mxu0 0
          %756 = vmatprep.subr.bf16.mxu0 0
          %757 = vmatpush1.bf16.msra.mxu0 0
          %758 = vmatprep.subr.bf16.mxu0 0
          %759 = vmatpush1.bf16.msra.mxu0 0
          %760 = vmatprep.subr.bf16.mxu0 0
          %761 = vmatpush1.bf16.msra.mxu0 0
          %762 = vmatprep.subr.bf16.mxu0 0
          %763 = vmatpush1.bf16.msra.mxu0 0
          %764 = vmatprep.subr.bf16.mxu0 0
          %765 = vmatpush1.bf16.msra.mxu0 0
          %766 = vmatprep.subr.bf16.mxu0 0
          %767 = vmatpush1.bf16.msra.mxu0 0
          %768 = vmatprep.subr.bf16.mxu0 0
          %769 = vmatpush1.bf16.msra.mxu0 0
          %770 = vmatprep.subr.bf16.mxu0 0
          %771 = vmatpush1.bf16.msra.mxu0 0
          %772 = vmatprep.subr.bf16.mxu0 0
          %773 = vmatpush1.bf16.msra.mxu0 0
          %774 = vmatprep.subr.bf16.mxu0 0
          %775 = vmatpush1.bf16.msra.mxu0 0
          %776 = vmatprep.subr.bf16.mxu0 0
          %777 = vmatpush1.bf16.msra.mxu0 0
          %778 = vmatprep.subr.bf16.mxu0 0
          %779 = vmatpush1.bf16.msra.mxu0 0
          %780 = vmatprep.subr.bf16.mxu0 0
          %781 = vmatpush1.bf16.msra.mxu0 0
          %782 = vmatprep.mubr.bf16.mxu0 0
          %783 = vmatmul.mubr.bf16.gmra.mrb[0].mxu0 %v685
          %v784 = vpop.f32.mrb[0].mxu0
          %v785 = vadd.f32 %v736, %v784
          %v786 = vpop.f32.mrb[0].mxu0
          %v787 = vpop.f32.mrb[0].mxu0
          %v788 = vpop.f32.mrb[0].mxu0
          %789 = vdwg.mxu0
          %v790 = vpack.c.bf16 %v722, %v722
          %vm791 = vcmask 60416
          %792 = vst.msk [vmem:[#allocation2] sm:$0xf] %vm791, %v790
          %v793 = vpack.c.bf16 %v785, %v785
          %794 = vst.msk [vmem:[#allocation3] sm:$0xf] %vm791, %v793
          %s795 = scalar_lea.vmem %s4, 16
          %v796 = vld [vmem:[%s795] sm:$0xf]
          %v797 = vld [vmem:[%s795 + $0x4] sm:$0xf]
          %v798 = vld [vmem:[%s795 + $0x8] sm:$0xf]
          %v799 = vld [vmem:[%s795 + $0xc] sm:$0xf]
          %s800 = scalar_lea.vmem %s5, 1
          %v801 = vld [vmem:[%s800] sm:$0x1]
          %v803 = vlaneseq
          %v804 = vshrl.u32 %v803, 7
          %v805 = vsub.s32 0, %v804
          %v806 = vrot.slane %v801, %v805
          %v812 = vunpack.c.l.b16 %v796
          %v813 = vunpack.c.l.b16 %v797
          %v814 = vunpack.c.l.b16 %v798
          %v815 = vunpack.c.l.b16 %v799
          %v816 = vpack.c.b16 %v813, %v812
          %v817 = vpack.c.b16 %v815, %v814
          %820 = vmatprep.subr.bf16.mxu0 0
          %821 = vmatpush1.bf16.msra.mxu0 %v816
          %822 = vmatprep.subr.bf16.mxu0 0
          %823 = vmatpush1.bf16.msra.mxu0 %v817
          %824 = vmatprep.subr.bf16.mxu0 0
          %825 = vmatpush1.bf16.msra.mxu0 0
          %826 = vmatprep.subr.bf16.mxu0 0
          %827 = vmatpush1.bf16.msra.mxu0 0
          %828 = vmatprep.subr.bf16.mxu0 0
          %829 = vmatpush1.bf16.msra.mxu0 0
          %830 = vmatprep.subr.bf16.mxu0 0
          %831 = vmatpush1.bf16.msra.mxu0 0
          %832 = vmatprep.subr.bf16.mxu0 0
          %833 = vmatpush1.bf16.msra.mxu0 0
          %834 = vmatprep.subr.bf16.mxu0 0
          %835 = vmatpush1.bf16.msra.mxu0 0
          %836 = vmatprep.subr.bf16.mxu0 0
          %837 = vmatpush1.bf16.msra.mxu0 0
          %838 = vmatprep.subr.bf16.mxu0 0
          %839 = vmatpush1.bf16.msra.mxu0 0
          %840 = vmatprep.subr.bf16.mxu0 0
          %841 = vmatpush1.bf16.msra.mxu0 0
          %842 = vmatprep.subr.bf16.mxu0 0
          %843 = vmatpush1.bf16.msra.mxu0 0
          %844 = vmatprep.subr.bf16.mxu0 0
          %845 = vmatpush1.bf16.msra.mxu0 0
          %846 = vmatprep.subr.bf16.mxu0 0
          %847 = vmatpush1.bf16.msra.mxu0 0
          %848 = vmatprep.subr.bf16.mxu0 0
          %849 = vmatpush1.bf16.msra.mxu0 0
          %850 = vmatprep.subr.bf16.mxu0 0
          %851 = vmatpush1.bf16.msra.mxu0 0
          %852 = vmatprep.mubr.bf16.mxu0 0
          %853 = vmatmul.mubr.bf16.gmra.mrb[0].mxu0 %v685
          %v854 = vpop.f32.mrb[0].mxu0
          %v855 = vadd.f32 %v806, %v854
          %v856 = vpop.f32.mrb[0].mxu0
          %v857 = vpop.f32.mrb[0].mxu0
          %v858 = vpop.f32.mrb[0].mxu0
          %859 = vdwg.mxu0
          %s860 = scalar_lea.vmem %s6, 16
          %v861 = vld [vmem:[%s860] sm:$0xf]
          %v862 = vld [vmem:[%s860 + $0x4] sm:$0xf]
          %v863 = vld [vmem:[%s860 + $0x8] sm:$0xf]
          %v864 = vld [vmem:[%s860 + $0xc] sm:$0xf]
          %s865 = scalar_lea.vmem %s7, 1
          %v866 = vld [vmem:[%s865] sm:$0x1]
          %v868 = vlaneseq
          %v869 = vshrl.u32 %v868, 7
          %v870 = vsub.s32 0, %v869
          %v871 = vrot.slane %v866, %v870
          %v877 = vunpack.c.l.b16 %v861
          %v878 = vunpack.c.l.b16 %v862
          %v879 = vunpack.c.l.b16 %v863
          %v880 = vunpack.c.l.b16 %v864
          %v881 = vpack.c.b16 %v878, %v877
          %v882 = vpack.c.b16 %v880, %v879
          %885 = vmatprep.subr.bf16.mxu0 0
          %886 = vmatpush1.bf16.msra.mxu0 %v881
          %887 = vmatprep.subr.bf16.mxu0 0
          %888 = vmatpush1.bf16.msra.mxu0 %v882
          %889 = vmatprep.subr.bf16.mxu0 0
          %890 = vmatpush1.bf16.msra.mxu0 0
          %891 = vmatprep.subr.bf16.mxu0 0
          %892 = vmatpush1.bf16.msra.mxu0 0
          %893 = vmatprep.subr.bf16.mxu0 0
          %894 = vmatpush1.bf16.msra.mxu0 0
          %895 = vmatprep.subr.bf16.mxu0 0
          %896 = vmatpush1.bf16.msra.mxu0 0
          %897 = vmatprep.subr.bf16.mxu0 0
          %898 = vmatpush1.bf16.msra.mxu0 0
          %899 = vmatprep.subr.bf16.mxu0 0
          %900 = vmatpush1.bf16.msra.mxu0 0
          %901 = vmatprep.subr.bf16.mxu0 0
          %902 = vmatpush1.bf16.msra.mxu0 0
          %903 = vmatprep.subr.bf16.mxu0 0
          %904 = vmatpush1.bf16.msra.mxu0 0
          %905 = vmatprep.subr.bf16.mxu0 0
          %906 = vmatpush1.bf16.msra.mxu0 0
          %907 = vmatprep.subr.bf16.mxu0 0
          %908 = vmatpush1.bf16.msra.mxu0 0
          %909 = vmatprep.subr.bf16.mxu0 0
          %910 = vmatpush1.bf16.msra.mxu0 0
          %911 = vmatprep.subr.bf16.mxu0 0
          %912 = vmatpush1.bf16.msra.mxu0 0
          %913 = vmatprep.subr.bf16.mxu0 0
          %914 = vmatpush1.bf16.msra.mxu0 0
          %915 = vmatprep.subr.bf16.mxu0 0
          %916 = vmatpush1.bf16.msra.mxu0 0
          %917 = vmatprep.mubr.bf16.mxu0 0
          %918 = vmatmul.mubr.bf16.gmra.mrb[0].mxu0 %v685
          %v919 = vpop.f32.mrb[0].mxu0
          %v920 = vadd.f32 %v871, %v919
          %v921 = vpop.f32.mrb[0].mxu0
          %v922 = vpop.f32.mrb[0].mxu0
          %v923 = vpop.f32.mrb[0].mxu0
          %924 = vdwg.mxu0
          %v925 = vpack.c.bf16 %v855, %v855
          %s926 = scalar_lea.vmem [#allocation2], 4
          %927 = vst.msk [vmem:[%s926] sm:$0xf] %vm791, %v925
          %v928 = vpack.c.bf16 %v920, %v920
          %s929 = scalar_lea.vmem [#allocation3], 4
          %930 = vst.msk [vmem:[%s929] sm:$0xf] %vm791, %v928
          %s931 = scalar_lea.vmem %s4, 32
          %v932 = vld [vmem:[%s931] sm:$0xf]
          %v933 = vld [vmem:[%s931 + $0x4] sm:$0xf]
          %v934 = vld [vmem:[%s931 + $0x8] sm:$0xf]
          %v935 = vld [vmem:[%s931 + $0xc] sm:$0xf]
          %s936 = scalar_lea.vmem %s5, 2
          %v937 = vld [vmem:[%s936] sm:$0x1]
          %v939 = vlaneseq
          %v940 = vshrl.u32 %v939, 7
          %v941 = vsub.s32 0, %v940
          %v942 = vrot.slane %v937, %v941
          %v948 = vunpack.c.l.b16 %v932
          %v949 = vunpack.c.l.b16 %v933
          %v950 = vunpack.c.l.b16 %v934
          %v951 = vunpack.c.l.b16 %v935
          %v952 = vpack.c.b16 %v949, %v948
          %v953 = vpack.c.b16 %v951, %v950
          %956 = vmatprep.subr.bf16.mxu0 0
          %957 = vmatpush1.bf16.msra.mxu0 %v952
          %958 = vmatprep.subr.bf16.mxu0 0
          %959 = vmatpush1.bf16.msra.mxu0 %v953
          %960 = vmatprep.subr.bf16.mxu0 0
          %961 = vmatpush1.bf16.msra.mxu0 0
          %962 = vmatprep.subr.bf16.mxu0 0
          %963 = vmatpush1.bf16.msra.mxu0 0
          %964 = vmatprep.subr.bf16.mxu0 0
          %965 = vmatpush1.bf16.msra.mxu0 0
          %966 = vmatprep.subr.bf16.mxu0 0
          %967 = vmatpush1.bf16.msra.mxu0 0
          %968 = vmatprep.subr.bf16.mxu0 0
          %969 = vmatpush1.bf16.msra.mxu0 0
          %970 = vmatprep.subr.bf16.mxu0 0
          %971 = vmatpush1.bf16.msra.mxu0 0
          %972 = vmatprep.subr.bf16.mxu0 0
          %973 = vmatpush1.bf16.msra.mxu0 0
          %974 = vmatprep.subr.bf16.mxu0 0
          %975 = vmatpush1.bf16.msra.mxu0 0
          %976 = vmatprep.subr.bf16.mxu0 0
          %977 = vmatpush1.bf16.msra.mxu0 0
          %978 = vmatprep.subr.bf16.mxu0 0
          %979 = vmatpush1.bf16.msra.mxu0 0
          %980 = vmatprep.subr.bf16.mxu0 0
          %981 = vmatpush1.bf16.msra.mxu0 0
          %982 = vmatprep.subr.bf16.mxu0 0
          %983 = vmatpush1.bf16.msra.mxu0 0
          %984 = vmatprep.subr.bf16.mxu0 0
          %985 = vmatpush1.bf16.msra.mxu0 0
          %986 = vmatprep.subr.bf16.mxu0 0
          %987 = vmatpush1.bf16.msra.mxu0 0
          %988 = vmatprep.mubr.bf16.mxu0 0
          %989 = vmatmul.mubr.bf16.gmra.mrb[0].mxu0 %v685
          %v990 = vpop.f32.mrb[0].mxu0
          %v991 = vadd.f32 %v942, %v990
          %v992 = vpop.f32.mrb[0].mxu0
          %v993 = vpop.f32.mrb[0].mxu0
          %v994 = vpop.f32.mrb[0].mxu0
          %995 = vdwg.mxu0
          %s996 = scalar_lea.vmem %s6, 32
          %v997 = vld [vmem:[%s996] sm:$0xf]
          %v998 = vld [vmem:[%s996 + $0x4] sm:$0xf]
          %v999 = vld [vmem:[%s996 + $0x8] sm:$0xf]
          %v1000 = vld [vmem:[%s996 + $0xc] sm:$0xf]
          %s1001 = scalar_lea.vmem %s7, 2
          %v1002 = vld [vmem:[%s1001] sm:$0x1]
          %v1004 = vlaneseq
          %v1005 = vshrl.u32 %v1004, 7
          %v1006 = vsub.s32 0, %v1005
          %v1007 = vrot.slane %v1002, %v1006
          %v1013 = vunpack.c.l.b16 %v997
          %v1014 = vunpack.c.l.b16 %v998
          %v1015 = vunpack.c.l.b16 %v999
          %v1016 = vunpack.c.l.b16 %v1000
          %v1017 = vpack.c.b16 %v1014, %v1013
          %v1018 = vpack.c.b16 %v1016, %v1015
          %1021 = vmatprep.subr.bf16.mxu0 0
          %1022 = vmatpush1.bf16.msra.mxu0 %v1017
          %1023 = vmatprep.subr.bf16.mxu0 0
          %1024 = vmatpush1.bf16.msra.mxu0 %v1018
          %1025 = vmatprep.subr.bf16.mxu0 0
          %1026 = vmatpush1.bf16.msra.mxu0 0
          %1027 = vmatprep.subr.bf16.mxu0 0
          %1028 = vmatpush1.bf16.msra.mxu0 0
          %1029 = vmatprep.subr.bf16.mxu0 0
          %1030 = vmatpush1.bf16.msra.mxu0 0
          %1031 = vmatprep.subr.bf16.mxu0 0
          %1032 = vmatpush1.bf16.msra.mxu0 0
          %1033 = vmatprep.subr.bf16.mxu0 0
          %1034 = vmatpush1.bf16.msra.mxu0 0
          %1035 = vmatprep.subr.bf16.mxu0 0
          %1036 = vmatpush1.bf16.msra.mxu0 0
          %1037 = vmatprep.subr.bf16.mxu0 0
          %1038 = vmatpush1.bf16.msra.mxu0 0
          %1039 = vmatprep.subr.bf16.mxu0 0
          %1040 = vmatpush1.bf16.msra.mxu0 0
          %1041 = vmatprep.subr.bf16.mxu0 0
          %1042 = vmatpush1.bf16.msra.mxu0 0
          %1043 = vmatprep.subr.bf16.mxu0 0
          %1044 = vmatpush1.bf16.msra.mxu0 0
          %1045 = vmatprep.subr.bf16.mxu0 0
          %1046 = vmatpush1.bf16.msra.mxu0 0
          %1047 = vmatprep.subr.bf16.mxu0 0
          %1048 = vmatpush1.bf16.msra.mxu0 0
          %1049 = vmatprep.subr.bf16.mxu0 0
          %1050 = vmatpush1.bf16.msra.mxu0 0
          %1051 = vmatprep.subr.bf16.mxu0 0
          %1052 = vmatpush1.bf16.msra.mxu0 0
          %1053 = vmatprep.mubr.bf16.mxu0 0
          %1054 = vmatmul.mubr.bf16.gmra.mrb[0].mxu0 %v685
          %v1055 = vpop.f32.mrb[0].mxu0
          %v1056 = vadd.f32 %v1007, %v1055
          %v1057 = vpop.f32.mrb[0].mxu0
          %v1058 = vpop.f32.mrb[0].mxu0
          %v1059 = vpop.f32.mrb[0].mxu0
          %1060 = vdwg.mxu0
          %v1061 = vpack.c.bf16 %v991, %v991
          %s1062 = scalar_lea.vmem [#allocation2], 8
          %1063 = vst.msk [vmem:[%s1062] sm:$0xf] %vm791, %v1061
          %v1064 = vpack.c.bf16 %v1056, %v1056
          %s1065 = scalar_lea.vmem [#allocation3], 8
          %1066 = vst.msk [vmem:[%s1065] sm:$0xf] %vm791, %v1064
          %s1067 = scalar_lea.vmem %s4, 48
          %v1068 = vld [vmem:[%s1067] sm:$0xf]
          %v1069 = vld [vmem:[%s1067 + $0x4] sm:$0xf]
          %v1070 = vld [vmem:[%s1067 + $0x8] sm:$0xf]
          %v1071 = vld [vmem:[%s1067 + $0xc] sm:$0xf]
          %s1072 = scalar_lea.vmem %s5, 3
          %v1073 = vld [vmem:[%s1072] sm:$0x1]
          %v1075 = vlaneseq
          %v1076 = vshrl.u32 %v1075, 7
          %v1077 = vsub.s32 0, %v1076
          %v1078 = vrot.slane %v1073, %v1077
          %v1084 = vunpack.c.l.b16 %v1068
          %v1085 = vunpack.c.l.b16 %v1069
          %v1086 = vunpack.c.l.b16 %v1070
          %v1087 = vunpack.c.l.b16 %v1071
          %v1088 = vpack.c.b16 %v1085, %v1084
          %v1089 = vpack.c.b16 %v1087, %v1086
          %1092 = vmatprep.subr.bf16.mxu0 0
          %1093 = vmatpush1.bf16.msra.mxu0 %v1088
          %1094 = vmatprep.subr.bf16.mxu0 0
          %1095 = vmatpush1.bf16.msra.mxu0 %v1089
          %1096 = vmatprep.subr.bf16.mxu0 0
          %1097 = vmatpush1.bf16.msra.mxu0 0
          %1098 = vmatprep.subr.bf16.mxu0 0
          %1099 = vmatpush1.bf16.msra.mxu0 0
          %1100 = vmatprep.subr.bf16.mxu0 0
          %1101 = vmatpush1.bf16.msra.mxu0 0
          %1102 = vmatprep.subr.bf16.mxu0 0
          %1103 = vmatpush1.bf16.msra.mxu0 0
          %1104 = vmatprep.subr.bf16.mxu0 0
          %1105 = vmatpush1.bf16.msra.mxu0 0
          %1106 = vmatprep.subr.bf16.mxu0 0
          %1107 = vmatpush1.bf16.msra.mxu0 0
          %1108 = vmatprep.subr.bf16.mxu0 0
          %1109 = vmatpush1.bf16.msra.mxu0 0
          %1110 = vmatprep.subr.bf16.mxu0 0
          %1111 = vmatpush1.bf16.msra.mxu0 0
          %1112 = vmatprep.subr.bf16.mxu0 0
          %1113 = vmatpush1.bf16.msra.mxu0 0
          %1114 = vmatprep.subr.bf16.mxu0 0
          %1115 = vmatpush1.bf16.msra.mxu0 0
          %1116 = vmatprep.subr.bf16.mxu0 0
          %1117 = vmatpush1.bf16.msra.mxu0 0
          %1118 = vmatprep.subr.bf16.mxu0 0
          %1119 = vmatpush1.bf16.msra.mxu0 0
          %1120 = vmatprep.subr.bf16.mxu0 0
          %1121 = vmatpush1.bf16.msra.mxu0 0
          %1122 = vmatprep.subr.bf16.mxu0 0
          %1123 = vmatpush1.bf16.msra.mxu0 0
          %1124 = vmatprep.mubr.bf16.mxu0 0
          %1125 = vmatmul.mubr.bf16.gmra.mrb[0].mxu0 %v685
          %v1126 = vpop.f32.mrb[0].mxu0
          %v1127 = vadd.f32 %v1078, %v1126
          %v1128 = vpop.f32.mrb[0].mxu0
          %v1129 = vpop.f32.mrb[0].mxu0
          %v1130 = vpop.f32.mrb[0].mxu0
          %1131 = vdwg.mxu0
          %s1132 = scalar_lea.vmem %s6, 48
          %v1133 = vld [vmem:[%s1132] sm:$0xf]
          %v1134 = vld [vmem:[%s1132 + $0x4] sm:$0xf]
          %v1135 = vld [vmem:[%s1132 + $0x8] sm:$0xf]
          %v1136 = vld [vmem:[%s1132 + $0xc] sm:$0xf]
          %s1137 = scalar_lea.vmem %s7, 3
          %v1138 = vld [vmem:[%s1137] sm:$0x1]
          %v1140 = vlaneseq
          %v1141 = vshrl.u32 %v1140, 7
          %v1142 = vsub.s32 0, %v1141
          %v1143 = vrot.slane %v1138, %v1142
          %v1149 = vunpack.c.l.b16 %v1133
          %v1150 = vunpack.c.l.b16 %v1134
          %v1151 = vunpack.c.l.b16 %v1135
          %v1152 = vunpack.c.l.b16 %v1136
          %v1153 = vpack.c.b16 %v1150, %v1149
          %v1154 = vpack.c.b16 %v1152, %v1151
          %1157 = vmatprep.subr.bf16.mxu0 0
          %1158 = vmatpush1.bf16.msra.mxu0 %v1153
          %1159 = vmatprep.subr.bf16.mxu0 0
          %1160 = vmatpush1.bf16.msra.mxu0 %v1154
          %1161 = vmatprep.subr.bf16.mxu0 0
          %1162 = vmatpush1.bf16.msra.mxu0 0
          %1163 = vmatprep.subr.bf16.mxu0 0
          %1164 = vmatpush1.bf16.msra.mxu0 0
          %1165 = vmatprep.subr.bf16.mxu0 0
          %1166 = vmatpush1.bf16.msra.mxu0 0
          %1167 = vmatprep.subr.bf16.mxu0 0
          %1168 = vmatpush1.bf16.msra.mxu0 0
          %1169 = vmatprep.subr.bf16.mxu0 0
          %1170 = vmatpush1.bf16.msra.mxu0 0
          %1171 = vmatprep.subr.bf16.mxu0 0
          %1172 = vmatpush1.bf16.msra.mxu0 0
          %1173 = vmatprep.subr.bf16.mxu0 0
          %1174 = vmatpush1.bf16.msra.mxu0 0
          %1175 = vmatprep.subr.bf16.mxu0 0
          %1176 = vmatpush1.bf16.msra.mxu0 0
          %1177 = vmatprep.subr.bf16.mxu0 0
          %1178 = vmatpush1.bf16.msra.mxu0 0
          %1179 = vmatprep.subr.bf16.mxu0 0
          %1180 = vmatpush1.bf16.msra.mxu0 0
          %1181 = vmatprep.subr.bf16.mxu0 0
          %1182 = vmatpush1.bf16.msra.mxu0 0
          %1183 = vmatprep.subr.bf16.mxu0 0
          %1184 = vmatpush1.bf16.msra.mxu0 0
          %1185 = vmatprep.subr.bf16.mxu0 0
          %1186 = vmatpush1.bf16.msra.mxu0 0
          %1187 = vmatprep.subr.bf16.mxu0 0
          %1188 = vmatpush1.bf16.msra.mxu0 0
          %1189 = vmatprep.mubr.bf16.mxu0 0
          %1190 = vmatmul.mubr.bf16.gmra.mrb[0].mxu0 %v685
          %v1191 = vpop.f32.mrb[0].mxu0
          %v1192 = vadd.f32 %v1143, %v1191
          %v1193 = vpop.f32.mrb[0].mxu0
          %v1194 = vpop.f32.mrb[0].mxu0
          %v1195 = vpop.f32.mrb[0].mxu0
          %1196 = vdwg.mxu0
          %v1197 = vpack.c.bf16 %v1127, %v1127
          %s1198 = scalar_lea.vmem [#allocation2], 12
          %1199 = vst.msk [vmem:[%s1198] sm:$0xf] %vm791, %v1197
          %v1200 = vpack.c.bf16 %v1192, %v1192
          %s1201 = scalar_lea.vmem [#allocation3], 12
          %1202 = vst.msk [vmem:[%s1201] sm:$0xf] %vm791, %v1200
        $region96: #{tpu_custom_call.1} parent=91 // pred_fallthru
          _
        %s1203 = smul.u32 %s42, 8
        %s1204 = scalar_lea.vmem %s645, %s1203
        %v1205 = vld [vmem:[%s1204] sm:$0xff]
        %v1206 = vpack.c.bf16 %v1205, %v1205
        %v1207 = vld [vmem:[%s652] sm:$0xf]
        %v1208 = vunpack.c.l.bf16 %v1207
        %v1209 = vld [vmem:[%s2] sm:$0xf]
        %v1210 = vld [vmem:[%s2 + $0x4] sm:$0xf]
        %v1211 = vld [vmem:[%s2 + $0x8] sm:$0xf]
        %v1212 = vld [vmem:[%s2 + $0xc] sm:$0xf]
        %v1213 = vld [vmem:[%s3] sm:$0x1]
        %v1215 = vlaneseq
        %v1216 = vshrl.u32 %v1215, 7
        %v1217 = vsub.s32 0, %v1216
        %v1218 = vrot.slane %v1213, %v1217
        %v1224 = vunpack.c.l.b16 %v1209
        %v1225 = vunpack.c.l.b16 %v1210
        %v1226 = vunpack.c.l.b16 %v1211
        %v1227 = vunpack.c.l.b16 %v1212
        %v1228 = vpack.c.b16 %v1225, %v1224
        %v1229 = vpack.c.b16 %v1227, %v1226
        %vm1232 = vcmask 261120
        %v1234 = vsel %vm1232, %v1206, 0
        %1236 = vmatprep.subr.bf16.mxu0 0
        %1237 = vmatpush1.bf16.msra.mxu0 %v1228
        %1238 = vmatprep.subr.bf16.mxu0 0
        %1239 = vmatpush1.bf16.msra.mxu0 %v1229
        %1240 = vmatprep.subr.bf16.mxu0 0
        %1241 = vmatpush1.bf16.msra.mxu0 0
        %1242 = vmatprep.subr.bf16.mxu0 0
        %1243 = vmatpush1.bf16.msra.mxu0 0
        %1244 = vmatprep.subr.bf16.mxu0 0
        %1245 = vmatpush1.bf16.msra.mxu0 0
        %1246 = vmatprep.subr.bf16.mxu0 0
        %1247 = vmatpush1.bf16.msra.mxu0 0
        %1248 = vmatprep.subr.bf16.mxu0 0
        %1249 = vmatpush1.bf16.msra.mxu0 0
        %1250 = vmatprep.subr.bf16.mxu0 0
        %1251 = vmatpush1.bf16.msra.mxu0 0
        %1252 = vmatprep.subr.bf16.mxu0 0
        %1253 = vmatpush1.bf16.msra.mxu0 0
        %1254 = vmatprep.subr.bf16.mxu0 0
        %1255 = vmatpush1.bf16.msra.mxu0 0
        %1256 = vmatprep.subr.bf16.mxu0 0
        %1257 = vmatpush1.bf16.msra.mxu0 0
        %1258 = vmatprep.subr.bf16.mxu0 0
        %1259 = vmatpush1.bf16.msra.mxu0 0
        %1260 = vmatprep.subr.bf16.mxu0 0
        %1261 = vmatpush1.bf16.msra.mxu0 0
        %1262 = vmatprep.subr.bf16.mxu0 0
        %1263 = vmatpush1.bf16.msra.mxu0 0
        %1264 = vmatprep.subr.bf16.mxu0 0
        %1265 = vmatpush1.bf16.msra.mxu0 0
        %1266 = vmatprep.subr.bf16.mxu0 0
        %1267 = vmatpush1.bf16.msra.mxu0 0
        %1268 = vmatprep.mubr.bf16.mxu0 0
        %1269 = vmatmul.mubr.bf16.gmra.mrb[0].mxu0 %v1234
        %v1270 = vpop.f32.mrb[0].mxu0
        %v1271 = vadd.f32 %v1218, %v1270
        %v1272 = vpop.f32.mrb[0].mxu0
        %v1273 = vpop.f32.mrb[0].mxu0
        %v1274 = vpop.f32.mrb[0].mxu0
        %1275 = vdwg.mxu0
        %v1276 = vpack.c.bf16 %v1271, %v1271
        %v1277 = vld [vmem:[#allocation2] sm:$0xf]
        %vm1278 = vcmask 64512
        %v1280 = vsel %vm1278, %v1276, 0
        %v1283 = vsel %vm1278, %v1277, 0
        %1285 = vmatprep.subr.bf16.mxu0 0
        %1286 = vmatpush1.bf16.xpose.msra.mxu0 %v1283
        %1287 = vmatprep.subr.bf16.mxu0 0
        %1288 = vmatpush1.bf16.xpose.msra.mxu0 0
        %1289 = vmatprep.subr.bf16.mxu0 0
        %1290 = vmatpush1.bf16.xpose.msra.mxu0 0
        %1291 = vmatprep.subr.bf16.mxu0 0
        %1292 = vmatpush1.bf16.xpose.msra.mxu0 0
        %1293 = vmatprep.subr.bf16.mxu0 0
        %1294 = vmatpush1.bf16.xpose.msra.mxu0 0
        %1295 = vmatprep.subr.bf16.mxu0 0
        %1296 = vmatpush1.bf16.xpose.msra.mxu0 0
        %1297 = vmatprep.subr.bf16.mxu0 0
        %1298 = vmatpush1.bf16.xpose.msra.mxu0 0
        %1299 = vmatprep.subr.bf16.mxu0 0
        %1300 = vmatpush1.bf16.xpose.msra.mxu0 0
        %1301 = vmatprep.subr.bf16.mxu0 0
        %1302 = vmatpush1.bf16.xpose.msra.mxu0 0
        %1303 = vmatprep.subr.bf16.mxu0 0
        %1304 = vmatpush1.bf16.xpose.msra.mxu0 0
        %1305 = vmatprep.subr.bf16.mxu0 0
        %1306 = vmatpush1.bf16.xpose.msra.mxu0 0
        %1307 = vmatprep.subr.bf16.mxu0 0
        %1308 = vmatpush1.bf16.xpose.msra.mxu0 0
        %1309 = vmatprep.subr.bf16.mxu0 0
        %1310 = vmatpush1.bf16.xpose.msra.mxu0 0
        %1311 = vmatprep.subr.bf16.mxu0 0
        %1312 = vmatpush1.bf16.xpose.msra.mxu0 0
        %1313 = vmatprep.subr.bf16.mxu0 0
        %1314 = vmatpush1.bf16.xpose.msra.mxu0 0
        %1315 = vmatprep.subr.bf16.mxu0 0
        %1316 = vmatpush1.bf16.xpose.msra.mxu0 0
        %1317 = vmatprep.mubr.bf16.mxu0 0
        %1318 = vmatmul.mubr.bf16.gmra.mrb[0].mxu0 %v1280
        %v1319 = vpop.f32.mrb[0].mxu0
        %v1320 = vadd.f32 %v1208, %v1319
        %v1321 = vpop.f32.mrb[0].mxu0
        %v1322 = vpop.f32.mrb[0].mxu0
        %v1323 = vpop.f32.mrb[0].mxu0
        %1324 = vdwg.mxu0
        %v1325 = vsel %vm1278, %v1320, -inf
        %1326 = vmax.xlane.f32.xlu0 %v1325
        %v1327 = vpop.xlane.xlu0 %1326
        %v1328 = vsub.f32 %v1320, %v1327
        %v1329 = vmul.f32 %v1328, 1.442695
        %v1330 = vpow.pop %v1329
        %v1331 = vsel %vm1278, %v1330, 0.0
        %1332 = vadd.xlane.f32.xlu0 %v1331
        %v1333 = vpop.xlane.xlu0 %1332
        %v1334 = vrcp.pop %v1333
        %v1335 = vmul.f32 %v1330, %v1334
        %1336 = vst.msk [vmem:[%s641] sm:$0xff] %vm1278, %v1335
        %v1337 = vpack.c.bf16 %v1335, %v1335
        %v1338 = vld [vmem:[#allocation3] sm:$0xf]
        %v1340 = vsel %vm1278, %v1337, 0
        %vm1342 = vcmask 1043456
        %v1344 = vsel %vm1342, %v1338, 0
        %1346 = vmatprep.subr.bf16.mxu0 0
        %1347 = vmatpush1.bf16.msra.mxu0 %v1344
        %1348 = vmatprep.subr.bf16.mxu0 0
        %1349 = vmatpush1.bf16.msra.mxu0 0
        %1350 = vmatprep.subr.bf16.mxu0 0
        %1351 = vmatpush1.bf16.msra.mxu0 0
        %1352 = vmatprep.subr.bf16.mxu0 0
        %1353 = vmatpush1.bf16.msra.mxu0 0
        %1354 = vmatprep.subr.bf16.mxu0 0
        %1355 = vmatpush1.bf16.msra.mxu0 0
        %1356 = vmatprep.subr.bf16.mxu0 0
        %1357 = vmatpush1.bf16.msra.mxu0 0
        %1358 = vmatprep.subr.bf16.mxu0 0
        %1359 = vmatpush1.bf16.msra.mxu0 0
        %1360 = vmatprep.subr.bf16.mxu0 0
        %1361 = vmatpush1.bf16.msra.mxu0 0
        %1362 = vmatprep.subr.bf16.mxu0 0
        %1363 = vmatpush1.bf16.msra.mxu0 0
        %1364 = vmatprep.subr.bf16.mxu0 0
        %1365 = vmatpush1.bf16.msra.mxu0 0
        %1366 = vmatprep.subr.bf16.mxu0 0
        %1367 = vmatpush1.bf16.msra.mxu0 0
        %1368 = vmatprep.subr.bf16.mxu0 0
        %1369 = vmatpush1.bf16.msra.mxu0 0
        %1370 = vmatprep.subr.bf16.mxu0 0
        %1371 = vmatpush1.bf16.msra.mxu0 0
        %1372 = vmatprep.subr.bf16.mxu0 0
        %1373 = vmatpush1.bf16.msra.mxu0 0
        %1374 = vmatprep.subr.bf16.mxu0 0
        %1375 = vmatpush1.bf16.msra.mxu0 0
        %1376 = vmatprep.subr.bf16.mxu0 0
        %1377 = vmatpush1.bf16.msra.mxu0 0
        %1378 = vmatprep.mubr.bf16.mxu0 0
        %1379 = vmatmul.mubr.bf16.gmra.mrb[0].mxu0 %v1340
        %v1380 = vpop.f32.mrb[0].mxu0
        %v1381 = vadd.f32 0.0, %v1380
        %v1382 = vpop.f32.mrb[0].mxu0
        %v1383 = vpop.f32.mrb[0].mxu0
        %v1384 = vpop.f32.mrb[0].mxu0
        %1385 = vdwg.mxu0
        %1386 = vst.msk [vmem:[#allocation4] sm:$0xff] %vm1278, %v1381
        %s1387 = scalar_lea.vmem %s2, 16
        %v1388 = vld [vmem:[%s1387] sm:$0xf]
        %v1389 = vld [vmem:[%s1387 + $0x4] sm:$0xf]
        %v1390 = vld [vmem:[%s1387 + $0x8] sm:$0xf]
        %v1391 = vld [vmem:[%s1387 + $0xc] sm:$0xf]
        %s1392 = scalar_lea.vmem %s3, 1
        %v1393 = vld [vmem:[%s1392] sm:$0x1]
        %v1395 = vlaneseq
        %v1396 = vshrl.u32 %v1395, 7
        %v1397 = vsub.s32 0, %v1396
        %v1398 = vrot.slane %v1393, %v1397
        %v1404 = vunpack.c.l.b16 %v1388
        %v1405 = vunpack.c.l.b16 %v1389
        %v1406 = vunpack.c.l.b16 %v1390
        %v1407 = vunpack.c.l.b16 %v1391
        %v1408 = vpack.c.b16 %v1405, %v1404
        %v1409 = vpack.c.b16 %v1407, %v1406
        %1412 = vmatprep.subr.bf16.mxu0 0
        %1413 = vmatpush1.bf16.msra.mxu0 %v1408
        %1414 = vmatprep.subr.bf16.mxu0 0
        %1415 = vmatpush1.bf16.msra.mxu0 %v1409
        %1416 = vmatprep.subr.bf16.mxu0 0
        %1417 = vmatpush1.bf16.msra.mxu0 0
        %1418 = vmatprep.subr.bf16.mxu0 0
        %1419 = vmatpush1.bf16.msra.mxu0 0
        %1420 = vmatprep.subr.bf16.mxu0 0
        %1421 = vmatpush1.bf16.msra.mxu0 0
        %1422 = vmatprep.subr.bf16.mxu0 0
        %1423 = vmatpush1.bf16.msra.mxu0 0
        %1424 = vmatprep.subr.bf16.mxu0 0
        %1425 = vmatpush1.bf16.msra.mxu0 0
        %1426 = vmatprep.subr.bf16.mxu0 0
        %1427 = vmatpush1.bf16.msra.mxu0 0
        %1428 = vmatprep.subr.bf16.mxu0 0
        %1429 = vmatpush1.bf16.msra.mxu0 0
        %1430 = vmatprep.subr.bf16.mxu0 0
        %1431 = vmatpush1.bf16.msra.mxu0 0
        %1432 = vmatprep.subr.bf16.mxu0 0
        %1433 = vmatpush1.bf16.msra.mxu0 0
        %1434 = vmatprep.subr.bf16.mxu0 0
        %1435 = vmatpush1.bf16.msra.mxu0 0
        %1436 = vmatprep.subr.bf16.mxu0 0
        %1437 = vmatpush1.bf16.msra.mxu0 0
        %1438 = vmatprep.subr.bf16.mxu0 0
        %1439 = vmatpush1.bf16.msra.mxu0 0
        %1440 = vmatprep.subr.bf16.mxu0 0
        %1441 = vmatpush1.bf16.msra.mxu0 0
        %1442 = vmatprep.subr.bf16.mxu0 0
        %1443 = vmatpush1.bf16.msra.mxu0 0
        %1444 = vmatprep.mubr.bf16.mxu0 0
        %1445 = vmatmul.mubr.bf16.gmra.mrb[0].mxu0 %v1234
        %v1446 = vpop.f32.mrb[0].mxu0
        %v1447 = vadd.f32 %v1398, %v1446
        %v1448 = vpop.f32.mrb[0].mxu0
        %v1449 = vpop.f32.mrb[0].mxu0
        %v1450 = vpop.f32.mrb[0].mxu0
        %1451 = vdwg.mxu0
        %v1452 = vpack.c.bf16 %v1447, %v1447
        %s1453 = scalar_lea.vmem [#allocation2], 4
        %v1454 = vld [vmem:[%s1453] sm:$0xf]
        %v1456 = vsel %vm1278, %v1452, 0
        %v1459 = vsel %vm1278, %v1454, 0
        %1461 = vmatprep.subr.bf16.mxu0 0
        %1462 = vmatpush1.bf16.xpose.msra.mxu0 %v1459
        %1463 = vmatprep.subr.bf16.mxu0 0
        %1464 = vmatpush1.bf16.xpose.msra.mxu0 0
        %1465 = vmatprep.subr.bf16.mxu0 0
        %1466 = vmatpush1.bf16.xpose.msra.mxu0 0
        %1467 = vmatprep.subr.bf16.mxu0 0
        %1468 = vmatpush1.bf16.xpose.msra.mxu0 0
        %1469 = vmatprep.subr.bf16.mxu0 0
        %1470 = vmatpush1.bf16.xpose.msra.mxu0 0
        %1471 = vmatprep.subr.bf16.mxu0 0
        %1472 = vmatpush1.bf16.xpose.msra.mxu0 0
        %1473 = vmatprep.subr.bf16.mxu0 0
        %1474 = vmatpush1.bf16.xpose.msra.mxu0 0
        %1475 = vmatprep.subr.bf16.mxu0 0
        %1476 = vmatpush1.bf16.xpose.msra.mxu0 0
        %1477 = vmatprep.subr.bf16.mxu0 0
        %1478 = vmatpush1.bf16.xpose.msra.mxu0 0
        %1479 = vmatprep.subr.bf16.mxu0 0
        %1480 = vmatpush1.bf16.xpose.msra.mxu0 0
        %1481 = vmatprep.subr.bf16.mxu0 0
        %1482 = vmatpush1.bf16.xpose.msra.mxu0 0
        %1483 = vmatprep.subr.bf16.mxu0 0
        %1484 = vmatpush1.bf16.xpose.msra.mxu0 0
        %1485 = vmatprep.subr.bf16.mxu0 0
        %1486 = vmatpush1.bf16.xpose.msra.mxu0 0
        %1487 = vmatprep.subr.bf16.mxu0 0
        %1488 = vmatpush1.bf16.xpose.msra.mxu0 0
        %1489 = vmatprep.subr.bf16.mxu0 0
        %1490 = vmatpush1.bf16.xpose.msra.mxu0 0
        %1491 = vmatprep.subr.bf16.mxu0 0
        %1492 = vmatpush1.bf16.xpose.msra.mxu0 0
        %1493 = vmatprep.mubr.bf16.mxu0 0
        %1494 = vmatmul.mubr.bf16.gmra.mrb[0].mxu0 %v1456
        %v1495 = vpop.f32.mrb[0].mxu0
        %v1496 = vadd.f32 %v1208, %v1495
        %v1497 = vpop.f32.mrb[0].mxu0
        %v1498 = vpop.f32.mrb[0].mxu0
        %v1499 = vpop.f32.mrb[0].mxu0
        %1500 = vdwg.mxu0
        %v1501 = vsel %vm1278, %v1496, -inf
        %1502 = vmax.xlane.f32.xlu0 %v1501
        %v1503 = vpop.xlane.xlu0 %1502
        %v1504 = vsub.f32 %v1496, %v1503
        %v1505 = vmul.f32 %v1504, 1.442695
        %v1506 = vpow.pop %v1505
        %v1507 = vsel %vm1278, %v1506, 0.0
        %1508 = vadd.xlane.f32.xlu0 %v1507
        %v1509 = vpop.xlane.xlu0 %1508
        %v1510 = vrcp.pop %v1509
        %v1511 = vmul.f32 %v1506, %v1510
        %s1512 = scalar_lea.vmem %s641, 8 [#allocation7]
        %1513 = vst.msk [vmem:[%s1512] sm:$0xff] %vm1278, %v1511
        %v1514 = vpack.c.bf16 %v1511, %v1511
        %s1515 = scalar_lea.vmem [#allocation3], 4
        %v1516 = vld [vmem:[%s1515] sm:$0xf]
        %v1518 = vsel %vm1278, %v1514, 0
        %v1521 = vsel %vm1342, %v1516, 0
        %1523 = vmatprep.subr.bf16.mxu0 0
        %1524 = vmatpush1.bf16.msra.mxu0 %v1521
        %1525 = vmatprep.subr.bf16.mxu0 0
        %1526 = vmatpush1.bf16.msra.mxu0 0
        %1527 = vmatprep.subr.bf16.mxu0 0
        %1528 = vmatpush1.bf16.msra.mxu0 0
        %1529 = vmatprep.subr.bf16.mxu0 0
        %1530 = vmatpush1.bf16.msra.mxu0 0
        %1531 = vmatprep.subr.bf16.mxu0 0
        %1532 = vmatpush1.bf16.msra.mxu0 0
        %1533 = vmatprep.subr.bf16.mxu0 0
        %1534 = vmatpush1.bf16.msra.mxu0 0
        %1535 = vmatprep.subr.bf16.mxu0 0
        %1536 = vmatpush1.bf16.msra.mxu0 0
        %1537 = vmatprep.subr.bf16.mxu0 0
        %1538 = vmatpush1.bf16.msra.mxu0 0
        %1539 = vmatprep.subr.bf16.mxu0 0
        %1540 = vmatpush1.bf16.msra.mxu0 0
        %1541 = vmatprep.subr.bf16.mxu0 0
        %1542 = vmatpush1.bf16.msra.mxu0 0
        %1543 = vmatprep.subr.bf16.mxu0 0
        %1544 = vmatpush1.bf16.msra.mxu0 0
        %1545 = vmatprep.subr.bf16.mxu0 0
        %1546 = vmatpush1.bf16.msra.mxu0 0
        %1547 = vmatprep.subr.bf16.mxu0 0
        %1548 = vmatpush1.bf16.msra.mxu0 0
        %1549 = vmatprep.subr.bf16.mxu0 0
        %1550 = vmatpush1.bf16.msra.mxu0 0
        %1551 = vmatprep.subr.bf16.mxu0 0
        %1552 = vmatpush1.bf16.msra.mxu0 0
        %1553 = vmatprep.subr.bf16.mxu0 0
        %1554 = vmatpush1.bf16.msra.mxu0 0
        %1555 = vmatprep.mubr.bf16.mxu0 0
        %1556 = vmatmul.mubr.bf16.gmra.mrb[0].mxu0 %v1518
        %v1557 = vpop.f32.mrb[0].mxu0
        %v1558 = vadd.f32 0.0, %v1557
        %v1559 = vpop.f32.mrb[0].mxu0
        %v1560 = vpop.f32.mrb[0].mxu0
        %v1561 = vpop.f32.mrb[0].mxu0
        %1562 = vdwg.mxu0
        %1564 = vrot.lane.b32.xlu0 %v1558, 8
        %v1565 = vpop.permute.xlu0 %1564
        %vm1567 = vcmask 130112
        %1568 = vst.msk [vmem:[#allocation4] sm:$0xff] %vm1567, %v1565
        %s1569 = scalar_lea.vmem %s2, 32
        %v1570 = vld [vmem:[%s1569] sm:$0xf]
        %v1571 = vld [vmem:[%s1569 + $0x4] sm:$0xf]
        %v1572 = vld [vmem:[%s1569 + $0x8] sm:$0xf]
        %v1573 = vld [vmem:[%s1569 + $0xc] sm:$0xf]
        %s1574 = scalar_lea.vmem %s3, 2
        %v1575 = vld [vmem:[%s1574] sm:$0x1]
        %v1577 = vlaneseq
        %v1578 = vshrl.u32 %v1577, 7
        %v1579 = vsub.s32 0, %v1578
        %v1580 = vrot.slane %v1575, %v1579
        %v1586 = vunpack.c.l.b16 %v1570
        %v1587 = vunpack.c.l.b16 %v1571
        %v1588 = vunpack.c.l.b16 %v1572
        %v1589 = vunpack.c.l.b16 %v1573
        %v1590 = vpack.c.b16 %v1587, %v1586
        %v1591 = vpack.c.b16 %v1589, %v1588
        %1594 = vmatprep.subr.bf16.mxu0 0
        %1595 = vmatpush1.bf16.msra.mxu0 %v1590
        %1596 = vmatprep.subr.bf16.mxu0 0
        %1597 = vmatpush1.bf16.msra.mxu0 %v1591
        %1598 = vmatprep.subr.bf16.mxu0 0
        %1599 = vmatpush1.bf16.msra.mxu0 0
        %1600 = vmatprep.subr.bf16.mxu0 0
        %1601 = vmatpush1.bf16.msra.mxu0 0
        %1602 = vmatprep.subr.bf16.mxu0 0
        %1603 = vmatpush1.bf16.msra.mxu0 0
        %1604 = vmatprep.subr.bf16.mxu0 0
        %1605 = vmatpush1.bf16.msra.mxu0 0
        %1606 = vmatprep.subr.bf16.mxu0 0
        %1607 = vmatpush1.bf16.msra.mxu0 0
        %1608 = vmatprep.subr.bf16.mxu0 0
        %1609 = vmatpush1.bf16.msra.mxu0 0
        %1610 = vmatprep.subr.bf16.mxu0 0
        %1611 = vmatpush1.bf16.msra.mxu0 0
        %1612 = vmatprep.subr.bf16.mxu0 0
        %1613 = vmatpush1.bf16.msra.mxu0 0
        %1614 = vmatprep.subr.bf16.mxu0 0
        %1615 = vmatpush1.bf16.msra.mxu0 0
        %1616 = vmatprep.subr.bf16.mxu0 0
        %1617 = vmatpush1.bf16.msra.mxu0 0
        %1618 = vmatprep.subr.bf16.mxu0 0
        %1619 = vmatpush1.bf16.msra.mxu0 0
        %1620 = vmatprep.subr.bf16.mxu0 0
        %1621 = vmatpush1.bf16.msra.mxu0 0
        %1622 = vmatprep.subr.bf16.mxu0 0
        %1623 = vmatpush1.bf16.msra.mxu0 0
        %1624 = vmatprep.subr.bf16.mxu0 0
        %1625 = vmatpush1.bf16.msra.mxu0 0
        %1626 = vmatprep.mubr.bf16.mxu0 0
        %1627 = vmatmul.mubr.bf16.gmra.mrb[0].mxu0 %v1234
        %v1628 = vpop.f32.mrb[0].mxu0
        %v1629 = vadd.f32 %v1580, %v1628
        %v1630 = vpop.f32.mrb[0].mxu0
        %v1631 = vpop.f32.mrb[0].mxu0
        %v1632 = vpop.f32.mrb[0].mxu0
        %1633 = vdwg.mxu0
        %v1634 = vpack.c.bf16 %v1629, %v1629
        %s1635 = scalar_lea.vmem [#allocation2], 8
        %v1636 = vld [vmem:[%s1635] sm:$0xf]
        %v1638 = vsel %vm1278, %v1634, 0
        %v1641 = vsel %vm1278, %v1636, 0
        %1643 = vmatprep.subr.bf16.mxu0 0
        %1644 = vmatpush1.bf16.xpose.msra.mxu0 %v1641
        %1645 = vmatprep.subr.bf16.mxu0 0
        %1646 = vmatpush1.bf16.xpose.msra.mxu0 0
        %1647 = vmatprep.subr.bf16.mxu0 0
        %1648 = vmatpush1.bf16.xpose.msra.mxu0 0
        %1649 = vmatprep.subr.bf16.mxu0 0
        %1650 = vmatpush1.bf16.xpose.msra.mxu0 0
        %1651 = vmatprep.subr.bf16.mxu0 0
        %1652 = vmatpush1.bf16.xpose.msra.mxu0 0
        %1653 = vmatprep.subr.bf16.mxu0 0
        %1654 = vmatpush1.bf16.xpose.msra.mxu0 0
        %1655 = vmatprep.subr.bf16.mxu0 0
        %1656 = vmatpush1.bf16.xpose.msra.mxu0 0
        %1657 = vmatprep.subr.bf16.mxu0 0
        %1658 = vmatpush1.bf16.xpose.msra.mxu0 0
        %1659 = vmatprep.subr.bf16.mxu0 0
        %1660 = vmatpush1.bf16.xpose.msra.mxu0 0
        %1661 = vmatprep.subr.bf16.mxu0 0
        %1662 = vmatpush1.bf16.xpose.msra.mxu0 0
        %1663 = vmatprep.subr.bf16.mxu0 0
        %1664 = vmatpush1.bf16.xpose.msra.mxu0 0
        %1665 = vmatprep.subr.bf16.mxu0 0
        %1666 = vmatpush1.bf16.xpose.msra.mxu0 0
        %1667 = vmatprep.subr.bf16.mxu0 0
        %1668 = vmatpush1.bf16.xpose.msra.mxu0 0
        %1669 = vmatprep.subr.bf16.mxu0 0
        %1670 = vmatpush1.bf16.xpose.msra.mxu0 0
        %1671 = vmatprep.subr.bf16.mxu0 0
        %1672 = vmatpush1.bf16.xpose.msra.mxu0 0
        %1673 = vmatprep.subr.bf16.mxu0 0
        %1674 = vmatpush1.bf16.xpose.msra.mxu0 0
        %1675 = vmatprep.mubr.bf16.mxu0 0
        %1676 = vmatmul.mubr.bf16.gmra.mrb[0].mxu0 %v1638
        %v1677 = vpop.f32.mrb[0].mxu0
        %v1678 = vadd.f32 %v1208, %v1677
        %v1679 = vpop.f32.mrb[0].mxu0
        %v1680 = vpop.f32.mrb[0].mxu0
        %v1681 = vpop.f32.mrb[0].mxu0
        %1682 = vdwg.mxu0
        %v1683 = vsel %vm1278, %v1678, -inf
        %1684 = vmax.xlane.f32.xlu0 %v1683
        %v1685 = vpop.xlane.xlu0 %1684
        %v1686 = vsub.f32 %v1678, %v1685
        %v1687 = vmul.f32 %v1686, 1.442695
        %v1688 = vpow.pop %v1687
        %v1689 = vsel %vm1278, %v1688, 0.0
        %1690 = vadd.xlane.f32.xlu0 %v1689
        %v1691 = vpop.xlane.xlu0 %1690
        %v1692 = vrcp.pop %v1691
        %v1693 = vmul.f32 %v1688, %v1692
        %s1694 = scalar_lea.vmem %s641, 16 [#allocation7]
        %1695 = vst.msk [vmem:[%s1694] sm:$0xff] %vm1278, %v1693
        %v1696 = vpack.c.bf16 %v1693, %v1693
        %s1697 = scalar_lea.vmem [#allocation3], 8
        %v1698 = vld [vmem:[%s1697] sm:$0xf]
        %v1700 = vsel %vm1278, %v1696, 0
        %v1703 = vsel %vm1342, %v1698, 0
        %1705 = vmatprep.subr.bf16.mxu0 0
        %1706 = vmatpush1.bf16.msra.mxu0 %v1703
        %1707 = vmatprep.subr.bf16.mxu0 0
        %1708 = vmatpush1.bf16.msra.mxu0 0
        %1709 = vmatprep.subr.bf16.mxu0 0
        %1710 = vmatpush1.bf16.msra.mxu0 0
        %1711 = vmatprep.subr.bf16.mxu0 0
        %1712 = vmatpush1.bf16.msra.mxu0 0
        %1713 = vmatprep.subr.bf16.mxu0 0
        %1714 = vmatpush1.bf16.msra.mxu0 0
        %1715 = vmatprep.subr.bf16.mxu0 0
        %1716 = vmatpush1.bf16.msra.mxu0 0
        %1717 = vmatprep.subr.bf16.mxu0 0
        %1718 = vmatpush1.bf16.msra.mxu0 0
        %1719 = vmatprep.subr.bf16.mxu0 0
        %1720 = vmatpush1.bf16.msra.mxu0 0
        %1721 = vmatprep.subr.bf16.mxu0 0
        %1722 = vmatpush1.bf16.msra.mxu0 0
        %1723 = vmatprep.subr.bf16.mxu0 0
        %1724 = vmatpush1.bf16.msra.mxu0 0
        %1725 = vmatprep.subr.bf16.mxu0 0
        %1726 = vmatpush1.bf16.msra.mxu0 0
        %1727 = vmatprep.subr.bf16.mxu0 0
        %1728 = vmatpush1.bf16.msra.mxu0 0
        %1729 = vmatprep.subr.bf16.mxu0 0
        %1730 = vmatpush1.bf16.msra.mxu0 0
        %1731 = vmatprep.subr.bf16.mxu0 0
        %1732 = vmatpush1.bf16.msra.mxu0 0
        %1733 = vmatprep.subr.bf16.mxu0 0
        %1734 = vmatpush1.bf16.msra.mxu0 0
        %1735 = vmatprep.subr.bf16.mxu0 0
        %1736 = vmatpush1.bf16.msra.mxu0 0
        %1737 = vmatprep.mubr.bf16.mxu0 0
        %1738 = vmatmul.mubr.bf16.gmra.mrb[0].mxu0 %v1700
        %v1739 = vpop.f32.mrb[0].mxu0
        %v1740 = vadd.f32 0.0, %v1739
        %v1741 = vpop.f32.mrb[0].mxu0
        %v1742 = vpop.f32.mrb[0].mxu0
        %v1743 = vpop.f32.mrb[0].mxu0
        %1744 = vdwg.mxu0
        %1746 = vrot.lane.b32.xlu0 %v1740, 16
        %v1747 = vpop.permute.xlu0 %1746
        %vm1749 = vcmask 195712
        %1750 = vst.msk [vmem:[#allocation4] sm:$0xff] %vm1749, %v1747
        %s1751 = scalar_lea.vmem %s2, 48
        %v1752 = vld [vmem:[%s1751] sm:$0xf]
        %v1753 = vld [vmem:[%s1751 + $0x4] sm:$0xf]
        %v1754 = vld [vmem:[%s1751 + $0x8] sm:$0xf]
        %v1755 = vld [vmem:[%s1751 + $0xc] sm:$0xf]
        %s1756 = scalar_lea.vmem %s3, 3
        %v1757 = vld [vmem:[%s1756] sm:$0x1]
        %v1759 = vlaneseq
        %v1760 = vshrl.u32 %v1759, 7
        %v1761 = vsub.s32 0, %v1760
        %v1762 = vrot.slane %v1757, %v1761
        %v1768 = vunpack.c.l.b16 %v1752
        %v1769 = vunpack.c.l.b16 %v1753
        %v1770 = vunpack.c.l.b16 %v1754
        %v1771 = vunpack.c.l.b16 %v1755
        %v1772 = vpack.c.b16 %v1769, %v1768
        %v1773 = vpack.c.b16 %v1771, %v1770
        %1776 = vmatprep.subr.bf16.mxu0 0
        %1777 = vmatpush1.bf16.msra.mxu0 %v1772
        %1778 = vmatprep.subr.bf16.mxu0 0
        %1779 = vmatpush1.bf16.msra.mxu0 %v1773
        %1780 = vmatprep.subr.bf16.mxu0 0
        %1781 = vmatpush1.bf16.msra.mxu0 0
        %1782 = vmatprep.subr.bf16.mxu0 0
        %1783 = vmatpush1.bf16.msra.mxu0 0
        %1784 = vmatprep.subr.bf16.mxu0 0
        %1785 = vmatpush1.bf16.msra.mxu0 0
        %1786 = vmatprep.subr.bf16.mxu0 0
        %1787 = vmatpush1.bf16.msra.mxu0 0
        %1788 = vmatprep.subr.bf16.mxu0 0
        %1789 = vmatpush1.bf16.msra.mxu0 0
        %1790 = vmatprep.subr.bf16.mxu0 0
        %1791 = vmatpush1.bf16.msra.mxu0 0
        %1792 = vmatprep.subr.bf16.mxu0 0
        %1793 = vmatpush1.bf16.msra.mxu0 0
        %1794 = vmatprep.subr.bf16.mxu0 0
        %1795 = vmatpush1.bf16.msra.mxu0 0
        %1796 = vmatprep.subr.bf16.mxu0 0
        %1797 = vmatpush1.bf16.msra.mxu0 0
        %1798 = vmatprep.subr.bf16.mxu0 0
        %1799 = vmatpush1.bf16.msra.mxu0 0
        %1800 = vmatprep.subr.bf16.mxu0 0
        %1801 = vmatpush1.bf16.msra.mxu0 0
        %1802 = vmatprep.subr.bf16.mxu0 0
        %1803 = vmatpush1.bf16.msra.mxu0 0
        %1804 = vmatprep.subr.bf16.mxu0 0
        %1805 = vmatpush1.bf16.msra.mxu0 0
        %1806 = vmatprep.subr.bf16.mxu0 0
        %1807 = vmatpush1.bf16.msra.mxu0 0
        %1808 = vmatprep.mubr.bf16.mxu0 0
        %1809 = vmatmul.mubr.bf16.gmra.mrb[0].mxu0 %v1234
        %v1810 = vpop.f32.mrb[0].mxu0
        %v1811 = vadd.f32 %v1762, %v1810
        %v1812 = vpop.f32.mrb[0].mxu0
        %v1813 = vpop.f32.mrb[0].mxu0
        %v1814 = vpop.f32.mrb[0].mxu0
        %1815 = vdwg.mxu0
        %v1816 = vpack.c.bf16 %v1811, %v1811
        %s1817 = scalar_lea.vmem [#allocation2], 12
        %v1818 = vld [vmem:[%s1817] sm:$0xf]
        %v1820 = vsel %vm1278, %v1816, 0
        %v1823 = vsel %vm1278, %v1818, 0
        %1825 = vmatprep.subr.bf16.mxu0 0
        %1826 = vmatpush1.bf16.xpose.msra.mxu0 %v1823
        %1827 = vmatprep.subr.bf16.mxu0 0
        %1828 = vmatpush1.bf16.xpose.msra.mxu0 0
        %1829 = vmatprep.subr.bf16.mxu0 0
        %1830 = vmatpush1.bf16.xpose.msra.mxu0 0
        %1831 = vmatprep.subr.bf16.mxu0 0
        %1832 = vmatpush1.bf16.xpose.msra.mxu0 0
        %1833 = vmatprep.subr.bf16.mxu0 0
        %1834 = vmatpush1.bf16.xpose.msra.mxu0 0
        %1835 = vmatprep.subr.bf16.mxu0 0
        %1836 = vmatpush1.bf16.xpose.msra.mxu0 0
        %1837 = vmatprep.subr.bf16.mxu0 0
        %1838 = vmatpush1.bf16.xpose.msra.mxu0 0
        %1839 = vmatprep.subr.bf16.mxu0 0
        %1840 = vmatpush1.bf16.xpose.msra.mxu0 0
        %1841 = vmatprep.subr.bf16.mxu0 0
        %1842 = vmatpush1.bf16.xpose.msra.mxu0 0
        %1843 = vmatprep.subr.bf16.mxu0 0
        %1844 = vmatpush1.bf16.xpose.msra.mxu0 0
        %1845 = vmatprep.subr.bf16.mxu0 0
        %1846 = vmatpush1.bf16.xpose.msra.mxu0 0
        %1847 = vmatprep.subr.bf16.mxu0 0
        %1848 = vmatpush1.bf16.xpose.msra.mxu0 0
        %1849 = vmatprep.subr.bf16.mxu0 0
        %1850 = vmatpush1.bf16.xpose.msra.mxu0 0
        %1851 = vmatprep.subr.bf16.mxu0 0
        %1852 = vmatpush1.bf16.xpose.msra.mxu0 0
        %1853 = vmatprep.subr.bf16.mxu0 0
        %1854 = vmatpush1.bf16.xpose.msra.mxu0 0
        %1855 = vmatprep.subr.bf16.mxu0 0
        %1856 = vmatpush1.bf16.xpose.msra.mxu0 0
        %1857 = vmatprep.mubr.bf16.mxu0 0
        %1858 = vmatmul.mubr.bf16.gmra.mrb[0].mxu0 %v1820
        %v1859 = vpop.f32.mrb[0].mxu0
        %v1860 = vadd.f32 %v1208, %v1859
        %v1861 = vpop.f32.mrb[0].mxu0
        %v1862 = vpop.f32.mrb[0].mxu0
        %v1863 = vpop.f32.mrb[0].mxu0
        %1864 = vdwg.mxu0
        %v1865 = vsel %vm1278, %v1860, -inf
        %1866 = vmax.xlane.f32.xlu0 %v1865
        %v1867 = vpop.xlane.xlu0 %1866
        %v1868 = vsub.f32 %v1860, %v1867
        %v1869 = vmul.f32 %v1868, 1.442695
        %v1870 = vpow.pop %v1869
        %v1871 = vsel %vm1278, %v1870, 0.0
        %1872 = vadd.xlane.f32.xlu0 %v1871
        %v1873 = vpop.xlane.xlu0 %1872
        %v1874 = vrcp.pop %v1873
        %v1875 = vmul.f32 %v1870, %v1874
        %s1876 = scalar_lea.vmem %s641, 24 [#allocation7]
        %1877 = vst.msk [vmem:[%s1876] sm:$0xff] %vm1278, %v1875
        %v1878 = vpack.c.bf16 %v1875, %v1875
        %s1879 = scalar_lea.vmem [#allocation3], 12
        %v1880 = vld [vmem:[%s1879] sm:$0xf]
        %v1882 = vsel %vm1278, %v1878, 0
        %v1885 = vsel %vm1342, %v1880, 0
        %1887 = vmatprep.subr.bf16.mxu0 0
        %1888 = vmatpush1.bf16.msra.mxu0 %v1885
        %1889 = vmatprep.subr.bf16.mxu0 0
        %1890 = vmatpush1.bf16.msra.mxu0 0
        %1891 = vmatprep.subr.bf16.mxu0 0
        %1892 = vmatpush1.bf16.msra.mxu0 0
        %1893 = vmatprep.subr.bf16.mxu0 0
        %1894 = vmatpush1.bf16.msra.mxu0 0
        %1895 = vmatprep.subr.bf16.mxu0 0
        %1896 = vmatpush1.bf16.msra.mxu0 0
        %1897 = vmatprep.subr.bf16.mxu0 0
        %1898 = vmatpush1.bf16.msra.mxu0 0
        %1899 = vmatprep.subr.bf16.mxu0 0
        %1900 = vmatpush1.bf16.msra.mxu0 0
        %1901 = vmatprep.subr.bf16.mxu0 0
        %1902 = vmatpush1.bf16.msra.mxu0 0
        %1903 = vmatprep.subr.bf16.mxu0 0
        %1904 = vmatpush1.bf16.msra.mxu0 0
        %1905 = vmatprep.subr.bf16.mxu0 0
        %1906 = vmatpush1.bf16.msra.mxu0 0
        %1907 = vmatprep.subr.bf16.mxu0 0
        %1908 = vmatpush1.bf16.msra.mxu0 0
        %1909 = vmatprep.subr.bf16.mxu0 0
        %1910 = vmatpush1.bf16.msra.mxu0 0
        %1911 = vmatprep.subr.bf16.mxu0 0
        %1912 = vmatpush1.bf16.msra.mxu0 0
        %1913 = vmatprep.subr.bf16.mxu0 0
        %1914 = vmatpush1.bf16.msra.mxu0 0
        %1915 = vmatprep.subr.bf16.mxu0 0
        %1916 = vmatpush1.bf16.msra.mxu0 0
        %1917 = vmatprep.subr.bf16.mxu0 0
        %1918 = vmatpush1.bf16.msra.mxu0 0
        %1919 = vmatprep.mubr.bf16.mxu0 0
        %1920 = vmatmul.mubr.bf16.gmra.mrb[0].mxu0 %v1882
        %v1921 = vpop.f32.mrb[0].mxu0
        %v1922 = vadd.f32 0.0, %v1921
        %v1923 = vpop.f32.mrb[0].mxu0
        %v1924 = vpop.f32.mrb[0].mxu0
        %v1925 = vpop.f32.mrb[0].mxu0
        %1926 = vdwg.mxu0
        %1928 = vrot.lane.b32.xlu0 %v1922, 24
        %v1929 = vpop.permute.xlu0 %1928
        %vm1931 = vcmask 261312
        %1932 = vst.msk [vmem:[#allocation4] sm:$0xff] %vm1931, %v1929
        %v1933 = vld [vmem:[#allocation4] sm:$0xff]
        %v1934 = vpack.c.bf16 %v1933, %v1933
        %v1935 = vld [vmem:[%s8] sm:$0xf]
        %v1936 = vld [vmem:[%s8 + $0x4] sm:$0xf]
        %v1937 = vld [vmem:[%s8 + $0x8] sm:$0xf]
        %v1938 = vld [vmem:[%s8 + $0xc] sm:$0xf]
        %v1939 = vld [vmem:[%s9] sm:$0x1]
        %v1941 = vlaneseq
        %v1942 = vshrl.u32 %v1941, 7
        %v1943 = vsub.s32 0, %v1942
        %v1944 = vrot.slane %v1939, %v1943
        %v1950 = vunpack.c.l.b16 %v1935
        %v1951 = vunpack.c.l.b16 %v1936
        %v1952 = vunpack.c.l.b16 %v1937
        %v1953 = vunpack.c.l.b16 %v1938
        %v1954 = vpack.c.b16 %v1951, %v1950
        %v1955 = vpack.c.b16 %v1953, %v1952
        %v1959 = vsel %vm1232, %v1934, 0
        %1961 = vmatprep.subr.bf16.mxu0 0
        %1962 = vmatpush1.bf16.msra.mxu0 %v1954
        %1963 = vmatprep.subr.bf16.mxu0 0
        %1964 = vmatpush1.bf16.msra.mxu0 %v1955
        %1965 = vmatprep.subr.bf16.mxu0 0
        %1966 = vmatpush1.bf16.msra.mxu0 0
        %1967 = vmatprep.subr.bf16.mxu0 0
        %1968 = vmatpush1.bf16.msra.mxu0 0
        %1969 = vmatprep.subr.bf16.mxu0 0
        %1970 = vmatpush1.bf16.msra.mxu0 0
        %1971 = vmatprep.subr.bf16.mxu0 0
        %1972 = vmatpush1.bf16.msra.mxu0 0
        %1973 = vmatprep.subr.bf16.mxu0 0
        %1974 = vmatpush1.bf16.msra.mxu0 0
        %1975 = vmatprep.subr.bf16.mxu0 0
        %1976 = vmatpush1.bf16.msra.mxu0 0
        %1977 = vmatprep.subr.bf16.mxu0 0
        %1978 = vmatpush1.bf16.msra.mxu0 0
        %1979 = vmatprep.subr.bf16.mxu0 0
        %1980 = vmatpush1.bf16.msra.mxu0 0
        %1981 = vmatprep.subr.bf16.mxu0 0
        %1982 = vmatpush1.bf16.msra.mxu0 0
        %1983 = vmatprep.subr.bf16.mxu0 0
        %1984 = vmatpush1.bf16.msra.mxu0 0
        %1985 = vmatprep.subr.bf16.mxu0 0
        %1986 = vmatpush1.bf16.msra.mxu0 0
        %1987 = vmatprep.subr.bf16.mxu0 0
        %1988 = vmatpush1.bf16.msra.mxu0 0
        %1989 = vmatprep.subr.bf16.mxu0 0
        %1990 = vmatpush1.bf16.msra.mxu0 0
        %1991 = vmatprep.subr.bf16.mxu0 0
        %1992 = vmatpush1.bf16.msra.mxu0 0
        %1993 = vmatprep.mubr.bf16.mxu0 0
        %1994 = vmatmul.mubr.bf16.gmra.mrb[0].mxu0 %v1959
        %v1995 = vpop.f32.mrb[0].mxu0
        %v1996 = vadd.f32 %v1944, %v1995
        %v1997 = vpop.f32.mrb[0].mxu0
        %v1998 = vpop.f32.mrb[0].mxu0
        %v1999 = vpop.f32.mrb[0].mxu0
        %2000 = vdwg.mxu0
        %v2001 = vadd.f32 %v1996, %v1205
        %v2002 = vsel %vm1232, %v2001, 0.0
        %2003 = vadd.xlane.f32.xlu0 %v2002
        %v2004 = vpop.xlane.xlu0 %2003
        %v2005 = vrcp.pop 32.0
        %v2006 = vmul.f32 %v2004, %v2005
        %v2007 = vsub.f32 %v2001, %v2006
        %v2008 = vmul.f32 %v2007, %v2007
        %v2009 = vsel %vm1232, %v2008, 0.0
        %2010 = vadd.xlane.f32.xlu0 %v2009
        %v2011 = vpop.xlane.xlu0 %2010
        %v2012 = vmul.f32 %v2011, %v2005
        %v2013 = vadd.f32 %v2012, 1e-12
        %v2014 = vrsqrt.pop %v2013
        %v2015 = vmul.f32 %v2007, %v2014
        %v2016 = vld [vmem:[%s10] sm:$0x1]
        %v2018 = vlaneseq
        %v2019 = vshrl.u32 %v2018, 7
        %v2020 = vsub.s32 0, %v2019
        %v2021 = vrot.slane %v2016, %v2020
        %v2023 = vmul.f32 %v2015, %v2021
        %v2024 = vld [vmem:[%s11] sm:$0x1]
        %v2026 = vlaneseq
        %v2027 = vshrl.u32 %v2026, 7
        %v2028 = vsub.s32 0, %v2027
        %v2029 = vrot.slane %v2024, %v2028
        %v2031 = vadd.f32 %v2023, %v2029
        %v2032 = vpack.c.bf16 %v2031, %v2031
        %v2033 = vld [vmem:[%s12] sm:$0xf]
        %v2034 = vld [vmem:[%s12 + $0x4] sm:$0xf]
        %v2035 = vld [vmem:[%s12 + $0x8] sm:$0xf]
        %v2036 = vld [vmem:[%s12 + $0xc] sm:$0xf]
        %v2037 = vld [vmem:[%s13] sm:$0x1]
        %v2039 = vlaneseq
        %v2040 = vshrl.u32 %v2039, 7
        %v2041 = vsub.s32 0, %v2040
        %v2042 = vrot.slane %v2037, %v2041
        %v2048 = vunpack.c.l.b16 %v2033
        %v2049 = vunpack.c.l.b16 %v2034
        %v2050 = vunpack.c.l.b16 %v2035
        %v2051 = vunpack.c.l.b16 %v2036
        %v2052 = vpack.c.b16 %v2049, %v2048
        %v2053 = vpack.c.b16 %v2051, %v2050
        %v2057 = vsel %vm1232, %v2032, 0
        %2059 = vmatprep.subr.bf16.mxu0 0
        %2060 = vmatpush1.bf16.msra.mxu0 %v2052
        %2061 = vmatprep.subr.bf16.mxu0 0
        %2062 = vmatpush1.bf16.msra.mxu0 %v2053
        %2063 = vmatprep.subr.bf16.mxu0 0
        %2064 = vmatpush1.bf16.msra.mxu0 0
        %2065 = vmatprep.subr.bf16.mxu0 0
        %2066 = vmatpush1.bf16.msra.mxu0 0
        %2067 = vmatprep.subr.bf16.mxu0 0
        %2068 = vmatpush1.bf16.msra.mxu0 0
        %2069 = vmatprep.subr.bf16.mxu0 0
        %2070 = vmatpush1.bf16.msra.mxu0 0
        %2071 = vmatprep.subr.bf16.mxu0 0
        %2072 = vmatpush1.bf16.msra.mxu0 0
        %2073 = vmatprep.subr.bf16.mxu0 0
        %2074 = vmatpush1.bf16.msra.mxu0 0
        %2075 = vmatprep.subr.bf16.mxu0 0
        %2076 = vmatpush1.bf16.msra.mxu0 0
        %2077 = vmatprep.subr.bf16.mxu0 0
        %2078 = vmatpush1.bf16.msra.mxu0 0
        %2079 = vmatprep.subr.bf16.mxu0 0
        %2080 = vmatpush1.bf16.msra.mxu0 0
        %2081 = vmatprep.subr.bf16.mxu0 0
        %2082 = vmatpush1.bf16.msra.mxu0 0
        %2083 = vmatprep.subr.bf16.mxu0 0
        %2084 = vmatpush1.bf16.msra.mxu0 0
        %2085 = vmatprep.subr.bf16.mxu0 0
        %2086 = vmatpush1.bf16.msra.mxu0 0
        %2087 = vmatprep.subr.bf16.mxu0 0
        %2088 = vmatpush1.bf16.msra.mxu0 0
        %2089 = vmatprep.subr.bf16.mxu0 0
        %2090 = vmatpush1.bf16.msra.mxu0 0
        %2091 = vmatprep.mubr.bf16.mxu0 0
        %2092 = vmatmul.mubr.bf16.gmra.mrb[0].mxu0 %v2057
        %v2093 = vpop.f32.mrb[0].mxu0
        %v2094 = vadd.f32 %v2042, %v2093
        %v2095 = vpop.f32.mrb[0].mxu0
        %v2096 = vpop.f32.mrb[0].mxu0
        %v2097 = vpop.f32.mrb[0].mxu0
        %2098 = vdwg.mxu0
        %v2099 = vmax.f32 %v2094, 0.0
        %v2100 = vpack.c.bf16 %v2099, %v2099
        %v2101 = vld [vmem:[%s14] sm:$0xf]
        %v2102 = vld [vmem:[%s14 + $0x4] sm:$0xf]
        %v2103 = vld [vmem:[%s14 + $0x8] sm:$0xf]
        %v2104 = vld [vmem:[%s14 + $0xc] sm:$0xf]
        %v2105 = vld [vmem:[%s14 + $0x10] sm:$0xf]
        %v2106 = vld [vmem:[%s14 + $0x14] sm:$0xf]
        %v2107 = vld [vmem:[%s14 + $0x18] sm:$0xf]
        %v2108 = vld [vmem:[%s14 + $0x1c] sm:$0xf]
        %v2109 = vld [vmem:[%s15] sm:$0x1]
        %v2111 = vlaneseq
        %v2112 = vshrl.u32 %v2111, 7
        %v2113 = vsub.s32 0, %v2112
        %v2114 = vrot.slane %v2109, %v2113
        %v2124 = vunpack.c.l.b16 %v2101
        %v2125 = vunpack.c.l.b16 %v2102
        %v2126 = vunpack.c.l.b16 %v2103
        %v2127 = vunpack.c.l.b16 %v2104
        %v2128 = vunpack.c.l.b16 %v2105
        %v2129 = vunpack.c.l.b16 %v2106
        %v2130 = vunpack.c.l.b16 %v2107
        %v2131 = vunpack.c.l.b16 %v2108
        %v2132 = vpack.c.b16 %v2125, %v2124
        %v2133 = vpack.c.b16 %v2127, %v2126
        %v2134 = vpack.c.b16 %v2129, %v2128
        %v2135 = vpack.c.b16 %v2131, %v2130
        %vm2140 = vcmask 523264
        %v2142 = vsel %vm2140, %v2100, 0
        %2144 = vmatprep.subr.bf16.mxu0 0
        %2145 = vmatpush1.bf16.msra.mxu0 %v2132
        %2146 = vmatprep.subr.bf16.mxu0 0
        %2147 = vmatpush1.bf16.msra.mxu0 %v2133
        %2148 = vmatprep.subr.bf16.mxu0 0
        %2149 = vmatpush1.bf16.msra.mxu0 %v2134
        %2150 = vmatprep.subr.bf16.mxu0 0
        %2151 = vmatpush1.bf16.msra.mxu0 %v2135
        %2152 = vmatprep.subr.bf16.mxu0 0
        %2153 = vmatpush1.bf16.msra.mxu0 0
        %2154 = vmatprep.subr.bf16.mxu0 0
        %2155 = vmatpush1.bf16.msra.mxu0 0
        %2156 = vmatprep.subr.bf16.mxu0 0
        %2157 = vmatpush1.bf16.msra.mxu0 0
        %2158 = vmatprep.subr.bf16.mxu0 0
        %2159 = vmatpush1.bf16.msra.mxu0 0
        %2160 = vmatprep.subr.bf16.mxu0 0
        %2161 = vmatpush1.bf16.msra.mxu0 0
        %2162 = vmatprep.subr.bf16.mxu0 0
        %2163 = vmatpush1.bf16.msra.mxu0 0
        %2164 = vmatprep.subr.bf16.mxu0 0
        %2165 = vmatpush1.bf16.msra.mxu0 0
        %2166 = vmatprep.subr.bf16.mxu0 0
        %2167 = vmatpush1.bf16.msra.mxu0 0
        %2168 = vmatprep.subr.bf16.mxu0 0
        %2169 = vmatpush1.bf16.msra.mxu0 0
        %2170 = vmatprep.subr.bf16.mxu0 0
        %2171 = vmatpush1.bf16.msra.mxu0 0
        %2172 = vmatprep.subr.bf16.mxu0 0
        %2173 = vmatpush1.bf16.msra.mxu0 0
        %2174 = vmatprep.subr.bf16.mxu0 0
        %2175 = vmatpush1.bf16.msra.mxu0 0
        %2176 = vmatprep.mubr.bf16.mxu0 0
        %2177 = vmatmul.mubr.bf16.gmra.mrb[0].mxu0 %v2142
        %v2178 = vpop.f32.mrb[0].mxu0
        %v2179 = vadd.f32 %v2114, %v2178
        %v2180 = vpop.f32.mrb[0].mxu0
        %v2181 = vpop.f32.mrb[0].mxu0
        %v2182 = vpop.f32.mrb[0].mxu0
        %2183 = vdwg.mxu0
        %v2184 = vadd.f32 %v2179, %v2031
        %v2185 = vsel %vm1232, %v2184, 0.0
        %2186 = vadd.xlane.f32.xlu0 %v2185
        %v2187 = vpop.xlane.xlu0 %2186
        %v2188 = vmul.f32 %v2187, %v2005
        %v2189 = vsub.f32 %v2184, %v2188
        %v2190 = vmul.f32 %v2189, %v2189
        %v2191 = vsel %vm1232, %v2190, 0.0
        %2192 = vadd.xlane.f32.xlu0 %v2191
        %v2193 = vpop.xlane.xlu0 %2192
        %v2194 = vmul.f32 %v2193, %v2005
        %v2195 = vadd.f32 %v2194, 1e-12
        %v2196 = vrsqrt.pop %v2195
        %v2197 = vmul.f32 %v2189, %v2196
        %v2198 = vld [vmem:[%s16] sm:$0x1]
        %v2200 = vlaneseq
        %v2201 = vshrl.u32 %v2200, 7
        %v2202 = vsub.s32 0, %v2201
        %v2203 = vrot.slane %v2198, %v2202
        %v2205 = vmul.f32 %v2197, %v2203
        %v2206 = vld [vmem:[%s17] sm:$0x1]
        %v2208 = vlaneseq
        %v2209 = vshrl.u32 %v2208, 7
        %v2210 = vsub.s32 0, %v2209
        %v2211 = vrot.slane %v2206, %v2210
        %v2213 = vadd.f32 %v2205, %v2211
        %2214 = vst.msk [vmem:[%s634] sm:$0xff] %vm1232, %v2213
        %s2215 = sand.u32 %s449, 1
        %s2216 = scalar_lea.sflag [#allocation6], %s2215
        %s2217 = sand.u32 %s449, 1
        %s2218 = smul.addr %s2217, 8
        %s2219 = scalar_lea.vmem [#allocation5], %s2218
        %s2220 = sand.u32 %s477, 1
        %s2221 = scalar_lea.sflag [#allocation8], %s2220
        %s2222 = sand.u32 %s477, 1
        %s2223 = smul.addr %s2222, 32
        %s2224 = scalar_lea.vmem [#allocation7], %s2223
        // Predicated region
        $region97: #{tpu_custom_call.1} parent=91 // pred_check
          %p2225 = pneg %p459
        $region98: #{tpu_custom_call.1} parent=91 // pred_check_branch
          %2227 = sbr.rel (%p2225) target = $region100
        $region99: #{tpu_custom_call.1} parent=91 // pred_region
          %s2229 = ssub.s32 128, 128
          %2230 = vsyncadd %s2216, %s2229
          %s2231 = sadd.s32 %s42, %s41
          %s2232 = smul.addr %s2231, 128
          %s2233 = scalar_lea.hbm %s18, %s2232
          %s2235 = sshll.u32 %s2219, 4
          %s2236 = int_to_ptr.vmem [resolvable:$true] %s2235
          %2238 = dma.vmem_to_hbm [thread:$0]  %s2236, 128, %s2233, %s2216
        $region100: #{tpu_custom_call.1} parent=91 // pred_fallthru
          _
        // Predicated region
        $region101: #{tpu_custom_call.1} parent=91 // pred_check
          %p2239 = pneg %p487
        $region102: #{tpu_custom_call.1} parent=91 // pred_check_branch
          %2241 = sbr.rel (%p2239) target = $region104
        $region103: #{tpu_custom_call.1} parent=91 // pred_region
          %s2243 = ssub.s32 512, 512
          %2244 = vsyncadd %s2221, %s2243
          %s2245 = smul.addr %s41, 4
          %s2246 = sadd.s32 %s42, %s2245
          %s2247 = smul.addr %s2246, 128
          %s2248 = scalar_lea.hbm %s19, %s2247
          %s2249 = sshll.u32 %s2224, 4
          %s2250 = int_to_ptr.vmem [resolvable:$true] %s2249
          %2255 = dma.vmem_to_hbm [thread:$0]  %s2250, 512, %s2248, %s2221, 128, 128, 8
        $region104: #{tpu_custom_call.1} parent=91 // pred_fallthru
          _
      $region92: #{tpu_custom_call.1} parent=5 // pred_fallthru
        _
      %p2256 = scmp.le.s32.totalorder 2, %s32
      // Predicated region
      $region105: #{tpu_custom_call.1} parent=5 // pred_check
        %p2257 = pneg %p2256
      $region106: #{tpu_custom_call.1} parent=5 // pred_check_branch
        %2259 = sbr.rel (%p2257) target = $region108
      $region107: #{tpu_custom_call.1} parent=5 // pred_region
        %s2260 = ssub.s32 %s32, 2
        // Predicated region
        $region109: #{tpu_custom_call.1} parent=107 // pred_check
          %p2261 = pneg %p465
        $region110: #{tpu_custom_call.1} parent=107 // pred_check_branch
          %2263 = sbr.rel (%p2261) target = $region112
        $region111: #{tpu_custom_call.1} parent=107 // pred_region
          %s2264 = sand.u32 %s450, 1
          %s2265 = scalar_lea.sflag [#allocation6], %s2264
          %s2266 = sand.u32 %s450, 1
          %s2267 = smul.addr %s2266, 8
          %s2268 = scalar_lea.vmem [#allocation5], %s2267
          %2269 = dma.done %s2265, 128
        $region112: #{tpu_custom_call.1} parent=107 // pred_fallthru
          _
        // Predicated region
        $region113: #{tpu_custom_call.1} parent=107 // pred_check
          %p2270 = pneg %p493
        $region114: #{tpu_custom_call.1} parent=107 // pred_check_branch
          %2272 = sbr.rel (%p2270) target = $region116
        $region115: #{tpu_custom_call.1} parent=107 // pred_region
          %s2273 = sand.u32 %s478, 1
          %s2274 = scalar_lea.sflag [#allocation8], %s2273
          %s2275 = sand.u32 %s478, 1
          %s2276 = smul.addr %s2275, 32
          %s2277 = scalar_lea.vmem [#allocation7], %s2276
          %2278 = dma.done %s2274, 512
        $region116: #{tpu_custom_call.1} parent=107 // pred_fallthru
          _
      $region108: #{tpu_custom_call.1} parent=5 // pred_fallthru
        _
    $region6: #{tpu_custom_call.1} parent=1 // loop_footer
      %s36 = sadd.s32 1, %s32
    $region7: #{tpu_custom_call.1} parent=1 // loop_footer_branch
      %31 = sbr.rel target = $region3
    $region8: #{tpu_custom_call.1} parent=1 // loop_exit
      _
    %2279 = vsyncpa [#allocation6], 1
    %s2280 = scalar_lea.sflag [#allocation6], 1
    %2281 = vsyncpa %s2280, 1
    %2282 = vsyncpa [#allocation8], 1
    %s2283 = scalar_lea.sflag [#allocation8], 1
    %2284 = vsyncpa %s2283, 1

// kernel: tpu_custom_call.1
$region0: #{tpu_custom_call.1}
  #allocation0 [shape = 'u32[]', space=smem, size = 0x4, offset = 0x4, fixed_abs, tag = 'smem constant byte address 0x4 - core index']
  #allocation1 [shape = 'u32[144,128]{1,0:T(1,128)}', space=vmem, size = 0x12000, scoped, tag = 'internal scratch']
  #allocation2 [shape = 'bf16[4,8,8]{2,1,0:T(8,128)(2,1)}', space=vmem, size = 0x2000, scoped, tag = 'scratch operand']
  #allocation3 [shape = 'bf16[4,8,8]{2,1,0:T(8,128)(2,1)}', space=vmem, size = 0x2000, scoped, tag = 'scratch operand']
  #allocation4 [shape = 'f32[8,32]{1,0:T(8,128)}', space=vmem, size = 0x1000, scoped, tag = 'scratch operand']
  %s0 = inlined_call_operand.vmem [shape: f32[2,8,32], index: 0, kind: input, shape index: {}]
  %s1 = inlined_call_operand.vmem [shape: bf16[2,8,8], index: 1, kind: input, shape index: {}]
  %s2 = inlined_call_operand.vmem [shape: bf16[4,32,8], index: 2, kind: input, shape index: {}]
  %s3 = inlined_call_operand.vmem [shape: f32[4,1,8], index: 3, kind: input, shape index: {}]
  %s4 = inlined_call_operand.vmem [shape: bf16[4,32,8], index: 4, kind: input, shape index: {}]
  %s5 = inlined_call_operand.vmem [shape: f32[4,1,8], index: 5, kind: input, shape index: {}]
  %s6 = inlined_call_operand.vmem [shape: bf16[4,32,8], index: 6, kind: input, shape index: {}]
  %s7 = inlined_call_operand.vmem [shape: f32[4,1,8], index: 7, kind: input, shape index: {}]
  %s8 = inlined_call_operand.vmem [shape: bf16[32,32], index: 8, kind: input, shape index: {}]
  %s9 = inlined_call_operand.vmem [shape: f32[1,32], index: 9, kind: input, shape index: {}]
  %s10 = inlined_call_operand.vmem [shape: f32[1,32], index: 10, kind: input, shape index: {}]
  %s11 = inlined_call_operand.vmem [shape: f32[1,32], index: 11, kind: input, shape index: {}]
  %s12 = inlined_call_operand.vmem [shape: bf16[32,64], index: 12, kind: input, shape index: {}]
  %s13 = inlined_call_operand.vmem [shape: f32[1,64], index: 13, kind: input, shape index: {}]
  %s14 = inlined_call_operand.vmem [shape: bf16[64,32], index: 14, kind: input, shape index: {}]
  %s15 = inlined_call_operand.vmem [shape: f32[1,32], index: 15, kind: input, shape index: {}]
  %s16 = inlined_call_operand.vmem [shape: f32[1,32], index: 16, kind: input, shape index: {}]
  %s17 = inlined_call_operand.vmem [shape: f32[1,32], index: 17, kind: input, shape index: {}]
  %s18 = inlined_call_operand.hbm [shape: f32[2,8,32], index: 18, kind: output, shape index: {0}]
  %s19 = inlined_call_operand.hbm [shape: f32[2,4,8,8], index: 19, kind: output, shape index: {1}]
  %20 = xla_tuple %s18, %s19
  %s21 = sld [smem:[#allocation0]]
  $region117: #{tpu_custom_call.1} parent=0
    _
  %s23 = ssub.s32 1, %s21
  %s24 = scalar_select 0, %s23, %s21
  $region1: #{tpu_custom_call.1} parent=0
    #allocation5 [shape = 'u8[8192]{0}', space=vmem, size = 0x2000, scoped, tag = 'output window, operand 0']
    #allocation6 [shape = 's32[2]{0}', space=sflag, size = 0x8, scoped, tag = 'scoped memory for tpu_custom_call.1']
    #allocation7 [shape = 'u8[32768]{0}', space=vmem, size = 0x8000, scoped, tag = 'output window, operand 1']
    #allocation8 [shape = 's32[2]{0}', space=sflag, size = 0x8, scoped, tag = 'scoped memory for tpu_custom_call.1']
    %25 = vsyncpa [#allocation6], 0
    %s26 = scalar_lea.sflag [#allocation6], 1
    %27 = vsyncpa %s26, 0
    %28 = vsyncpa [#allocation8], 0
    %s29 = scalar_lea.sflag [#allocation8], 1
    %30 = vsyncpa %s29, 0
    loop: start=0, step=1, limit=4
    $region2: #{tpu_custom_call.1} parent=1 // loop_pre_header
      _
    $region3: #{tpu_custom_call.1} parent=1 // loop_header
      %s32 = sphi 0, %s36
      %p33 = scmp.ge.s32.totalorder %s32, 4
      %s39 = sphi 0, %s51
      %s40 = sphi 0, %s47
      %s41 = sphi 0, %s39
      %s42 = sphi 0, %s40
      %s43 = sphi 0, %s41
      %s44 = sphi 0, %s42
      %s54 = sphi 0, %s56
      %s57 = sphi 0, %s54
      %s58 = sphi 0, %s57
      %s74 = sphi 0, %s58
      %s82 = sphi 0, %s84
      %s85 = sphi 0, %s82
      %s86 = sphi 0, %s85
      %s102 = sphi 0, %s86
      %s106 = sphi 0, %s106
      %s108 = sphi 0, %s106
      %s109 = sphi 0, %s108
      %s123 = sphi 0, %s109
      %s127 = sphi 0, %s127
      %s129 = sphi 0, %s127
      %s130 = sphi 0, %s129
      %s144 = sphi 0, %s130
      %s148 = sphi 0, %s148
      %s150 = sphi 0, %s148
      %s151 = sphi 0, %s150
      %s165 = sphi 0, %s151
      %s169 = sphi 0, %s169
      %s171 = sphi 0, %s169
      %s172 = sphi 0, %s171
      %s186 = sphi 0, %s172
      %s190 = sphi 0, %s190
      %s192 = sphi 0, %s190
      %s193 = sphi 0, %s192
      %s207 = sphi 0, %s193
      %s211 = sphi 0, %s211
      %s213 = sphi 0, %s211
      %s214 = sphi 0, %s213
      %s228 = sphi 0, %s214
      %s232 = sphi 0, %s232
      %s234 = sphi 0, %s232
      %s235 = sphi 0, %s234
      %s249 = sphi 0, %s235
      %s253 = sphi 0, %s253
      %s255 = sphi 0, %s253
      %s256 = sphi 0, %s255
      %s270 = sphi 0, %s256
      %s274 = sphi 0, %s274
      %s276 = sphi 0, %s274
      %s277 = sphi 0, %s276
      %s291 = sphi 0, %s277
      %s295 = sphi 0, %s295
      %s297 = sphi 0, %s295
      %s298 = sphi 0, %s297
      %s312 = sphi 0, %s298
      %s316 = sphi 0, %s316
      %s318 = sphi 0, %s316
      %s319 = sphi 0, %s318
      %s333 = sphi 0, %s319
      %s337 = sphi 0, %s337
      %s339 = sphi 0, %s337
      %s340 = sphi 0, %s339
      %s354 = sphi 0, %s340
      %s358 = sphi 0, %s358
      %s360 = sphi 0, %s358
      %s361 = sphi 0, %s360
      %s375 = sphi 0, %s361
      %s379 = sphi 0, %s379
      %s381 = sphi 0, %s379
      %s382 = sphi 0, %s381
      %s396 = sphi 0, %s382
      %s400 = sphi 0, %s400
      %s402 = sphi 0, %s400
      %s403 = sphi 0, %s402
      %s417 = sphi 0, %s403
      %s421 = sphi 0, %s421
      %s423 = sphi 0, %s421
      %s424 = sphi 0, %s423
      %s438 = sphi 0, %s424
      %s446 = sphi 0, %s448
      %s449 = sphi 0, %s446
      %s450 = sphi 0, %s449
      %s466 = sphi 0, %s450
      %s474 = sphi 0, %s476
      %s477 = sphi 0, %s474
      %s478 = sphi 0, %s477
      %s494 = sphi 0, %s478
    $region4: #{tpu_custom_call.1} parent=1 // loop_header_branch
      %35 = sbr.rel (%p33) target = $region8
    $region5: #{tpu_custom_call.1} parent=1 // loop_body
      %s37 = ssub.s32 %s32, 1
      %s38 = ssub.s32 %s32, 2
      %s45 = sadd.s32 1, %s40
      %p46 = scmp.ge.s32.totalorder %s45, 1
      %s47 = scalar_select %p46, 0, %s45
      %s48 = sadd.s32 1, %s39
      %s49 = scalar_select %p46, %s48, %s39
      %p50 = scmp.ge.s32.totalorder %s49, 2
      %s51 = scalar_select %p50, 0, %s49
      %s52 = ssub.s32 %s39, %s51
      %p53 = scmp.eq.s32.totalorder %s52, 0
      %s55 = sadd.s32 %s54, 1
      %s56 = scalar_select %p53, %s54, %s55
      %p59 = pneg %p53
      %p60 = scmp.eq.s32.totalorder %s32, 1
      %p61 = por %p59, %p60
      %p62 = scmp.ne.s32.totalorder %s54, %s57
      %p63 = scmp.eq.s32.totalorder %s32, 0
      %p64 = por %p62, %p63
      %p65 = scmp.ne.s32.totalorder %s54, %s57
      %p66 = scmp.eq.s32.totalorder %s37, 1
      %p67 = por %p65, %p66
      %p68 = scmp.ne.s32.totalorder %s57, %s58
      %p69 = scmp.eq.s32.totalorder %s37, 0
      %p70 = por %p68, %p69
      %p71 = scmp.ne.s32.totalorder %s57, %s58
      %p72 = scmp.eq.s32.totalorder %s38, 1
      %p73 = por %p71, %p72
      %p75 = scmp.ne.s32.totalorder %s58, %s74
      %p76 = scmp.eq.s32.totalorder %s38, 0
      %p77 = por %p75, %p76
      %s78 = ssub.s32 %s39, %s51
      %s79 = ssub.s32 %s40, %s47
      %s80 = sor.u32 %s78, %s79
      %p81 = scmp.eq.s32.totalorder %s80, 0
      %s83 = sadd.s32 %s82, 1
      %s84 = scalar_select %p81, %s82, %s83
      %p87 = pneg %p81
      %p88 = scmp.eq.s32.totalorder %s32, 1
      %p89 = por %p87, %p88
      %p90 = scmp.ne.s32.totalorder %s82, %s85
      %p91 = scmp.eq.s32.totalorder %s32, 0
      %p92 = por %p90, %p91
      %p93 = scmp.ne.s32.totalorder %s82, %s85
      %p94 = scmp.eq.s32.totalorder %s37, 1
      %p95 = por %p93, %p94
      %p96 = scmp.ne.s32.totalorder %s85, %s86
      %p97 = scmp.eq.s32.totalorder %s37, 0
      %p98 = por %p96, %p97
      %p99 = scmp.ne.s32.totalorder %s85, %s86
      %p100 = scmp.eq.s32.totalorder %s38, 1
      %p101 = por %p99, %p100
      %p103 = scmp.ne.s32.totalorder %s86, %s102
      %p104 = scmp.eq.s32.totalorder %s38, 0
      %p105 = por %p103, %p104
      %s107 = sadd.s32 %s106, 1
      %p110 = scmp.eq.s32.totalorder %s32, 1
      %p111 = scmp.ne.s32.totalorder %s106, %s108
      %p112 = scmp.eq.s32.totalorder %s32, 0
      %p113 = por %p111, %p112
      %p114 = scmp.ne.s32.totalorder %s106, %s108
      %p115 = scmp.eq.s32.totalorder %s37, 1
      %p116 = por %p114, %p115
      %p117 = scmp.ne.s32.totalorder %s108, %s109
      %p118 = scmp.eq.s32.totalorder %s37, 0
      %p119 = por %p117, %p118
      %p120 = scmp.ne.s32.totalorder %s108, %s109
      %p121 = scmp.eq.s32.totalorder %s38, 1
      %p122 = por %p120, %p121
      %p124 = scmp.ne.s32.totalorder %s109, %s123
      %p125 = scmp.eq.s32.totalorder %s38, 0
      %p126 = por %p124, %p125
      %s128 = sadd.s32 %s127, 1
      %p131 = scmp.eq.s32.totalorder %s32, 1
      %p132 = scmp.ne.s32.totalorder %s127, %s129
      %p133 = scmp.eq.s32.totalorder %s32, 0
      %p134 = por %p132, %p133
      %p135 = scmp.ne.s32.totalorder %s127, %s129
      %p136 = scmp.eq.s32.totalorder %s37, 1
      %p137 = por %p135, %p136
      %p138 = scmp.ne.s32.totalorder %s129, %s130
      %p139 = scmp.eq.s32.totalorder %s37, 0
      %p140 = por %p138, %p139
      %p141 = scmp.ne.s32.totalorder %s129, %s130
      %p142 = scmp.eq.s32.totalorder %s38, 1
      %p143 = por %p141, %p142
      %p145 = scmp.ne.s32.totalorder %s130, %s144
      %p146 = scmp.eq.s32.totalorder %s38, 0
      %p147 = por %p145, %p146
      %s149 = sadd.s32 %s148, 1
      %p152 = scmp.eq.s32.totalorder %s32, 1
      %p153 = scmp.ne.s32.totalorder %s148, %s150
      %p154 = scmp.eq.s32.totalorder %s32, 0
      %p155 = por %p153, %p154
      %p156 = scmp.ne.s32.totalorder %s148, %s150
      %p157 = scmp.eq.s32.totalorder %s37, 1
      %p158 = por %p156, %p157
      %p159 = scmp.ne.s32.totalorder %s150, %s151
      %p160 = scmp.eq.s32.totalorder %s37, 0
      %p161 = por %p159, %p160
      %p162 = scmp.ne.s32.totalorder %s150, %s151
      %p163 = scmp.eq.s32.totalorder %s38, 1
      %p164 = por %p162, %p163
      %p166 = scmp.ne.s32.totalorder %s151, %s165
      %p167 = scmp.eq.s32.totalorder %s38, 0
      %p168 = por %p166, %p167
      %s170 = sadd.s32 %s169, 1
      %p173 = scmp.eq.s32.totalorder %s32, 1
      %p174 = scmp.ne.s32.totalorder %s169, %s171
      %p175 = scmp.eq.s32.totalorder %s32, 0
      %p176 = por %p174, %p175
      %p177 = scmp.ne.s32.totalorder %s169, %s171
      %p178 = scmp.eq.s32.totalorder %s37, 1
      %p179 = por %p177, %p178
      %p180 = scmp.ne.s32.totalorder %s171, %s172
      %p181 = scmp.eq.s32.totalorder %s37, 0
      %p182 = por %p180, %p181
      %p183 = scmp.ne.s32.totalorder %s171, %s172
      %p184 = scmp.eq.s32.totalorder %s38, 1
      %p185 = por %p183, %p184
      %p187 = scmp.ne.s32.totalorder %s172, %s186
      %p188 = scmp.eq.s32.totalorder %s38, 0
      %p189 = por %p187, %p188
      %s191 = sadd.s32 %s190, 1
      %p194 = scmp.eq.s32.totalorder %s32, 1
      %p195 = scmp.ne.s32.totalorder %s190, %s192
      %p196 = scmp.eq.s32.totalorder %s32, 0
      %p197 = por %p195, %p196
      %p198 = scmp.ne.s32.totalorder %s190, %s192
      %p199 = scmp.eq.s32.totalorder %s37, 1
      %p200 = por %p198, %p199
      %p201 = scmp.ne.s32.totalorder %s192, %s193
      %p202 = scmp.eq.s32.totalorder %s37, 0
      %p203 = por %p201, %p202
      %p204 = scmp.ne.s32.totalorder %s192, %s193
      %p205 = scmp.eq.s32.totalorder %s38, 1
      %p206 = por %p204, %p205
      %p208 = scmp.ne.s32.totalorder %s193, %s207
      %p209 = scmp.eq.s32.totalorder %s38, 0
      %p210 = por %p208, %p209
      %s212 = sadd.s32 %s211, 1
      %p215 = scmp.eq.s32.totalorder %s32, 1
      %p216 = scmp.ne.s32.totalorder %s211, %s213
      %p217 = scmp.eq.s32.totalorder %s32, 0
      %p218 = por %p216, %p217
      %p219 = scmp.ne.s32.totalorder %s211, %s213
      %p220 = scmp.eq.s32.totalorder %s37, 1
      %p221 = por %p219, %p220
      %p222 = scmp.ne.s32.totalorder %s213, %s214
      %p223 = scmp.eq.s32.totalorder %s37, 0
      %p224 = por %p222, %p223
      %p225 = scmp.ne.s32.totalorder %s213, %s214
      %p226 = scmp.eq.s32.totalorder %s38, 1
      %p227 = por %p225, %p226
      %p229 = scmp.ne.s32.totalorder %s214, %s228
      %p230 = scmp.eq.s32.totalorder %s38, 0
      %p231 = por %p229, %p230
      %s233 = sadd.s32 %s232, 1
      %p236 = scmp.eq.s32.totalorder %s32, 1
      %p237 = scmp.ne.s32.totalorder %s232, %s234
      %p238 = scmp.eq.s32.totalorder %s32, 0
      %p239 = por %p237, %p238
      %p240 = scmp.ne.s32.totalorder %s232, %s234
      %p241 = scmp.eq.s32.totalorder %s37, 1
      %p242 = por %p240, %p241
      %p243 = scmp.ne.s32.totalorder %s234, %s235
      %p244 = scmp.eq.s32.totalorder %s37, 0
      %p245 = por %p243, %p244
      %p246 = scmp.ne.s32.totalorder %s234, %s235
      %p247 = scmp.eq.s32.totalorder %s38, 1
      %p248 = por %p246, %p247
      %p250 = scmp.ne.s32.totalorder %s235, %s249
      %p251 = scmp.eq.s32.totalorder %s38, 0
      %p252 = por %p250, %p251
      %s254 = sadd.s32 %s253, 1
      %p257 = scmp.eq.s32.totalorder %s32, 1
      %p258 = scmp.ne.s32.totalorder %s253, %s255
      %p259 = scmp.eq.s32.totalorder %s32, 0
      %p260 = por %p258, %p259
      %p261 = scmp.ne.s32.totalorder %s253, %s255
      %p262 = scmp.eq.s32.totalorder %s37, 1
      %p263 = por %p261, %p262
      %p264 = scmp.ne.s32.totalorder %s255, %s256
      %p265 = scmp.eq.s32.totalorder %s37, 0
      %p266 = por %p264, %p265
      %p267 = scmp.ne.s32.totalorder %s255, %s256
      %p268 = scmp.eq.s32.totalorder %s38, 1
      %p269 = por %p267, %p268
      %p271 = scmp.ne.s32.totalorder %s256, %s270
      %p272 = scmp.eq.s32.totalorder %s38, 0
      %p273 = por %p271, %p272
      %s275 = sadd.s32 %s274, 1
      %p278 = scmp.eq.s32.totalorder %s32, 1
      %p279 = scmp.ne.s32.totalorder %s274, %s276
      %p280 = scmp.eq.s32.totalorder %s32, 0
      %p281 = por %p279, %p280
      %p282 = scmp.ne.s32.totalorder %s274, %s276
      %p283 = scmp.eq.s32.totalorder %s37, 1
      %p284 = por %p282, %p283
      %p285 = scmp.ne.s32.totalorder %s276, %s277
      %p286 = scmp.eq.s32.totalorder %s37, 0
      %p287 = por %p285, %p286
      %p288 = scmp.ne.s32.totalorder %s276, %s277
      %p289 = scmp.eq.s32.totalorder %s38, 1
      %p290 = por %p288, %p289
      %p292 = scmp.ne.s32.totalorder %s277, %s291
      %p293 = scmp.eq.s32.totalorder %s38, 0
      %p294 = por %p292, %p293
      %s296 = sadd.s32 %s295, 1
      %p299 = scmp.eq.s32.totalorder %s32, 1
      %p300 = scmp.ne.s32.totalorder %s295, %s297
      %p301 = scmp.eq.s32.totalorder %s32, 0
      %p302 = por %p300, %p301
      %p303 = scmp.ne.s32.totalorder %s295, %s297
      %p304 = scmp.eq.s32.totalorder %s37, 1
      %p305 = por %p303, %p304
      %p306 = scmp.ne.s32.totalorder %s297, %s298
      %p307 = scmp.eq.s32.totalorder %s37, 0
      %p308 = por %p306, %p307
      %p309 = scmp.ne.s32.totalorder %s297, %s298
      %p310 = scmp.eq.s32.totalorder %s38, 1
      %p311 = por %p309, %p310
      %p313 = scmp.ne.s32.totalorder %s298, %s312
      %p314 = scmp.eq.s32.totalorder %s38, 0
      %p315 = por %p313, %p314
      %s317 = sadd.s32 %s316, 1
      %p320 = scmp.eq.s32.totalorder %s32, 1
      %p321 = scmp.ne.s32.totalorder %s316, %s318
      %p322 = scmp.eq.s32.totalorder %s32, 0
      %p323 = por %p321, %p322
      %p324 = scmp.ne.s32.totalorder %s316, %s318
      %p325 = scmp.eq.s32.totalorder %s37, 1
      %p326 = por %p324, %p325
      %p327 = scmp.ne.s32.totalorder %s318, %s319
      %p328 = scmp.eq.s32.totalorder %s37, 0
      %p329 = por %p327, %p328
      %p330 = scmp.ne.s32.totalorder %s318, %s319
      %p331 = scmp.eq.s32.totalorder %s38, 1
      %p332 = por %p330, %p331
      %p334 = scmp.ne.s32.totalorder %s319, %s333
      %p335 = scmp.eq.s32.totalorder %s38, 0
      %p336 = por %p334, %p335
      %s338 = sadd.s32 %s337, 1
      %p341 = scmp.eq.s32.totalorder %s32, 1
      %p342 = scmp.ne.s32.totalorder %s337, %s339
      %p343 = scmp.eq.s32.totalorder %s32, 0
      %p344 = por %p342, %p343
      %p345 = scmp.ne.s32.totalorder %s337, %s339
      %p346 = scmp.eq.s32.totalorder %s37, 1
      %p347 = por %p345, %p346
      %p348 = scmp.ne.s32.totalorder %s339, %s340
      %p349 = scmp.eq.s32.totalorder %s37, 0
      %p350 = por %p348, %p349
      %p351 = scmp.ne.s32.totalorder %s339, %s340
      %p352 = scmp.eq.s32.totalorder %s38, 1
      %p353 = por %p351, %p352
      %p355 = scmp.ne.s32.totalorder %s340, %s354
      %p356 = scmp.eq.s32.totalorder %s38, 0
      %p357 = por %p355, %p356
      %s359 = sadd.s32 %s358, 1
      %p362 = scmp.eq.s32.totalorder %s32, 1
      %p363 = scmp.ne.s32.totalorder %s358, %s360
      %p364 = scmp.eq.s32.totalorder %s32, 0
      %p365 = por %p363, %p364
      %p366 = scmp.ne.s32.totalorder %s358, %s360
      %p367 = scmp.eq.s32.totalorder %s37, 1
      %p368 = por %p366, %p367
      %p369 = scmp.ne.s32.totalorder %s360, %s361
      %p370 = scmp.eq.s32.totalorder %s37, 0
      %p371 = por %p369, %p370
      %p372 = scmp.ne.s32.totalorder %s360, %s361
      %p373 = scmp.eq.s32.totalorder %s38, 1
      %p374 = por %p372, %p373
      %p376 = scmp.ne.s32.totalorder %s361, %s375
      %p377 = scmp.eq.s32.totalorder %s38, 0
      %p378 = por %p376, %p377
      %s380 = sadd.s32 %s379, 1
      %p383 = scmp.eq.s32.totalorder %s32, 1
      %p384 = scmp.ne.s32.totalorder %s379, %s381
      %p385 = scmp.eq.s32.totalorder %s32, 0
      %p386 = por %p384, %p385
      %p387 = scmp.ne.s32.totalorder %s379, %s381
      %p388 = scmp.eq.s32.totalorder %s37, 1
      %p389 = por %p387, %p388
      %p390 = scmp.ne.s32.totalorder %s381, %s382
      %p391 = scmp.eq.s32.totalorder %s37, 0
      %p392 = por %p390, %p391
      %p393 = scmp.ne.s32.totalorder %s381, %s382
      %p394 = scmp.eq.s32.totalorder %s38, 1
      %p395 = por %p393, %p394
      %p397 = scmp.ne.s32.totalorder %s382, %s396
      %p398 = scmp.eq.s32.totalorder %s38, 0
      %p399 = por %p397, %p398
      %s401 = sadd.s32 %s400, 1
      %p404 = scmp.eq.s32.totalorder %s32, 1
      %p405 = scmp.ne.s32.totalorder %s400, %s402
      %p406 = scmp.eq.s32.totalorder %s32, 0
      %p407 = por %p405, %p406
      %p408 = scmp.ne.s32.totalorder %s400, %s402
      %p409 = scmp.eq.s32.totalorder %s37, 1
      %p410 = por %p408, %p409
      %p411 = scmp.ne.s32.totalorder %s402, %s403
      %p412 = scmp.eq.s32.totalorder %s37, 0
      %p413 = por %p411, %p412
      %p414 = scmp.ne.s32.totalorder %s402, %s403
      %p415 = scmp.eq.s32.totalorder %s38, 1
      %p416 = por %p414, %p415
      %p418 = scmp.ne.s32.totalorder %s403, %s417
      %p419 = scmp.eq.s32.totalorder %s38, 0
      %p420 = por %p418, %p419
      %s422 = sadd.s32 %s421, 1
      %p425 = scmp.eq.s32.totalorder %s32, 1
      %p426 = scmp.ne.s32.totalorder %s421, %s423
      %p427 = scmp.eq.s32.totalorder %s32, 0
      %p428 = por %p426, %p427
      %p429 = scmp.ne.s32.totalorder %s421, %s423
      %p430 = scmp.eq.s32.totalorder %s37, 1
      %p431 = por %p429, %p430
      %p432 = scmp.ne.s32.totalorder %s423, %s424
      %p433 = scmp.eq.s32.totalorder %s37, 0
      %p434 = por %p432, %p433
      %p435 = scmp.ne.s32.totalorder %s423, %s424
      %p436 = scmp.eq.s32.totalorder %s38, 1
      %p437 = por %p435, %p436
      %p439 = scmp.ne.s32.totalorder %s424, %s438
      %p440 = scmp.eq.s32.totalorder %s38, 0
      %p441 = por %p439, %p440
      %s442 = ssub.s32 %s39, %s51
      %s443 = ssub.s32 %s40, %s47
      %s444 = sor.u32 %s442, %s443
      %p445 = scmp.eq.s32.totalorder %s444, 0
      %s447 = sadd.s32 %s446, 1
      %s448 = scalar_select %p445, %s446, %s447
      %p451 = pneg %p445
      %p452 = scmp.eq.s32.totalorder %s32, 1
      %p453 = por %p451, %p452
      %p454 = scmp.ne.s32.totalorder %s446, %s449
      %p455 = scmp.eq.s32.totalorder %s32, 0
      %p456 = por %p454, %p455
      %p457 = scmp.ne.s32.totalorder %s446, %s449
      %p458 = scmp.eq.s32.totalorder %s37, 1
      %p459 = por %p457, %p458
      %p460 = scmp.ne.s32.totalorder %s449, %s450
      %p461 = scmp.eq.s32.totalorder %s37, 0
      %p462 = por %p460, %p461
      %p463 = scmp.ne.s32.totalorder %s449, %s450
      %p464 = scmp.eq.s32.totalorder %s38, 1
      %p465 = por %p463, %p464
      %p467 = scmp.ne.s32.totalorder %s450, %s466
      %p468 = scmp.eq.s32.totalorder %s38, 0
      %p469 = por %p467, %p468
      %s470 = ssub.s32 %s39, %s51
      %s471 = ssub.s32 %s40, %s47
      %s472 = sor.u32 %s470, %s471
      %p473 = scmp.eq.s32.totalorder %s472, 0
      %s475 = sadd.s32 %s474, 1
      %s476 = scalar_select %p473, %s474, %s475
      %p479 = pneg %p473
      %p480 = scmp.eq.s32.totalorder %s32, 1
      %p481 = por %p479, %p480
      %p482 = scmp.ne.s32.totalorder %s474, %s477
      %p483 = scmp.eq.s32.totalorder %s32, 0
      %p484 = por %p482, %p483
      %p485 = scmp.ne.s32.totalorder %s474, %s477
      %p486 = scmp.eq.s32.totalorder %s37, 1
      %p487 = por %p485, %p486
      %p488 = scmp.ne.s32.totalorder %s477, %s478
      %p489 = scmp.eq.s32.totalorder %s37, 0
      %p490 = por %p488, %p489
      %p491 = scmp.ne.s32.totalorder %s477, %s478
      %p492 = scmp.eq.s32.totalorder %s38, 1
      %p493 = por %p491, %p492
      %p495 = scmp.ne.s32.totalorder %s478, %s494
      %p496 = scmp.eq.s32.totalorder %s38, 0
      %p497 = por %p495, %p496
      %p498 = scmp.le.s32.totalorder 1, %s32
      %p499 = scmp.lt.s32.totalorder %s32, 3
      %p500 = pnand %p498, %p499
      %p501 = pneg %p500
      // Predicated region
      $region9: #{tpu_custom_call.1} parent=5 // pred_check
        _
      $region10: #{tpu_custom_call.1} parent=5 // pred_check_branch
        %503 = sbr.rel (%p500) target = $region12
      $region11: #{tpu_custom_call.1} parent=5 // pred_region
        %s504 = ssub.s32 %s32, 1
        // Predicated region
        $region13: #{tpu_custom_call.1} parent=11 // pred_check
          %p505 = pneg %p119
        $region14: #{tpu_custom_call.1} parent=11 // pred_check_branch
          %507 = sbr.rel (%p505) target = $region16
        $region15: #{tpu_custom_call.1} parent=11 // pred_region
          _
        $region16: #{tpu_custom_call.1} parent=11 // pred_fallthru
          _
        // Predicated region
        $region17: #{tpu_custom_call.1} parent=11 // pred_check
          %p508 = pneg %p140
        $region18: #{tpu_custom_call.1} parent=11 // pred_check_branch
          %510 = sbr.rel (%p508) target = $region20
        $region19: #{tpu_custom_call.1} parent=11 // pred_region
          _
        $region20: #{tpu_custom_call.1} parent=11 // pred_fallthru
          _
        // Predicated region
        $region21: #{tpu_custom_call.1} parent=11 // pred_check
          %p511 = pneg %p161
        $region22: #{tpu_custom_call.1} parent=11 // pred_check_branch
          %513 = sbr.rel (%p511) target = $region24
        $region23: #{tpu_custom_call.1} parent=11 // pred_region
          _
        $region24: #{tpu_custom_call.1} parent=11 // pred_fallthru
          _
        // Predicated region
        $region25: #{tpu_custom_call.1} parent=11 // pred_check
          %p514 = pneg %p182
        $region26: #{tpu_custom_call.1} parent=11 // pred_check_branch
          %516 = sbr.rel (%p514) target = $region28
        $region27: #{tpu_custom_call.1} parent=11 // pred_region
          _
        $region28: #{tpu_custom_call.1} parent=11 // pred_fallthru
          _
        // Predicated region
        $region29: #{tpu_custom_call.1} parent=11 // pred_check
          %p517 = pneg %p203
        $region30: #{tpu_custom_call.1} parent=11 // pred_check_branch
          %519 = sbr.rel (%p517) target = $region32
        $region31: #{tpu_custom_call.1} parent=11 // pred_region
          _
        $region32: #{tpu_custom_call.1} parent=11 // pred_fallthru
          _
        // Predicated region
        $region33: #{tpu_custom_call.1} parent=11 // pred_check
          %p520 = pneg %p224
        $region34: #{tpu_custom_call.1} parent=11 // pred_check_branch
          %522 = sbr.rel (%p520) target = $region36
        $region35: #{tpu_custom_call.1} parent=11 // pred_region
          _
        $region36: #{tpu_custom_call.1} parent=11 // pred_fallthru
          _
        // Predicated region
        $region37: #{tpu_custom_call.1} parent=11 // pred_check
          %p523 = pneg %p245
        $region38: #{tpu_custom_call.1} parent=11 // pred_check_branch
          %525 = sbr.rel (%p523) target = $region40
        $region39: #{tpu_custom_call.1} parent=11 // pred_region
          _
        $region40: #{tpu_custom_call.1} parent=11 // pred_fallthru
          _
        // Predicated region
        $region41: #{tpu_custom_call.1} parent=11 // pred_check
          %p526 = pneg %p266
        $region42: #{tpu_custom_call.1} parent=11 // pred_check_branch
          %528 = sbr.rel (%p526) target = $region44
        $region43: #{tpu_custom_call.1} parent=11 // pred_region
          _
        $region44: #{tpu_custom_call.1} parent=11 // pred_fallthru
          _
        // Predicated region
        $region45: #{tpu_custom_call.1} parent=11 // pred_check
          %p529 = pneg %p287
        $region46: #{tpu_custom_call.1} parent=11 // pred_check_branch
          %531 = sbr.rel (%p529) target = $region48
        $region47: #{tpu_custom_call.1} parent=11 // pred_region
          _
        $region48: #{tpu_custom_call.1} parent=11 // pred_fallthru
          _
        // Predicated region
        $region49: #{tpu_custom_call.1} parent=11 // pred_check
          %p532 = pneg %p308
        $region50: #{tpu_custom_call.1} parent=11 // pred_check_branch
          %534 = sbr.rel (%p532) target = $region52
        $region51: #{tpu_custom_call.1} parent=11 // pred_region
          _
        $region52: #{tpu_custom_call.1} parent=11 // pred_fallthru
          _
        // Predicated region
        $region53: #{tpu_custom_call.1} parent=11 // pred_check
          %p535 = pneg %p329
        $region54: #{tpu_custom_call.1} parent=11 // pred_check_branch
          %537 = sbr.rel (%p535) target = $region56
        $region55: #{tpu_custom_call.1} parent=11 // pred_region
          _
        $region56: #{tpu_custom_call.1} parent=11 // pred_fallthru
          _
        // Predicated region
        $region57: #{tpu_custom_call.1} parent=11 // pred_check
          %p538 = pneg %p350
        $region58: #{tpu_custom_call.1} parent=11 // pred_check_branch
          %540 = sbr.rel (%p538) target = $region60
        $region59: #{tpu_custom_call.1} parent=11 // pred_region
          _
        $region60: #{tpu_custom_call.1} parent=11 // pred_fallthru
          _
        // Predicated region
        $region61: #{tpu_custom_call.1} parent=11 // pred_check
          %p541 = pneg %p371
        $region62: #{tpu_custom_call.1} parent=11 // pred_check_branch
          %543 = sbr.rel (%p541) target = $region64
        $region63: #{tpu_custom_call.1} parent=11 // pred_region
          _
        $region64: #{tpu_custom_call.1} parent=11 // pred_fallthru
          _
        // Predicated region
        $region65: #{tpu_custom_call.1} parent=11 // pred_check
          %p544 = pneg %p392
        $region66: #{tpu_custom_call.1} parent=11 // pred_check_branch
          %546 = sbr.rel (%p544) target = $region68
        $region67: #{tpu_custom_call.1} parent=11 // pred_region
          _
        $region68: #{tpu_custom_call.1} parent=11 // pred_fallthru
          _
        // Predicated region
        $region69: #{tpu_custom_call.1} parent=11 // pred_check
          %p547 = pneg %p413
        $region70: #{tpu_custom_call.1} parent=11 // pred_check_branch
          %549 = sbr.rel (%p547) target = $region72
        $region71: #{tpu_custom_call.1} parent=11 // pred_region
          _
        $region72: #{tpu_custom_call.1} parent=11 // pred_fallthru
          _
        // Predicated region
        $region73: #{tpu_custom_call.1} parent=11 // pred_check
          %p550 = pneg %p434
        $region74: #{tpu_custom_call.1} parent=11 // pred_check_branch
          %552 = sbr.rel (%p550) target = $region76
        $region75: #{tpu_custom_call.1} parent=11 // pred_region
          _
        $region76: #{tpu_custom_call.1} parent=11 // pred_fallthru
          _
      $region12: #{tpu_custom_call.1} parent=5 // pred_fallthru
        _
      %p553 = scmp.lt.s32.totalorder %s32, 2
      // Predicated region
      $region77: #{tpu_custom_call.1} parent=5 // pred_check
        %p554 = pneg %p553
      $region78: #{tpu_custom_call.1} parent=5 // pred_check_branch
        %556 = sbr.rel (%p554) target = $region80
      $region79: #{tpu_custom_call.1} parent=5 // pred_region
        // Predicated region
        $region81: #{tpu_custom_call.1} parent=79 // pred_check
          %p557 = pneg %p64
        $region82: #{tpu_custom_call.1} parent=79 // pred_check_branch
          %559 = sbr.rel (%p557) target = $region84
        $region83: #{tpu_custom_call.1} parent=79 // pred_region
          %p560 = scmp.lt.s32.totalorder %s39, 1
          %s561 = scalar_select %p560, %s39, 1
          %s562 = smul.addr %s561, 8
          %s563 = scalar_lea.vmem %s0, %s562
        $region84: #{tpu_custom_call.1} parent=79 // pred_fallthru
          _
        // Predicated region
        $region85: #{tpu_custom_call.1} parent=79 // pred_check
          %p564 = pneg %p92
        $region86: #{tpu_custom_call.1} parent=79 // pred_check_branch
          %566 = sbr.rel (%p564) target = $region88
        $region87: #{tpu_custom_call.1} parent=79 // pred_region
          %p567 = scmp.lt.s32.totalorder %s39, 1
          %s568 = scalar_select %p567, %s39, 1
          %p569 = scmp.lt.s32.totalorder %s40, 0
          %s570 = scalar_select %p569, %s40, 0
          %s571 = sadd.s32 %s570, %s568
          %s572 = smul.addr %s571, 4
          %s573 = scalar_lea.vmem %s1, %s572
        $region88: #{tpu_custom_call.1} parent=79 // pred_fallthru
          _
      $region80: #{tpu_custom_call.1} parent=5 // pred_fallthru
        _
      %p574 = scmp.le.s32.totalorder 1, %s32
      %p575 = scmp.lt.s32.totalorder %s32, 3
      %p576 = pnand %p574, %p575
      %p577 = pneg %p576
      // Predicated region
      $region89: #{tpu_custom_call.1} parent=5 // pred_check
        _
      $region90: #{tpu_custom_call.1} parent=5 // pred_check_branch
        %579 = sbr.rel (%p576) target = $region92
      $region91: #{tpu_custom_call.1} parent=5 // pred_region
        %s580 = ssub.s32 %s32, 1
        %p581 = scmp.lt.s32.totalorder %s41, 1
        %s582 = scalar_select %p581, %s41, 1
        %s583 = smul.addr %s582, 8
        %s584 = scalar_lea.vmem %s0, %s583
        %p585 = pneg %p70
        %p586 = pneg %p67
        %p587 = scmp.lt.s32.totalorder %s41, 1
        %s588 = scalar_select %p587, %s41, 1
        %p589 = scmp.lt.s32.totalorder %s42, 0
        %s590 = scalar_select %p589, %s42, 0
        %s591 = sadd.s32 %s590, %s588
        %s592 = smul.addr %s591, 4
        %s593 = scalar_lea.vmem %s1, %s592
        %p594 = pneg %p98
        %p595 = pneg %p95
        %p596 = pneg %p119
        %p597 = pneg %p116
        %p598 = pneg %p140
        %p599 = pneg %p137
        %p600 = pneg %p161
        %p601 = pneg %p158
        %p602 = pneg %p182
        %p603 = pneg %p179
        %p604 = pneg %p203
        %p605 = pneg %p200
        %p606 = pneg %p224
        %p607 = pneg %p221
        %p608 = pneg %p245
        %p609 = pneg %p242
        %p610 = pneg %p266
        %p611 = pneg %p263
        %p612 = pneg %p287
        %p613 = pneg %p284
        %p614 = pneg %p308
        %p615 = pneg %p305
        %p616 = pneg %p329
        %p617 = pneg %p326
        %p618 = pneg %p350
        %p619 = pneg %p347
        %p620 = pneg %p371
        %p621 = pneg %p368
        %p622 = pneg %p392
        %p623 = pneg %p389
        %p624 = pneg %p413
        %p625 = pneg %p410
        %p626 = pneg %p434
        %p627 = pneg %p431
        %p628 = pneg %p462
        %p629 = pneg %p459
        %s630 = sand.u32 %s449, 1
        %s631 = scalar_lea.sflag [#allocation6], %s630
        %s632 = sand.u32 %s449, 1
        %s633 = smul.addr %s632, 8
        %s634 = scalar_lea.vmem [#allocation5], %s633
        %p635 = pneg %p490
        %p636 = pneg %p487
        %s637 = sand.u32 %s477, 1
        %s638 = scalar_lea.sflag [#allocation8], %s637
        %s639 = sand.u32 %s477, 1
        %s640 = smul.addr %s639, 32
        %s641 = scalar_lea.vmem [#allocation7], %s640
        %p642 = scmp.lt.s32.totalorder %s41, 1
        %s643 = scalar_select %p642, %s41, 1
        %s644 = smul.addr %s643, 8
        %s645 = scalar_lea.vmem %s0, %s644
        %p646 = scmp.lt.s32.totalorder %s41, 1
        %s647 = scalar_select %p646, %s41, 1
        %p648 = scmp.lt.s32.totalorder %s42, 0
        %s649 = scalar_select %p648, %s42, 0
        %s650 = sadd.s32 %s649, %s647
        %s651 = smul.addr %s650, 4
        %s652 = scalar_lea.vmem %s1, %s651
        %p654 = scmp.eq.s32.totalorder %s42, 0
        // Predicated region
        $region93: #{tpu_custom_call.1} parent=91 // pred_check
          %p655 = pneg %p654
        $region94: #{tpu_custom_call.1} parent=91 // pred_check_branch
          %657 = sbr.rel (%p655) target = $region96
        $region95: #{tpu_custom_call.1} parent=91 // pred_region
          %v658 = vld [vmem:[%s645] sm:$0xff]
          %v659 = vpack.c.bf16 %v658, %v658
          %v660 = vld [vmem:[%s4] sm:$0xf]
          %v661 = vld [vmem:[%s4 + $0x4] sm:$0xf]
          %v662 = vld [vmem:[%s4 + $0x8] sm:$0xf]
          %v663 = vld [vmem:[%s4 + $0xc] sm:$0xf]
          %v664 = vld [vmem:[%s5] sm:$0x1]
          %v666 = vlaneseq
          %v667 = vshrl.u32 %v666, 7
          %v668 = vsub.s32 0, %v667
          %v669 = vrot.slane %v664, %v668
          %v675 = vunpack.c.l.b16 %v660
          %v676 = vunpack.c.l.b16 %v661
          %v677 = vunpack.c.l.b16 %v662
          %v678 = vunpack.c.l.b16 %v663
          %v679 = vpack.c.b16 %v676, %v675
          %v680 = vpack.c.b16 %v678, %v677
          %vm683 = vcmask 261120
          %v685 = vsel %vm683, %v659, 0
          %687 = vmatprep.subr.bf16.mxu0 0
          %688 = vmatpush1.bf16.msra.mxu0 %v679
          %689 = vmatprep.subr.bf16.mxu0 0
          %690 = vmatpush1.bf16.msra.mxu0 %v680
          %691 = vmatprep.subr.bf16.mxu0 0
          %692 = vmatpush1.bf16.msra.mxu0 0
          %693 = vmatprep.subr.bf16.mxu0 0
          %694 = vmatpush1.bf16.msra.mxu0 0
          %695 = vmatprep.subr.bf16.mxu0 0
          %696 = vmatpush1.bf16.msra.mxu0 0
          %697 = vmatprep.subr.bf16.mxu0 0
          %698 = vmatpush1.bf16.msra.mxu0 0
          %699 = vmatprep.subr.bf16.mxu0 0
          %700 = vmatpush1.bf16.msra.mxu0 0
          %701 = vmatprep.subr.bf16.mxu0 0
          %702 = vmatpush1.bf16.msra.mxu0 0
          %703 = vmatprep.subr.bf16.mxu0 0
          %704 = vmatpush1.bf16.msra.mxu0 0
          %705 = vmatprep.subr.bf16.mxu0 0
          %706 = vmatpush1.bf16.msra.mxu0 0
          %707 = vmatprep.subr.bf16.mxu0 0
          %708 = vmatpush1.bf16.msra.mxu0 0
          %709 = vmatprep.subr.bf16.mxu0 0
          %710 = vmatpush1.bf16.msra.mxu0 0
          %711 = vmatprep.subr.bf16.mxu0 0
          %712 = vmatpush1.bf16.msra.mxu0 0
          %713 = vmatprep.subr.bf16.mxu0 0
          %714 = vmatpush1.bf16.msra.mxu0 0
          %715 = vmatprep.subr.bf16.mxu0 0
          %716 = vmatpush1.bf16.msra.mxu0 0
          %717 = vmatprep.subr.bf16.mxu0 0
          %718 = vmatpush1.bf16.msra.mxu0 0
          %719 = vmatprep.mubr.bf16.mxu0 0
          %720 = vmatmul.mubr.bf16.gmra.mrb[0].mxu0 %v685
          %v721 = vpop.f32.mrb[0].mxu0
          %v722 = vadd.f32 %v669, %v721
          %v723 = vpop.f32.mrb[0].mxu0
          %v724 = vpop.f32.mrb[0].mxu0
          %v725 = vpop.f32.mrb[0].mxu0
          %726 = vdwg.mxu0
          %v727 = vld [vmem:[%s6] sm:$0xf]
          %v728 = vld [vmem:[%s6 + $0x4] sm:$0xf]
          %v729 = vld [vmem:[%s6 + $0x8] sm:$0xf]
          %v730 = vld [vmem:[%s6 + $0xc] sm:$0xf]
          %v731 = vld [vmem:[%s7] sm:$0x1]
          %v733 = vlaneseq
          %v734 = vshrl.u32 %v733, 7
          %v735 = vsub.s32 0, %v734
          %v736 = vrot.slane %v731, %v735
          %v742 = vunpack.c.l.b16 %v727
          %v743 = vunpack.c.l.b16 %v728
          %v744 = vunpack.c.l.b16 %v729
          %v745 = vunpack.c.l.b16 %v730
          %v746 = vpack.c.b16 %v743, %v742
          %v747 = vpack.c.b16 %v745, %v744
          %750 = vmatprep.subr.bf16.mxu0 0
          %751 = vmatpush1.bf16.msra.mxu0 %v746
          %752 = vmatprep.subr.bf16.mxu0 0
          %753 = vmatpush1.bf16.msra.mxu0 %v747
          %754 = vmatprep.subr.bf16.mxu0 0
          %755 = vmatpush1.bf16.msra.mxu0 0
          %756 = vmatprep.subr.bf16.mxu0 0
          %757 = vmatpush1.bf16.msra.mxu0 0
          %758 = vmatprep.subr.bf16.mxu0 0
          %759 = vmatpush1.bf16.msra.mxu0 0
          %760 = vmatprep.subr.bf16.mxu0 0
          %761 = vmatpush1.bf16.msra.mxu0 0
          %762 = vmatprep.subr.bf16.mxu0 0
          %763 = vmatpush1.bf16.msra.mxu0 0
          %764 = vmatprep.subr.bf16.mxu0 0
          %765 = vmatpush1.bf16.msra.mxu0 0
          %766 = vmatprep.subr.bf16.mxu0 0
          %767 = vmatpush1.bf16.msra.mxu0 0
          %768 = vmatprep.subr.bf16.mxu0 0
          %769 = vmatpush1.bf16.msra.mxu0 0
          %770 = vmatprep.subr.bf16.mxu0 0
          %771 = vmatpush1.bf16.msra.mxu0 0
          %772 = vmatprep.subr.bf16.mxu0 0
          %773 = vmatpush1.bf16.msra.mxu0 0
          %774 = vmatprep.subr.bf16.mxu0 0
          %775 = vmatpush1.bf16.msra.mxu0 0
          %776 = vmatprep.subr.bf16.mxu0 0
          %777 = vmatpush1.bf16.msra.mxu0 0
          %778 = vmatprep.subr.bf16.mxu0 0
          %779 = vmatpush1.bf16.msra.mxu0 0
          %780 = vmatprep.subr.bf16.mxu0 0
          %781 = vmatpush1.bf16.msra.mxu0 0
          %782 = vmatprep.mubr.bf16.mxu0 0
          %783 = vmatmul.mubr.bf16.gmra.mrb[0].mxu0 %v685
          %v784 = vpop.f32.mrb[0].mxu0
          %v785 = vadd.f32 %v736, %v784
          %v786 = vpop.f32.mrb[0].mxu0
          %v787 = vpop.f32.mrb[0].mxu0
          %v788 = vpop.f32.mrb[0].mxu0
          %789 = vdwg.mxu0
          %v790 = vpack.c.bf16 %v722, %v722
          %vm791 = vcmask 60416
          %792 = vst.msk [vmem:[#allocation2] sm:$0xf] %vm791, %v790
          %v793 = vpack.c.bf16 %v785, %v785
          %794 = vst.msk [vmem:[#allocation3] sm:$0xf] %vm791, %v793
          %s795 = scalar_lea.vmem %s4, 16
          %v796 = vld [vmem:[%s795] sm:$0xf]
          %v797 = vld [vmem:[%s795 + $0x4] sm:$0xf]
          %v798 = vld [vmem:[%s795 + $0x8] sm:$0xf]
          %v799 = vld [vmem:[%s795 + $0xc] sm:$0xf]
          %s800 = scalar_lea.vmem %s5, 1
          %v801 = vld [vmem:[%s800] sm:$0x1]
          %v803 = vlaneseq
          %v804 = vshrl.u32 %v803, 7
          %v805 = vsub.s32 0, %v804
          %v806 = vrot.slane %v801, %v805
          %v812 = vunpack.c.l.b16 %v796
          %v813 = vunpack.c.l.b16 %v797
          %v814 = vunpack.c.l.b16 %v798
          %v815 = vunpack.c.l.b16 %v799
          %v816 = vpack.c.b16 %v813, %v812
          %v817 = vpack.c.b16 %v815, %v814
          %820 = vmatprep.subr.bf16.mxu0 0
          %821 = vmatpush1.bf16.msra.mxu0 %v816
          %822 = vmatprep.subr.bf16.mxu0 0
          %823 = vmatpush1.bf16.msra.mxu0 %v817
          %824 = vmatprep.subr.bf16.mxu0 0
          %825 = vmatpush1.bf16.msra.mxu0 0
          %826 = vmatprep.subr.bf16.mxu0 0
          %827 = vmatpush1.bf16.msra.mxu0 0
          %828 = vmatprep.subr.bf16.mxu0 0
          %829 = vmatpush1.bf16.msra.mxu0 0
          %830 = vmatprep.subr.bf16.mxu0 0
          %831 = vmatpush1.bf16.msra.mxu0 0
          %832 = vmatprep.subr.bf16.mxu0 0
          %833 = vmatpush1.bf16.msra.mxu0 0
          %834 = vmatprep.subr.bf16.mxu0 0
          %835 = vmatpush1.bf16.msra.mxu0 0
          %836 = vmatprep.subr.bf16.mxu0 0
          %837 = vmatpush1.bf16.msra.mxu0 0
          %838 = vmatprep.subr.bf16.mxu0 0
          %839 = vmatpush1.bf16.msra.mxu0 0
          %840 = vmatprep.subr.bf16.mxu0 0
          %841 = vmatpush1.bf16.msra.mxu0 0
          %842 = vmatprep.subr.bf16.mxu0 0
          %843 = vmatpush1.bf16.msra.mxu0 0
          %844 = vmatprep.subr.bf16.mxu0 0
          %845 = vmatpush1.bf16.msra.mxu0 0
          %846 = vmatprep.subr.bf16.mxu0 0
          %847 = vmatpush1.bf16.msra.mxu0 0
          %848 = vmatprep.subr.bf16.mxu0 0
          %849 = vmatpush1.bf16.msra.mxu0 0
          %850 = vmatprep.subr.bf16.mxu0 0
          %851 = vmatpush1.bf16.msra.mxu0 0
          %852 = vmatprep.mubr.bf16.mxu0 0
          %853 = vmatmul.mubr.bf16.gmra.mrb[0].mxu0 %v685
          %v854 = vpop.f32.mrb[0].mxu0
          %v855 = vadd.f32 %v806, %v854
          %v856 = vpop.f32.mrb[0].mxu0
          %v857 = vpop.f32.mrb[0].mxu0
          %v858 = vpop.f32.mrb[0].mxu0
          %859 = vdwg.mxu0
          %s860 = scalar_lea.vmem %s6, 16
          %v861 = vld [vmem:[%s860] sm:$0xf]
          %v862 = vld [vmem:[%s860 + $0x4] sm:$0xf]
          %v863 = vld [vmem:[%s860 + $0x8] sm:$0xf]
          %v864 = vld [vmem:[%s860 + $0xc] sm:$0xf]
          %s865 = scalar_lea.vmem %s7, 1
          %v866 = vld [vmem:[%s865] sm:$0x1]
          %v868 = vlaneseq
          %v869 = vshrl.u32 %v868, 7
          %v870 = vsub.s32 0, %v869
          %v871 = vrot.slane %v866, %v870
          %v877 = vunpack.c.l.b16 %v861
          %v878 = vunpack.c.l.b16 %v862
          %v879 = vunpack.c.l.b16 %v863
          %v880 = vunpack.c.l.b16 %v864
          %v881 = vpack.c.b16 %v878, %v877
          %v882 = vpack.c.b16 %v880, %v879
          %885 = vmatprep.subr.bf16.mxu0 0
          %886 = vmatpush1.bf16.msra.mxu0 %v881
          %887 = vmatprep.subr.bf16.mxu0 0
          %888 = vmatpush1.bf16.msra.mxu0 %v882
          %889 = vmatprep.subr.bf16.mxu0 0
          %890 = vmatpush1.bf16.msra.mxu0 0
          %891 = vmatprep.subr.bf16.mxu0 0
          %892 = vmatpush1.bf16.msra.mxu0 0
          %893 = vmatprep.subr.bf16.mxu0 0
          %894 = vmatpush1.bf16.msra.mxu0 0
          %895 = vmatprep.subr.bf16.mxu0 0
          %896 = vmatpush1.bf16.msra.mxu0 0
          %897 = vmatprep.subr.bf16.mxu0 0
          %898 = vmatpush1.bf16.msra.mxu0 0
          %899 = vmatprep.subr.bf16.mxu0 0
          %900 = vmatpush1.bf16.msra.mxu0 0
          %901 = vmatprep.subr.bf16.mxu0 0
          %902 = vmatpush1.bf16.msra.mxu0 0
          %903 = vmatprep.subr.bf16.mxu0 0
          %904 = vmatpush1.bf16.msra.mxu0 0
          %905 = vmatprep.subr.bf16.mxu0 0
          %906 = vmatpush1.bf16.msra.mxu0 0
          %907 = vmatprep.subr.bf16.mxu0 0
          %908 = vmatpush1.bf16.msra.mxu0 0
          %909 = vmatprep.subr.bf16.mxu0 0
          %910 = vmatpush1.bf16.msra.mxu0 0
          %911 = vmatprep.subr.bf16.mxu0 0
          %912 = vmatpush1.bf16.msra.mxu0 0
          %913 = vmatprep.subr.bf16.mxu0 0
          %914 = vmatpush1.bf16.msra.mxu0 0
          %915 = vmatprep.subr.bf16.mxu0 0
          %916 = vmatpush1.bf16.msra.mxu0 0
          %917 = vmatprep.mubr.bf16.mxu0 0
          %918 = vmatmul.mubr.bf16.gmra.mrb[0].mxu0 %v685
          %v919 = vpop.f32.mrb[0].mxu0
          %v920 = vadd.f32 %v871, %v919
          %v921 = vpop.f32.mrb[0].mxu0
          %v922 = vpop.f32.mrb[0].mxu0
          %v923 = vpop.f32.mrb[0].mxu0
          %924 = vdwg.mxu0
          %v925 = vpack.c.bf16 %v855, %v855
          %s926 = scalar_lea.vmem [#allocation2], 4
          %927 = vst.msk [vmem:[%s926] sm:$0xf] %vm791, %v925
          %v928 = vpack.c.bf16 %v920, %v920
          %s929 = scalar_lea.vmem [#allocation3], 4
          %930 = vst.msk [vmem:[%s929] sm:$0xf] %vm791, %v928
          %s931 = scalar_lea.vmem %s4, 32
          %v932 = vld [vmem:[%s931] sm:$0xf]
          %v933 = vld [vmem:[%s931 + $0x4] sm:$0xf]
          %v934 = vld [vmem:[%s931 + $0x8] sm:$0xf]
          %v935 = vld [vmem:[%s931 + $0xc] sm:$0xf]
          %s936 = scalar_lea.vmem %s5, 2
          %v937 = vld [vmem:[%s936] sm:$0x1]
          %v939 = vlaneseq
          %v940 = vshrl.u32 %v939, 7
          %v941 = vsub.s32 0, %v940
          %v942 = vrot.slane %v937, %v941
          %v948 = vunpack.c.l.b16 %v932
          %v949 = vunpack.c.l.b16 %v933
          %v950 = vunpack.c.l.b16 %v934
          %v951 = vunpack.c.l.b16 %v935
          %v952 = vpack.c.b16 %v949, %v948
          %v953 = vpack.c.b16 %v951, %v950
          %956 = vmatprep.subr.bf16.mxu0 0
          %957 = vmatpush1.bf16.msra.mxu0 %v952
          %958 = vmatprep.subr.bf16.mxu0 0
          %959 = vmatpush1.bf16.msra.mxu0 %v953
          %960 = vmatprep.subr.bf16.mxu0 0
          %961 = vmatpush1.bf16.msra.mxu0 0
          %962 = vmatprep.subr.bf16.mxu0 0
          %963 = vmatpush1.bf16.msra.mxu0 0
          %964 = vmatprep.subr.bf16.mxu0 0
          %965 = vmatpush1.bf16.msra.mxu0 0
          %966 = vmatprep.subr.bf16.mxu0 0
          %967 = vmatpush1.bf16.msra.mxu0 0
          %968 = vmatprep.subr.bf16.mxu0 0
          %969 = vmatpush1.bf16.msra.mxu0 0
          %970 = vmatprep.subr.bf16.mxu0 0
          %971 = vmatpush1.bf16.msra.mxu0 0
          %972 = vmatprep.subr.bf16.mxu0 0
          %973 = vmatpush1.bf16.msra.mxu0 0
          %974 = vmatprep.subr.bf16.mxu0 0
          %975 = vmatpush1.bf16.msra.mxu0 0
          %976 = vmatprep.subr.bf16.mxu0 0
          %977 = vmatpush1.bf16.msra.mxu0 0
          %978 = vmatprep.subr.bf16.mxu0 0
          %979 = vmatpush1.bf16.msra.mxu0 0
          %980 = vmatprep.subr.bf16.mxu0 0
          %981 = vmatpush1.bf16.msra.mxu0 0
          %982 = vmatprep.subr.bf16.mxu0 0
          %983 = vmatpush1.bf16.msra.mxu0 0
          %984 = vmatprep.subr.bf16.mxu0 0
          %985 = vmatpush1.bf16.msra.mxu0 0
          %986 = vmatprep.subr.bf16.mxu0 0
          %987 = vmatpush1.bf16.msra.mxu0 0
          %988 = vmatprep.mubr.bf16.mxu0 0
          %989 = vmatmul.mubr.bf16.gmra.mrb[0].mxu0 %v685
          %v990 = vpop.f32.mrb[0].mxu0
          %v991 = vadd.f32 %v942, %v990
          %v992 = vpop.f32.mrb[0].mxu0
          %v993 = vpop.f32.mrb[0].mxu0
          %v994 = vpop.f32.mrb[0].mxu0
          %995 = vdwg.mxu0
          %s996 = scalar_lea.vmem %s6, 32
          %v997 = vld [vmem:[%s996] sm:$0xf]
          %v998 = vld [vmem:[%s996 + $0x4] sm:$0xf]
          %v999 = vld [vmem:[%s996 + $0x8] sm:$0xf]
          %v1000 = vld [vmem:[%s996 + $0xc] sm:$0xf]
          %s1001 = scalar_lea.vmem %s7, 2
          %v1002 = vld [vmem:[%s1001] sm:$0x1]
          %v1004 = vlaneseq
          %v1005 = vshrl.u32 %v1004, 7
          %v1006 = vsub.s32 0, %v1005
          %v1007 = vrot.slane %v1002, %v1006
          %v1013 = vunpack.c.l.b16 %v997
          %v1014 = vunpack.c.l.b16 %v998
          %v1015 = vunpack.c.l.b16 %v999
          %v1016 = vunpack.c.l.b16 %v1000
          %v1017 = vpack.c.b16 %v1014, %v1013
          %v1018 = vpack.c.b16 %v1016, %v1015
          %1021 = vmatprep.subr.bf16.mxu0 0
          %1022 = vmatpush1.bf16.msra.mxu0 %v1017
          %1023 = vmatprep.subr.bf16.mxu0 0
          %1024 = vmatpush1.bf16.msra.mxu0 %v1018
          %1025 = vmatprep.subr.bf16.mxu0 0
          %1026 = vmatpush1.bf16.msra.mxu0 0
          %1027 = vmatprep.subr.bf16.mxu0 0
          %1028 = vmatpush1.bf16.msra.mxu0 0
          %1029 = vmatprep.subr.bf16.mxu0 0
          %1030 = vmatpush1.bf16.msra.mxu0 0
          %1031 = vmatprep.subr.bf16.mxu0 0
          %1032 = vmatpush1.bf16.msra.mxu0 0
          %1033 = vmatprep.subr.bf16.mxu0 0
          %1034 = vmatpush1.bf16.msra.mxu0 0
          %1035 = vmatprep.subr.bf16.mxu0 0
          %1036 = vmatpush1.bf16.msra.mxu0 0
          %1037 = vmatprep.subr.bf16.mxu0 0
          %1038 = vmatpush1.bf16.msra.mxu0 0
          %1039 = vmatprep.subr.bf16.mxu0 0
          %1040 = vmatpush1.bf16.msra.mxu0 0
          %1041 = vmatprep.subr.bf16.mxu0 0
          %1042 = vmatpush1.bf16.msra.mxu0 0
          %1043 = vmatprep.subr.bf16.mxu0 0
          %1044 = vmatpush1.bf16.msra.mxu0 0
          %1045 = vmatprep.subr.bf16.mxu0 0
          %1046 = vmatpush1.bf16.msra.mxu0 0
          %1047 = vmatprep.subr.bf16.mxu0 0
          %1048 = vmatpush1.bf16.msra.mxu0 0
          %1049 = vmatprep.subr.bf16.mxu0 0
          %1050 = vmatpush1.bf16.msra.mxu0 0
          %1051 = vmatprep.subr.bf16.mxu0 0
          %1052 = vmatpush1.bf16.msra.mxu0 0
          %1053 = vmatprep.mubr.bf16.mxu0 0
          %1054 = vmatmul.mubr.bf16.gmra.mrb[0].mxu0 %v685
          %v1055 = vpop.f32.mrb[0].mxu0
          %v1056 = vadd.f32 %v1007, %v1055
          %v1057 = vpop.f32.mrb[0].mxu0
          %v1058 = vpop.f32.mrb[0].mxu0
          %v1059 = vpop.f32.mrb[0].mxu0
          %1060 = vdwg.mxu0
          %v1061 = vpack.c.bf16 %v991, %v991
          %s1062 = scalar_lea.vmem [#allocation2], 8
          %1063 = vst.msk [vmem:[%s1062] sm:$0xf] %vm791, %v1061
          %v1064 = vpack.c.bf16 %v1056, %v1056
          %s1065 = scalar_lea.vmem [#allocation3], 8
          %1066 = vst.msk [vmem:[%s1065] sm:$0xf] %vm791, %v1064
          %s1067 = scalar_lea.vmem %s4, 48
          %v1068 = vld [vmem:[%s1067] sm:$0xf]
          %v1069 = vld [vmem:[%s1067 + $0x4] sm:$0xf]
          %v1070 = vld [vmem:[%s1067 + $0x8] sm:$0xf]
          %v1071 = vld [vmem:[%s1067 + $0xc] sm:$0xf]
          %s1072 = scalar_lea.vmem %s5, 3
          %v1073 = vld [vmem:[%s1072] sm:$0x1]
          %v1075 = vlaneseq
          %v1076 = vshrl.u32 %v1075, 7
          %v1077 = vsub.s32 0, %v1076
          %v1078 = vrot.slane %v1073, %v1077
          %v1084 = vunpack.c.l.b16 %v1068
          %v1085 = vunpack.c.l.b16 %v1069
          %v1086 = vunpack.c.l.b16 %v1070
          %v1087 = vunpack.c.l.b16 %v1071
          %v1088 = vpack.c.b16 %v1085, %v1084
          %v1089 = vpack.c.b16 %v1087, %v1086
          %1092 = vmatprep.subr.bf16.mxu0 0
          %1093 = vmatpush1.bf16.msra.mxu0 %v1088
          %1094 = vmatprep.subr.bf16.mxu0 0
          %1095 = vmatpush1.bf16.msra.mxu0 %v1089
          %1096 = vmatprep.subr.bf16.mxu0 0
          %1097 = vmatpush1.bf16.msra.mxu0 0
          %1098 = vmatprep.subr.bf16.mxu0 0
          %1099 = vmatpush1.bf16.msra.mxu0 0
          %1100 = vmatprep.subr.bf16.mxu0 0
          %1101 = vmatpush1.bf16.msra.mxu0 0
          %1102 = vmatprep.subr.bf16.mxu0 0
          %1103 = vmatpush1.bf16.msra.mxu0 0
          %1104 = vmatprep.subr.bf16.mxu0 0
          %1105 = vmatpush1.bf16.msra.mxu0 0
          %1106 = vmatprep.subr.bf16.mxu0 0
          %1107 = vmatpush1.bf16.msra.mxu0 0
          %1108 = vmatprep.subr.bf16.mxu0 0
          %1109 = vmatpush1.bf16.msra.mxu0 0
          %1110 = vmatprep.subr.bf16.mxu0 0
          %1111 = vmatpush1.bf16.msra.mxu0 0
          %1112 = vmatprep.subr.bf16.mxu0 0
          %1113 = vmatpush1.bf16.msra.mxu0 0
          %1114 = vmatprep.subr.bf16.mxu0 0
          %1115 = vmatpush1.bf16.msra.mxu0 0
          %1116 = vmatprep.subr.bf16.mxu0 0
          %1117 = vmatpush1.bf16.msra.mxu0 0
          %1118 = vmatprep.subr.bf16.mxu0 0
          %1119 = vmatpush1.bf16.msra.mxu0 0
          %1120 = vmatprep.subr.bf16.mxu0 0
          %1121 = vmatpush1.bf16.msra.mxu0 0
          %1122 = vmatprep.subr.bf16.mxu0 0
          %1123 = vmatpush1.bf16.msra.mxu0 0
          %1124 = vmatprep.mubr.bf16.mxu0 0
          %1125 = vmatmul.mubr.bf16.gmra.mrb[0].mxu0 %v685
          %v1126 = vpop.f32.mrb[0].mxu0
          %v1127 = vadd.f32 %v1078, %v1126
          %v1128 = vpop.f32.mrb[0].mxu0
          %v1129 = vpop.f32.mrb[0].mxu0
          %v1130 = vpop.f32.mrb[0].mxu0
          %1131 = vdwg.mxu0
          %s1132 = scalar_lea.vmem %s6, 48
          %v1133 = vld [vmem:[%s1132] sm:$0xf]
          %v1134 = vld [vmem:[%s1132 + $0x4] sm:$0xf]
          %v1135 = vld [vmem:[%s1132 + $0x8] sm:$0xf]
          %v1136 = vld [vmem:[%s1132 + $0xc] sm:$0xf]
          %s1137 = scalar_lea.vmem %s7, 3
          %v1138 = vld [vmem:[%s1137] sm:$0x1]
          %v1140 = vlaneseq
          %v1141 = vshrl.u32 %v1140, 7
          %v1142 = vsub.s32 0, %v1141
          %v1143 = vrot.slane %v1138, %v1142
          %v1149 = vunpack.c.l.b16 %v1133
          %v1150 = vunpack.c.l.b16 %v1134
          %v1151 = vunpack.c.l.b16 %v1135
          %v1152 = vunpack.c.l.b16 %v1136
          %v1153 = vpack.c.b16 %v1150, %v1149
          %v1154 = vpack.c.b16 %v1152, %v1151
          %1157 = vmatprep.subr.bf16.mxu0 0
          %1158 = vmatpush1.bf16.msra.mxu0 %v1153
          %1159 = vmatprep.subr.bf16.mxu0 0
          %1160 = vmatpush1.bf16.msra.mxu0 %v1154
          %1161 = vmatprep.subr.bf16.mxu0 0
          %1162 = vmatpush1.bf16.msra.mxu0 0
          %1163 = vmatprep.subr.bf16.mxu0 0
          %1164 = vmatpush1.bf16.msra.mxu0 0
          %1165 = vmatprep.subr.bf16.mxu0 0
          %1166 = vmatpush1.bf16.msra.mxu0 0
          %1167 = vmatprep.subr.bf16.mxu0 0
          %1168 = vmatpush1.bf16.msra.mxu0 0
          %1169 = vmatprep.subr.bf16.mxu0 0
          %1170 = vmatpush1.bf16.msra.mxu0 0
          %1171 = vmatprep.subr.bf16.mxu0 0
          %1172 = vmatpush1.bf16.msra.mxu0 0
          %1173 = vmatprep.subr.bf16.mxu0 0
          %1174 = vmatpush1.bf16.msra.mxu0 0
          %1175 = vmatprep.subr.bf16.mxu0 0
          %1176 = vmatpush1.bf16.msra.mxu0 0
          %1177 = vmatprep.subr.bf16.mxu0 0
          %1178 = vmatpush1.bf16.msra.mxu0 0
          %1179 = vmatprep.subr.bf16.mxu0 0
          %1180 = vmatpush1.bf16.msra.mxu0 0
          %1181 = vmatprep.subr.bf16.mxu0 0
          %1182 = vmatpush1.bf16.msra.mxu0 0
          %1183 = vmatprep.subr.bf16.mxu0 0
          %1184 = vmatpush1.bf16.msra.mxu0 0
          %1185 = vmatprep.subr.bf16.mxu0 0
          %1186 = vmatpush1.bf16.msra.mxu0 0
          %1187 = vmatprep.subr.bf16.mxu0 0
          %1188 = vmatpush1.bf16.msra.mxu0 0
          %1189 = vmatprep.mubr.bf16.mxu0 0
          %1190 = vmatmul.mubr.bf16.gmra.mrb[0].mxu0 %v685
          %v1191 = vpop.f32.mrb[0].mxu0
          %v1192 = vadd.f32 %v1143, %v1191
          %v1193 = vpop.f32.mrb[0].mxu0
          %v1194 = vpop.f32.mrb[0].mxu0
          %v1195 = vpop.f32.mrb[0].mxu0
          %1196 = vdwg.mxu0
          %v1197 = vpack.c.bf16 %v1127, %v1127
          %s1198 = scalar_lea.vmem [#allocation2], 12
          %1199 = vst.msk [vmem:[%s1198] sm:$0xf] %vm791, %v1197
          %v1200 = vpack.c.bf16 %v1192, %v1192
          %s1201 = scalar_lea.vmem [#allocation3], 12
          %1202 = vst.msk [vmem:[%s1201] sm:$0xf] %vm791, %v1200
        $region96: #{tpu_custom_call.1} parent=91 // pred_fallthru
          _
        %s1203 = smul.u32 %s42, 8
        %s1204 = scalar_lea.vmem %s645, %s1203
        %v1205 = vld [vmem:[%s1204] sm:$0xff]
        %v1206 = vpack.c.bf16 %v1205, %v1205
        %v1207 = vld [vmem:[%s652] sm:$0xf]
        %v1208 = vunpack.c.l.bf16 %v1207
        %v1209 = vld [vmem:[%s2] sm:$0xf]
        %v1210 = vld [vmem:[%s2 + $0x4] sm:$0xf]
        %v1211 = vld [vmem:[%s2 + $0x8] sm:$0xf]
        %v1212 = vld [vmem:[%s2 + $0xc] sm:$0xf]
        %v1213 = vld [vmem:[%s3] sm:$0x1]
        %v1215 = vlaneseq
        %v1216 = vshrl.u32 %v1215, 7
        %v1217 = vsub.s32 0, %v1216
        %v1218 = vrot.slane %v1213, %v1217
        %v1224 = vunpack.c.l.b16 %v1209
        %v1225 = vunpack.c.l.b16 %v1210
        %v1226 = vunpack.c.l.b16 %v1211
        %v1227 = vunpack.c.l.b16 %v1212
        %v1228 = vpack.c.b16 %v1225, %v1224
        %v1229 = vpack.c.b16 %v1227, %v1226
        %vm1232 = vcmask 261120
        %v1234 = vsel %vm1232, %v1206, 0
        %1236 = vmatprep.subr.bf16.mxu0 0
        %1237 = vmatpush1.bf16.msra.mxu0 %v1228
        %1238 = vmatprep.subr.bf16.mxu0 0
        %1239 = vmatpush1.bf16.msra.mxu0 %v1229
        %1240 = vmatprep.subr.bf16.mxu0 0
        %1241 = vmatpush1.bf16.msra.mxu0 0
        %1242 = vmatprep.subr.bf16.mxu0 0
        %1243 = vmatpush1.bf16.msra.mxu0 0
        %1244 = vmatprep.subr.bf16.mxu0 0
        %1245 = vmatpush1.bf16.msra.mxu0 0
        %1246 = vmatprep.subr.bf16.mxu0 0
        %1247 = vmatpush1.bf16.msra.mxu0 0
        %1248 = vmatprep.subr.bf16.mxu0 0
        %1249 = vmatpush1.bf16.msra.mxu0 0
        %1250 = vmatprep.subr.bf16.mxu0 0
        %1251 = vmatpush1.bf16.msra.mxu0 0
        %1252 = vmatprep.subr.bf16.mxu0 0
        %1253 = vmatpush1.bf16.msra.mxu0 0
        %1254 = vmatprep.subr.bf16.mxu0 0
        %1255 = vmatpush1.bf16.msra.mxu0 0
        %1256 = vmatprep.subr.bf16.mxu0 0
        %1257 = vmatpush1.bf16.msra.mxu0 0
        %1258 = vmatprep.subr.bf16.mxu0 0
        %1259 = vmatpush1.bf16.msra.mxu0 0
        %1260 = vmatprep.subr.bf16.mxu0 0
        %1261 = vmatpush1.bf16.msra.mxu0 0
        %1262 = vmatprep.subr.bf16.mxu0 0
        %1263 = vmatpush1.bf16.msra.mxu0 0
        %1264 = vmatprep.subr.bf16.mxu0 0
        %1265 = vmatpush1.bf16.msra.mxu0 0
        %1266 = vmatprep.subr.bf16.mxu0 0
        %1267 = vmatpush1.bf16.msra.mxu0 0
        %1268 = vmatprep.mubr.bf16.mxu0 0
        %1269 = vmatmul.mubr.bf16.gmra.mrb[0].mxu0 %v1234
        %v1270 = vpop.f32.mrb[0].mxu0
        %v1271 = vadd.f32 %v1218, %v1270
        %v1272 = vpop.f32.mrb[0].mxu0
        %v1273 = vpop.f32.mrb[0].mxu0
        %v1274 = vpop.f32.mrb[0].mxu0
        %1275 = vdwg.mxu0
        %v1276 = vpack.c.bf16 %v1271, %v1271
        %v1277 = vld [vmem:[#allocation2] sm:$0xf]
        %vm1278 = vcmask 64512
        %v1280 = vsel %vm1278, %v1276, 0
        %v1283 = vsel %vm1278, %v1277, 0
        %1285 = vmatprep.subr.bf16.mxu0 0
        %1286 = vmatpush1.bf16.xpose.msra.mxu0 %v1283
        %1287 = vmatprep.subr.bf16.mxu0 0
        %1288 = vmatpush1.bf16.xpose.msra.mxu0 0
        %1289 = vmatprep.subr.bf16.mxu0 0
        %1290 = vmatpush1.bf16.xpose.msra.mxu0 0
        %1291 = vmatprep.subr.bf16.mxu0 0
        %1292 = vmatpush1.bf16.xpose.msra.mxu0 0
        %1293 = vmatprep.subr.bf16.mxu0 0
        %1294 = vmatpush1.bf16.xpose.msra.mxu0 0
        %1295 = vmatprep.subr.bf16.mxu0 0
        %1296 = vmatpush1.bf16.xpose.msra.mxu0 0
        %1297 = vmatprep.subr.bf16.mxu0 0
        %1298 = vmatpush1.bf16.xpose.msra.mxu0 0
        %1299 = vmatprep.subr.bf16.mxu0 0
        %1300 = vmatpush1.bf16.xpose.msra.mxu0 0
        %1301 = vmatprep.subr.bf16.mxu0 0
        %1302 = vmatpush1.bf16.xpose.msra.mxu0 0
        %1303 = vmatprep.subr.bf16.mxu0 0
        %1304 = vmatpush1.bf16.xpose.msra.mxu0 0
        %1305 = vmatprep.subr.bf16.mxu0 0
        %1306 = vmatpush1.bf16.xpose.msra.mxu0 0
        %1307 = vmatprep.subr.bf16.mxu0 0
        %1308 = vmatpush1.bf16.xpose.msra.mxu0 0
        %1309 = vmatprep.subr.bf16.mxu0 0
        %1310 = vmatpush1.bf16.xpose.msra.mxu0 0
        %1311 = vmatprep.subr.bf16.mxu0 0
        %1312 = vmatpush1.bf16.xpose.msra.mxu0 0
        %1313 = vmatprep.subr.bf16.mxu0 0
        %1314 = vmatpush1.bf16.xpose.msra.mxu0 0
        %1315 = vmatprep.subr.bf16.mxu0 0
        %1316 = vmatpush1.bf16.xpose.msra.mxu0 0
        %1317 = vmatprep.mubr.bf16.mxu0 0
        %1318 = vmatmul.mubr.bf16.gmra.mrb[0].mxu0 %v1280
        %v1319 = vpop.f32.mrb[0].mxu0
        %v1320 = vadd.f32 %v1208, %v1319
        %v1321 = vpop.f32.mrb[0].mxu0
        %v1322 = vpop.f32.mrb[0].mxu0
        %v1323 = vpop.f32.mrb[0].mxu0
        %1324 = vdwg.mxu0
        %v1325 = vsel %vm1278, %v1320, -inf
        %1326 = vmax.xlane.f32.xlu0 %v1325
        %v1327 = vpop.xlane.xlu0 %1326
        %v1328 = vsub.f32 %v1320, %v1327
        %v1329 = vmul.f32 %v1328, 1.442695
        %v1330 = vpow.pop %v1329
        %v1331 = vsel %vm1278, %v1330, 0.0
        %1332 = vadd.xlane.f32.xlu0 %v1331
        %v1333 = vpop.xlane.xlu0 %1332
        %v1334 = vrcp.pop %v1333
        %v1335 = vmul.f32 %v1330, %v1334
        %1336 = vst.msk [vmem:[%s641] sm:$0xff] %vm1278, %v1335
        %v1337 = vpack.c.bf16 %v1335, %v1335
        %v1338 = vld [vmem:[#allocation3] sm:$0xf]
        %v1340 = vsel %vm1278, %v1337, 0
        %vm1342 = vcmask 1043456
        %v1344 = vsel %vm1342, %v1338, 0
        %1346 = vmatprep.subr.bf16.mxu0 0
        %1347 = vmatpush1.bf16.msra.mxu0 %v1344
        %1348 = vmatprep.subr.bf16.mxu0 0
        %1349 = vmatpush1.bf16.msra.mxu0 0
        %1350 = vmatprep.subr.bf16.mxu0 0
        %1351 = vmatpush1.bf16.msra.mxu0 0
        %1352 = vmatprep.subr.bf16.mxu0 0
        %1353 = vmatpush1.bf16.msra.mxu0 0
        %1354 = vmatprep.subr.bf16.mxu0 0
        %1355 = vmatpush1.bf16.msra.mxu0 0
        %1356 = vmatprep.subr.bf16.mxu0 0
        %1357 = vmatpush1.bf16.msra.mxu0 0
        %1358 = vmatprep.subr.bf16.mxu0 0
        %1359 = vmatpush1.bf16.msra.mxu0 0
        %1360 = vmatprep.subr.bf16.mxu0 0
        %1361 = vmatpush1.bf16.msra.mxu0 0
        %1362 = vmatprep.subr.bf16.mxu0 0
        %1363 = vmatpush1.bf16.msra.mxu0 0
        %1364 = vmatprep.subr.bf16.mxu0 0
        %1365 = vmatpush1.bf16.msra.mxu0 0
        %1366 = vmatprep.subr.bf16.mxu0 0
        %1367 = vmatpush1.bf16.msra.mxu0 0
        %1368 = vmatprep.subr.bf16.mxu0 0
        %1369 = vmatpush1.bf16.msra.mxu0 0
        %1370 = vmatprep.subr.bf16.mxu0 0
        %1371 = vmatpush1.bf16.msra.mxu0 0
        %1372 = vmatprep.subr.bf16.mxu0 0
        %1373 = vmatpush1.bf16.msra.mxu0 0
        %1374 = vmatprep.subr.bf16.mxu0 0
        %1375 = vmatpush1.bf16.msra.mxu0 0
        %1376 = vmatprep.subr.bf16.mxu0 0
        %1377 = vmatpush1.bf16.msra.mxu0 0
        %1378 = vmatprep.mubr.bf16.mxu0 0
        %1379 = vmatmul.mubr.bf16.gmra.mrb[0].mxu0 %v1340
        %v1380 = vpop.f32.mrb[0].mxu0
        %v1381 = vadd.f32 0.0, %v1380
        %v1382 = vpop.f32.mrb[0].mxu0
        %v1383 = vpop.f32.mrb[0].mxu0
        %v1384 = vpop.f32.mrb[0].mxu0
        %1385 = vdwg.mxu0
        %1386 = vst.msk [vmem:[#allocation4] sm:$0xff] %vm1278, %v1381
        %s1387 = scalar_lea.vmem %s2, 16
        %v1388 = vld [vmem:[%s1387] sm:$0xf]
        %v1389 = vld [vmem:[%s1387 + $0x4] sm:$0xf]
        %v1390 = vld [vmem:[%s1387 + $0x8] sm:$0xf]
        %v1391 = vld [vmem:[%s1387 + $0xc] sm:$0xf]
        %s1392 = scalar_lea.vmem %s3, 1
        %v1393 = vld [vmem:[%s1392] sm:$0x1]
        %v1395 = vlaneseq
        %v1396 = vshrl.u32 %v1395, 7
        %v1397 = vsub.s32 0, %v1396
        %v1398 = vrot.slane %v1393, %v1397
        %v1404 = vunpack.c.l.b16 %v1388
        %v1405 = vunpack.c.l.b16 %v1389
        %v1406 = vunpack.c.l.b16 %v1390
        %v1407 = vunpack.c.l.b16 %v1391
        %v1408 = vpack.c.b16 %v1405, %v1404
        %v1409 = vpack.c.b16 %v1407, %v1406
        %1412 = vmatprep.subr.bf16.mxu0 0
        %1413 = vmatpush1.bf16.msra.mxu0 %v1408
        %1414 = vmatprep.subr.bf16.mxu0 0
        %1415 = vmatpush1.bf16.msra.mxu0 %v1409
        %1416 = vmatprep.subr.bf16.mxu0 0
        %1417 = vmatpush1.bf16.msra.mxu0 0
        %1418 = vmatprep.subr.bf16.mxu0 0
        %1419 = vmatpush1.bf16.msra.mxu0 0
        %1420 = vmatprep.subr.bf16.mxu0 0
        %1421 = vmatpush1.bf16.msra.mxu0 0
        %1422 = vmatprep.subr.bf16.mxu0 0
        %1423 = vmatpush1.bf16.msra.mxu0 0
        %1424 = vmatprep.subr.bf16.mxu0 0
        %1425 = vmatpush1.bf16.msra.mxu0 0
        %1426 = vmatprep.subr.bf16.mxu0 0
        %1427 = vmatpush1.bf16.msra.mxu0 0
        %1428 = vmatprep.subr.bf16.mxu0 0
        %1429 = vmatpush1.bf16.msra.mxu0 0
        %1430 = vmatprep.subr.bf16.mxu0 0
        %1431 = vmatpush1.bf16.msra.mxu0 0
        %1432 = vmatprep.subr.bf16.mxu0 0
        %1433 = vmatpush1.bf16.msra.mxu0 0
        %1434 = vmatprep.subr.bf16.mxu0 0
        %1435 = vmatpush1.bf16.msra.mxu0 0
        %1436 = vmatprep.subr.bf16.mxu0 0
        %1437 = vmatpush1.bf16.msra.mxu0 0
        %1438 = vmatprep.subr.bf16.mxu0 0
        %1439 = vmatpush1.bf16.msra.mxu0 0
        %1440 = vmatprep.subr.bf16.mxu0 0
        %1441 = vmatpush1.bf16.msra.mxu0 0
        %1442 = vmatprep.subr.bf16.mxu0 0
        %1443 = vmatpush1.bf16.msra.mxu0 0
        %1444 = vmatprep.mubr.bf16.mxu0 0
        %1445 = vmatmul.mubr.bf16.gmra.mrb[0].mxu0 %v1234
        %v1446 = vpop.f32.mrb[0].mxu0
        %v1447 = vadd.f32 %v1398, %v1446
        %v1448 = vpop.f32.mrb[0].mxu0
        %v1449 = vpop.f32.mrb[0].mxu0
        %v1450 = vpop.f32.mrb[0].mxu0
        %1451 = vdwg.mxu0
        %v1452 = vpack.c.bf16 %v1447, %v1447
        %s1453 = scalar_lea.vmem [#allocation2], 4
        %v1454 = vld [vmem:[%s1453] sm:$0xf]
        %v1456 = vsel %vm1278, %v1452, 0
        %v1459 = vsel %vm1278, %v1454, 0
        %1461 = vmatprep.subr.bf16.mxu0 0
        %1462 = vmatpush1.bf16.xpose.msra.mxu0 %v1459
        %1463 = vmatprep.subr.bf16.mxu0 0
        %1464 = vmatpush1.bf16.xpose.msra.mxu0 0
        %1465 = vmatprep.subr.bf16.mxu0 0
        %1466 = vmatpush1.bf16.xpose.msra.mxu0 0
        %1467 = vmatprep.subr.bf16.mxu0 0
        %1468 = vmatpush1.bf16.xpose.msra.mxu0 0
        %1469 = vmatprep.subr.bf16.mxu0 0
        %1470 = vmatpush1.bf16.xpose.msra.mxu0 0
        %1471 = vmatprep.subr.bf16.mxu0 0
        %1472 = vmatpush1.bf16.xpose.msra.mxu0 0
        %1473 = vmatprep.subr.bf16.mxu0 0
        %1474 = vmatpush1.bf16.xpose.msra.mxu0 0
        %1475 = vmatprep.subr.bf16.mxu0 0
        %1476 = vmatpush1.bf16.xpose.msra.mxu0 0
        %1477 = vmatprep.subr.bf16.mxu0 0
        %1478 = vmatpush1.bf16.xpose.msra.mxu0 0
        %1479 = vmatprep.subr.bf16.mxu0 0
        %1480 = vmatpush1.bf16.xpose.msra.mxu0 0
        %1481 = vmatprep.subr.bf16.mxu0 0
        %1482 = vmatpush1.bf16.xpose.msra.mxu0 0
        %1483 = vmatprep.subr.bf16.mxu0 0
        %1484 = vmatpush1.bf16.xpose.msra.mxu0 0
        %1485 = vmatprep.subr.bf16.mxu0 0
        %1486 = vmatpush1.bf16.xpose.msra.mxu0 0
        %1487 = vmatprep.subr.bf16.mxu0 0
        %1488 = vmatpush1.bf16.xpose.msra.mxu0 0
        %1489 = vmatprep.subr.bf16.mxu0 0
        %1490 = vmatpush1.bf16.xpose.msra.mxu0 0
        %1491 = vmatprep.subr.bf16.mxu0 0
        %1492 = vmatpush1.bf16.xpose.msra.mxu0 0
        %1493 = vmatprep.mubr.bf16.mxu0 0
        %1494 = vmatmul.mubr.bf16.gmra.mrb[0].mxu0 %v1456
        %v1495 = vpop.f32.mrb[0].mxu0
        %v1496 = vadd.f32 %v1208, %v1495
        %v1497 = vpop.f32.mrb[0].mxu0
        %v1498 = vpop.f32.mrb[0].mxu0
        %v1499 = vpop.f32.mrb[0].mxu0
        %1500 = vdwg.mxu0
        %v1501 = vsel %vm1278, %v1496, -inf
        %1502 = vmax.xlane.f32.xlu0 %v1501
        %v1503 = vpop.xlane.xlu0 %1502
        %v1504 = vsub.f32 %v1496, %v1503
        %v1505 = vmul.f32 %v1504, 1.442695
        %v1506 = vpow.pop %v1505
        %v1507 = vsel %vm1278, %v1506, 0.0
        %1508 = vadd.xlane.f32.xlu0 %v1507
        %v1509 = vpop.xlane.xlu0 %1508
        %v1510 = vrcp.pop %v1509
        %v1511 = vmul.f32 %v1506, %v1510
        %s1512 = scalar_lea.vmem %s641, 8 [#allocation7]
        %1513 = vst.msk [vmem:[%s1512] sm:$0xff] %vm1278, %v1511
        %v1514 = vpack.c.bf16 %v1511, %v1511
        %s1515 = scalar_lea.vmem [#allocation3], 4
        %v1516 = vld [vmem:[%s1515] sm:$0xf]
        %v1518 = vsel %vm1278, %v1514, 0
        %v1521 = vsel %vm1342, %v1516, 0
        %1523 = vmatprep.subr.bf16.mxu0 0
        %1524 = vmatpush1.bf16.msra.mxu0 %v1521
        %1525 = vmatprep.subr.bf16.mxu0 0
        %1526 = vmatpush1.bf16.msra.mxu0 0
        %1527 = vmatprep.subr.bf16.mxu0 0
        %1528 = vmatpush1.bf16.msra.mxu0 0
        %1529 = vmatprep.subr.bf16.mxu0 0
        %1530 = vmatpush1.bf16.msra.mxu0 0
        %1531 = vmatprep.subr.bf16.mxu0 0
        %1532 = vmatpush1.bf16.msra.mxu0 0
        %1533 = vmatprep.subr.bf16.mxu0 0
        %1534 = vmatpush1.bf16.msra.mxu0 0
        %1535 = vmatprep.subr.bf16.mxu0 0
        %1536 = vmatpush1.bf16.msra.mxu0 0
        %1537 = vmatprep.subr.bf16.mxu0 0
        %1538 = vmatpush1.bf16.msra.mxu0 0
        %1539 = vmatprep.subr.bf16.mxu0 0
        %1540 = vmatpush1.bf16.msra.mxu0 0
        %1541 = vmatprep.subr.bf16.mxu0 0
        %1542 = vmatpush1.bf16.msra.mxu0 0
        %1543 = vmatprep.subr.bf16.mxu0 0
        %1544 = vmatpush1.bf16.msra.mxu0 0
        %1545 = vmatprep.subr.bf16.mxu0 0
        %1546 = vmatpush1.bf16.msra.mxu0 0
        %1547 = vmatprep.subr.bf16.mxu0 0
        %1548 = vmatpush1.bf16.msra.mxu0 0
        %1549 = vmatprep.subr.bf16.mxu0 0
        %1550 = vmatpush1.bf16.msra.mxu0 0
        %1551 = vmatprep.subr.bf16.mxu0 0
        %1552 = vmatpush1.bf16.msra.mxu0 0
        %1553 = vmatprep.subr.bf16.mxu0 0
        %1554 = vmatpush1.bf16.msra.mxu0 0
        %1555 = vmatprep.mubr.bf16.mxu0 0
        %1556 = vmatmul.mubr.bf16.gmra.mrb[0].mxu0 %v1518
        %v1557 = vpop.f32.mrb[0].mxu0
        %v1558 = vadd.f32 0.0, %v1557
        %v1559 = vpop.f32.mrb[0].mxu0
        %v1560 = vpop.f32.mrb[0].mxu0
        %v1561 = vpop.f32.mrb[0].mxu0
        %1562 = vdwg.mxu0
        %1564 = vrot.lane.b32.xlu0 %v1558, 8
        %v1565 = vpop.permute.xlu0 %1564
        %vm1567 = vcmask 130112
        %1568 = vst.msk [vmem:[#allocation4] sm:$0xff] %vm1567, %v1565
        %s1569 = scalar_lea.vmem %s2, 32
        %v1570 = vld [vmem:[%s1569] sm:$0xf]
        %v1571 = vld [vmem:[%s1569 + $0x4] sm:$0xf]
        %v1572 = vld [vmem:[%s1569 + $0x8] sm:$0xf]
        %v1573 = vld [vmem:[%s1569 + $0xc] sm:$0xf]
        %s1574 = scalar_lea.vmem %s3, 2
        %v1575 = vld [vmem:[%s1574] sm:$0x1]
        %v1577 = vlaneseq
        %v1578 = vshrl.u32 %v1577, 7
        %v1579 = vsub.s32 0, %v1578
        %v1580 = vrot.slane %v1575, %v1579
        %v1586 = vunpack.c.l.b16 %v1570
        %v1587 = vunpack.c.l.b16 %v1571
        %v1588 = vunpack.c.l.b16 %v1572
        %v1589 = vunpack.c.l.b16 %v1573
        %v1590 = vpack.c.b16 %v1587, %v1586
        %v1591 = vpack.c.b16 %v1589, %v1588
        %1594 = vmatprep.subr.bf16.mxu0 0
        %1595 = vmatpush1.bf16.msra.mxu0 %v1590
        %1596 = vmatprep.subr.bf16.mxu0 0
        %1597 = vmatpush1.bf16.msra.mxu0 %v1591
        %1598 = vmatprep.subr.bf16.mxu0 0
        %1599 = vmatpush1.bf16.msra.mxu0 0
        %1600 = vmatprep.subr.bf16.mxu0 0
        %1601 = vmatpush1.bf16.msra.mxu0 0
        %1602 = vmatprep.subr.bf16.mxu0 0
        %1603 = vmatpush1.bf16.msra.mxu0 0
        %1604 = vmatprep.subr.bf16.mxu0 0
        %1605 = vmatpush1.bf16.msra.mxu0 0
        %1606 = vmatprep.subr.bf16.mxu0 0
        %1607 = vmatpush1.bf16.msra.mxu0 0
        %1608 = vmatprep.subr.bf16.mxu0 0
        %1609 = vmatpush1.bf16.msra.mxu0 0
        %1610 = vmatprep.subr.bf16.mxu0 0
        %1611 = vmatpush1.bf16.msra.mxu0 0
        %1612 = vmatprep.subr.bf16.mxu0 0
        %1613 = vmatpush1.bf16.msra.mxu0 0
        %1614 = vmatprep.subr.bf16.mxu0 0
        %1615 = vmatpush1.bf16.msra.mxu0 0
        %1616 = vmatprep.subr.bf16.mxu0 0
        %1617 = vmatpush1.bf16.msra.mxu0 0
        %1618 = vmatprep.subr.bf16.mxu0 0
        %1619 = vmatpush1.bf16.msra.mxu0 0
        %1620 = vmatprep.subr.bf16.mxu0 0
        %1621 = vmatpush1.bf16.msra.mxu0 0
        %1622 = vmatprep.subr.bf16.mxu0 0
        %1623 = vmatpush1.bf16.msra.mxu0 0
        %1624 = vmatprep.subr.bf16.mxu0 0
        %1625 = vmatpush1.bf16.msra.mxu0 0
        %1626 = vmatprep.mubr.bf16.mxu0 0
        %1627 = vmatmul.mubr.bf16.gmra.mrb[0].mxu0 %v1234
        %v1628 = vpop.f32.mrb[0].mxu0
        %v1629 = vadd.f32 %v1580, %v1628
        %v1630 = vpop.f32.mrb[0].mxu0
        %v1631 = vpop.f32.mrb[0].mxu0
        %v1632 = vpop.f32.mrb[0].mxu0
        %1633 = vdwg.mxu0
        %v1634 = vpack.c.bf16 %v1629, %v1629
        %s1635 = scalar_lea.vmem [#allocation2], 8
        %v1636 = vld [vmem:[%s1635] sm:$0xf]
        %v1638 = vsel %vm1278, %v1634, 0
        %v1641 = vsel %vm1278, %v1636, 0
        %1643 = vmatprep.subr.bf16.mxu0 0
        %1644 = vmatpush1.bf16.xpose.msra.mxu0 %v1641
        %1645 = vmatprep.subr.bf16.mxu0 0
        %1646 = vmatpush1.bf16.xpose.msra.mxu0 0
        %1647 = vmatprep.subr.bf16.mxu0 0
        %1648 = vmatpush1.bf16.xpose.msra.mxu0 0
        %1649 = vmatprep.subr.bf16.mxu0 0
        %1650 = vmatpush1.bf16.xpose.msra.mxu0 0
        %1651 = vmatprep.subr.bf16.mxu0 0
        %1652 = vmatpush1.bf16.xpose.msra.mxu0 0
        %1653 = vmatprep.subr.bf16.mxu0 0
        %1654 = vmatpush1.bf16.xpose.msra.mxu0 0
        %1655 = vmatprep.subr.bf16.mxu0 0
        %1656 = vmatpush1.bf16.xpose.msra.mxu0 0
        %1657 = vmatprep.subr.bf16.mxu0 0
        %1658 = vmatpush1.bf16.xpose.msra.mxu0 0
        %1659 = vmatprep.subr.bf16.mxu0 0
        %1660 = vmatpush1.bf16.xpose.msra.mxu0 0
        %1661 = vmatprep.subr.bf16.mxu0 0
        %1662 = vmatpush1.bf16.xpose.msra.mxu0 0
        %1663 = vmatprep.subr.bf16.mxu0 0
        %1664 = vmatpush1.bf16.xpose.msra.mxu0 0
        %1665 = vmatprep.subr.bf16.mxu0 0
        %1666 = vmatpush1.bf16.xpose.msra.mxu0 0
        %1667 = vmatprep.subr.bf16.mxu0 0
        %1668 = vmatpush1.bf16.xpose.msra.mxu0 0
        %1669 = vmatprep.subr.bf16.mxu0 0
        %1670 = vmatpush1.bf16.xpose.msra.mxu0 0
        %1671 = vmatprep.subr.bf16.mxu0 0
        %1672 = vmatpush1.bf16.xpose.msra.mxu0 0
        %1673 = vmatprep.subr.bf16.mxu0 0
        %1674 = vmatpush1.bf16.xpose.msra.mxu0 0
        %1675 = vmatprep.mubr.bf16.mxu0 0
        %1676 = vmatmul.mubr.bf16.gmra.mrb[0].mxu0 %v1638
        %v1677 = vpop.f32.mrb[0].mxu0
        %v1678 = vadd.f32 %v1208, %v1677
        %v1679 = vpop.f32.mrb[0].mxu0
        %v1680 = vpop.f32.mrb[0].mxu0
        %v1681 = vpop.f32.mrb[0].mxu0
        %1682 = vdwg.mxu0
        %v1683 = vsel %vm1278, %v1678, -inf
        %1684 = vmax.xlane.f32.xlu0 %v1683
        %v1685 = vpop.xlane.xlu0 %1684
        %v1686 = vsub.f32 %v1678, %v1685
        %v1687 = vmul.f32 %v1686, 1.442695
        %v1688 = vpow.pop %v1687
        %v1689 = vsel %vm1278, %v1688, 0.0
        %1690 = vadd.xlane.f32.xlu0 %v1689
        %v1691 = vpop.xlane.xlu0 %1690
        %v1692 = vrcp.pop %v1691
        %v1693 = vmul.f32 %v1688, %v1692
        %s1694 = scalar_lea.vmem %s641, 16 [#allocation7]
        %1695 = vst.msk [vmem:[%s1694] sm:$0xff] %vm1278, %v1693
        %v1696 = vpack.c.bf16 %v1693, %v1693
        %s1697 = scalar_lea.vmem [#allocation3], 8
        %v1698 = vld [vmem:[%s1697] sm:$0xf]
        %v1700 = vsel %vm1278, %v1696, 0
        %v1703 = vsel %vm1342, %v1698, 0
        %1705 = vmatprep.subr.bf16.mxu0 0
        %1706 = vmatpush1.bf16.msra.mxu0 %v1703
        %1707 = vmatprep.subr.bf16.mxu0 0
        %1708 = vmatpush1.bf16.msra.mxu0 0
        %1709 = vmatprep.subr.bf16.mxu0 0
        %1710 = vmatpush1.bf16.msra.mxu0 0
        %1711 = vmatprep.subr.bf16.mxu0 0
        %1712 = vmatpush1.bf16.msra.mxu0 0
        %1713 = vmatprep.subr.bf16.mxu0 0
        %1714 = vmatpush1.bf16.msra.mxu0 0
        %1715 = vmatprep.subr.bf16.mxu0 0
        %1716 = vmatpush1.bf16.msra.mxu0 0
        %1717 = vmatprep.subr.bf16.mxu0 0
        %1718 = vmatpush1.bf16.msra.mxu0 0
        %1719 = vmatprep.subr.bf16.mxu0 0
        %1720 = vmatpush1.bf16.msra.mxu0 0
        %1721 = vmatprep.subr.bf16.mxu0 0
        %1722 = vmatpush1.bf16.msra.mxu0 0
        %1723 = vmatprep.subr.bf16.mxu0 0
        %1724 = vmatpush1.bf16.msra.mxu0 0
        %1725 = vmatprep.subr.bf16.mxu0 0
        %1726 = vmatpush1.bf16.msra.mxu0 0
        %1727 = vmatprep.subr.bf16.mxu0 0
        %1728 = vmatpush1.bf16.msra.mxu0 0
        %1729 = vmatprep.subr.bf16.mxu0 0
        %1730 = vmatpush1.bf16.msra.mxu0 0
        %1731 = vmatprep.subr.bf16.mxu0 0
        %1732 = vmatpush1.bf16.msra.mxu0 0
        %1733 = vmatprep.subr.bf16.mxu0 0
        %1734 = vmatpush1.bf16.msra.mxu0 0
        %1735 = vmatprep.subr.bf16.mxu0 0
        %1736 = vmatpush1.bf16.msra.mxu0 0
        %1737 = vmatprep.mubr.bf16.mxu0 0
        %1738 = vmatmul.mubr.bf16.gmra.mrb[0].mxu0 %v1700
        %v1739 = vpop.f32.mrb[0].mxu0
        %v1740 = vadd.f32 0.0, %v1739
        %v1741 = vpop.f32.mrb[0].mxu0
        %v1742 = vpop.f32.mrb[0].mxu0
        %v1743 = vpop.f32.mrb[0].mxu0
        %1744 = vdwg.mxu0
        %1746 = vrot.lane.b32.xlu0 %v1740, 16
        %v1747 = vpop.permute.xlu0 %1746
        %vm1749 = vcmask 195712
        %1750 = vst.msk [vmem:[#allocation4] sm:$0xff] %vm1749, %v1747
        %s1751 = scalar_lea.vmem %s2, 48
        %v1752 = vld [vmem:[%s1751] sm:$0xf]
        %v1753 = vld [vmem:[%s1751 + $0x4] sm:$0xf]
        %v1754 = vld [vmem:[%s1751 + $0x8] sm:$0xf]
        %v1755 = vld [vmem:[%s1751 + $0xc] sm:$0xf]
        %s1756 = scalar_lea.vmem %s3, 3
        %v1757 = vld [vmem:[%s1756] sm:$0x1]
        %v1759 = vlaneseq
        %v1760 = vshrl.u32 %v1759, 7
        %v1761 = vsub.s32 0, %v1760
        %v1762 = vrot.slane %v1757, %v1761
        %v1768 = vunpack.c.l.b16 %v1752
        %v1769 = vunpack.c.l.b16 %v1753
        %v1770 = vunpack.c.l.b16 %v1754
        %v1771 = vunpack.c.l.b16 %v1755
        %v1772 = vpack.c.b16 %v1769, %v1768
        %v1773 = vpack.c.b16 %v1771, %v1770
        %1776 = vmatprep.subr.bf16.mxu0 0
        %1777 = vmatpush1.bf16.msra.mxu0 %v1772
        %1778 = vmatprep.subr.bf16.mxu0 0
        %1779 = vmatpush1.bf16.msra.mxu0 %v1773
        %1780 = vmatprep.subr.bf16.mxu0 0
        %1781 = vmatpush1.bf16.msra.mxu0 0
        %1782 = vmatprep.subr.bf16.mxu0 0
        %1783 = vmatpush1.bf16.msra.mxu0 0
        %1784 = vmatprep.subr.bf16.mxu0 0
        %1785 = vmatpush1.bf16.msra.mxu0 0
        %1786 = vmatprep.subr.bf16.mxu0 0
        %1787 = vmatpush1.bf16.msra.mxu0 0
        %1788 = vmatprep.subr.bf16.mxu0 0
        %1789 = vmatpush1.bf16.msra.mxu0 0
        %1790 = vmatprep.subr.bf16.mxu0 0
        %1791 = vmatpush1.bf16.msra.mxu0 0
        %1792 = vmatprep.subr.bf16.mxu0 0
        %1793 = vmatpush1.bf16.msra.mxu0 0
        %1794 = vmatprep.subr.bf16.mxu0 0
        %1795 = vmatpush1.bf16.msra.mxu0 0
        %1796 = vmatprep.subr.bf16.mxu0 0
        %1797 = vmatpush1.bf16.msra.mxu0 0
        %1798 = vmatprep.subr.bf16.mxu0 0
        %1799 = vmatpush1.bf16.msra.mxu0 0
        %1800 = vmatprep.subr.bf16.mxu0 0
        %1801 = vmatpush1.bf16.msra.mxu0 0
        %1802 = vmatprep.subr.bf16.mxu0 0
        %1803 = vmatpush1.bf16.msra.mxu0 0
        %1804 = vmatprep.subr.bf16.mxu0 0
        %1805 = vmatpush1.bf16.msra.mxu0 0
        %1806 = vmatprep.subr.bf16.mxu0 0
        %1807 = vmatpush1.bf16.msra.mxu0 0
        %1808 = vmatprep.mubr.bf16.mxu0 0
        %1809 = vmatmul.mubr.bf16.gmra.mrb[0].mxu0 %v1234
        %v1810 = vpop.f32.mrb[0].mxu0
        %v1811 = vadd.f32 %v1762, %v1810
        %v1812 = vpop.f32.mrb[0].mxu0
        %v1813 = vpop.f32.mrb[0].mxu0
        %v1814 = vpop.f32.mrb[0].mxu0
        %1815 = vdwg.mxu0
        %v1816 = vpack.c.bf16 %v1811, %v1811
        %s1817 = scalar_lea.vmem [#allocation2], 12
        %v1818 = vld [vmem:[%s1817] sm:$0xf]
        %v1820 = vsel %vm1278, %v1816, 0
        %v1823 = vsel %vm1278, %v1818, 0
        %1825 = vmatprep.subr.bf16.mxu0 0
        %1826 = vmatpush1.bf16.xpose.msra.mxu0 %v1823
        %1827 = vmatprep.subr.bf16.mxu0 0
        %1828 = vmatpush1.bf16.xpose.msra.mxu0 0
        %1829 = vmatprep.subr.bf16.mxu0 0
        %1830 = vmatpush1.bf16.xpose.msra.mxu0 0
        %1831 = vmatprep.subr.bf16.mxu0 0
        %1832 = vmatpush1.bf16.xpose.msra.mxu0 0
        %1833 = vmatprep.subr.bf16.mxu0 0
        %1834 = vmatpush1.bf16.xpose.msra.mxu0 0
        %1835 = vmatprep.subr.bf16.mxu0 0
        %1836 = vmatpush1.bf16.xpose.msra.mxu0 0
        %1837 = vmatprep.subr.bf16.mxu0 0
        %1838 = vmatpush1.bf16.xpose.msra.mxu0 0
        %1839 = vmatprep.subr.bf16.mxu0 0
        %1840 = vmatpush1.bf16.xpose.msra.mxu0 0
        %1841 = vmatprep.subr.bf16.mxu0 0
        %1842 = vmatpush1.bf16.xpose.msra.mxu0 0
        %1843 = vmatprep.subr.bf16.mxu0 0
        %1844 = vmatpush1.bf16.xpose.msra.mxu0 0
        %1845 = vmatprep.subr.bf16.mxu0 0
        %1846 = vmatpush1.bf16.xpose.msra.mxu0 0
        %1847 = vmatprep.subr.bf16.mxu0 0
        %1848 = vmatpush1.bf16.xpose.msra.mxu0 0
        %1849 = vmatprep.subr.bf16.mxu0 0
        %1850 = vmatpush1.bf16.xpose.msra.mxu0 0
        %1851 = vmatprep.subr.bf16.mxu0 0
        %1852 = vmatpush1.bf16.xpose.msra.mxu0 0
        %1853 = vmatprep.subr.bf16.mxu0 0
        %1854 = vmatpush1.bf16.xpose.msra.mxu0 0
        %1855 = vmatprep.subr.bf16.mxu0 0
        %1856 = vmatpush1.bf16.xpose.msra.mxu0 0
        %1857 = vmatprep.mubr.bf16.mxu0 0
        %1858 = vmatmul.mubr.bf16.gmra.mrb[0].mxu0 %v1820
        %v1859 = vpop.f32.mrb[0].mxu0
        %v1860 = vadd.f32 %v1208, %v1859
        %v1861 = vpop.f32.mrb[0].mxu0
        %v1862 = vpop.f32.mrb[0].mxu0
        %v1863 = vpop.f32.mrb[0].mxu0
        %1864 = vdwg.mxu0
        %v1865 = vsel %vm1278, %v1860, -inf
        %1866 = vmax.xlane.f32.xlu0 %v1865
        %v1867 = vpop.xlane.xlu0 %1866
        %v1868 = vsub.f32 %v1860, %v1867
        %v1869 = vmul.f32 %v1868, 1.442695
        %v1870 = vpow.pop %v1869
        %v1871 = vsel %vm1278, %v1870, 0.0
        %1872 = vadd.xlane.f32.xlu0 %v1871
        %v1873 = vpop.xlane.xlu0 %1872
        %v1874 = vrcp.pop %v1873
        %v1875 = vmul.f32 %v1870, %v1874
        %s1876 = scalar_lea.vmem %s641, 24 [#allocation7]
        %1877 = vst.msk [vmem:[%s1876] sm:$0xff] %vm1278, %v1875
        %v1878 = vpack.c.bf16 %v1875, %v1875
        %s1879 = scalar_lea.vmem [#allocation3], 12
        %v1880 = vld [vmem:[%s1879] sm:$0xf]
        %v1882 = vsel %vm1278, %v1878, 0
        %v1885 = vsel %vm1342, %v1880, 0
        %1887 = vmatprep.subr.bf16.mxu0 0
        %1888 = vmatpush1.bf16.msra.mxu0 %v1885
        %1889 = vmatprep.subr.bf16.mxu0 0
        %1890 = vmatpush1.bf16.msra.mxu0 0
        %1891 = vmatprep.subr.bf16.mxu0 0
        %1892 = vmatpush1.bf16.msra.mxu0 0
        %1893 = vmatprep.subr.bf16.mxu0 0
        %1894 = vmatpush1.bf16.msra.mxu0 0
        %1895 = vmatprep.subr.bf16.mxu0 0
        %1896 = vmatpush1.bf16.msra.mxu0 0
        %1897 = vmatprep.subr.bf16.mxu0 0
        %1898 = vmatpush1.bf16.msra.mxu0 0
        %1899 = vmatprep.subr.bf16.mxu0 0
        %1900 = vmatpush1.bf16.msra.mxu0 0
        %1901 = vmatprep.subr.bf16.mxu0 0
        %1902 = vmatpush1.bf16.msra.mxu0 0
        %1903 = vmatprep.subr.bf16.mxu0 0
        %1904 = vmatpush1.bf16.msra.mxu0 0
        %1905 = vmatprep.subr.bf16.mxu0 0
        %1906 = vmatpush1.bf16.msra.mxu0 0
        %1907 = vmatprep.subr.bf16.mxu0 0
        %1908 = vmatpush1.bf16.msra.mxu0 0
        %1909 = vmatprep.subr.bf16.mxu0 0
        %1910 = vmatpush1.bf16.msra.mxu0 0
        %1911 = vmatprep.subr.bf16.mxu0 0
        %1912 = vmatpush1.bf16.msra.mxu0 0
        %1913 = vmatprep.subr.bf16.mxu0 0
        %1914 = vmatpush1.bf16.msra.mxu0 0
        %1915 = vmatprep.subr.bf16.mxu0 0
        %1916 = vmatpush1.bf16.msra.mxu0 0
        %1917 = vmatprep.subr.bf16.mxu0 0
        %1918 = vmatpush1.bf16.msra.mxu0 0
        %1919 = vmatprep.mubr.bf16.mxu0 0
        %1920 = vmatmul.mubr.bf16.gmra.mrb[0].mxu0 %v1882
        %v1921 = vpop.f32.mrb[0].mxu0
        %v1922 = vadd.f32 0.0, %v1921
        %v1923 = vpop.f32.mrb[0].mxu0
        %v1924 = vpop.f32.mrb[0].mxu0
        %v1925 = vpop.f32.mrb[0].mxu0
        %1926 = vdwg.mxu0
        %1928 = vrot.lane.b32.xlu0 %v1922, 24
        %v1929 = vpop.permute.xlu0 %1928
        %vm1931 = vcmask 261312
        %1932 = vst.msk [vmem:[#allocation4] sm:$0xff] %vm1931, %v1929
        %v1933 = vld [vmem:[#allocation4] sm:$0xff]
        %v1934 = vpack.c.bf16 %v1933, %v1933
        %v1935 = vld [vmem:[%s8] sm:$0xf]
        %v1936 = vld [vmem:[%s8 + $0x4] sm:$0xf]
        %v1937 = vld [vmem:[%s8 + $0x8] sm:$0xf]
        %v1938 = vld [vmem:[%s8 + $0xc] sm:$0xf]
        %v1939 = vld [vmem:[%s9] sm:$0x1]
        %v1941 = vlaneseq
        %v1942 = vshrl.u32 %v1941, 7
        %v1943 = vsub.s32 0, %v1942
        %v1944 = vrot.slane %v1939, %v1943
        %v1950 = vunpack.c.l.b16 %v1935
        %v1951 = vunpack.c.l.b16 %v1936
        %v1952 = vunpack.c.l.b16 %v1937
        %v1953 = vunpack.c.l.b16 %v1938
        %v1954 = vpack.c.b16 %v1951, %v1950
        %v1955 = vpack.c.b16 %v1953, %v1952
        %v1959 = vsel %vm1232, %v1934, 0
        %1961 = vmatprep.subr.bf16.mxu0 0
        %1962 = vmatpush1.bf16.msra.mxu0 %v1954
        %1963 = vmatprep.subr.bf16.mxu0 0
        %1964 = vmatpush1.bf16.msra.mxu0 %v1955
        %1965 = vmatprep.subr.bf16.mxu0 0
        %1966 = vmatpush1.bf16.msra.mxu0 0
        %1967 = vmatprep.subr.bf16.mxu0 0
        %1968 = vmatpush1.bf16.msra.mxu0 0
        %1969 = vmatprep.subr.bf16.mxu0 0
        %1970 = vmatpush1.bf16.msra.mxu0 0
        %1971 = vmatprep.subr.bf16.mxu0 0
        %1972 = vmatpush1.bf16.msra.mxu0 0
        %1973 = vmatprep.subr.bf16.mxu0 0
        %1974 = vmatpush1.bf16.msra.mxu0 0
        %1975 = vmatprep.subr.bf16.mxu0 0
        %1976 = vmatpush1.bf16.msra.mxu0 0
        %1977 = vmatprep.subr.bf16.mxu0 0
        %1978 = vmatpush1.bf16.msra.mxu0 0
        %1979 = vmatprep.subr.bf16.mxu0 0
        %1980 = vmatpush1.bf16.msra.mxu0 0
        %1981 = vmatprep.subr.bf16.mxu0 0
        %1982 = vmatpush1.bf16.msra.mxu0 0
        %1983 = vmatprep.subr.bf16.mxu0 0
        %1984 = vmatpush1.bf16.msra.mxu0 0
        %1985 = vmatprep.subr.bf16.mxu0 0
        %1986 = vmatpush1.bf16.msra.mxu0 0
        %1987 = vmatprep.subr.bf16.mxu0 0
        %1988 = vmatpush1.bf16.msra.mxu0 0
        %1989 = vmatprep.subr.bf16.mxu0 0
        %1990 = vmatpush1.bf16.msra.mxu0 0
        %1991 = vmatprep.subr.bf16.mxu0 0
        %1992 = vmatpush1.bf16.msra.mxu0 0
        %1993 = vmatprep.mubr.bf16.mxu0 0
        %1994 = vmatmul.mubr.bf16.gmra.mrb[0].mxu0 %v1959
        %v1995 = vpop.f32.mrb[0].mxu0
        %v1996 = vadd.f32 %v1944, %v1995
        %v1997 = vpop.f32.mrb[0].mxu0
        %v1998 = vpop.f32.mrb[0].mxu0
        %v1999 = vpop.f32.mrb[0].mxu0
        %2000 = vdwg.mxu0
        %v2001 = vadd.f32 %v1996, %v1205
        %v2002 = vsel %vm1232, %v2001, 0.0
        %2003 = vadd.xlane.f32.xlu0 %v2002
        %v2004 = vpop.xlane.xlu0 %2003
        %v2005 = vrcp.pop 32.0
        %v2006 = vmul.f32 %v2004, %v2005
        %v2007 = vsub.f32 %v2001, %v2006
        %v2008 = vmul.f32 %v2007, %v2007
        %v2009 = vsel %vm1232, %v2008, 0.0
        %2010 = vadd.xlane.f32.xlu0 %v2009
        %v2011 = vpop.xlane.xlu0 %2010
        %v2012 = vmul.f32 %v2011, %v2005
        %v2013 = vadd.f32 %v2012, 1e-12
        %v2014 = vrsqrt.pop %v2013
        %v2015 = vmul.f32 %v2007, %v2014
        %v2016 = vld [vmem:[%s10] sm:$0x1]
        %v2018 = vlaneseq
        %v2019 = vshrl.u32 %v2018, 7
        %v2020 = vsub.s32 0, %v2019
        %v2021 = vrot.slane %v2016, %v2020
        %v2023 = vmul.f32 %v2015, %v2021
        %v2024 = vld [vmem:[%s11] sm:$0x1]
        %v2026 = vlaneseq
        %v2027 = vshrl.u32 %v2026, 7
        %v2028 = vsub.s32 0, %v2027
        %v2029 = vrot.slane %v2024, %v2028
        %v2031 = vadd.f32 %v2023, %v2029
        %v2032 = vpack.c.bf16 %v2031, %v2031
        %v2033 = vld [vmem:[%s12] sm:$0xf]
        %v2034 = vld [vmem:[%s12 + $0x4] sm:$0xf]
        %v2035 = vld [vmem:[%s12 + $0x8] sm:$0xf]
        %v2036 = vld [vmem:[%s12 + $0xc] sm:$0xf]
        %v2037 = vld [vmem:[%s13] sm:$0x1]
        %v2039 = vlaneseq
        %v2040 = vshrl.u32 %v2039, 7
        %v2041 = vsub.s32 0, %v2040
        %v2042 = vrot.slane %v2037, %v2041
        %v2048 = vunpack.c.l.b16 %v2033
        %v2049 = vunpack.c.l.b16 %v2034
        %v2050 = vunpack.c.l.b16 %v2035
        %v2051 = vunpack.c.l.b16 %v2036
        %v2052 = vpack.c.b16 %v2049, %v2048
        %v2053 = vpack.c.b16 %v2051, %v2050
        %v2057 = vsel %vm1232, %v2032, 0
        %2059 = vmatprep.subr.bf16.mxu0 0
        %2060 = vmatpush1.bf16.msra.mxu0 %v2052
        %2061 = vmatprep.subr.bf16.mxu0 0
        %2062 = vmatpush1.bf16.msra.mxu0 %v2053
        %2063 = vmatprep.subr.bf16.mxu0 0
        %2064 = vmatpush1.bf16.msra.mxu0 0
        %2065 = vmatprep.subr.bf16.mxu0 0
        %2066 = vmatpush1.bf16.msra.mxu0 0
        %2067 = vmatprep.subr.bf16.mxu0 0
        %2068 = vmatpush1.bf16.msra.mxu0 0
        %2069 = vmatprep.subr.bf16.mxu0 0
        %2070 = vmatpush1.bf16.msra.mxu0 0
        %2071 = vmatprep.subr.bf16.mxu0 0
        %2072 = vmatpush1.bf16.msra.mxu0 0
        %2073 = vmatprep.subr.bf16.mxu0 0
        %2074 = vmatpush1.bf16.msra.mxu0 0
        %2075 = vmatprep.subr.bf16.mxu0 0
        %2076 = vmatpush1.bf16.msra.mxu0 0
        %2077 = vmatprep.subr.bf16.mxu0 0
        %2078 = vmatpush1.bf16.msra.mxu0 0
        %2079 = vmatprep.subr.bf16.mxu0 0
        %2080 = vmatpush1.bf16.msra.mxu0 0
        %2081 = vmatprep.subr.bf16.mxu0 0
        %2082 = vmatpush1.bf16.msra.mxu0 0
        %2083 = vmatprep.subr.bf16.mxu0 0
        %2084 = vmatpush1.bf16.msra.mxu0 0
        %2085 = vmatprep.subr.bf16.mxu0 0
        %2086 = vmatpush1.bf16.msra.mxu0 0
        %2087 = vmatprep.subr.bf16.mxu0 0
        %2088 = vmatpush1.bf16.msra.mxu0 0
        %2089 = vmatprep.subr.bf16.mxu0 0
        %2090 = vmatpush1.bf16.msra.mxu0 0
        %2091 = vmatprep.mubr.bf16.mxu0 0
        %2092 = vmatmul.mubr.bf16.gmra.mrb[0].mxu0 %v2057
        %v2093 = vpop.f32.mrb[0].mxu0
        %v2094 = vadd.f32 %v2042, %v2093
        %v2095 = vpop.f32.mrb[0].mxu0
        %v2096 = vpop.f32.mrb[0].mxu0
        %v2097 = vpop.f32.mrb[0].mxu0
        %2098 = vdwg.mxu0
        %v2099 = vmax.f32 %v2094, 0.0
        %v2100 = vpack.c.bf16 %v2099, %v2099
        %v2101 = vld [vmem:[%s14] sm:$0xf]
        %v2102 = vld [vmem:[%s14 + $0x4] sm:$0xf]
        %v2103 = vld [vmem:[%s14 + $0x8] sm:$0xf]
        %v2104 = vld [vmem:[%s14 + $0xc] sm:$0xf]
        %v2105 = vld [vmem:[%s14 + $0x10] sm:$0xf]
        %v2106 = vld [vmem:[%s14 + $0x14] sm:$0xf]
        %v2107 = vld [vmem:[%s14 + $0x18] sm:$0xf]
        %v2108 = vld [vmem:[%s14 + $0x1c] sm:$0xf]
        %v2109 = vld [vmem:[%s15] sm:$0x1]
        %v2111 = vlaneseq
        %v2112 = vshrl.u32 %v2111, 7
        %v2113 = vsub.s32 0, %v2112
        %v2114 = vrot.slane %v2109, %v2113
        %v2124 = vunpack.c.l.b16 %v2101
        %v2125 = vunpack.c.l.b16 %v2102
        %v2126 = vunpack.c.l.b16 %v2103
        %v2127 = vunpack.c.l.b16 %v2104
        %v2128 = vunpack.c.l.b16 %v2105
        %v2129 = vunpack.c.l.b16 %v2106
        %v2130 = vunpack.c.l.b16 %v2107
        %v2131 = vunpack.c.l.b16 %v2108
        %v2132 = vpack.c.b16 %v2125, %v2124
        %v2133 = vpack.c.b16 %v2127, %v2126
        %v2134 = vpack.c.b16 %v2129, %v2128
        %v2135 = vpack.c.b16 %v2131, %v2130
        %vm2140 = vcmask 523264
        %v2142 = vsel %vm2140, %v2100, 0
        %2144 = vmatprep.subr.bf16.mxu0 0
        %2145 = vmatpush1.bf16.msra.mxu0 %v2132
        %2146 = vmatprep.subr.bf16.mxu0 0
        %2147 = vmatpush1.bf16.msra.mxu0 %v2133
        %2148 = vmatprep.subr.bf16.mxu0 0
        %2149 = vmatpush1.bf16.msra.mxu0 %v2134
        %2150 = vmatprep.subr.bf16.mxu0 0
        %2151 = vmatpush1.bf16.msra.mxu0 %v2135
        %2152 = vmatprep.subr.bf16.mxu0 0
        %2153 = vmatpush1.bf16.msra.mxu0 0
        %2154 = vmatprep.subr.bf16.mxu0 0
        %2155 = vmatpush1.bf16.msra.mxu0 0
        %2156 = vmatprep.subr.bf16.mxu0 0
        %2157 = vmatpush1.bf16.msra.mxu0 0
        %2158 = vmatprep.subr.bf16.mxu0 0
        %2159 = vmatpush1.bf16.msra.mxu0 0
        %2160 = vmatprep.subr.bf16.mxu0 0
        %2161 = vmatpush1.bf16.msra.mxu0 0
        %2162 = vmatprep.subr.bf16.mxu0 0
        %2163 = vmatpush1.bf16.msra.mxu0 0
        %2164 = vmatprep.subr.bf16.mxu0 0
        %2165 = vmatpush1.bf16.msra.mxu0 0
        %2166 = vmatprep.subr.bf16.mxu0 0
        %2167 = vmatpush1.bf16.msra.mxu0 0
        %2168 = vmatprep.subr.bf16.mxu0 0
        %2169 = vmatpush1.bf16.msra.mxu0 0
        %2170 = vmatprep.subr.bf16.mxu0 0
        %2171 = vmatpush1.bf16.msra.mxu0 0
        %2172 = vmatprep.subr.bf16.mxu0 0
        %2173 = vmatpush1.bf16.msra.mxu0 0
        %2174 = vmatprep.subr.bf16.mxu0 0
        %2175 = vmatpush1.bf16.msra.mxu0 0
        %2176 = vmatprep.mubr.bf16.mxu0 0
        %2177 = vmatmul.mubr.bf16.gmra.mrb[0].mxu0 %v2142
        %v2178 = vpop.f32.mrb[0].mxu0
        %v2179 = vadd.f32 %v2114, %v2178
        %v2180 = vpop.f32.mrb[0].mxu0
        %v2181 = vpop.f32.mrb[0].mxu0
        %v2182 = vpop.f32.mrb[0].mxu0
        %2183 = vdwg.mxu0
        %v2184 = vadd.f32 %v2179, %v2031
        %v2185 = vsel %vm1232, %v2184, 0.0
        %2186 = vadd.xlane.f32.xlu0 %v2185
        %v2187 = vpop.xlane.xlu0 %2186
        %v2188 = vmul.f32 %v2187, %v2005
        %v2189 = vsub.f32 %v2184, %v2188
        %v2190 = vmul.f32 %v2189, %v2189
        %v2191 = vsel %vm1232, %v2190, 0.0
        %2192 = vadd.xlane.f32.xlu0 %v2191
        %v2193 = vpop.xlane.xlu0 %2192
        %v2194 = vmul.f32 %v2193, %v2005
        %v2195 = vadd.f32 %v2194, 1e-12
        %v2196 = vrsqrt.pop %v2195
        %v2197 = vmul.f32 %v2189, %v2196
        %v2198 = vld [vmem:[%s16] sm:$0x1]
        %v2200 = vlaneseq
        %v2201 = vshrl.u32 %v2200, 7
        %v2202 = vsub.s32 0, %v2201
        %v2203 = vrot.slane %v2198, %v2202
        %v2205 = vmul.f32 %v2197, %v2203
        %v2206 = vld [vmem:[%s17] sm:$0x1]
        %v2208 = vlaneseq
        %v2209 = vshrl.u32 %v2208, 7
        %v2210 = vsub.s32 0, %v2209
        %v2211 = vrot.slane %v2206, %v2210
        %v2213 = vadd.f32 %v2205, %v2211
        %2214 = vst.msk [vmem:[%s634] sm:$0xff] %vm1232, %v2213
        %s2215 = sand.u32 %s449, 1
        %s2216 = scalar_lea.sflag [#allocation6], %s2215
        %s2217 = sand.u32 %s449, 1
        %s2218 = smul.addr %s2217, 8
        %s2219 = scalar_lea.vmem [#allocation5], %s2218
        %s2220 = sand.u32 %s477, 1
        %s2221 = scalar_lea.sflag [#allocation8], %s2220
        %s2222 = sand.u32 %s477, 1
        %s2223 = smul.addr %s2222, 32
        %s2224 = scalar_lea.vmem [#allocation7], %s2223
        // Predicated region
        $region97: #{tpu_custom_call.1} parent=91 // pred_check
          %p2225 = pneg %p459
        $region98: #{tpu_custom_call.1} parent=91 // pred_check_branch
          %2227 = sbr.rel (%p2225) target = $region100
        $region99: #{tpu_custom_call.1} parent=91 // pred_region
          %s2229 = ssub.s32 128, 128
          %2230 = vsyncadd %s2216, %s2229
          %s2231 = sadd.s32 %s42, %s41
          %s2232 = smul.addr %s2231, 128
          %s2233 = scalar_lea.hbm %s18, %s2232
          %s2235 = sshll.u32 %s2219, 4
          %s2236 = int_to_ptr.vmem [resolvable:$true] %s2235
          %2238 = dma.vmem_to_hbm [thread:$0]  %s2236, 128, %s2233, %s2216
        $region100: #{tpu_custom_call.1} parent=91 // pred_fallthru
          _
        // Predicated region
        $region101: #{tpu_custom_call.1} parent=91 // pred_check
          %p2239 = pneg %p487
        $region102: #{tpu_custom_call.1} parent=91 // pred_check_branch
          %2241 = sbr.rel (%p2239) target = $region104
        $region103: #{tpu_custom_call.1} parent=91 // pred_region
          %s2243 = ssub.s32 512, 512
          %2244 = vsyncadd %s2221, %s2243
          %s2245 = smul.addr %s41, 4
          %s2246 = sadd.s32 %s42, %s2245
          %s2247 = smul.addr %s2246, 128
          %s2248 = scalar_lea.hbm %s19, %s2247
          %s2249 = sshll.u32 %s2224, 4
          %s2250 = int_to_ptr.vmem [resolvable:$true] %s2249
          %2255 = dma.vmem_to_hbm [thread:$0]  %s2250, 512, %s2248, %s2221, 128, 128, 8
        $region104: #{tpu_custom_call.1} parent=91 // pred_fallthru
          _
      $region92: #{tpu_custom_call.1} parent=5 // pred_fallthru
        _
      %p2256 = scmp.le.s32.totalorder 2, %s32
      // Predicated region
      $region105: #{tpu_custom_call.1} parent=5 // pred_check
        %p2257 = pneg %p2256
      $region106: #{tpu_custom_call.1} parent=5 // pred_check_branch
        %2259 = sbr.rel (%p2257) target = $region108
      $region107: #{tpu_custom_call.1} parent=5 // pred_region
        %s2260 = ssub.s32 %s32, 2
        // Predicated region
        $region109: #{tpu_custom_call.1} parent=107 // pred_check
          %p2261 = pneg %p465
        $region110: #{tpu_custom_call.1} parent=107 // pred_check_branch
          %2263 = sbr.rel (%p2261) target = $region112
        $region111: #{tpu_custom_call.1} parent=107 // pred_region
          %s2264 = sand.u32 %s450, 1
          %s2265 = scalar_lea.sflag [#allocation6], %s2264
          %s2266 = sand.u32 %s450, 1
          %s2267 = smul.addr %s2266, 8
          %s2268 = scalar_lea.vmem [#allocation5], %s2267
          %2269 = dma.done %s2265, 128
        $region112: #{tpu_custom_call.1} parent=107 // pred_fallthru
          _
        // Predicated region
        $region113: #{tpu_custom_call.1} parent=107 // pred_check
          %p2270 = pneg %p493
        $region114: #{tpu_custom_call.1} parent=107 // pred_check_branch
          %2272 = sbr.rel (%p2270) target = $region116
        $region115: #{tpu_custom_call.1} parent=107 // pred_region
          %s2273 = sand.u32 %s478, 1
          %s2274 = scalar_lea.sflag [#allocation8], %s2273
          %s2275 = sand.u32 %s478, 1
          %s2276 = smul.addr %s2275, 32
          %s2277 = scalar_lea.vmem [#allocation7], %s2276
          %2278 = dma.done %s2274, 512
        $region116: #{tpu_custom_call.1} parent=107 // pred_fallthru
          _
      $region108: #{tpu_custom_call.1} parent=5 // pred_fallthru
        _
    $region6: #{tpu_custom_call.1} parent=1 // loop_footer
      %s36 = sadd.s32 1, %s32
    $region7: #{tpu_custom_call.1} parent=1 // loop_footer_branch
      %31 = sbr.rel target = $region3
    $region8: #{tpu_custom_call.1} parent=1 // loop_exit
      _
    %2279 = vsyncpa [#allocation6], 1
    %s2280 = scalar_lea.sflag [#allocation6], 1
    %2281 = vsyncpa %s2280, 1
    %2282 = vsyncpa [#allocation8], 1
    %s2283 = scalar_lea.sflag [#allocation8], 1
    %2284 = vsyncpa %s2283, 1

</llo_original>
